<compile_context>
chip_gen: v7x
topology: tpu7x:2x2x1
jax: 0.10.0
libtpu: 0.0.40
codegen_flags: <defaults>
</compile_context>

<pallas_src>
import math
import numpy as np
import jax
import jax.numpy as jnp
from jax import lax
from jax.experimental import pallas as pl
from jax.experimental.pallas import tpu as pltpu

# ----------------------------- configuration ---------------------------------
HIDDEN = 32          # gnn_hidden_dim
NHEAD = 4            # gnn_num_head
HEAD_DIM = 8         # gnn_head_dim
QK = NHEAD * HEAD_DIM              # 32
ITERS = 2            # gnn_iters
LENGTH_DIM = 10
MAX_WORD_LEN = 5
KEY_DIM = HIDDEN + LENGTH_DIM      # 42, edge2node key dim (no-edge variant)
B = 2
L = 8                              # sequence length
MAX_N = 8                          # fixed (compile-time) graph-row padding, >= 1+max words
LN_EPS = 1e-5
NEG_INF = -1e30
LEAKY_SLOPE = 0.01                 # F.leaky_relu default

# ------------------------ packed weight-slab layout ---------------------------
# one f32 [SLAB_ROWS, 128] slab; all offsets static & 8-aligned.
R_IT = 64                          # rows reserved per iteration's MHA block
R_BIAS = 48                        # bias row offset inside an iteration block
R_LN = 56                          # mha layernorm gamma/beta row offset
R_CELL = ITERS * R_IT              # 128: Nodes_Cell weight [96, 128]
R_BC = R_CELL + 3 * HIDDEN         # 224: Nodes_Cell bias row
R_MISC = R_BC + 8                  # 232: norm gamma | norm beta | att_w | att_b
SLAB_ROWS = R_MISC + 8             # 240
# per-iteration block columns: wq 0:32 | [wk|wv] 32:96 | wo 96:128

# ------------------------ packed data-slab layout ------------------------------
DROWS = max(L, MAX_N)              # 8
DCOL_NODES = 0                     # cols  0:32  nodes0           (rows 0:L)
DCOL_INVMB = HIDDEN                # cols 32:40  (1 - mask_b), row0 zeroed (rows 0:MAX_N)
DCOL_MASKT = HIDDEN + L            # cols 40:48  mask_f^T (1.0 = masked)   (rows 0:L)
DCOL_WLEN = HIDDEN + L + MAX_N     # cols 48:58  word-length embeddings    (rows 0:MAX_N)
DCOLS = HIDDEN + L + MAX_N + LENGTH_DIM     # 58


# ============================== fused Pallas kernel ===========================

def _layernorm(x, gamma, beta):
    mu = jnp.mean(x, axis=-1, keepdims=True)
    var = jnp.mean(jnp.square(x - mu), axis=-1, keepdims=True)
    return (x - mu) * lax.rsqrt(var + LN_EPS) * gamma + beta


def graph_fused_kernel(data_ref, w_ref, out_ref, ctx_ref, cat_ref):
    """Full Graph forward (both GNN iterations + layer pooling), both batch
    elements, one grid step.  data_ref: [B, DROWS, DCOLS] packed per-batch graph
    data; w_ref: [SLAB_ROWS, 128] packed weights; ctx_ref/cat_ref: VMEM scratch."""
    scale = 1.0 / math.sqrt(HEAD_DIM)

    # shared parameters (static slab slices)
    ng = w_ref[R_MISC:R_MISC + 1, 0:HIDDEN]
    nbeta = w_ref[R_MISC:R_MISC + 1, HIDDEN:2 * HIDDEN]
    aw = w_ref[R_MISC:R_MISC + 1, 2 * HIDDEN:3 * HIDDEN]
    ab = w_ref[R_MISC:R_MISC + 1, 3 * HIDDEN:3 * HIDDEN + 1]

    row0 = lax.broadcasted_iota(jnp.int32, (L, HIDDEN), 0) == 0

    for b in range(B):                               # static unroll (B=2)
        nodes0 = data_ref[b, 0:L, DCOL_NODES:DCOL_NODES + HIDDEN]            # [L, H]
        inv_mb = data_ref[b, 0:MAX_N, DCOL_INVMB:DCOL_INVMB + L]             # [N, L]
        maskT = data_ref[b, 0:L, DCOL_MASKT:DCOL_MASKT + MAX_N]              # [L, N]
        wlen = data_ref[b, 0:MAX_N, DCOL_WLEN:DCOL_WLEN + LENGTH_DIM]        # [N, 10]
        masked = maskT > 0.5

        def edge2node(nodes, it):
            base = it * R_IT
            # nodes_begin: row 0 already zeroed via inv_mb preprocessing
            nb = jnp.dot(inv_mb, nodes, preferred_element_type=jnp.float32)  # [N, H]
            q = (jnp.dot(nodes, w_ref[base:base + HIDDEN, 0:QK],
                         preferred_element_type=jnp.float32)
                 + w_ref[base + R_BIAS:base + R_BIAS + 1, 0:QK])             # [L, QK]
            # fused K|V projection of value = [nodes_begin | words_length]
            kv = (jnp.dot(nb, w_ref[base:base + HIDDEN, QK:3 * QK],
                          preferred_element_type=jnp.float32)
                  + jnp.dot(wlen, w_ref[base + HIDDEN:base + KEY_DIM, QK:3 * QK],
                            preferred_element_type=jnp.float32)
                  + w_ref[base + R_BIAS:base + R_BIAS + 1, QK:3 * QK])       # [N, 2QK]
            k = kv[:, 0:QK]
            v = kv[:, QK:2 * QK]

            # per-head online attention; contexts assembled in VMEM scratch so the
            # output projection is ONE [L,QK]@[QK,H] matmul.
            for h in range(NHEAD):
                sl = slice(h * HEAD_DIM, (h + 1) * HEAD_DIM)
                s = lax.dot_general(q[:, sl], k[:, sl], (((1,), (1,)), ((), ())),
                                    preferred_element_type=jnp.float32) * scale
                s = jnp.where(masked, NEG_INF, s)         # hard mask (matches reference)
                m = jnp.max(s, axis=-1, keepdims=True)
                e = jnp.exp(s - m)
                alpha = e * pl.reciprocal(jnp.sum(e, axis=-1, keepdims=True), approx=True)
                ctx_ref[:, sl] = jnp.dot(alpha, v[:, sl],
                                         preferred_element_type=jnp.float32)
            out = (jnp.dot(ctx_ref[...], w_ref[base:base + QK, 3 * QK:4 * QK],
                           preferred_element_type=jnp.float32)
                   + w_ref[base + R_BIAS:base + R_BIAS + 1, 3 * QK:4 * QK])
            out = jnp.where(out >= 0.0, out, LEAKY_SLOPE * out)              # leaky_relu
            g = w_ref[base + R_LN:base + R_LN + 1, 0:HIDDEN]
            be = w_ref[base + R_LN:base + R_LN + 1, HIDDEN:2 * HIDDEN]
            return _layernorm(out + nodes, g, be)

        def nodes_cell(h, h2, x):
            # lane-concat [h | h2 | x] in scratch -> ONE fused 4-gate matmul
            cat_ref[:, 0:HIDDEN] = h
            cat_ref[:, HIDDEN:2 * HIDDEN] = h2
            cat_ref[:, 2 * HIDDEN:3 * HIDDEN] = x
            pre = (jnp.dot(cat_ref[...], w_ref[R_CELL:R_CELL + 3 * HIDDEN, :],
                           preferred_element_type=jnp.float32)
                   + w_ref[R_BC:R_BC + 1, :])                                # [L, 4H]
            ix = jax.nn.sigmoid(pre[:, 0 * HIDDEN:1 * HIDDEN])
            i2 = jax.nn.sigmoid(pre[:, 1 * HIDDEN:2 * HIDDEN])
            fg = jax.nn.sigmoid(pre[:, 2 * HIDDEN:3 * HIDDEN])
            cx = jnp.tanh(pre[:, 3 * HIDDEN:4 * HIDDEN])
            m = jnp.maximum(jnp.maximum(ix, i2), fg)
            e0 = jnp.exp(ix - m)
            e1 = jnp.exp(i2 - m)
            e2 = jnp.exp(fg - m)
            inv = pl.reciprocal(e0 + e1 + e2, approx=True)
            return (e0 * cx + e1 * h2 + e2 * x) * inv

        layers = [nodes0]          # nodes_f_cat kept as live values (no concat)
        layer_sum = nodes0         # running sum for LayerNorm(sum(nodes_f_cat))
        nodes_f = nodes0
        for it in range(ITERS):
            att = edge2node(nodes_f, it)
            # nodes_f_r = [0, nodes_f[:-1]] : XLU roll + zero row 0 (no MXU push)
            shifted = jnp.where(row0, 0.0, pltpu.roll(nodes_f, shift=1, axis=0))
            cell = nodes_cell(nodes_f, shifted, att)
            layers.append(cell)
            layer_sum = layer_sum + cell
            nodes_f = _layernorm(layer_sum, ng, nbeta)

        # layer-attention pooling: sigmoid(Linear(H->1)) -> softmax over layers -> sum
        acts = [jax.nn.sigmoid(jnp.sum(lyr * aw, axis=-1, keepdims=True) + ab)
                for lyr in layers]
        m = acts[0]
        for a in acts[1:]:
            m = jnp.maximum(m, a)
        es = [jnp.exp(a - m) for a in acts]
        den = es[0]
        for e in es[1:]:
            den = den + e
        pooled = es[0] * layers[0]
        for e, lyr in zip(es[1:], layers[1:]):
            pooled = pooled + e * lyr
        out_ref[b, :, :] = pooled * pl.reciprocal(den, approx=True)


# ============================ host-side packing ================================

def _pack_weights(params):
    """Pack every weight/bias into one [SLAB_ROWS, 128] f32 slab (done once)."""
    slab = jnp.zeros((SLAB_ROWS, 128), jnp.float32)
    for it in range(ITERS):
        p = params["edge2node_f"][it]
        base = it * R_IT
        slab = slab.at[base:base + HIDDEN, 0:QK].set(p["wq"])
        slab = slab.at[base:base + KEY_DIM, QK:2 * QK].set(p["wk"])
        slab = slab.at[base:base + KEY_DIM, 2 * QK:3 * QK].set(p["wv"])
        slab = slab.at[base:base + QK, 3 * QK:4 * QK].set(p["wo"])
        slab = slab.at[base + R_BIAS, 0:QK].set(p["bq"][0])
        slab = slab.at[base + R_BIAS, QK:2 * QK].set(p["bk"][0])
        slab = slab.at[base + R_BIAS, 2 * QK:3 * QK].set(p["bv"][0])
        slab = slab.at[base + R_BIAS, 3 * QK:4 * QK].set(p["bo"][0])
        slab = slab.at[base + R_LN, 0:HIDDEN].set(p["gamma"][0])
        slab = slab.at[base + R_LN, HIDDEN:2 * HIDDEN].set(p["beta"][0])
    cell = params["node_rnn_f"]
    wall = jnp.concatenate([cell["wix"], cell["wi2"], cell["wf"], cell["wcx"]], axis=1)
    bc = jnp.concatenate([cell["bix"], cell["bi2"], cell["bf"], cell["bcx"]], axis=1)
    slab = slab.at[R_CELL:R_CELL + 3 * HIDDEN, :].set(wall)
    slab = slab.at[R_BC, :].set(bc[0])
    slab = slab.at[R_MISC, 0:HIDDEN].set(params["norm_gamma"][0])
    slab = slab.at[R_MISC, HIDDEN:2 * HIDDEN].set(params["norm_beta"][0])
    slab = slab.at[R_MISC, 2 * HIDDEN:3 * HIDDEN].set(params["att_w"][0])
    slab = slab.at[R_MISC, 3 * HIDDEN].set(params["att_b"][0, 0])
    return slab


def _pack_data(nodes0, inv_mb, maskT, words_length):
    data = jnp.zeros((B, DROWS, DCOLS), jnp.float32)
    data = data.at[:, 0:L, DCOL_NODES:DCOL_NODES + HIDDEN].set(nodes0)
    data = data.at[:, 0:MAX_N, DCOL_INVMB:DCOL_INVMB + L].set(inv_mb)
    data = data.at[:, 0:L, DCOL_MASKT:DCOL_MASKT + MAX_N].set(maskT)
    data = data.at[:, 0:MAX_N, DCOL_WLEN:DCOL_WLEN + LENGTH_DIM].set(words_length)
    return data


# ============================ pallas_call wrapper =============================

@jax.jit
def _fused_forward(data, slab):
    return pl.pallas_call(
        graph_fused_kernel,
        out_shape=jax.ShapeDtypeStruct((B, L, HIDDEN), jnp.float32),
        grid=(1,),                                        # single step: no serial batch grid
        in_specs=[
            pl.BlockSpec((B, DROWS, DCOLS), lambda i: (0, 0, 0)),      # packed graph data
            pl.BlockSpec((SLAB_ROWS, 128), lambda i: (0, 0)),          # packed weight slab
        ],
        out_specs=pl.BlockSpec((B, L, HIDDEN), lambda i: (0, 0, 0)),
        scratch_shapes=[pltpu.VMEM((L, QK), jnp.float32),              # head-context assembly
                        pltpu.VMEM((L, 3 * HIDDEN), jnp.float32)],     # cell [h|h2|x] assembly
        compiler_params=pltpu.CompilerParams(
            dimension_semantics=("arbitrary",)),
    )(data, slab)


# ============================== graph glue ====================================

def construct_graph_no_edge(word_list, length_emb_table, batch_size, seq_len):
    """Host-side graph construction (data-dependent Python loops) — glue only.
    Pads to the fixed MAX_N so traced shapes never change (no recompiles)."""
    length_emb_table = np.asarray(length_emb_table)
    words_mask_f = np.ones((batch_size, MAX_N, seq_len), np.float32)
    words_mask_b = np.ones((batch_size, MAX_N, seq_len), np.float32)
    words_length = np.zeros((batch_size, MAX_N, LENGTH_DIM), np.float32)
    edges_mask = np.zeros((batch_size, MAX_N), np.float32)
    for sen in range(batch_size):
        rows_f = [np.zeros(seq_len, np.float32)]
        rows_b = [np.zeros(seq_len, np.float32)]
        rows_len = [np.zeros(LENGTH_DIM, np.float32)]
        for w in range(seq_len):
            if w < len(word_list[sen]) and word_list[sen][w]:
                for _word, word_len in zip(word_list[sen][w][0], word_list[sen][w][1]):
                    idx = min(word_len, MAX_WORD_LEN) - 1
                    rows_len.append(length_emb_table[idx].astype(np.float32))
                    rf = np.ones(seq_len, np.float32); rf[w + word_len - 1] = 0.0
                    rb = np.ones(seq_len, np.float32); rb[w] = 0.0
                    rows_f.append(rf)
                    rows_b.append(rb)
        n = len(rows_f)
        assert n <= MAX_N, "increase MAX_N (fixed padding keeps shapes static)"
        edges_mask[sen, :n] = 1.0
        words_mask_f[sen, :n] = np.stack(rows_f)
        words_mask_b[sen, :n] = np.stack(rows_b)
        words_length[sen, :n] = np.stack(rows_len)
    return (jnp.asarray(words_mask_f), jnp.asarray(words_mask_b),
            jnp.asarray(words_length), jnp.asarray(edges_mask))


def graph_forward(params, word_list, inputs_f, inputs_b, mask):
    """Forward pass of Graph (use_edge=False, use_global=False, unidirectional)."""
    del inputs_b  # only used when bidirectional=True
    mask = mask.astype(jnp.float32)
    words_mask_f, words_mask_b, words_length, _edges_mask = construct_graph_no_edge(
        word_list, params["length_emb"], B, L)

    nodes0 = inputs_f * mask[:, :, None]                     # dropout(rate=0) == identity
    # (1 - words_mask_b) with row 0 zeroed (folds nodes_begin row-0 masking)
    inv_mb = (1.0 - words_mask_b).at[:, 0, :].set(0.0)
    # pre-transposed float mask (1.0 = masked) applied with a hard where in-kernel
    maskT = jnp.transpose(words_mask_f, (0, 2, 1))

    data = _pack_data(nodes0, inv_mb, maskT, words_length)
    slab = _pack_weights(params)
    nodes = _fused_forward(data, slab)
    return nodes, None, None     # edges / edge_embs are None when use_edge=False


# ============================ pure-JAX reference ==============================

def ref_mha(nodes, mask_b, mask_f, wlen, p):
    nb = jnp.einsum("bnl,blh->bnh", 1.0 - mask_b, nodes)
    nb = nb.at[:, 0, :].set(0.0)
    value = jnp.concatenate([nb, wlen], -1)
    q = jnp.einsum("blh,hq->blq", nodes, p["wq"]) + p["bq"][0]
    k = jnp.einsum("bnk,kq->bnq", value, p["wk"]) + p["bk"][0]
    v = jnp.einsum("bnk,kq->bnq", value, p["wv"]) + p["bv"][0]
    N = value.shape[1]
    qh = q.reshape(B, L, NHEAD, HEAD_DIM)
    kh = k.reshape(B, N, NHEAD, HEAD_DIM)
    vh = v.reshape(B, N, NHEAD, HEAD_DIM)
    scores = jnp.einsum("blhd,bnhd->bhln", qh, kh) / math.sqrt(HEAD_DIM)
    mt = (jnp.transpose(mask_f, (0, 2, 1)) > 0.5)[:, None, :, :]
    scores = jnp.where(mt, NEG_INF, scores)
    alpha = jax.nn.softmax(scores, axis=-1)
    att = jnp.einsum("bhln,bnhd->blhd", alpha, vh).reshape(B, L, QK)
    out = jnp.einsum("blq,qh->blh", att, p["wo"]) + p["bo"][0]
    out = jnp.where(out >= 0, out, LEAKY_SLOPE * out)
    res = out + nodes
    mu = res.mean(-1, keepdims=True)
    var = ((res - mu) ** 2).mean(-1, keepdims=True)
    return (res - mu) / jnp.sqrt(var + LN_EPS) * p["gamma"][0] + p["beta"][0]


def ref_nodes_cell(h, h2, x, p):
    cat_all = jnp.concatenate([h, h2, x], -1)
    ix = jax.nn.sigmoid(cat_all @ p["wix"] + p["bix"][0])
    i2 = jax.nn.sigmoid(cat_all @ p["wi2"] + p["bi2"][0])
    f = jax.nn.sigmoid(cat_all @ p["wf"] + p["bf"][0])
    cx = jnp.tanh(cat_all @ p["wcx"] + p["bcx"][0])
    stacked = jnp.stack([ix, i2, f], axis=1)
    alpha = jax.nn.softmax(stacked, axis=1)
    return alpha[:, 0] * cx + alpha[:, 1] * h2 + alpha[:, 2] * x


def ref_sum_norm(cat, gamma, beta):
    s = jnp.sum(cat, axis=1)
    mu = s.mean(-1, keepdims=True)
    var = ((s - mu) ** 2).mean(-1, keepdims=True)
    return (s - mu) / jnp.sqrt(var + LN_EPS) * gamma[0] + beta[0]


def ref_forward(params, word_list, inputs_f, mask):
    words_mask_f, words_mask_b, words_length, _ = construct_graph_no_edge(
        word_list, params["length_emb"], B, L)
    nodes_f = inputs_f * mask[:, :, None]
    nodes_f_cat = nodes_f[:, None]
    for i in range(ITERS):
        att = ref_mha(nodes_f, words_mask_b, words_mask_f, words_length,
                      params["edge2node_f"][i])
        nodes_f_r = jnp.concatenate(
            [jnp.zeros((B, 1, HIDDEN)), nodes_f[:, :L - 1]], axis=1)
        cell = ref_nodes_cell(nodes_f, nodes_f_r, att, params["node_rnn_f"])
        nodes_f_cat = jnp.concatenate([nodes_f_cat, cell[:, None]], axis=1)
        nodes_f = ref_sum_norm(nodes_f_cat, params["norm_gamma"], params["norm_beta"])
    logits = jnp.einsum("btlh,h->btl", nodes_f_cat, params["att_w"][0]) + params["att_b"][0, 0]
    a = jax.nn.sigmoid(logits)
    alpha = jax.nn.softmax(a, axis=1)
    return jnp.sum(alpha[..., None] * nodes_f_cat, axis=1)


# ============================ parameter init ==================================

def init_params(key):
    def nrm(k, shape, scale=0.1):
        return (scale * jax.random.normal(k, shape)).astype(jnp.float32)

    keys = iter(jax.random.split(key, 64))
    params = {
        "length_emb": nrm(next(keys), (MAX_WORD_LEN, LENGTH_DIM), 0.5),
        "norm_gamma": jnp.ones((1, HIDDEN), jnp.float32),
        "norm_beta": jnp.zeros((1, HIDDEN), jnp.float32),
        "att_w": nrm(next(keys), (1, HIDDEN)),
        "att_b": jnp.zeros((1, 1), jnp.float32),
        "edge2node_f": [],
        "node_rnn_f": {},
    }
    for _ in range(ITERS):
        params["edge2node_f"].append({
            "wq": nrm(next(keys), (HIDDEN, QK)),
            "bq": nrm(next(keys), (1, QK), 0.01),
            "wk": nrm(next(keys), (KEY_DIM, QK)),
            "bk": nrm(next(keys), (1, QK), 0.01),
            "wv": nrm(next(keys), (KEY_DIM, QK)),
            "bv": nrm(next(keys), (1, QK), 0.01),
            "wo": nrm(next(keys), (QK, HIDDEN)),
            "bo": nrm(next(keys), (1, HIDDEN), 0.01),
            "gamma": jnp.ones((1, HIDDEN), jnp.float32),
            "beta": jnp.zeros((1, HIDDEN), jnp.float32),
        })
    params["node_rnn_f"] = {
        "wix": nrm(next(keys), (3 * HIDDEN, HIDDEN)),
        "bix": nrm(next(keys), (1, HIDDEN), 0.01),
        "wi2": nrm(next(keys), (3 * HIDDEN, HIDDEN)),
        "bi2": nrm(next(keys), (1, HIDDEN), 0.01),
        "wf": nrm(next(keys), (3 * HIDDEN, HIDDEN)),
        "bf": nrm(next(keys), (1, HIDDEN), 0.01),
        "wcx": nrm(next(keys), (3 * HIDDEN, HIDDEN)),
        "bcx": nrm(next(keys), (1, HIDDEN), 0.01),
    }
    return params


# =================================== main =====================================

if __name__ == "__main__":
    key = jax.random.PRNGKey(0)
    kp, kf, kb = jax.random.split(key, 3)
    params = init_params(kp)

    inputs_f = jax.random.normal(kf, (B, L, HIDDEN), jnp.float32)
    inputs_b = jax.random.normal(kb, (B, L, HIDDEN), jnp.float32)   # unused (unidirectional)
    mask = jnp.asarray([[1.0] * L, [1.0] * (L - 1) + [0.0]], jnp.float32)

    # word_list[sen][pos] = ([word_ids], [word_lens]) or [] — ids unused (use_edge=False)
    word_list = [
        [([10], [2]), [], ([11], [3]), [], [], ([12], [2]), [], []],
        [[], ([13], [2]), [], [], ([14], [4]), [], [], []],
    ]

    nodes, edges, edge_embs = graph_forward(params, word_list, inputs_f, inputs_b, mask)
    nodes = jax.block_until_ready(nodes)

    nodes_ref = jax.block_until_ready(ref_forward(params, word_list, inputs_f, mask))
    np.testing.assert_allclose(np.asarray(nodes), np.asarray(nodes_ref),
                               rtol=2e-2, atol=2e-2)
    assert nodes.shape == (B, L, HIDDEN)
    assert edges is None and edge_embs is None

    print("KERNEL_OK")
</pallas_src>

<mosaic_0001>
module attributes {stable_mosaic.version = 11 : i64} {
  func.func @graph_fused_kernel(%arg0: i32, %arg1: memref<2x8x58xf32, #tpu.memory_space<vmem>>, %arg2: memref<240x128xf32, #tpu.memory_space<vmem>>, %arg3: memref<2x8x32xf32, #tpu.memory_space<vmem>>, %arg4: memref<8x32xf32, #tpu.memory_space<vmem>>, %arg5: memref<8x96xf32, #tpu.memory_space<vmem>>) attributes {dimension_semantics = [#tpu.dimension_semantics<arbitrary>], iteration_bounds = array<i64: 1>, scalar_prefetch = 0 : i64, scratch_operands = 2 : i64, tpu.core_type = #tpu.core_type<tc>, window_params = [{pipeline_mode = #tpu.pipeline_mode<synchronous>, transform_indices = @transform_0, window_bounds = array<i64: 2, 8, 58>}, {pipeline_mode = #tpu.pipeline_mode<synchronous>, transform_indices = @transform_1, window_bounds = array<i64: 240, 128>}, {pipeline_mode = #tpu.pipeline_mode<synchronous>, transform_indices = @transform_2, window_bounds = array<i64: 2, 8, 32>}]} {
    %c232 = arith.constant 232 : index
    %c0 = arith.constant 0 : index
    %0 = vector.load %arg2[%c232, %c0] : memref<240x128xf32, #tpu.memory_space<vmem>>, vector<1x32xf32>
    %c232_0 = arith.constant 232 : index
    %c32 = arith.constant 32 : index
    %1 = vector.load %arg2[%c232_0, %c32] : memref<240x128xf32, #tpu.memory_space<vmem>>, vector<1x32xf32>
    %c232_1 = arith.constant 232 : index
    %c64 = arith.constant 64 : index
    %2 = vector.load %arg2[%c232_1, %c64] : memref<240x128xf32, #tpu.memory_space<vmem>>, vector<1x32xf32>
    %c232_2 = arith.constant 232 : index
    %c96 = arith.constant 96 : index
    %3 = vector.load %arg2[%c232_2, %c96] : memref<240x128xf32, #tpu.memory_space<vmem>>, vector<1x1xf32>
    %4 = tpu.iota {dimensions = array<i32: 0>} : vector<8x32xi32>
    %c0_i32 = arith.constant 0 : i32
    %5 = vector.broadcast %c0_i32 : i32 to vector<8x32xi32>
    %6 = arith.cmpi eq, %4, %5 : vector<8x32xi32>
    %c0_3 = arith.constant 0 : index
    %c0_4 = arith.constant 0 : index
    %c0_5 = arith.constant 0 : index
    %7 = vector.load %arg1[%c0_3, %c0_4, %c0_5] : memref<2x8x58xf32, #tpu.memory_space<vmem>>, vector<1x8x32xf32>
    %8 = vector.shape_cast %7 : vector<1x8x32xf32> to vector<8x32xf32>
    %c0_6 = arith.constant 0 : index
    %c0_7 = arith.constant 0 : index
    %c32_8 = arith.constant 32 : index
    %9 = vector.load %arg1[%c0_6, %c0_7, %c32_8] : memref<2x8x58xf32, #tpu.memory_space<vmem>>, vector<1x8x8xf32>
    %10 = vector.shape_cast %9 : vector<1x8x8xf32> to vector<8x8xf32>
    %c0_9 = arith.constant 0 : index
    %c0_10 = arith.constant 0 : index
    %c40 = arith.constant 40 : index
    %11 = vector.load %arg1[%c0_9, %c0_10, %c40] : memref<2x8x58xf32, #tpu.memory_space<vmem>>, vector<1x8x8xf32>
    %12 = vector.shape_cast %11 : vector<1x8x8xf32> to vector<8x8xf32>
    %c0_11 = arith.constant 0 : index
    %c0_12 = arith.constant 0 : index
    %c48 = arith.constant 48 : index
    %13 = vector.load %arg1[%c0_11, %c0_12, %c48] : memref<2x8x58xf32, #tpu.memory_space<vmem>>, vector<1x8x10xf32>
    %14 = vector.shape_cast %13 : vector<1x8x10xf32> to vector<8x10xf32>
    %cst = arith.constant 5.000000e-01 : f32
    %15 = vector.broadcast %cst : f32 to vector<8x8xf32>
    %16 = arith.cmpf ogt, %12, %15 : vector<8x8xf32>
    %cst_13 = arith.constant dense<0.000000e+00> : vector<8x32xf32>
    %17 = tpu.matmul %10, %8, %cst_13 {dimension_numbers = #tpu.dot_dimension_numbers<[1], [0], [0], [1], [0, 0, 1, 1], [], []>} : vector<8x8xf32>, vector<8x32xf32>, vector<8x32xf32> -> vector<8x32xf32>
    %c0_14 = arith.constant 0 : index
    %c0_15 = arith.constant 0 : index
    %18 = vector.load %arg2[%c0_14, %c0_15] : memref<240x128xf32, #tpu.memory_space<vmem>>, vector<32x32xf32>
    %cst_16 = arith.constant dense<0.000000e+00> : vector<8x32xf32>
    %19 = tpu.matmul %8, %18, %cst_16 {dimension_numbers = #tpu.dot_dimension_numbers<[1], [0], [0], [1], [0, 0, 1, 1], [], []>} : vector<8x32xf32>, vector<32x32xf32>, vector<8x32xf32> -> vector<8x32xf32>
    %c48_17 = arith.constant 48 : index
    %c0_18 = arith.constant 0 : index
    %20 = vector.load %arg2[%c48_17, %c0_18] : memref<240x128xf32, #tpu.memory_space<vmem>>, vector<1x32xf32>
    %21 = vector.broadcast %20 : vector<1x32xf32> to vector<8x32xf32>
    %22 = arith.addf %19, %21 : vector<8x32xf32>
    %c0_19 = arith.constant 0 : index
    %c32_20 = arith.constant 32 : index
    %23 = vector.load %arg2[%c0_19, %c32_20] : memref<240x128xf32, #tpu.memory_space<vmem>>, vector<32x64xf32>
    %cst_21 = arith.constant dense<0.000000e+00> : vector<8x64xf32>
    %24 = tpu.matmul %17, %23, %cst_21 {dimension_numbers = #tpu.dot_dimension_numbers<[1], [0], [0], [1], [0, 0, 1, 1], [], []>} : vector<8x32xf32>, vector<32x64xf32>, vector<8x64xf32> -> vector<8x64xf32>
    %c32_22 = arith.constant 32 : index
    %c32_23 = arith.constant 32 : index
    %25 = vector.load %arg2[%c32_22, %c32_23] : memref<240x128xf32, #tpu.memory_space<vmem>>, vector<10x64xf32>
    %cst_24 = arith.constant dense<0.000000e+00> : vector<8x64xf32>
    %26 = tpu.matmul %14, %25, %cst_24 {dimension_numbers = #tpu.dot_dimension_numbers<[1], [0], [0], [1], [0, 0, 1, 1], [], []>} : vector<8x10xf32>, vector<10x64xf32>, vector<8x64xf32> -> vector<8x64xf32>
    %27 = arith.addf %24, %26 : vector<8x64xf32>
    %c48_25 = arith.constant 48 : index
    %c32_26 = arith.constant 32 : index
    %28 = vector.load %arg2[%c48_25, %c32_26] : memref<240x128xf32, #tpu.memory_space<vmem>>, vector<1x64xf32>
    %29 = vector.broadcast %28 : vector<1x64xf32> to vector<8x64xf32>
    %30 = arith.addf %27, %29 : vector<8x64xf32>
    %31 = vector.extract_strided_slice %30 {offsets = [0, 0], sizes = [8, 32], strides = [1, 1]} : vector<8x64xf32> to vector<8x32xf32>
    %32 = vector.extract_strided_slice %30 {offsets = [0, 32], sizes = [8, 32], strides = [1, 1]} : vector<8x64xf32> to vector<8x32xf32>
    %33 = vector.extract_strided_slice %22 {offsets = [0, 0], sizes = [8, 8], strides = [1, 1]} : vector<8x32xf32> to vector<8x8xf32>
    %34 = vector.extract_strided_slice %31 {offsets = [0, 0], sizes = [8, 8], strides = [1, 1]} : vector<8x32xf32> to vector<8x8xf32>
    %cst_27 = arith.constant dense<0.000000e+00> : vector<8x8xf32>
    %35 = tpu.matmul %33, %34, %cst_27 {dimension_numbers = #tpu.dot_dimension_numbers<[1], [1], [0], [0], [0, 0, 1, 0], [], []>} : vector<8x8xf32>, vector<8x8xf32>, vector<8x8xf32> -> vector<8x8xf32>
    %cst_28 = arith.constant 0.353553385 : f32
    %36 = vector.broadcast %cst_28 : f32 to vector<8x8xf32>
    %37 = arith.mulf %35, %36 : vector<8x8xf32>
    %cst_29 = arith.constant -1.000000e+30 : f32
    %38 = vector.broadcast %cst_29 : f32 to vector<8x8xf32>
    %39 = arith.select %16, %38, %37 : vector<8x8xi1>, vector<8x8xf32>
    %cst_30 = arith.constant dense<0xFF800000> : vector<8xf32>
    %40 = vector.multi_reduction <maximumf>, %39, %cst_30 [1] : vector<8x8xf32> to vector<8xf32>
    %41 = vector.shape_cast %40 : vector<8xf32> to vector<8x1xf32>
    %42 = vector.broadcast %41 : vector<8x1xf32> to vector<8x8xf32>
    %43 = arith.subf %39, %42 : vector<8x8xf32>
    %44 = math.exp %43 : vector<8x8xf32>
    %cst_31 = arith.constant dense<0.000000e+00> : vector<8xf32>
    %45 = vector.multi_reduction <add>, %44, %cst_31 [1] : vector<8x8xf32> to vector<8xf32>
    %46 = vector.shape_cast %45 : vector<8xf32> to vector<8x1xf32>
    %47 = tpu.reciprocal %46 {approx = true} : vector<8x1xf32> -> vector<8x1xf32>
    %48 = vector.broadcast %47 : vector<8x1xf32> to vector<8x8xf32>
    %49 = arith.mulf %44, %48 : vector<8x8xf32>
    %50 = vector.extract_strided_slice %32 {offsets = [0, 0], sizes = [8, 8], strides = [1, 1]} : vector<8x32xf32> to vector<8x8xf32>
    %cst_32 = arith.constant dense<0.000000e+00> : vector<8x8xf32>
    %51 = tpu.matmul %49, %50, %cst_32 {dimension_numbers = #tpu.dot_dimension_numbers<[1], [0], [0], [1], [0, 0, 1, 1], [], []>} : vector<8x8xf32>, vector<8x8xf32>, vector<8x8xf32> -> vector<8x8xf32>
    %c0_33 = arith.constant 0 : index
    %c0_34 = arith.constant 0 : index
    %52 = vector.load %arg4[%c0_33, %c0_34] : memref<8x32xf32, #tpu.memory_space<vmem>>, vector<8x8xf32>
    tpu.vector_store %arg4[%c0_33, %c0_34], %51 {strides = array<i32>} : memref<8x32xf32, #tpu.memory_space<vmem>>, vector<8x8xf32>,
    %53 = vector.extract_strided_slice %22 {offsets = [0, 8], sizes = [8, 8], strides = [1, 1]} : vector<8x32xf32> to vector<8x8xf32>
    %54 = vector.extract_strided_slice %31 {offsets = [0, 8], sizes = [8, 8], strides = [1, 1]} : vector<8x32xf32> to vector<8x8xf32>
    %cst_35 = arith.constant dense<0.000000e+00> : vector<8x8xf32>
    %55 = tpu.matmul %53, %54, %cst_35 {dimension_numbers = #tpu.dot_dimension_numbers<[1], [1], [0], [0], [0, 0, 1, 0], [], []>} : vector<8x8xf32>, vector<8x8xf32>, vector<8x8xf32> -> vector<8x8xf32>
    %cst_36 = arith.constant 0.353553385 : f32
    %56 = vector.broadcast %cst_36 : f32 to vector<8x8xf32>
    %57 = arith.mulf %55, %56 : vector<8x8xf32>
    %cst_37 = arith.constant -1.000000e+30 : f32
    %58 = vector.broadcast %cst_37 : f32 to vector<8x8xf32>
    %59 = arith.select %16, %58, %57 : vector<8x8xi1>, vector<8x8xf32>
    %cst_38 = arith.constant dense<0xFF800000> : vector<8xf32>
    %60 = vector.multi_reduction <maximumf>, %59, %cst_38 [1] : vector<8x8xf32> to vector<8xf32>
    %61 = vector.shape_cast %60 : vector<8xf32> to vector<8x1xf32>
    %62 = vector.broadcast %61 : vector<8x1xf32> to vector<8x8xf32>
    %63 = arith.subf %59, %62 : vector<8x8xf32>
    %64 = math.exp %63 : vector<8x8xf32>
    %cst_39 = arith.constant dense<0.000000e+00> : vector<8xf32>
    %65 = vector.multi_reduction <add>, %64, %cst_39 [1] : vector<8x8xf32> to vector<8xf32>
    %66 = vector.shape_cast %65 : vector<8xf32> to vector<8x1xf32>
    %67 = tpu.reciprocal %66 {approx = true} : vector<8x1xf32> -> vector<8x1xf32>
    %68 = vector.broadcast %67 : vector<8x1xf32> to vector<8x8xf32>
    %69 = arith.mulf %64, %68 : vector<8x8xf32>
    %70 = vector.extract_strided_slice %32 {offsets = [0, 8], sizes = [8, 8], strides = [1, 1]} : vector<8x32xf32> to vector<8x8xf32>
    %cst_40 = arith.constant dense<0.000000e+00> : vector<8x8xf32>
    %71 = tpu.matmul %69, %70, %cst_40 {dimension_numbers = #tpu.dot_dimension_numbers<[1], [0], [0], [1], [0, 0, 1, 1], [], []>} : vector<8x8xf32>, vector<8x8xf32>, vector<8x8xf32> -> vector<8x8xf32>
    %c0_41 = arith.constant 0 : index
    %c8 = arith.constant 8 : index
    %72 = vector.load %arg4[%c0_41, %c8] : memref<8x32xf32, #tpu.memory_space<vmem>>, vector<8x8xf32>
    tpu.vector_store %arg4[%c0_41, %c8], %71 {strides = array<i32>} : memref<8x32xf32, #tpu.memory_space<vmem>>, vector<8x8xf32>,
    %73 = vector.extract_strided_slice %22 {offsets = [0, 16], sizes = [8, 8], strides = [1, 1]} : vector<8x32xf32> to vector<8x8xf32>
    %74 = vector.extract_strided_slice %31 {offsets = [0, 16], sizes = [8, 8], strides = [1, 1]} : vector<8x32xf32> to vector<8x8xf32>
    %cst_42 = arith.constant dense<0.000000e+00> : vector<8x8xf32>
    %75 = tpu.matmul %73, %74, %cst_42 {dimension_numbers = #tpu.dot_dimension_numbers<[1], [1], [0], [0], [0, 0, 1, 0], [], []>} : vector<8x8xf32>, vector<8x8xf32>, vector<8x8xf32> -> vector<8x8xf32>
    %cst_43 = arith.constant 0.353553385 : f32
    %76 = vector.broadcast %cst_43 : f32 to vector<8x8xf32>
    %77 = arith.mulf %75, %76 : vector<8x8xf32>
    %cst_44 = arith.constant -1.000000e+30 : f32
    %78 = vector.broadcast %cst_44 : f32 to vector<8x8xf32>
    %79 = arith.select %16, %78, %77 : vector<8x8xi1>, vector<8x8xf32>
    %cst_45 = arith.constant dense<0xFF800000> : vector<8xf32>
    %80 = vector.multi_reduction <maximumf>, %79, %cst_45 [1] : vector<8x8xf32> to vector<8xf32>
    %81 = vector.shape_cast %80 : vector<8xf32> to vector<8x1xf32>
    %82 = vector.broadcast %81 : vector<8x1xf32> to vector<8x8xf32>
    %83 = arith.subf %79, %82 : vector<8x8xf32>
    %84 = math.exp %83 : vector<8x8xf32>
    %cst_46 = arith.constant dense<0.000000e+00> : vector<8xf32>
    %85 = vector.multi_reduction <add>, %84, %cst_46 [1] : vector<8x8xf32> to vector<8xf32>
    %86 = vector.shape_cast %85 : vector<8xf32> to vector<8x1xf32>
    %87 = tpu.reciprocal %86 {approx = true} : vector<8x1xf32> -> vector<8x1xf32>
    %88 = vector.broadcast %87 : vector<8x1xf32> to vector<8x8xf32>
    %89 = arith.mulf %84, %88 : vector<8x8xf32>
    %90 = vector.extract_strided_slice %32 {offsets = [0, 16], sizes = [8, 8], strides = [1, 1]} : vector<8x32xf32> to vector<8x8xf32>
    %cst_47 = arith.constant dense<0.000000e+00> : vector<8x8xf32>
    %91 = tpu.matmul %89, %90, %cst_47 {dimension_numbers = #tpu.dot_dimension_numbers<[1], [0], [0], [1], [0, 0, 1, 1], [], []>} : vector<8x8xf32>, vector<8x8xf32>, vector<8x8xf32> -> vector<8x8xf32>
    %c0_48 = arith.constant 0 : index
    %c16 = arith.constant 16 : index
    %92 = vector.load %arg4[%c0_48, %c16] : memref<8x32xf32, #tpu.memory_space<vmem>>, vector<8x8xf32>
    tpu.vector_store %arg4[%c0_48, %c16], %91 {strides = array<i32>} : memref<8x32xf32, #tpu.memory_space<vmem>>, vector<8x8xf32>,
    %93 = vector.extract_strided_slice %22 {offsets = [0, 24], sizes = [8, 8], strides = [1, 1]} : vector<8x32xf32> to vector<8x8xf32>
    %94 = vector.extract_strided_slice %31 {offsets = [0, 24], sizes = [8, 8], strides = [1, 1]} : vector<8x32xf32> to vector<8x8xf32>
    %cst_49 = arith.constant dense<0.000000e+00> : vector<8x8xf32>
    %95 = tpu.matmul %93, %94, %cst_49 {dimension_numbers = #tpu.dot_dimension_numbers<[1], [1], [0], [0], [0, 0, 1, 0], [], []>} : vector<8x8xf32>, vector<8x8xf32>, vector<8x8xf32> -> vector<8x8xf32>
    %cst_50 = arith.constant 0.353553385 : f32
    %96 = vector.broadcast %cst_50 : f32 to vector<8x8xf32>
    %97 = arith.mulf %95, %96 : vector<8x8xf32>
    %cst_51 = arith.constant -1.000000e+30 : f32
    %98 = vector.broadcast %cst_51 : f32 to vector<8x8xf32>
    %99 = arith.select %16, %98, %97 : vector<8x8xi1>, vector<8x8xf32>
    %cst_52 = arith.constant dense<0xFF800000> : vector<8xf32>
    %100 = vector.multi_reduction <maximumf>, %99, %cst_52 [1] : vector<8x8xf32> to vector<8xf32>
    %101 = vector.shape_cast %100 : vector<8xf32> to vector<8x1xf32>
    %102 = vector.broadcast %101 : vector<8x1xf32> to vector<8x8xf32>
    %103 = arith.subf %99, %102 : vector<8x8xf32>
    %104 = math.exp %103 : vector<8x8xf32>
    %cst_53 = arith.constant dense<0.000000e+00> : vector<8xf32>
    %105 = vector.multi_reduction <add>, %104, %cst_53 [1] : vector<8x8xf32> to vector<8xf32>
    %106 = vector.shape_cast %105 : vector<8xf32> to vector<8x1xf32>
    %107 = tpu.reciprocal %106 {approx = true} : vector<8x1xf32> -> vector<8x1xf32>
    %108 = vector.broadcast %107 : vector<8x1xf32> to vector<8x8xf32>
    %109 = arith.mulf %104, %108 : vector<8x8xf32>
    %110 = vector.extract_strided_slice %32 {offsets = [0, 24], sizes = [8, 8], strides = [1, 1]} : vector<8x32xf32> to vector<8x8xf32>
    %cst_54 = arith.constant dense<0.000000e+00> : vector<8x8xf32>
    %111 = tpu.matmul %109, %110, %cst_54 {dimension_numbers = #tpu.dot_dimension_numbers<[1], [0], [0], [1], [0, 0, 1, 1], [], []>} : vector<8x8xf32>, vector<8x8xf32>, vector<8x8xf32> -> vector<8x8xf32>
    %c0_55 = arith.constant 0 : index
    %c24 = arith.constant 24 : index
    %112 = vector.load %arg4[%c0_55, %c24] : memref<8x32xf32, #tpu.memory_space<vmem>>, vector<8x8xf32>
    tpu.vector_store %arg4[%c0_55, %c24], %111 {strides = array<i32>} : memref<8x32xf32, #tpu.memory_space<vmem>>, vector<8x8xf32>,
    %c0_56 = arith.constant 0 : index
    %c0_57 = arith.constant 0 : index
    %113 = vector.load %arg4[%c0_56, %c0_57] : memref<8x32xf32, #tpu.memory_space<vmem>>, vector<8x32xf32>
    %c0_58 = arith.constant 0 : index
    %c96_59 = arith.constant 96 : index
    %114 = vector.load %arg2[%c0_58, %c96_59] : memref<240x128xf32, #tpu.memory_space<vmem>>, vector<32x32xf32>
    %cst_60 = arith.constant dense<0.000000e+00> : vector<8x32xf32>
    %115 = tpu.matmul %113, %114, %cst_60 {dimension_numbers = #tpu.dot_dimension_numbers<[1], [0], [0], [1], [0, 0, 1, 1], [], []>} : vector<8x32xf32>, vector<32x32xf32>, vector<8x32xf32> -> vector<8x32xf32>
    %c48_61 = arith.constant 48 : index
    %c96_62 = arith.constant 96 : index
    %116 = vector.load %arg2[%c48_61, %c96_62] : memref<240x128xf32, #tpu.memory_space<vmem>>, vector<1x32xf32>
    %117 = vector.broadcast %116 : vector<1x32xf32> to vector<8x32xf32>
    %118 = arith.addf %115, %117 : vector<8x32xf32>
    %cst_63 = arith.constant 0.000000e+00 : f32
    %119 = vector.broadcast %cst_63 : f32 to vector<8x32xf32>
    %120 = arith.cmpf oge, %118, %119 : vector<8x32xf32>
    %cst_64 = arith.constant 0.00999999977 : f32
    %121 = vector.broadcast %cst_64 : f32 to vector<8x32xf32>
    %122 = arith.mulf %121, %118 : vector<8x32xf32>
    %123 = arith.select %120, %118, %122 : vector<8x32xi1>, vector<8x32xf32>
    %c56 = arith.constant 56 : index
    %c0_65 = arith.constant 0 : index
    %124 = vector.load %arg2[%c56, %c0_65] : memref<240x128xf32, #tpu.memory_space<vmem>>, vector<1x32xf32>
    %c56_66 = arith.constant 56 : index
    %c32_67 = arith.constant 32 : index
    %125 = vector.load %arg2[%c56_66, %c32_67] : memref<240x128xf32, #tpu.memory_space<vmem>>, vector<1x32xf32>
    %126 = arith.addf %123, %8 : vector<8x32xf32>
    %cst_68 = arith.constant dense<0.000000e+00> : vector<8xf32>
    %127 = vector.multi_reduction <add>, %126, %cst_68 [1] : vector<8x32xf32> to vector<8xf32>
    %128 = vector.shape_cast %127 : vector<8xf32> to vector<8x1xf32>
    %cst_69 = arith.constant 3.200000e+01 : f32
    %129 = vector.broadcast %cst_69 : f32 to vector<8x1xf32>
    %130 = arith.divf %128, %129 : vector<8x1xf32>
    %131 = vector.broadcast %130 : vector<8x1xf32> to vector<8x32xf32>
    %132 = arith.subf %126, %131 : vector<8x32xf32>
    %133 = arith.mulf %132, %132 : vector<8x32xf32>
    %cst_70 = arith.constant dense<0.000000e+00> : vector<8xf32>
    %134 = vector.multi_reduction <add>, %133, %cst_70 [1] : vector<8x32xf32> to vector<8xf32>
    %135 = vector.shape_cast %134 : vector<8xf32> to vector<8x1xf32>
    %cst_71 = arith.constant 3.200000e+01 : f32
    %136 = vector.broadcast %cst_71 : f32 to vector<8x1xf32>
    %137 = arith.divf %135, %136 : vector<8x1xf32>
    %138 = vector.broadcast %130 : vector<8x1xf32> to vector<8x32xf32>
    %139 = arith.subf %126, %138 : vector<8x32xf32>
    %cst_72 = arith.constant 9.99999974E-6 : f32
    %140 = vector.broadcast %cst_72 : f32 to vector<8x1xf32>
    %141 = arith.addf %137, %140 : vector<8x1xf32>
    %142 = math.rsqrt %141 : vector<8x1xf32>
    %143 = vector.broadcast %142 : vector<8x1xf32> to vector<8x32xf32>
    %144 = arith.mulf %139, %143 : vector<8x32xf32>
    %145 = vector.broadcast %124 : vector<1x32xf32> to vector<8x32xf32>
    %146 = arith.mulf %144, %145 : vector<8x32xf32>
    %147 = vector.broadcast %125 : vector<1x32xf32> to vector<8x32xf32>
    %148 = arith.addf %146, %147 : vector<8x32xf32>
    %c1_i32 = arith.constant 1 : i32
    %149 = tpu.dynamic_rotate %8 by %c1_i32 dim 0 : vector<8x32xf32>, i32 -> vector<8x32xf32>
    %cst_73 = arith.constant 0.000000e+00 : f32
    %150 = vector.broadcast %cst_73 : f32 to vector<8x32xf32>
    %151 = arith.select %6, %150, %149 : vector<8x32xi1>, vector<8x32xf32>
    %c0_74 = arith.constant 0 : index
    %c0_75 = arith.constant 0 : index
    %152 = vector.load %arg5[%c0_74, %c0_75] : memref<8x96xf32, #tpu.memory_space<vmem>>, vector<8x32xf32>
    tpu.vector_store %arg5[%c0_74, %c0_75], %8 {strides = array<i32>} : memref<8x96xf32, #tpu.memory_space<vmem>>, vector<8x32xf32>,
    %c0_76 = arith.constant 0 : index
    %c32_77 = arith.constant 32 : index
    %153 = vector.load %arg5[%c0_76, %c32_77] : memref<8x96xf32, #tpu.memory_space<vmem>>, vector<8x32xf32>
    tpu.vector_store %arg5[%c0_76, %c32_77], %151 {strides = array<i32>} : memref<8x96xf32, #tpu.memory_space<vmem>>, vector<8x32xf32>,
    %c0_78 = arith.constant 0 : index
    %c64_79 = arith.constant 64 : index
    %154 = vector.load %arg5[%c0_78, %c64_79] : memref<8x96xf32, #tpu.memory_space<vmem>>, vector<8x32xf32>
    tpu.vector_store %arg5[%c0_78, %c64_79], %148 {strides = array<i32>} : memref<8x96xf32, #tpu.memory_space<vmem>>, vector<8x32xf32>,
    %c0_80 = arith.constant 0 : index
    %c0_81 = arith.constant 0 : index
    %155 = vector.load %arg5[%c0_80, %c0_81] : memref<8x96xf32, #tpu.memory_space<vmem>>, vector<8x96xf32>
    %c128 = arith.constant 128 : index
    %c0_82 = arith.constant 0 : index
    %156 = vector.load %arg2[%c128, %c0_82] : memref<240x128xf32, #tpu.memory_space<vmem>>, vector<96x128xf32>
    %cst_83 = arith.constant dense<0.000000e+00> : vector<8x128xf32>
    %157 = tpu.matmul %155, %156, %cst_83 {dimension_numbers = #tpu.dot_dimension_numbers<[1], [0], [0], [1], [0, 0, 1, 1], [], []>} : vector<8x96xf32>, vector<96x128xf32>, vector<8x128xf32> -> vector<8x128xf32>
    %c224 = arith.constant 224 : index
    %c0_84 = arith.constant 0 : index
    %158 = vector.load %arg2[%c224, %c0_84] : memref<240x128xf32, #tpu.memory_space<vmem>>, vector<1x128xf32>
    %159 = vector.broadcast %158 : vector<1x128xf32> to vector<8x128xf32>
    %160 = arith.addf %157, %159 : vector<8x128xf32>
    %161 = vector.extract_strided_slice %160 {offsets = [0, 0], sizes = [8, 32], strides = [1, 1]} : vector<8x128xf32> to vector<8x32xf32>
    %162 = arith.negf %161 : vector<8x32xf32>
    %163 = math.exp %162 : vector<8x32xf32>
    %cst_85 = arith.constant 1.000000e+00 : f32
    %164 = vector.broadcast %cst_85 : f32 to vector<8x32xf32>
    %165 = arith.addf %164, %163 : vector<8x32xf32>
    %166 = arith.divf %164, %165 : vector<8x32xf32>
    %167 = vector.extract_strided_slice %160 {offsets = [0, 32], sizes = [8, 32], strides = [1, 1]} : vector<8x128xf32> to vector<8x32xf32>
    %168 = arith.negf %167 : vector<8x32xf32>
    %169 = math.exp %168 : vector<8x32xf32>
    %cst_86 = arith.constant 1.000000e+00 : f32
    %170 = vector.broadcast %cst_86 : f32 to vector<8x32xf32>
    %171 = arith.addf %170, %169 : vector<8x32xf32>
    %172 = arith.divf %170, %171 : vector<8x32xf32>
    %173 = vector.extract_strided_slice %160 {offsets = [0, 64], sizes = [8, 32], strides = [1, 1]} : vector<8x128xf32> to vector<8x32xf32>
    %174 = arith.negf %173 : vector<8x32xf32>
    %175 = math.exp %174 : vector<8x32xf32>
    %cst_87 = arith.constant 1.000000e+00 : f32
    %176 = vector.broadcast %cst_87 : f32 to vector<8x32xf32>
    %177 = arith.addf %176, %175 : vector<8x32xf32>
    %178 = arith.divf %176, %177 : vector<8x32xf32>
    %179 = vector.extract_strided_slice %160 {offsets = [0, 96], sizes = [8, 32], strides = [1, 1]} : vector<8x128xf32> to vector<8x32xf32>
    %180 = math.tanh %179 : vector<8x32xf32>
    %181 = arith.maximumf %166, %172 : vector<8x32xf32>
    %182 = arith.maximumf %181, %178 : vector<8x32xf32>
    %183 = arith.subf %166, %182 : vector<8x32xf32>
    %184 = math.exp %183 : vector<8x32xf32>
    %185 = arith.subf %172, %182 : vector<8x32xf32>
    %186 = math.exp %185 : vector<8x32xf32>
    %187 = arith.subf %178, %182 : vector<8x32xf32>
    %188 = math.exp %187 : vector<8x32xf32>
    %189 = arith.addf %184, %186 : vector<8x32xf32>
    %190 = arith.addf %189, %188 : vector<8x32xf32>
    %191 = tpu.reciprocal %190 {approx = true} : vector<8x32xf32> -> vector<8x32xf32>
    %192 = arith.mulf %184, %180 : vector<8x32xf32>
    %193 = arith.mulf %186, %151 : vector<8x32xf32>
    %194 = arith.addf %192, %193 : vector<8x32xf32>
    %195 = arith.mulf %188, %148 : vector<8x32xf32>
    %196 = arith.addf %194, %195 : vector<8x32xf32>
    %197 = arith.mulf %196, %191 : vector<8x32xf32>
    %198 = arith.addf %8, %197 : vector<8x32xf32>
    %cst_88 = arith.constant dense<0.000000e+00> : vector<8xf32>
    %199 = vector.multi_reduction <add>, %198, %cst_88 [1] : vector<8x32xf32> to vector<8xf32>
    %200 = vector.shape_cast %199 : vector<8xf32> to vector<8x1xf32>
    %cst_89 = arith.constant 3.200000e+01 : f32
    %201 = vector.broadcast %cst_89 : f32 to vector<8x1xf32>
    %202 = arith.divf %200, %201 : vector<8x1xf32>
    %203 = vector.broadcast %202 : vector<8x1xf32> to vector<8x32xf32>
    %204 = arith.subf %198, %203 : vector<8x32xf32>
    %205 = arith.mulf %204, %204 : vector<8x32xf32>
    %cst_90 = arith.constant dense<0.000000e+00> : vector<8xf32>
    %206 = vector.multi_reduction <add>, %205, %cst_90 [1] : vector<8x32xf32> to vector<8xf32>
    %207 = vector.shape_cast %206 : vector<8xf32> to vector<8x1xf32>
    %cst_91 = arith.constant 3.200000e+01 : f32
    %208 = vector.broadcast %cst_91 : f32 to vector<8x1xf32>
    %209 = arith.divf %207, %208 : vector<8x1xf32>
    %210 = vector.broadcast %202 : vector<8x1xf32> to vector<8x32xf32>
    %211 = arith.subf %198, %210 : vector<8x32xf32>
    %cst_92 = arith.constant 9.99999974E-6 : f32
    %212 = vector.broadcast %cst_92 : f32 to vector<8x1xf32>
    %213 = arith.addf %209, %212 : vector<8x1xf32>
    %214 = math.rsqrt %213 : vector<8x1xf32>
    %215 = vector.broadcast %214 : vector<8x1xf32> to vector<8x32xf32>
    %216 = arith.mulf %211, %215 : vector<8x32xf32>
    %217 = vector.broadcast %0 : vector<1x32xf32> to vector<8x32xf32>
    %218 = arith.mulf %216, %217 : vector<8x32xf32>
    %219 = vector.broadcast %1 : vector<1x32xf32> to vector<8x32xf32>
    %220 = arith.addf %218, %219 : vector<8x32xf32>
    %cst_93 = arith.constant dense<0.000000e+00> : vector<8x32xf32>
    %221 = tpu.matmul %10, %220, %cst_93 {dimension_numbers = #tpu.dot_dimension_numbers<[1], [0], [0], [1], [0, 0, 1, 1], [], []>} : vector<8x8xf32>, vector<8x32xf32>, vector<8x32xf32> -> vector<8x32xf32>
    %c64_94 = arith.constant 64 : index
    %c0_95 = arith.constant 0 : index
    %222 = vector.load %arg2[%c64_94, %c0_95] : memref<240x128xf32, #tpu.memory_space<vmem>>, vector<32x32xf32>
    %cst_96 = arith.constant dense<0.000000e+00> : vector<8x32xf32>
    %223 = tpu.matmul %220, %222, %cst_96 {dimension_numbers = #tpu.dot_dimension_numbers<[1], [0], [0], [1], [0, 0, 1, 1], [], []>} : vector<8x32xf32>, vector<32x32xf32>, vector<8x32xf32> -> vector<8x32xf32>
    %c112 = arith.constant 112 : index
    %c0_97 = arith.constant 0 : index
    %224 = vector.load %arg2[%c112, %c0_97] : memref<240x128xf32, #tpu.memory_space<vmem>>, vector<1x32xf32>
    %225 = vector.broadcast %224 : vector<1x32xf32> to vector<8x32xf32>
    %226 = arith.addf %223, %225 : vector<8x32xf32>
    %c64_98 = arith.constant 64 : index
    %c32_99 = arith.constant 32 : index
    %227 = vector.load %arg2[%c64_98, %c32_99] : memref<240x128xf32, #tpu.memory_space<vmem>>, vector<32x64xf32>
    %cst_100 = arith.constant dense<0.000000e+00> : vector<8x64xf32>
    %228 = tpu.matmul %221, %227, %cst_100 {dimension_numbers = #tpu.dot_dimension_numbers<[1], [0], [0], [1], [0, 0, 1, 1], [], []>} : vector<8x32xf32>, vector<32x64xf32>, vector<8x64xf32> -> vector<8x64xf32>
    %c96_101 = arith.constant 96 : index
    %c32_102 = arith.constant 32 : index
    %229 = vector.load %arg2[%c96_101, %c32_102] : memref<240x128xf32, #tpu.memory_space<vmem>>, vector<10x64xf32>
    %cst_103 = arith.constant dense<0.000000e+00> : vector<8x64xf32>
    %230 = tpu.matmul %14, %229, %cst_103 {dimension_numbers = #tpu.dot_dimension_numbers<[1], [0], [0], [1], [0, 0, 1, 1], [], []>} : vector<8x10xf32>, vector<10x64xf32>, vector<8x64xf32> -> vector<8x64xf32>
    %231 = arith.addf %228, %230 : vector<8x64xf32>
    %c112_104 = arith.constant 112 : index
    %c32_105 = arith.constant 32 : index
    %232 = vector.load %arg2[%c112_104, %c32_105] : memref<240x128xf32, #tpu.memory_space<vmem>>, vector<1x64xf32>
    %233 = vector.broadcast %232 : vector<1x64xf32> to vector<8x64xf32>
    %234 = arith.addf %231, %233 : vector<8x64xf32>
    %235 = vector.extract_strided_slice %234 {offsets = [0, 0], sizes = [8, 32], strides = [1, 1]} : vector<8x64xf32> to vector<8x32xf32>
    %236 = vector.extract_strided_slice %234 {offsets = [0, 32], sizes = [8, 32], strides = [1, 1]} : vector<8x64xf32> to vector<8x32xf32>
    %237 = vector.extract_strided_slice %226 {offsets = [0, 0], sizes = [8, 8], strides = [1, 1]} : vector<8x32xf32> to vector<8x8xf32>
    %238 = vector.extract_strided_slice %235 {offsets = [0, 0], sizes = [8, 8], strides = [1, 1]} : vector<8x32xf32> to vector<8x8xf32>
    %cst_106 = arith.constant dense<0.000000e+00> : vector<8x8xf32>
    %239 = tpu.matmul %237, %238, %cst_106 {dimension_numbers = #tpu.dot_dimension_numbers<[1], [1], [0], [0], [0, 0, 1, 0], [], []>} : vector<8x8xf32>, vector<8x8xf32>, vector<8x8xf32> -> vector<8x8xf32>
    %cst_107 = arith.constant 0.353553385 : f32
    %240 = vector.broadcast %cst_107 : f32 to vector<8x8xf32>
    %241 = arith.mulf %239, %240 : vector<8x8xf32>
    %cst_108 = arith.constant -1.000000e+30 : f32
    %242 = vector.broadcast %cst_108 : f32 to vector<8x8xf32>
    %243 = arith.select %16, %242, %241 : vector<8x8xi1>, vector<8x8xf32>
    %cst_109 = arith.constant dense<0xFF800000> : vector<8xf32>
    %244 = vector.multi_reduction <maximumf>, %243, %cst_109 [1] : vector<8x8xf32> to vector<8xf32>
    %245 = vector.shape_cast %244 : vector<8xf32> to vector<8x1xf32>
    %246 = vector.broadcast %245 : vector<8x1xf32> to vector<8x8xf32>
    %247 = arith.subf %243, %246 : vector<8x8xf32>
    %248 = math.exp %247 : vector<8x8xf32>
    %cst_110 = arith.constant dense<0.000000e+00> : vector<8xf32>
    %249 = vector.multi_reduction <add>, %248, %cst_110 [1] : vector<8x8xf32> to vector<8xf32>
    %250 = vector.shape_cast %249 : vector<8xf32> to vector<8x1xf32>
    %251 = tpu.reciprocal %250 {approx = true} : vector<8x1xf32> -> vector<8x1xf32>
    %252 = vector.broadcast %251 : vector<8x1xf32> to vector<8x8xf32>
    %253 = arith.mulf %248, %252 : vector<8x8xf32>
    %254 = vector.extract_strided_slice %236 {offsets = [0, 0], sizes = [8, 8], strides = [1, 1]} : vector<8x32xf32> to vector<8x8xf32>
    %cst_111 = arith.constant dense<0.000000e+00> : vector<8x8xf32>
    %255 = tpu.matmul %253, %254, %cst_111 {dimension_numbers = #tpu.dot_dimension_numbers<[1], [0], [0], [1], [0, 0, 1, 1], [], []>} : vector<8x8xf32>, vector<8x8xf32>, vector<8x8xf32> -> vector<8x8xf32>
    %c0_112 = arith.constant 0 : index
    %c0_113 = arith.constant 0 : index
    %256 = vector.load %arg4[%c0_112, %c0_113] : memref<8x32xf32, #tpu.memory_space<vmem>>, vector<8x8xf32>
    tpu.vector_store %arg4[%c0_112, %c0_113], %255 {strides = array<i32>} : memref<8x32xf32, #tpu.memory_space<vmem>>, vector<8x8xf32>,
    %257 = vector.extract_strided_slice %226 {offsets = [0, 8], sizes = [8, 8], strides = [1, 1]} : vector<8x32xf32> to vector<8x8xf32>
    %258 = vector.extract_strided_slice %235 {offsets = [0, 8], sizes = [8, 8], strides = [1, 1]} : vector<8x32xf32> to vector<8x8xf32>
    %cst_114 = arith.constant dense<0.000000e+00> : vector<8x8xf32>
    %259 = tpu.matmul %257, %258, %cst_114 {dimension_numbers = #tpu.dot_dimension_numbers<[1], [1], [0], [0], [0, 0, 1, 0], [], []>} : vector<8x8xf32>, vector<8x8xf32>, vector<8x8xf32> -> vector<8x8xf32>
    %cst_115 = arith.constant 0.353553385 : f32
    %260 = vector.broadcast %cst_115 : f32 to vector<8x8xf32>
    %261 = arith.mulf %259, %260 : vector<8x8xf32>
    %cst_116 = arith.constant -1.000000e+30 : f32
    %262 = vector.broadcast %cst_116 : f32 to vector<8x8xf32>
    %263 = arith.select %16, %262, %261 : vector<8x8xi1>, vector<8x8xf32>
    %cst_117 = arith.constant dense<0xFF800000> : vector<8xf32>
    %264 = vector.multi_reduction <maximumf>, %263, %cst_117 [1] : vector<8x8xf32> to vector<8xf32>
    %265 = vector.shape_cast %264 : vector<8xf32> to vector<8x1xf32>
    %266 = vector.broadcast %265 : vector<8x1xf32> to vector<8x8xf32>
    %267 = arith.subf %263, %266 : vector<8x8xf32>
    %268 = math.exp %267 : vector<8x8xf32>
    %cst_118 = arith.constant dense<0.000000e+00> : vector<8xf32>
    %269 = vector.multi_reduction <add>, %268, %cst_118 [1] : vector<8x8xf32> to vector<8xf32>
    %270 = vector.shape_cast %269 : vector<8xf32> to vector<8x1xf32>
    %271 = tpu.reciprocal %270 {approx = true} : vector<8x1xf32> -> vector<8x1xf32>
    %272 = vector.broadcast %271 : vector<8x1xf32> to vector<8x8xf32>
    %273 = arith.mulf %268, %272 : vector<8x8xf32>
    %274 = vector.extract_strided_slice %236 {offsets = [0, 8], sizes = [8, 8], strides = [1, 1]} : vector<8x32xf32> to vector<8x8xf32>
    %cst_119 = arith.constant dense<0.000000e+00> : vector<8x8xf32>
    %275 = tpu.matmul %273, %274, %cst_119 {dimension_numbers = #tpu.dot_dimension_numbers<[1], [0], [0], [1], [0, 0, 1, 1], [], []>} : vector<8x8xf32>, vector<8x8xf32>, vector<8x8xf32> -> vector<8x8xf32>
    %c0_120 = arith.constant 0 : index
    %c8_121 = arith.constant 8 : index
    %276 = vector.load %arg4[%c0_120, %c8_121] : memref<8x32xf32, #tpu.memory_space<vmem>>, vector<8x8xf32>
    tpu.vector_store %arg4[%c0_120, %c8_121], %275 {strides = array<i32>} : memref<8x32xf32, #tpu.memory_space<vmem>>, vector<8x8xf32>,
    %277 = vector.extract_strided_slice %226 {offsets = [0, 16], sizes = [8, 8], strides = [1, 1]} : vector<8x32xf32> to vector<8x8xf32>
    %278 = vector.extract_strided_slice %235 {offsets = [0, 16], sizes = [8, 8], strides = [1, 1]} : vector<8x32xf32> to vector<8x8xf32>
    %cst_122 = arith.constant dense<0.000000e+00> : vector<8x8xf32>
    %279 = tpu.matmul %277, %278, %cst_122 {dimension_numbers = #tpu.dot_dimension_numbers<[1], [1], [0], [0], [0, 0, 1, 0], [], []>} : vector<8x8xf32>, vector<8x8xf32>, vector<8x8xf32> -> vector<8x8xf32>
    %cst_123 = arith.constant 0.353553385 : f32
    %280 = vector.broadcast %cst_123 : f32 to vector<8x8xf32>
    %281 = arith.mulf %279, %280 : vector<8x8xf32>
    %cst_124 = arith.constant -1.000000e+30 : f32
    %282 = vector.broadcast %cst_124 : f32 to vector<8x8xf32>
    %283 = arith.select %16, %282, %281 : vector<8x8xi1>, vector<8x8xf32>
    %cst_125 = arith.constant dense<0xFF800000> : vector<8xf32>
    %284 = vector.multi_reduction <maximumf>, %283, %cst_125 [1] : vector<8x8xf32> to vector<8xf32>
    %285 = vector.shape_cast %284 : vector<8xf32> to vector<8x1xf32>
    %286 = vector.broadcast %285 : vector<8x1xf32> to vector<8x8xf32>
    %287 = arith.subf %283, %286 : vector<8x8xf32>
    %288 = math.exp %287 : vector<8x8xf32>
    %cst_126 = arith.constant dense<0.000000e+00> : vector<8xf32>
    %289 = vector.multi_reduction <add>, %288, %cst_126 [1] : vector<8x8xf32> to vector<8xf32>
    %290 = vector.shape_cast %289 : vector<8xf32> to vector<8x1xf32>
    %291 = tpu.reciprocal %290 {approx = true} : vector<8x1xf32> -> vector<8x1xf32>
    %292 = vector.broadcast %291 : vector<8x1xf32> to vector<8x8xf32>
    %293 = arith.mulf %288, %292 : vector<8x8xf32>
    %294 = vector.extract_strided_slice %236 {offsets = [0, 16], sizes = [8, 8], strides = [1, 1]} : vector<8x32xf32> to vector<8x8xf32>
    %cst_127 = arith.constant dense<0.000000e+00> : vector<8x8xf32>
    %295 = tpu.matmul %293, %294, %cst_127 {dimension_numbers = #tpu.dot_dimension_numbers<[1], [0], [0], [1], [0, 0, 1, 1], [], []>} : vector<8x8xf32>, vector<8x8xf32>, vector<8x8xf32> -> vector<8x8xf32>
    %c0_128 = arith.constant 0 : index
    %c16_129 = arith.constant 16 : index
    %296 = vector.load %arg4[%c0_128, %c16_129] : memref<8x32xf32, #tpu.memory_space<vmem>>, vector<8x8xf32>
    tpu.vector_store %arg4[%c0_128, %c16_129], %295 {strides = array<i32>} : memref<8x32xf32, #tpu.memory_space<vmem>>, vector<8x8xf32>,
    %297 = vector.extract_strided_slice %226 {offsets = [0, 24], sizes = [8, 8], strides = [1, 1]} : vector<8x32xf32> to vector<8x8xf32>
    %298 = vector.extract_strided_slice %235 {offsets = [0, 24], sizes = [8, 8], strides = [1, 1]} : vector<8x32xf32> to vector<8x8xf32>
    %cst_130 = arith.constant dense<0.000000e+00> : vector<8x8xf32>
    %299 = tpu.matmul %297, %298, %cst_130 {dimension_numbers = #tpu.dot_dimension_numbers<[1], [1], [0], [0], [0, 0, 1, 0], [], []>} : vector<8x8xf32>, vector<8x8xf32>, vector<8x8xf32> -> vector<8x8xf32>
    %cst_131 = arith.constant 0.353553385 : f32
    %300 = vector.broadcast %cst_131 : f32 to vector<8x8xf32>
    %301 = arith.mulf %299, %300 : vector<8x8xf32>
    %cst_132 = arith.constant -1.000000e+30 : f32
    %302 = vector.broadcast %cst_132 : f32 to vector<8x8xf32>
    %303 = arith.select %16, %302, %301 : vector<8x8xi1>, vector<8x8xf32>
    %cst_133 = arith.constant dense<0xFF800000> : vector<8xf32>
    %304 = vector.multi_reduction <maximumf>, %303, %cst_133 [1] : vector<8x8xf32> to vector<8xf32>
    %305 = vector.shape_cast %304 : vector<8xf32> to vector<8x1xf32>
    %306 = vector.broadcast %305 : vector<8x1xf32> to vector<8x8xf32>
    %307 = arith.subf %303, %306 : vector<8x8xf32>
    %308 = math.exp %307 : vector<8x8xf32>
    %cst_134 = arith.constant dense<0.000000e+00> : vector<8xf32>
    %309 = vector.multi_reduction <add>, %308, %cst_134 [1] : vector<8x8xf32> to vector<8xf32>
    %310 = vector.shape_cast %309 : vector<8xf32> to vector<8x1xf32>
    %311 = tpu.reciprocal %310 {approx = true} : vector<8x1xf32> -> vector<8x1xf32>
    %312 = vector.broadcast %311 : vector<8x1xf32> to vector<8x8xf32>
    %313 = arith.mulf %308, %312 : vector<8x8xf32>
    %314 = vector.extract_strided_slice %236 {offsets = [0, 24], sizes = [8, 8], strides = [1, 1]} : vector<8x32xf32> to vector<8x8xf32>
    %cst_135 = arith.constant dense<0.000000e+00> : vector<8x8xf32>
    %315 = tpu.matmul %313, %314, %cst_135 {dimension_numbers = #tpu.dot_dimension_numbers<[1], [0], [0], [1], [0, 0, 1, 1], [], []>} : vector<8x8xf32>, vector<8x8xf32>, vector<8x8xf32> -> vector<8x8xf32>
    %c0_136 = arith.constant 0 : index
    %c24_137 = arith.constant 24 : index
    %316 = vector.load %arg4[%c0_136, %c24_137] : memref<8x32xf32, #tpu.memory_space<vmem>>, vector<8x8xf32>
    tpu.vector_store %arg4[%c0_136, %c24_137], %315 {strides = array<i32>} : memref<8x32xf32, #tpu.memory_space<vmem>>, vector<8x8xf32>,
    %c0_138 = arith.constant 0 : index
    %c0_139 = arith.constant 0 : index
    %317 = vector.load %arg4[%c0_138, %c0_139] : memref<8x32xf32, #tpu.memory_space<vmem>>, vector<8x32xf32>
    %c64_140 = arith.constant 64 : index
    %c96_141 = arith.constant 96 : index
    %318 = vector.load %arg2[%c64_140, %c96_141] : memref<240x128xf32, #tpu.memory_space<vmem>>, vector<32x32xf32>
    %cst_142 = arith.constant dense<0.000000e+00> : vector<8x32xf32>
    %319 = tpu.matmul %317, %318, %cst_142 {dimension_numbers = #tpu.dot_dimension_numbers<[1], [0], [0], [1], [0, 0, 1, 1], [], []>} : vector<8x32xf32>, vector<32x32xf32>, vector<8x32xf32> -> vector<8x32xf32>
    %c112_143 = arith.constant 112 : index
    %c96_144 = arith.constant 96 : index
    %320 = vector.load %arg2[%c112_143, %c96_144] : memref<240x128xf32, #tpu.memory_space<vmem>>, vector<1x32xf32>
    %321 = vector.broadcast %320 : vector<1x32xf32> to vector<8x32xf32>
    %322 = arith.addf %319, %321 : vector<8x32xf32>
    %cst_145 = arith.constant 0.000000e+00 : f32
    %323 = vector.broadcast %cst_145 : f32 to vector<8x32xf32>
    %324 = arith.cmpf oge, %322, %323 : vector<8x32xf32>
    %cst_146 = arith.constant 0.00999999977 : f32
    %325 = vector.broadcast %cst_146 : f32 to vector<8x32xf32>
    %326 = arith.mulf %325, %322 : vector<8x32xf32>
    %327 = arith.select %324, %322, %326 : vector<8x32xi1>, vector<8x32xf32>
    %c120 = arith.constant 120 : index
    %c0_147 = arith.constant 0 : index
    %328 = vector.load %arg2[%c120, %c0_147] : memref<240x128xf32, #tpu.memory_space<vmem>>, vector<1x32xf32>
    %c120_148 = arith.constant 120 : index
    %c32_149 = arith.constant 32 : index
    %329 = vector.load %arg2[%c120_148, %c32_149] : memref<240x128xf32, #tpu.memory_space<vmem>>, vector<1x32xf32>
    %330 = arith.addf %327, %220 : vector<8x32xf32>
    %cst_150 = arith.constant dense<0.000000e+00> : vector<8xf32>
    %331 = vector.multi_reduction <add>, %330, %cst_150 [1] : vector<8x32xf32> to vector<8xf32>
    %332 = vector.shape_cast %331 : vector<8xf32> to vector<8x1xf32>
    %cst_151 = arith.constant 3.200000e+01 : f32
    %333 = vector.broadcast %cst_151 : f32 to vector<8x1xf32>
    %334 = arith.divf %332, %333 : vector<8x1xf32>
    %335 = vector.broadcast %334 : vector<8x1xf32> to vector<8x32xf32>
    %336 = arith.subf %330, %335 : vector<8x32xf32>
    %337 = arith.mulf %336, %336 : vector<8x32xf32>
    %cst_152 = arith.constant dense<0.000000e+00> : vector<8xf32>
    %338 = vector.multi_reduction <add>, %337, %cst_152 [1] : vector<8x32xf32> to vector<8xf32>
    %339 = vector.shape_cast %338 : vector<8xf32> to vector<8x1xf32>
    %cst_153 = arith.constant 3.200000e+01 : f32
    %340 = vector.broadcast %cst_153 : f32 to vector<8x1xf32>
    %341 = arith.divf %339, %340 : vector<8x1xf32>
    %342 = vector.broadcast %334 : vector<8x1xf32> to vector<8x32xf32>
    %343 = arith.subf %330, %342 : vector<8x32xf32>
    %cst_154 = arith.constant 9.99999974E-6 : f32
    %344 = vector.broadcast %cst_154 : f32 to vector<8x1xf32>
    %345 = arith.addf %341, %344 : vector<8x1xf32>
    %346 = math.rsqrt %345 : vector<8x1xf32>
    %347 = vector.broadcast %346 : vector<8x1xf32> to vector<8x32xf32>
    %348 = arith.mulf %343, %347 : vector<8x32xf32>
    %349 = vector.broadcast %328 : vector<1x32xf32> to vector<8x32xf32>
    %350 = arith.mulf %348, %349 : vector<8x32xf32>
    %351 = vector.broadcast %329 : vector<1x32xf32> to vector<8x32xf32>
    %352 = arith.addf %350, %351 : vector<8x32xf32>
    %c1_i32_155 = arith.constant 1 : i32
    %353 = tpu.dynamic_rotate %220 by %c1_i32_155 dim 0 : vector<8x32xf32>, i32 -> vector<8x32xf32>
    %cst_156 = arith.constant 0.000000e+00 : f32
    %354 = vector.broadcast %cst_156 : f32 to vector<8x32xf32>
    %355 = arith.select %6, %354, %353 : vector<8x32xi1>, vector<8x32xf32>
    %c0_157 = arith.constant 0 : index
    %c0_158 = arith.constant 0 : index
    %356 = vector.load %arg5[%c0_157, %c0_158] : memref<8x96xf32, #tpu.memory_space<vmem>>, vector<8x32xf32>
    tpu.vector_store %arg5[%c0_157, %c0_158], %220 {strides = array<i32>} : memref<8x96xf32, #tpu.memory_space<vmem>>, vector<8x32xf32>,
    %c0_159 = arith.constant 0 : index
    %c32_160 = arith.constant 32 : index
    %357 = vector.load %arg5[%c0_159, %c32_160] : memref<8x96xf32, #tpu.memory_space<vmem>>, vector<8x32xf32>
    tpu.vector_store %arg5[%c0_159, %c32_160], %355 {strides = array<i32>} : memref<8x96xf32, #tpu.memory_space<vmem>>, vector<8x32xf32>,
    %c0_161 = arith.constant 0 : index
    %c64_162 = arith.constant 64 : index
    %358 = vector.load %arg5[%c0_161, %c64_162] : memref<8x96xf32, #tpu.memory_space<vmem>>, vector<8x32xf32>
    tpu.vector_store %arg5[%c0_161, %c64_162], %352 {strides = array<i32>} : memref<8x96xf32, #tpu.memory_space<vmem>>, vector<8x32xf32>,
    %c0_163 = arith.constant 0 : index
    %c0_164 = arith.constant 0 : index
    %359 = vector.load %arg5[%c0_163, %c0_164] : memref<8x96xf32, #tpu.memory_space<vmem>>, vector<8x96xf32>
    %c128_165 = arith.constant 128 : index
    %c0_166 = arith.constant 0 : index
    %360 = vector.load %arg2[%c128_165, %c0_166] : memref<240x128xf32, #tpu.memory_space<vmem>>, vector<96x128xf32>
    %cst_167 = arith.constant dense<0.000000e+00> : vector<8x128xf32>
    %361 = tpu.matmul %359, %360, %cst_167 {dimension_numbers = #tpu.dot_dimension_numbers<[1], [0], [0], [1], [0, 0, 1, 1], [], []>} : vector<8x96xf32>, vector<96x128xf32>, vector<8x128xf32> -> vector<8x128xf32>
    %c224_168 = arith.constant 224 : index
    %c0_169 = arith.constant 0 : index
    %362 = vector.load %arg2[%c224_168, %c0_169] : memref<240x128xf32, #tpu.memory_space<vmem>>, vector<1x128xf32>
    %363 = vector.broadcast %362 : vector<1x128xf32> to vector<8x128xf32>
    %364 = arith.addf %361, %363 : vector<8x128xf32>
    %365 = vector.extract_strided_slice %364 {offsets = [0, 0], sizes = [8, 32], strides = [1, 1]} : vector<8x128xf32> to vector<8x32xf32>
    %366 = arith.negf %365 : vector<8x32xf32>
    %367 = math.exp %366 : vector<8x32xf32>
    %cst_170 = arith.constant 1.000000e+00 : f32
    %368 = vector.broadcast %cst_170 : f32 to vector<8x32xf32>
    %369 = arith.addf %368, %367 : vector<8x32xf32>
    %370 = arith.divf %368, %369 : vector<8x32xf32>
    %371 = vector.extract_strided_slice %364 {offsets = [0, 32], sizes = [8, 32], strides = [1, 1]} : vector<8x128xf32> to vector<8x32xf32>
    %372 = arith.negf %371 : vector<8x32xf32>
    %373 = math.exp %372 : vector<8x32xf32>
    %cst_171 = arith.constant 1.000000e+00 : f32
    %374 = vector.broadcast %cst_171 : f32 to vector<8x32xf32>
    %375 = arith.addf %374, %373 : vector<8x32xf32>
    %376 = arith.divf %374, %375 : vector<8x32xf32>
    %377 = vector.extract_strided_slice %364 {offsets = [0, 64], sizes = [8, 32], strides = [1, 1]} : vector<8x128xf32> to vector<8x32xf32>
    %378 = arith.negf %377 : vector<8x32xf32>
    %379 = math.exp %378 : vector<8x32xf32>
    %cst_172 = arith.constant 1.000000e+00 : f32
    %380 = vector.broadcast %cst_172 : f32 to vector<8x32xf32>
    %381 = arith.addf %380, %379 : vector<8x32xf32>
    %382 = arith.divf %380, %381 : vector<8x32xf32>
    %383 = vector.extract_strided_slice %364 {offsets = [0, 96], sizes = [8, 32], strides = [1, 1]} : vector<8x128xf32> to vector<8x32xf32>
    %384 = math.tanh %383 : vector<8x32xf32>
    %385 = arith.maximumf %370, %376 : vector<8x32xf32>
    %386 = arith.maximumf %385, %382 : vector<8x32xf32>
    %387 = arith.subf %370, %386 : vector<8x32xf32>
    %388 = math.exp %387 : vector<8x32xf32>
    %389 = arith.subf %376, %386 : vector<8x32xf32>
    %390 = math.exp %389 : vector<8x32xf32>
    %391 = arith.subf %382, %386 : vector<8x32xf32>
    %392 = math.exp %391 : vector<8x32xf32>
    %393 = arith.addf %388, %390 : vector<8x32xf32>
    %394 = arith.addf %393, %392 : vector<8x32xf32>
    %395 = tpu.reciprocal %394 {approx = true} : vector<8x32xf32> -> vector<8x32xf32>
    %396 = arith.mulf %388, %384 : vector<8x32xf32>
    %397 = arith.mulf %390, %355 : vector<8x32xf32>
    %398 = arith.addf %396, %397 : vector<8x32xf32>
    %399 = arith.mulf %392, %352 : vector<8x32xf32>
    %400 = arith.addf %398, %399 : vector<8x32xf32>
    %401 = arith.mulf %400, %395 : vector<8x32xf32>
    %402 = vector.broadcast %2 : vector<1x32xf32> to vector<8x32xf32>
    %403 = arith.mulf %8, %402 : vector<8x32xf32>
    %cst_173 = arith.constant dense<0.000000e+00> : vector<8xf32>
    %404 = vector.multi_reduction <add>, %403, %cst_173 [1] : vector<8x32xf32> to vector<8xf32>
    %405 = vector.shape_cast %404 : vector<8xf32> to vector<8x1xf32>
    %406 = vector.broadcast %3 : vector<1x1xf32> to vector<8x1xf32>
    %407 = arith.addf %405, %406 : vector<8x1xf32>
    %408 = arith.negf %407 : vector<8x1xf32>
    %409 = math.exp %408 : vector<8x1xf32>
    %cst_174 = arith.constant 1.000000e+00 : f32
    %410 = vector.broadcast %cst_174 : f32 to vector<8x1xf32>
    %411 = arith.addf %410, %409 : vector<8x1xf32>
    %412 = arith.divf %410, %411 : vector<8x1xf32>
    %413 = vector.broadcast %2 : vector<1x32xf32> to vector<8x32xf32>
    %414 = arith.mulf %197, %413 : vector<8x32xf32>
    %cst_175 = arith.constant dense<0.000000e+00> : vector<8xf32>
    %415 = vector.multi_reduction <add>, %414, %cst_175 [1] : vector<8x32xf32> to vector<8xf32>
    %416 = vector.shape_cast %415 : vector<8xf32> to vector<8x1xf32>
    %417 = vector.broadcast %3 : vector<1x1xf32> to vector<8x1xf32>
    %418 = arith.addf %416, %417 : vector<8x1xf32>
    %419 = arith.negf %418 : vector<8x1xf32>
    %420 = math.exp %419 : vector<8x1xf32>
    %cst_176 = arith.constant 1.000000e+00 : f32
    %421 = vector.broadcast %cst_176 : f32 to vector<8x1xf32>
    %422 = arith.addf %421, %420 : vector<8x1xf32>
    %423 = arith.divf %421, %422 : vector<8x1xf32>
    %424 = vector.broadcast %2 : vector<1x32xf32> to vector<8x32xf32>
    %425 = arith.mulf %401, %424 : vector<8x32xf32>
    %cst_177 = arith.constant dense<0.000000e+00> : vector<8xf32>
    %426 = vector.multi_reduction <add>, %425, %cst_177 [1] : vector<8x32xf32> to vector<8xf32>
    %427 = vector.shape_cast %426 : vector<8xf32> to vector<8x1xf32>
    %428 = vector.broadcast %3 : vector<1x1xf32> to vector<8x1xf32>
    %429 = arith.addf %427, %428 : vector<8x1xf32>
    %430 = arith.negf %429 : vector<8x1xf32>
    %431 = math.exp %430 : vector<8x1xf32>
    %cst_178 = arith.constant 1.000000e+00 : f32
    %432 = vector.broadcast %cst_178 : f32 to vector<8x1xf32>
    %433 = arith.addf %432, %431 : vector<8x1xf32>
    %434 = arith.divf %432, %433 : vector<8x1xf32>
    %435 = arith.maximumf %412, %423 : vector<8x1xf32>
    %436 = arith.maximumf %435, %434 : vector<8x1xf32>
    %437 = arith.subf %412, %436 : vector<8x1xf32>
    %438 = math.exp %437 : vector<8x1xf32>
    %439 = arith.subf %423, %436 : vector<8x1xf32>
    %440 = math.exp %439 : vector<8x1xf32>
    %441 = arith.subf %434, %436 : vector<8x1xf32>
    %442 = math.exp %441 : vector<8x1xf32>
    %443 = arith.addf %438, %440 : vector<8x1xf32>
    %444 = arith.addf %443, %442 : vector<8x1xf32>
    %445 = vector.broadcast %438 : vector<8x1xf32> to vector<8x32xf32>
    %446 = arith.mulf %445, %8 : vector<8x32xf32>
    %447 = vector.broadcast %440 : vector<8x1xf32> to vector<8x32xf32>
    %448 = arith.mulf %447, %197 : vector<8x32xf32>
    %449 = arith.addf %446, %448 : vector<8x32xf32>
    %450 = vector.broadcast %442 : vector<8x1xf32> to vector<8x32xf32>
    %451 = arith.mulf %450, %401 : vector<8x32xf32>
    %452 = arith.addf %449, %451 : vector<8x32xf32>
    %453 = tpu.reciprocal %444 {approx = true} : vector<8x1xf32> -> vector<8x1xf32>
    %454 = vector.broadcast %453 : vector<8x1xf32> to vector<8x32xf32>
    %455 = arith.mulf %452, %454 : vector<8x32xf32>
    %c0_179 = arith.constant 0 : index
    %c0_180 = arith.constant 0 : index
    %c0_181 = arith.constant 0 : index
    %456 = vector.load %arg3[%c0_179, %c0_180, %c0_181] : memref<2x8x32xf32, #tpu.memory_space<vmem>>, vector<1x8x32xf32>
    %457 = vector.shape_cast %456 : vector<1x8x32xf32> to vector<8x32xf32>
    %458 = vector.shape_cast %455 : vector<8x32xf32> to vector<1x8x32xf32>
    tpu.vector_store %arg3[%c0_179, %c0_180, %c0_181], %458 {strides = array<i32>} : memref<2x8x32xf32, #tpu.memory_space<vmem>>, vector<1x8x32xf32>,
    %c1 = arith.constant 1 : index
    %c0_182 = arith.constant 0 : index
    %c0_183 = arith.constant 0 : index
    %459 = vector.load %arg1[%c1, %c0_182, %c0_183] : memref<2x8x58xf32, #tpu.memory_space<vmem>>, vector<1x8x32xf32>
    %460 = vector.shape_cast %459 : vector<1x8x32xf32> to vector<8x32xf32>
    %c1_184 = arith.constant 1 : index
    %c0_185 = arith.constant 0 : index
    %c32_186 = arith.constant 32 : index
    %461 = vector.load %arg1[%c1_184, %c0_185, %c32_186] : memref<2x8x58xf32, #tpu.memory_space<vmem>>, vector<1x8x8xf32>
    %462 = vector.shape_cast %461 : vector<1x8x8xf32> to vector<8x8xf32>
    %c1_187 = arith.constant 1 : index
    %c0_188 = arith.constant 0 : index
    %c40_189 = arith.constant 40 : index
    %463 = vector.load %arg1[%c1_187, %c0_188, %c40_189] : memref<2x8x58xf32, #tpu.memory_space<vmem>>, vector<1x8x8xf32>
    %464 = vector.shape_cast %463 : vector<1x8x8xf32> to vector<8x8xf32>
    %c1_190 = arith.constant 1 : index
    %c0_191 = arith.constant 0 : index
    %c48_192 = arith.constant 48 : index
    %465 = vector.load %arg1[%c1_190, %c0_191, %c48_192] : memref<2x8x58xf32, #tpu.memory_space<vmem>>, vector<1x8x10xf32>
    %466 = vector.shape_cast %465 : vector<1x8x10xf32> to vector<8x10xf32>
    %cst_193 = arith.constant 5.000000e-01 : f32
    %467 = vector.broadcast %cst_193 : f32 to vector<8x8xf32>
    %468 = arith.cmpf ogt, %464, %467 : vector<8x8xf32>
    %cst_194 = arith.constant dense<0.000000e+00> : vector<8x32xf32>
    %469 = tpu.matmul %462, %460, %cst_194 {dimension_numbers = #tpu.dot_dimension_numbers<[1], [0], [0], [1], [0, 0, 1, 1], [], []>} : vector<8x8xf32>, vector<8x32xf32>, vector<8x32xf32> -> vector<8x32xf32>
    %c0_195 = arith.constant 0 : index
    %c0_196 = arith.constant 0 : index
    %470 = vector.load %arg2[%c0_195, %c0_196] : memref<240x128xf32, #tpu.memory_space<vmem>>, vector<32x32xf32>
    %cst_197 = arith.constant dense<0.000000e+00> : vector<8x32xf32>
    %471 = tpu.matmul %460, %470, %cst_197 {dimension_numbers = #tpu.dot_dimension_numbers<[1], [0], [0], [1], [0, 0, 1, 1], [], []>} : vector<8x32xf32>, vector<32x32xf32>, vector<8x32xf32> -> vector<8x32xf32>
    %c48_198 = arith.constant 48 : index
    %c0_199 = arith.constant 0 : index
    %472 = vector.load %arg2[%c48_198, %c0_199] : memref<240x128xf32, #tpu.memory_space<vmem>>, vector<1x32xf32>
    %473 = vector.broadcast %472 : vector<1x32xf32> to vector<8x32xf32>
    %474 = arith.addf %471, %473 : vector<8x32xf32>
    %c0_200 = arith.constant 0 : index
    %c32_201 = arith.constant 32 : index
    %475 = vector.load %arg2[%c0_200, %c32_201] : memref<240x128xf32, #tpu.memory_space<vmem>>, vector<32x64xf32>
    %cst_202 = arith.constant dense<0.000000e+00> : vector<8x64xf32>
    %476 = tpu.matmul %469, %475, %cst_202 {dimension_numbers = #tpu.dot_dimension_numbers<[1], [0], [0], [1], [0, 0, 1, 1], [], []>} : vector<8x32xf32>, vector<32x64xf32>, vector<8x64xf32> -> vector<8x64xf32>
    %c32_203 = arith.constant 32 : index
    %c32_204 = arith.constant 32 : index
    %477 = vector.load %arg2[%c32_203, %c32_204] : memref<240x128xf32, #tpu.memory_space<vmem>>, vector<10x64xf32>
    %cst_205 = arith.constant dense<0.000000e+00> : vector<8x64xf32>
    %478 = tpu.matmul %466, %477, %cst_205 {dimension_numbers = #tpu.dot_dimension_numbers<[1], [0], [0], [1], [0, 0, 1, 1], [], []>} : vector<8x10xf32>, vector<10x64xf32>, vector<8x64xf32> -> vector<8x64xf32>
    %479 = arith.addf %476, %478 : vector<8x64xf32>
    %c48_206 = arith.constant 48 : index
    %c32_207 = arith.constant 32 : index
    %480 = vector.load %arg2[%c48_206, %c32_207] : memref<240x128xf32, #tpu.memory_space<vmem>>, vector<1x64xf32>
    %481 = vector.broadcast %480 : vector<1x64xf32> to vector<8x64xf32>
    %482 = arith.addf %479, %481 : vector<8x64xf32>
    %483 = vector.extract_strided_slice %482 {offsets = [0, 0], sizes = [8, 32], strides = [1, 1]} : vector<8x64xf32> to vector<8x32xf32>
    %484 = vector.extract_strided_slice %482 {offsets = [0, 32], sizes = [8, 32], strides = [1, 1]} : vector<8x64xf32> to vector<8x32xf32>
    %485 = vector.extract_strided_slice %474 {offsets = [0, 0], sizes = [8, 8], strides = [1, 1]} : vector<8x32xf32> to vector<8x8xf32>
    %486 = vector.extract_strided_slice %483 {offsets = [0, 0], sizes = [8, 8], strides = [1, 1]} : vector<8x32xf32> to vector<8x8xf32>
    %cst_208 = arith.constant dense<0.000000e+00> : vector<8x8xf32>
    %487 = tpu.matmul %485, %486, %cst_208 {dimension_numbers = #tpu.dot_dimension_numbers<[1], [1], [0], [0], [0, 0, 1, 0], [], []>} : vector<8x8xf32>, vector<8x8xf32>, vector<8x8xf32> -> vector<8x8xf32>
    %cst_209 = arith.constant 0.353553385 : f32
    %488 = vector.broadcast %cst_209 : f32 to vector<8x8xf32>
    %489 = arith.mulf %487, %488 : vector<8x8xf32>
    %cst_210 = arith.constant -1.000000e+30 : f32
    %490 = vector.broadcast %cst_210 : f32 to vector<8x8xf32>
    %491 = arith.select %468, %490, %489 : vector<8x8xi1>, vector<8x8xf32>
    %cst_211 = arith.constant dense<0xFF800000> : vector<8xf32>
    %492 = vector.multi_reduction <maximumf>, %491, %cst_211 [1] : vector<8x8xf32> to vector<8xf32>
    %493 = vector.shape_cast %492 : vector<8xf32> to vector<8x1xf32>
    %494 = vector.broadcast %493 : vector<8x1xf32> to vector<8x8xf32>
    %495 = arith.subf %491, %494 : vector<8x8xf32>
    %496 = math.exp %495 : vector<8x8xf32>
    %cst_212 = arith.constant dense<0.000000e+00> : vector<8xf32>
    %497 = vector.multi_reduction <add>, %496, %cst_212 [1] : vector<8x8xf32> to vector<8xf32>
    %498 = vector.shape_cast %497 : vector<8xf32> to vector<8x1xf32>
    %499 = tpu.reciprocal %498 {approx = true} : vector<8x1xf32> -> vector<8x1xf32>
    %500 = vector.broadcast %499 : vector<8x1xf32> to vector<8x8xf32>
    %501 = arith.mulf %496, %500 : vector<8x8xf32>
    %502 = vector.extract_strided_slice %484 {offsets = [0, 0], sizes = [8, 8], strides = [1, 1]} : vector<8x32xf32> to vector<8x8xf32>
    %cst_213 = arith.constant dense<0.000000e+00> : vector<8x8xf32>
    %503 = tpu.matmul %501, %502, %cst_213 {dimension_numbers = #tpu.dot_dimension_numbers<[1], [0], [0], [1], [0, 0, 1, 1], [], []>} : vector<8x8xf32>, vector<8x8xf32>, vector<8x8xf32> -> vector<8x8xf32>
    %c0_214 = arith.constant 0 : index
    %c0_215 = arith.constant 0 : index
    %504 = vector.load %arg4[%c0_214, %c0_215] : memref<8x32xf32, #tpu.memory_space<vmem>>, vector<8x8xf32>
    tpu.vector_store %arg4[%c0_214, %c0_215], %503 {strides = array<i32>} : memref<8x32xf32, #tpu.memory_space<vmem>>, vector<8x8xf32>,
    %505 = vector.extract_strided_slice %474 {offsets = [0, 8], sizes = [8, 8], strides = [1, 1]} : vector<8x32xf32> to vector<8x8xf32>
    %506 = vector.extract_strided_slice %483 {offsets = [0, 8], sizes = [8, 8], strides = [1, 1]} : vector<8x32xf32> to vector<8x8xf32>
    %cst_216 = arith.constant dense<0.000000e+00> : vector<8x8xf32>
    %507 = tpu.matmul %505, %506, %cst_216 {dimension_numbers = #tpu.dot_dimension_numbers<[1], [1], [0], [0], [0, 0, 1, 0], [], []>} : vector<8x8xf32>, vector<8x8xf32>, vector<8x8xf32> -> vector<8x8xf32>
    %cst_217 = arith.constant 0.353553385 : f32
    %508 = vector.broadcast %cst_217 : f32 to vector<8x8xf32>
    %509 = arith.mulf %507, %508 : vector<8x8xf32>
    %cst_218 = arith.constant -1.000000e+30 : f32
    %510 = vector.broadcast %cst_218 : f32 to vector<8x8xf32>
    %511 = arith.select %468, %510, %509 : vector<8x8xi1>, vector<8x8xf32>
    %cst_219 = arith.constant dense<0xFF800000> : vector<8xf32>
    %512 = vector.multi_reduction <maximumf>, %511, %cst_219 [1] : vector<8x8xf32> to vector<8xf32>
    %513 = vector.shape_cast %512 : vector<8xf32> to vector<8x1xf32>
    %514 = vector.broadcast %513 : vector<8x1xf32> to vector<8x8xf32>
    %515 = arith.subf %511, %514 : vector<8x8xf32>
    %516 = math.exp %515 : vector<8x8xf32>
    %cst_220 = arith.constant dense<0.000000e+00> : vector<8xf32>
    %517 = vector.multi_reduction <add>, %516, %cst_220 [1] : vector<8x8xf32> to vector<8xf32>
    %518 = vector.shape_cast %517 : vector<8xf32> to vector<8x1xf32>
    %519 = tpu.reciprocal %518 {approx = true} : vector<8x1xf32> -> vector<8x1xf32>
    %520 = vector.broadcast %519 : vector<8x1xf32> to vector<8x8xf32>
    %521 = arith.mulf %516, %520 : vector<8x8xf32>
    %522 = vector.extract_strided_slice %484 {offsets = [0, 8], sizes = [8, 8], strides = [1, 1]} : vector<8x32xf32> to vector<8x8xf32>
    %cst_221 = arith.constant dense<0.000000e+00> : vector<8x8xf32>
    %523 = tpu.matmul %521, %522, %cst_221 {dimension_numbers = #tpu.dot_dimension_numbers<[1], [0], [0], [1], [0, 0, 1, 1], [], []>} : vector<8x8xf32>, vector<8x8xf32>, vector<8x8xf32> -> vector<8x8xf32>
    %c0_222 = arith.constant 0 : index
    %c8_223 = arith.constant 8 : index
    %524 = vector.load %arg4[%c0_222, %c8_223] : memref<8x32xf32, #tpu.memory_space<vmem>>, vector<8x8xf32>
    tpu.vector_store %arg4[%c0_222, %c8_223], %523 {strides = array<i32>} : memref<8x32xf32, #tpu.memory_space<vmem>>, vector<8x8xf32>,
    %525 = vector.extract_strided_slice %474 {offsets = [0, 16], sizes = [8, 8], strides = [1, 1]} : vector<8x32xf32> to vector<8x8xf32>
    %526 = vector.extract_strided_slice %483 {offsets = [0, 16], sizes = [8, 8], strides = [1, 1]} : vector<8x32xf32> to vector<8x8xf32>
    %cst_224 = arith.constant dense<0.000000e+00> : vector<8x8xf32>
    %527 = tpu.matmul %525, %526, %cst_224 {dimension_numbers = #tpu.dot_dimension_numbers<[1], [1], [0], [0], [0, 0, 1, 0], [], []>} : vector<8x8xf32>, vector<8x8xf32>, vector<8x8xf32> -> vector<8x8xf32>
    %cst_225 = arith.constant 0.353553385 : f32
    %528 = vector.broadcast %cst_225 : f32 to vector<8x8xf32>
    %529 = arith.mulf %527, %528 : vector<8x8xf32>
    %cst_226 = arith.constant -1.000000e+30 : f32
    %530 = vector.broadcast %cst_226 : f32 to vector<8x8xf32>
    %531 = arith.select %468, %530, %529 : vector<8x8xi1>, vector<8x8xf32>
    %cst_227 = arith.constant dense<0xFF800000> : vector<8xf32>
    %532 = vector.multi_reduction <maximumf>, %531, %cst_227 [1] : vector<8x8xf32> to vector<8xf32>
    %533 = vector.shape_cast %532 : vector<8xf32> to vector<8x1xf32>
    %534 = vector.broadcast %533 : vector<8x1xf32> to vector<8x8xf32>
    %535 = arith.subf %531, %534 : vector<8x8xf32>
    %536 = math.exp %535 : vector<8x8xf32>
    %cst_228 = arith.constant dense<0.000000e+00> : vector<8xf32>
    %537 = vector.multi_reduction <add>, %536, %cst_228 [1] : vector<8x8xf32> to vector<8xf32>
    %538 = vector.shape_cast %537 : vector<8xf32> to vector<8x1xf32>
    %539 = tpu.reciprocal %538 {approx = true} : vector<8x1xf32> -> vector<8x1xf32>
    %540 = vector.broadcast %539 : vector<8x1xf32> to vector<8x8xf32>
    %541 = arith.mulf %536, %540 : vector<8x8xf32>
    %542 = vector.extract_strided_slice %484 {offsets = [0, 16], sizes = [8, 8], strides = [1, 1]} : vector<8x32xf32> to vector<8x8xf32>
    %cst_229 = arith.constant dense<0.000000e+00> : vector<8x8xf32>
    %543 = tpu.matmul %541, %542, %cst_229 {dimension_numbers = #tpu.dot_dimension_numbers<[1], [0], [0], [1], [0, 0, 1, 1], [], []>} : vector<8x8xf32>, vector<8x8xf32>, vector<8x8xf32> -> vector<8x8xf32>
    %c0_230 = arith.constant 0 : index
    %c16_231 = arith.constant 16 : index
    %544 = vector.load %arg4[%c0_230, %c16_231] : memref<8x32xf32, #tpu.memory_space<vmem>>, vector<8x8xf32>
    tpu.vector_store %arg4[%c0_230, %c16_231], %543 {strides = array<i32>} : memref<8x32xf32, #tpu.memory_space<vmem>>, vector<8x8xf32>,
    %545 = vector.extract_strided_slice %474 {offsets = [0, 24], sizes = [8, 8], strides = [1, 1]} : vector<8x32xf32> to vector<8x8xf32>
    %546 = vector.extract_strided_slice %483 {offsets = [0, 24], sizes = [8, 8], strides = [1, 1]} : vector<8x32xf32> to vector<8x8xf32>
    %cst_232 = arith.constant dense<0.000000e+00> : vector<8x8xf32>
    %547 = tpu.matmul %545, %546, %cst_232 {dimension_numbers = #tpu.dot_dimension_numbers<[1], [1], [0], [0], [0, 0, 1, 0], [], []>} : vector<8x8xf32>, vector<8x8xf32>, vector<8x8xf32> -> vector<8x8xf32>
    %cst_233 = arith.constant 0.353553385 : f32
    %548 = vector.broadcast %cst_233 : f32 to vector<8x8xf32>
    %549 = arith.mulf %547, %548 : vector<8x8xf32>
    %cst_234 = arith.constant -1.000000e+30 : f32
    %550 = vector.broadcast %cst_234 : f32 to vector<8x8xf32>
    %551 = arith.select %468, %550, %549 : vector<8x8xi1>, vector<8x8xf32>
    %cst_235 = arith.constant dense<0xFF800000> : vector<8xf32>
    %552 = vector.multi_reduction <maximumf>, %551, %cst_235 [1] : vector<8x8xf32> to vector<8xf32>
    %553 = vector.shape_cast %552 : vector<8xf32> to vector<8x1xf32>
    %554 = vector.broadcast %553 : vector<8x1xf32> to vector<8x8xf32>
    %555 = arith.subf %551, %554 : vector<8x8xf32>
    %556 = math.exp %555 : vector<8x8xf32>
    %cst_236 = arith.constant dense<0.000000e+00> : vector<8xf32>
    %557 = vector.multi_reduction <add>, %556, %cst_236 [1] : vector<8x8xf32> to vector<8xf32>
    %558 = vector.shape_cast %557 : vector<8xf32> to vector<8x1xf32>
    %559 = tpu.reciprocal %558 {approx = true} : vector<8x1xf32> -> vector<8x1xf32>
    %560 = vector.broadcast %559 : vector<8x1xf32> to vector<8x8xf32>
    %561 = arith.mulf %556, %560 : vector<8x8xf32>
    %562 = vector.extract_strided_slice %484 {offsets = [0, 24], sizes = [8, 8], strides = [1, 1]} : vector<8x32xf32> to vector<8x8xf32>
    %cst_237 = arith.constant dense<0.000000e+00> : vector<8x8xf32>
    %563 = tpu.matmul %561, %562, %cst_237 {dimension_numbers = #tpu.dot_dimension_numbers<[1], [0], [0], [1], [0, 0, 1, 1], [], []>} : vector<8x8xf32>, vector<8x8xf32>, vector<8x8xf32> -> vector<8x8xf32>
    %c0_238 = arith.constant 0 : index
    %c24_239 = arith.constant 24 : index
    %564 = vector.load %arg4[%c0_238, %c24_239] : memref<8x32xf32, #tpu.memory_space<vmem>>, vector<8x8xf32>
    tpu.vector_store %arg4[%c0_238, %c24_239], %563 {strides = array<i32>} : memref<8x32xf32, #tpu.memory_space<vmem>>, vector<8x8xf32>,
    %c0_240 = arith.constant 0 : index
    %c0_241 = arith.constant 0 : index
    %565 = vector.load %arg4[%c0_240, %c0_241] : memref<8x32xf32, #tpu.memory_space<vmem>>, vector<8x32xf32>
    %c0_242 = arith.constant 0 : index
    %c96_243 = arith.constant 96 : index
    %566 = vector.load %arg2[%c0_242, %c96_243] : memref<240x128xf32, #tpu.memory_space<vmem>>, vector<32x32xf32>
    %cst_244 = arith.constant dense<0.000000e+00> : vector<8x32xf32>
    %567 = tpu.matmul %565, %566, %cst_244 {dimension_numbers = #tpu.dot_dimension_numbers<[1], [0], [0], [1], [0, 0, 1, 1], [], []>} : vector<8x32xf32>, vector<32x32xf32>, vector<8x32xf32> -> vector<8x32xf32>
    %c48_245 = arith.constant 48 : index
    %c96_246 = arith.constant 96 : index
    %568 = vector.load %arg2[%c48_245, %c96_246] : memref<240x128xf32, #tpu.memory_space<vmem>>, vector<1x32xf32>
    %569 = vector.broadcast %568 : vector<1x32xf32> to vector<8x32xf32>
    %570 = arith.addf %567, %569 : vector<8x32xf32>
    %cst_247 = arith.constant 0.000000e+00 : f32
    %571 = vector.broadcast %cst_247 : f32 to vector<8x32xf32>
    %572 = arith.cmpf oge, %570, %571 : vector<8x32xf32>
    %cst_248 = arith.constant 0.00999999977 : f32
    %573 = vector.broadcast %cst_248 : f32 to vector<8x32xf32>
    %574 = arith.mulf %573, %570 : vector<8x32xf32>
    %575 = arith.select %572, %570, %574 : vector<8x32xi1>, vector<8x32xf32>
    %c56_249 = arith.constant 56 : index
    %c0_250 = arith.constant 0 : index
    %576 = vector.load %arg2[%c56_249, %c0_250] : memref<240x128xf32, #tpu.memory_space<vmem>>, vector<1x32xf32>
    %c56_251 = arith.constant 56 : index
    %c32_252 = arith.constant 32 : index
    %577 = vector.load %arg2[%c56_251, %c32_252] : memref<240x128xf32, #tpu.memory_space<vmem>>, vector<1x32xf32>
    %578 = arith.addf %575, %460 : vector<8x32xf32>
    %cst_253 = arith.constant dense<0.000000e+00> : vector<8xf32>
    %579 = vector.multi_reduction <add>, %578, %cst_253 [1] : vector<8x32xf32> to vector<8xf32>
    %580 = vector.shape_cast %579 : vector<8xf32> to vector<8x1xf32>
    %cst_254 = arith.constant 3.200000e+01 : f32
    %581 = vector.broadcast %cst_254 : f32 to vector<8x1xf32>
    %582 = arith.divf %580, %581 : vector<8x1xf32>
    %583 = vector.broadcast %582 : vector<8x1xf32> to vector<8x32xf32>
    %584 = arith.subf %578, %583 : vector<8x32xf32>
    %585 = arith.mulf %584, %584 : vector<8x32xf32>
    %cst_255 = arith.constant dense<0.000000e+00> : vector<8xf32>
    %586 = vector.multi_reduction <add>, %585, %cst_255 [1] : vector<8x32xf32> to vector<8xf32>
    %587 = vector.shape_cast %586 : vector<8xf32> to vector<8x1xf32>
    %cst_256 = arith.constant 3.200000e+01 : f32
    %588 = vector.broadcast %cst_256 : f32 to vector<8x1xf32>
    %589 = arith.divf %587, %588 : vector<8x1xf32>
    %590 = vector.broadcast %582 : vector<8x1xf32> to vector<8x32xf32>
    %591 = arith.subf %578, %590 : vector<8x32xf32>
    %cst_257 = arith.constant 9.99999974E-6 : f32
    %592 = vector.broadcast %cst_257 : f32 to vector<8x1xf32>
    %593 = arith.addf %589, %592 : vector<8x1xf32>
    %594 = math.rsqrt %593 : vector<8x1xf32>
    %595 = vector.broadcast %594 : vector<8x1xf32> to vector<8x32xf32>
    %596 = arith.mulf %591, %595 : vector<8x32xf32>
    %597 = vector.broadcast %576 : vector<1x32xf32> to vector<8x32xf32>
    %598 = arith.mulf %596, %597 : vector<8x32xf32>
    %599 = vector.broadcast %577 : vector<1x32xf32> to vector<8x32xf32>
    %600 = arith.addf %598, %599 : vector<8x32xf32>
    %c1_i32_258 = arith.constant 1 : i32
    %601 = tpu.dynamic_rotate %460 by %c1_i32_258 dim 0 : vector<8x32xf32>, i32 -> vector<8x32xf32>
    %cst_259 = arith.constant 0.000000e+00 : f32
    %602 = vector.broadcast %cst_259 : f32 to vector<8x32xf32>
    %603 = arith.select %6, %602, %601 : vector<8x32xi1>, vector<8x32xf32>
    %c0_260 = arith.constant 0 : index
    %c0_261 = arith.constant 0 : index
    %604 = vector.load %arg5[%c0_260, %c0_261] : memref<8x96xf32, #tpu.memory_space<vmem>>, vector<8x32xf32>
    tpu.vector_store %arg5[%c0_260, %c0_261], %460 {strides = array<i32>} : memref<8x96xf32, #tpu.memory_space<vmem>>, vector<8x32xf32>,
    %c0_262 = arith.constant 0 : index
    %c32_263 = arith.constant 32 : index
    %605 = vector.load %arg5[%c0_262, %c32_263] : memref<8x96xf32, #tpu.memory_space<vmem>>, vector<8x32xf32>
    tpu.vector_store %arg5[%c0_262, %c32_263], %603 {strides = array<i32>} : memref<8x96xf32, #tpu.memory_space<vmem>>, vector<8x32xf32>,
    %c0_264 = arith.constant 0 : index
    %c64_265 = arith.constant 64 : index
    %606 = vector.load %arg5[%c0_264, %c64_265] : memref<8x96xf32, #tpu.memory_space<vmem>>, vector<8x32xf32>
    tpu.vector_store %arg5[%c0_264, %c64_265], %600 {strides = array<i32>} : memref<8x96xf32, #tpu.memory_space<vmem>>, vector<8x32xf32>,
    %c0_266 = arith.constant 0 : index
    %c0_267 = arith.constant 0 : index
    %607 = vector.load %arg5[%c0_266, %c0_267] : memref<8x96xf32, #tpu.memory_space<vmem>>, vector<8x96xf32>
    %c128_268 = arith.constant 128 : index
    %c0_269 = arith.constant 0 : index
    %608 = vector.load %arg2[%c128_268, %c0_269] : memref<240x128xf32, #tpu.memory_space<vmem>>, vector<96x128xf32>
    %cst_270 = arith.constant dense<0.000000e+00> : vector<8x128xf32>
    %609 = tpu.matmul %607, %608, %cst_270 {dimension_numbers = #tpu.dot_dimension_numbers<[1], [0], [0], [1], [0, 0, 1, 1], [], []>} : vector<8x96xf32>, vector<96x128xf32>, vector<8x128xf32> -> vector<8x128xf32>
    %c224_271 = arith.constant 224 : index
    %c0_272 = arith.constant 0 : index
    %610 = vector.load %arg2[%c224_271, %c0_272] : memref<240x128xf32, #tpu.memory_space<vmem>>, vector<1x128xf32>
    %611 = vector.broadcast %610 : vector<1x128xf32> to vector<8x128xf32>
    %612 = arith.addf %609, %611 : vector<8x128xf32>
    %613 = vector.extract_strided_slice %612 {offsets = [0, 0], sizes = [8, 32], strides = [1, 1]} : vector<8x128xf32> to vector<8x32xf32>
    %614 = arith.negf %613 : vector<8x32xf32>
    %615 = math.exp %614 : vector<8x32xf32>
    %cst_273 = arith.constant 1.000000e+00 : f32
    %616 = vector.broadcast %cst_273 : f32 to vector<8x32xf32>
    %617 = arith.addf %616, %615 : vector<8x32xf32>
    %618 = arith.divf %616, %617 : vector<8x32xf32>
    %619 = vector.extract_strided_slice %612 {offsets = [0, 32], sizes = [8, 32], strides = [1, 1]} : vector<8x128xf32> to vector<8x32xf32>
    %620 = arith.negf %619 : vector<8x32xf32>
    %621 = math.exp %620 : vector<8x32xf32>
    %cst_274 = arith.constant 1.000000e+00 : f32
    %622 = vector.broadcast %cst_274 : f32 to vector<8x32xf32>
    %623 = arith.addf %622, %621 : vector<8x32xf32>
    %624 = arith.divf %622, %623 : vector<8x32xf32>
    %625 = vector.extract_strided_slice %612 {offsets = [0, 64], sizes = [8, 32], strides = [1, 1]} : vector<8x128xf32> to vector<8x32xf32>
    %626 = arith.negf %625 : vector<8x32xf32>
    %627 = math.exp %626 : vector<8x32xf32>
    %cst_275 = arith.constant 1.000000e+00 : f32
    %628 = vector.broadcast %cst_275 : f32 to vector<8x32xf32>
    %629 = arith.addf %628, %627 : vector<8x32xf32>
    %630 = arith.divf %628, %629 : vector<8x32xf32>
    %631 = vector.extract_strided_slice %612 {offsets = [0, 96], sizes = [8, 32], strides = [1, 1]} : vector<8x128xf32> to vector<8x32xf32>
    %632 = math.tanh %631 : vector<8x32xf32>
    %633 = arith.maximumf %618, %624 : vector<8x32xf32>
    %634 = arith.maximumf %633, %630 : vector<8x32xf32>
    %635 = arith.subf %618, %634 : vector<8x32xf32>
    %636 = math.exp %635 : vector<8x32xf32>
    %637 = arith.subf %624, %634 : vector<8x32xf32>
    %638 = math.exp %637 : vector<8x32xf32>
    %639 = arith.subf %630, %634 : vector<8x32xf32>
    %640 = math.exp %639 : vector<8x32xf32>
    %641 = arith.addf %636, %638 : vector<8x32xf32>
    %642 = arith.addf %641, %640 : vector<8x32xf32>
    %643 = tpu.reciprocal %642 {approx = true} : vector<8x32xf32> -> vector<8x32xf32>
    %644 = arith.mulf %636, %632 : vector<8x32xf32>
    %645 = arith.mulf %638, %603 : vector<8x32xf32>
    %646 = arith.addf %644, %645 : vector<8x32xf32>
    %647 = arith.mulf %640, %600 : vector<8x32xf32>
    %648 = arith.addf %646, %647 : vector<8x32xf32>
    %649 = arith.mulf %648, %643 : vector<8x32xf32>
    %650 = arith.addf %460, %649 : vector<8x32xf32>
    %cst_276 = arith.constant dense<0.000000e+00> : vector<8xf32>
    %651 = vector.multi_reduction <add>, %650, %cst_276 [1] : vector<8x32xf32> to vector<8xf32>
    %652 = vector.shape_cast %651 : vector<8xf32> to vector<8x1xf32>
    %cst_277 = arith.constant 3.200000e+01 : f32
    %653 = vector.broadcast %cst_277 : f32 to vector<8x1xf32>
    %654 = arith.divf %652, %653 : vector<8x1xf32>
    %655 = vector.broadcast %654 : vector<8x1xf32> to vector<8x32xf32>
    %656 = arith.subf %650, %655 : vector<8x32xf32>
    %657 = arith.mulf %656, %656 : vector<8x32xf32>
    %cst_278 = arith.constant dense<0.000000e+00> : vector<8xf32>
    %658 = vector.multi_reduction <add>, %657, %cst_278 [1] : vector<8x32xf32> to vector<8xf32>
    %659 = vector.shape_cast %658 : vector<8xf32> to vector<8x1xf32>
    %cst_279 = arith.constant 3.200000e+01 : f32
    %660 = vector.broadcast %cst_279 : f32 to vector<8x1xf32>
    %661 = arith.divf %659, %660 : vector<8x1xf32>
    %662 = vector.broadcast %654 : vector<8x1xf32> to vector<8x32xf32>
    %663 = arith.subf %650, %662 : vector<8x32xf32>
    %cst_280 = arith.constant 9.99999974E-6 : f32
    %664 = vector.broadcast %cst_280 : f32 to vector<8x1xf32>
    %665 = arith.addf %661, %664 : vector<8x1xf32>
    %666 = math.rsqrt %665 : vector<8x1xf32>
    %667 = vector.broadcast %666 : vector<8x1xf32> to vector<8x32xf32>
    %668 = arith.mulf %663, %667 : vector<8x32xf32>
    %669 = vector.broadcast %0 : vector<1x32xf32> to vector<8x32xf32>
    %670 = arith.mulf %668, %669 : vector<8x32xf32>
    %671 = vector.broadcast %1 : vector<1x32xf32> to vector<8x32xf32>
    %672 = arith.addf %670, %671 : vector<8x32xf32>
    %cst_281 = arith.constant dense<0.000000e+00> : vector<8x32xf32>
    %673 = tpu.matmul %462, %672, %cst_281 {dimension_numbers = #tpu.dot_dimension_numbers<[1], [0], [0], [1], [0, 0, 1, 1], [], []>} : vector<8x8xf32>, vector<8x32xf32>, vector<8x32xf32> -> vector<8x32xf32>
    %c64_282 = arith.constant 64 : index
    %c0_283 = arith.constant 0 : index
    %674 = vector.load %arg2[%c64_282, %c0_283] : memref<240x128xf32, #tpu.memory_space<vmem>>, vector<32x32xf32>
    %cst_284 = arith.constant dense<0.000000e+00> : vector<8x32xf32>
    %675 = tpu.matmul %672, %674, %cst_284 {dimension_numbers = #tpu.dot_dimension_numbers<[1], [0], [0], [1], [0, 0, 1, 1], [], []>} : vector<8x32xf32>, vector<32x32xf32>, vector<8x32xf32> -> vector<8x32xf32>
    %c112_285 = arith.constant 112 : index
    %c0_286 = arith.constant 0 : index
    %676 = vector.load %arg2[%c112_285, %c0_286] : memref<240x128xf32, #tpu.memory_space<vmem>>, vector<1x32xf32>
    %677 = vector.broadcast %676 : vector<1x32xf32> to vector<8x32xf32>
    %678 = arith.addf %675, %677 : vector<8x32xf32>
    %c64_287 = arith.constant 64 : index
    %c32_288 = arith.constant 32 : index
    %679 = vector.load %arg2[%c64_287, %c32_288] : memref<240x128xf32, #tpu.memory_space<vmem>>, vector<32x64xf32>
    %cst_289 = arith.constant dense<0.000000e+00> : vector<8x64xf32>
    %680 = tpu.matmul %673, %679, %cst_289 {dimension_numbers = #tpu.dot_dimension_numbers<[1], [0], [0], [1], [0, 0, 1, 1], [], []>} : vector<8x32xf32>, vector<32x64xf32>, vector<8x64xf32> -> vector<8x64xf32>
    %c96_290 = arith.constant 96 : index
    %c32_291 = arith.constant 32 : index
    %681 = vector.load %arg2[%c96_290, %c32_291] : memref<240x128xf32, #tpu.memory_space<vmem>>, vector<10x64xf32>
    %cst_292 = arith.constant dense<0.000000e+00> : vector<8x64xf32>
    %682 = tpu.matmul %466, %681, %cst_292 {dimension_numbers = #tpu.dot_dimension_numbers<[1], [0], [0], [1], [0, 0, 1, 1], [], []>} : vector<8x10xf32>, vector<10x64xf32>, vector<8x64xf32> -> vector<8x64xf32>
    %683 = arith.addf %680, %682 : vector<8x64xf32>
    %c112_293 = arith.constant 112 : index
    %c32_294 = arith.constant 32 : index
    %684 = vector.load %arg2[%c112_293, %c32_294] : memref<240x128xf32, #tpu.memory_space<vmem>>, vector<1x64xf32>
    %685 = vector.broadcast %684 : vector<1x64xf32> to vector<8x64xf32>
    %686 = arith.addf %683, %685 : vector<8x64xf32>
    %687 = vector.extract_strided_slice %686 {offsets = [0, 0], sizes = [8, 32], strides = [1, 1]} : vector<8x64xf32> to vector<8x32xf32>
    %688 = vector.extract_strided_slice %686 {offsets = [0, 32], sizes = [8, 32], strides = [1, 1]} : vector<8x64xf32> to vector<8x32xf32>
    %689 = vector.extract_strided_slice %678 {offsets = [0, 0], sizes = [8, 8], strides = [1, 1]} : vector<8x32xf32> to vector<8x8xf32>
    %690 = vector.extract_strided_slice %687 {offsets = [0, 0], sizes = [8, 8], strides = [1, 1]} : vector<8x32xf32> to vector<8x8xf32>
    %cst_295 = arith.constant dense<0.000000e+00> : vector<8x8xf32>
    %691 = tpu.matmul %689, %690, %cst_295 {dimension_numbers = #tpu.dot_dimension_numbers<[1], [1], [0], [0], [0, 0, 1, 0], [], []>} : vector<8x8xf32>, vector<8x8xf32>, vector<8x8xf32> -> vector<8x8xf32>
    %cst_296 = arith.constant 0.353553385 : f32
    %692 = vector.broadcast %cst_296 : f32 to vector<8x8xf32>
    %693 = arith.mulf %691, %692 : vector<8x8xf32>
    %cst_297 = arith.constant -1.000000e+30 : f32
    %694 = vector.broadcast %cst_297 : f32 to vector<8x8xf32>
    %695 = arith.select %468, %694, %693 : vector<8x8xi1>, vector<8x8xf32>
    %cst_298 = arith.constant dense<0xFF800000> : vector<8xf32>
    %696 = vector.multi_reduction <maximumf>, %695, %cst_298 [1] : vector<8x8xf32> to vector<8xf32>
    %697 = vector.shape_cast %696 : vector<8xf32> to vector<8x1xf32>
    %698 = vector.broadcast %697 : vector<8x1xf32> to vector<8x8xf32>
    %699 = arith.subf %695, %698 : vector<8x8xf32>
    %700 = math.exp %699 : vector<8x8xf32>
    %cst_299 = arith.constant dense<0.000000e+00> : vector<8xf32>
    %701 = vector.multi_reduction <add>, %700, %cst_299 [1] : vector<8x8xf32> to vector<8xf32>
    %702 = vector.shape_cast %701 : vector<8xf32> to vector<8x1xf32>
    %703 = tpu.reciprocal %702 {approx = true} : vector<8x1xf32> -> vector<8x1xf32>
    %704 = vector.broadcast %703 : vector<8x1xf32> to vector<8x8xf32>
    %705 = arith.mulf %700, %704 : vector<8x8xf32>
    %706 = vector.extract_strided_slice %688 {offsets = [0, 0], sizes = [8, 8], strides = [1, 1]} : vector<8x32xf32> to vector<8x8xf32>
    %cst_300 = arith.constant dense<0.000000e+00> : vector<8x8xf32>
    %707 = tpu.matmul %705, %706, %cst_300 {dimension_numbers = #tpu.dot_dimension_numbers<[1], [0], [0], [1], [0, 0, 1, 1], [], []>} : vector<8x8xf32>, vector<8x8xf32>, vector<8x8xf32> -> vector<8x8xf32>
    %c0_301 = arith.constant 0 : index
    %c0_302 = arith.constant 0 : index
    %708 = vector.load %arg4[%c0_301, %c0_302] : memref<8x32xf32, #tpu.memory_space<vmem>>, vector<8x8xf32>
    tpu.vector_store %arg4[%c0_301, %c0_302], %707 {strides = array<i32>} : memref<8x32xf32, #tpu.memory_space<vmem>>, vector<8x8xf32>,
    %709 = vector.extract_strided_slice %678 {offsets = [0, 8], sizes = [8, 8], strides = [1, 1]} : vector<8x32xf32> to vector<8x8xf32>
    %710 = vector.extract_strided_slice %687 {offsets = [0, 8], sizes = [8, 8], strides = [1, 1]} : vector<8x32xf32> to vector<8x8xf32>
    %cst_303 = arith.constant dense<0.000000e+00> : vector<8x8xf32>
    %711 = tpu.matmul %709, %710, %cst_303 {dimension_numbers = #tpu.dot_dimension_numbers<[1], [1], [0], [0], [0, 0, 1, 0], [], []>} : vector<8x8xf32>, vector<8x8xf32>, vector<8x8xf32> -> vector<8x8xf32>
    %cst_304 = arith.constant 0.353553385 : f32
    %712 = vector.broadcast %cst_304 : f32 to vector<8x8xf32>
    %713 = arith.mulf %711, %712 : vector<8x8xf32>
    %cst_305 = arith.constant -1.000000e+30 : f32
    %714 = vector.broadcast %cst_305 : f32 to vector<8x8xf32>
    %715 = arith.select %468, %714, %713 : vector<8x8xi1>, vector<8x8xf32>
    %cst_306 = arith.constant dense<0xFF800000> : vector<8xf32>
    %716 = vector.multi_reduction <maximumf>, %715, %cst_306 [1] : vector<8x8xf32> to vector<8xf32>
    %717 = vector.shape_cast %716 : vector<8xf32> to vector<8x1xf32>
    %718 = vector.broadcast %717 : vector<8x1xf32> to vector<8x8xf32>
    %719 = arith.subf %715, %718 : vector<8x8xf32>
    %720 = math.exp %719 : vector<8x8xf32>
    %cst_307 = arith.constant dense<0.000000e+00> : vector<8xf32>
    %721 = vector.multi_reduction <add>, %720, %cst_307 [1] : vector<8x8xf32> to vector<8xf32>
    %722 = vector.shape_cast %721 : vector<8xf32> to vector<8x1xf32>
    %723 = tpu.reciprocal %722 {approx = true} : vector<8x1xf32> -> vector<8x1xf32>
    %724 = vector.broadcast %723 : vector<8x1xf32> to vector<8x8xf32>
    %725 = arith.mulf %720, %724 : vector<8x8xf32>
    %726 = vector.extract_strided_slice %688 {offsets = [0, 8], sizes = [8, 8], strides = [1, 1]} : vector<8x32xf32> to vector<8x8xf32>
    %cst_308 = arith.constant dense<0.000000e+00> : vector<8x8xf32>
    %727 = tpu.matmul %725, %726, %cst_308 {dimension_numbers = #tpu.dot_dimension_numbers<[1], [0], [0], [1], [0, 0, 1, 1], [], []>} : vector<8x8xf32>, vector<8x8xf32>, vector<8x8xf32> -> vector<8x8xf32>
    %c0_309 = arith.constant 0 : index
    %c8_310 = arith.constant 8 : index
    %728 = vector.load %arg4[%c0_309, %c8_310] : memref<8x32xf32, #tpu.memory_space<vmem>>, vector<8x8xf32>
    tpu.vector_store %arg4[%c0_309, %c8_310], %727 {strides = array<i32>} : memref<8x32xf32, #tpu.memory_space<vmem>>, vector<8x8xf32>,
    %729 = vector.extract_strided_slice %678 {offsets = [0, 16], sizes = [8, 8], strides = [1, 1]} : vector<8x32xf32> to vector<8x8xf32>
    %730 = vector.extract_strided_slice %687 {offsets = [0, 16], sizes = [8, 8], strides = [1, 1]} : vector<8x32xf32> to vector<8x8xf32>
    %cst_311 = arith.constant dense<0.000000e+00> : vector<8x8xf32>
    %731 = tpu.matmul %729, %730, %cst_311 {dimension_numbers = #tpu.dot_dimension_numbers<[1], [1], [0], [0], [0, 0, 1, 0], [], []>} : vector<8x8xf32>, vector<8x8xf32>, vector<8x8xf32> -> vector<8x8xf32>
    %cst_312 = arith.constant 0.353553385 : f32
    %732 = vector.broadcast %cst_312 : f32 to vector<8x8xf32>
    %733 = arith.mulf %731, %732 : vector<8x8xf32>
    %cst_313 = arith.constant -1.000000e+30 : f32
    %734 = vector.broadcast %cst_313 : f32 to vector<8x8xf32>
    %735 = arith.select %468, %734, %733 : vector<8x8xi1>, vector<8x8xf32>
    %cst_314 = arith.constant dense<0xFF800000> : vector<8xf32>
    %736 = vector.multi_reduction <maximumf>, %735, %cst_314 [1] : vector<8x8xf32> to vector<8xf32>
    %737 = vector.shape_cast %736 : vector<8xf32> to vector<8x1xf32>
    %738 = vector.broadcast %737 : vector<8x1xf32> to vector<8x8xf32>
    %739 = arith.subf %735, %738 : vector<8x8xf32>
    %740 = math.exp %739 : vector<8x8xf32>
    %cst_315 = arith.constant dense<0.000000e+00> : vector<8xf32>
    %741 = vector.multi_reduction <add>, %740, %cst_315 [1] : vector<8x8xf32> to vector<8xf32>
    %742 = vector.shape_cast %741 : vector<8xf32> to vector<8x1xf32>
    %743 = tpu.reciprocal %742 {approx = true} : vector<8x1xf32> -> vector<8x1xf32>
    %744 = vector.broadcast %743 : vector<8x1xf32> to vector<8x8xf32>
    %745 = arith.mulf %740, %744 : vector<8x8xf32>
    %746 = vector.extract_strided_slice %688 {offsets = [0, 16], sizes = [8, 8], strides = [1, 1]} : vector<8x32xf32> to vector<8x8xf32>
    %cst_316 = arith.constant dense<0.000000e+00> : vector<8x8xf32>
    %747 = tpu.matmul %745, %746, %cst_316 {dimension_numbers = #tpu.dot_dimension_numbers<[1], [0], [0], [1], [0, 0, 1, 1], [], []>} : vector<8x8xf32>, vector<8x8xf32>, vector<8x8xf32> -> vector<8x8xf32>
    %c0_317 = arith.constant 0 : index
    %c16_318 = arith.constant 16 : index
    %748 = vector.load %arg4[%c0_317, %c16_318] : memref<8x32xf32, #tpu.memory_space<vmem>>, vector<8x8xf32>
    tpu.vector_store %arg4[%c0_317, %c16_318], %747 {strides = array<i32>} : memref<8x32xf32, #tpu.memory_space<vmem>>, vector<8x8xf32>,
    %749 = vector.extract_strided_slice %678 {offsets = [0, 24], sizes = [8, 8], strides = [1, 1]} : vector<8x32xf32> to vector<8x8xf32>
    %750 = vector.extract_strided_slice %687 {offsets = [0, 24], sizes = [8, 8], strides = [1, 1]} : vector<8x32xf32> to vector<8x8xf32>
    %cst_319 = arith.constant dense<0.000000e+00> : vector<8x8xf32>
    %751 = tpu.matmul %749, %750, %cst_319 {dimension_numbers = #tpu.dot_dimension_numbers<[1], [1], [0], [0], [0, 0, 1, 0], [], []>} : vector<8x8xf32>, vector<8x8xf32>, vector<8x8xf32> -> vector<8x8xf32>
    %cst_320 = arith.constant 0.353553385 : f32
    %752 = vector.broadcast %cst_320 : f32 to vector<8x8xf32>
    %753 = arith.mulf %751, %752 : vector<8x8xf32>
    %cst_321 = arith.constant -1.000000e+30 : f32
    %754 = vector.broadcast %cst_321 : f32 to vector<8x8xf32>
    %755 = arith.select %468, %754, %753 : vector<8x8xi1>, vector<8x8xf32>
    %cst_322 = arith.constant dense<0xFF800000> : vector<8xf32>
    %756 = vector.multi_reduction <maximumf>, %755, %cst_322 [1] : vector<8x8xf32> to vector<8xf32>
    %757 = vector.shape_cast %756 : vector<8xf32> to vector<8x1xf32>
    %758 = vector.broadcast %757 : vector<8x1xf32> to vector<8x8xf32>
    %759 = arith.subf %755, %758 : vector<8x8xf32>
    %760 = math.exp %759 : vector<8x8xf32>
    %cst_323 = arith.constant dense<0.000000e+00> : vector<8xf32>
    %761 = vector.multi_reduction <add>, %760, %cst_323 [1] : vector<8x8xf32> to vector<8xf32>
    %762 = vector.shape_cast %761 : vector<8xf32> to vector<8x1xf32>
    %763 = tpu.reciprocal %762 {approx = true} : vector<8x1xf32> -> vector<8x1xf32>
    %764 = vector.broadcast %763 : vector<8x1xf32> to vector<8x8xf32>
    %765 = arith.mulf %760, %764 : vector<8x8xf32>
    %766 = vector.extract_strided_slice %688 {offsets = [0, 24], sizes = [8, 8], strides = [1, 1]} : vector<8x32xf32> to vector<8x8xf32>
    %cst_324 = arith.constant dense<0.000000e+00> : vector<8x8xf32>
    %767 = tpu.matmul %765, %766, %cst_324 {dimension_numbers = #tpu.dot_dimension_numbers<[1], [0], [0], [1], [0, 0, 1, 1], [], []>} : vector<8x8xf32>, vector<8x8xf32>, vector<8x8xf32> -> vector<8x8xf32>
    %c0_325 = arith.constant 0 : index
    %c24_326 = arith.constant 24 : index
    %768 = vector.load %arg4[%c0_325, %c24_326] : memref<8x32xf32, #tpu.memory_space<vmem>>, vector<8x8xf32>
    tpu.vector_store %arg4[%c0_325, %c24_326], %767 {strides = array<i32>} : memref<8x32xf32, #tpu.memory_space<vmem>>, vector<8x8xf32>,
    %c0_327 = arith.constant 0 : index
    %c0_328 = arith.constant 0 : index
    %769 = vector.load %arg4[%c0_327, %c0_328] : memref<8x32xf32, #tpu.memory_space<vmem>>, vector<8x32xf32>
    %c64_329 = arith.constant 64 : index
    %c96_330 = arith.constant 96 : index
    %770 = vector.load %arg2[%c64_329, %c96_330] : memref<240x128xf32, #tpu.memory_space<vmem>>, vector<32x32xf32>
    %cst_331 = arith.constant dense<0.000000e+00> : vector<8x32xf32>
    %771 = tpu.matmul %769, %770, %cst_331 {dimension_numbers = #tpu.dot_dimension_numbers<[1], [0], [0], [1], [0, 0, 1, 1], [], []>} : vector<8x32xf32>, vector<32x32xf32>, vector<8x32xf32> -> vector<8x32xf32>
    %c112_332 = arith.constant 112 : index
    %c96_333 = arith.constant 96 : index
    %772 = vector.load %arg2[%c112_332, %c96_333] : memref<240x128xf32, #tpu.memory_space<vmem>>, vector<1x32xf32>
    %773 = vector.broadcast %772 : vector<1x32xf32> to vector<8x32xf32>
    %774 = arith.addf %771, %773 : vector<8x32xf32>
    %cst_334 = arith.constant 0.000000e+00 : f32
    %775 = vector.broadcast %cst_334 : f32 to vector<8x32xf32>
    %776 = arith.cmpf oge, %774, %775 : vector<8x32xf32>
    %cst_335 = arith.constant 0.00999999977 : f32
    %777 = vector.broadcast %cst_335 : f32 to vector<8x32xf32>
    %778 = arith.mulf %777, %774 : vector<8x32xf32>
    %779 = arith.select %776, %774, %778 : vector<8x32xi1>, vector<8x32xf32>
    %c120_336 = arith.constant 120 : index
    %c0_337 = arith.constant 0 : index
    %780 = vector.load %arg2[%c120_336, %c0_337] : memref<240x128xf32, #tpu.memory_space<vmem>>, vector<1x32xf32>
    %c120_338 = arith.constant 120 : index
    %c32_339 = arith.constant 32 : index
    %781 = vector.load %arg2[%c120_338, %c32_339] : memref<240x128xf32, #tpu.memory_space<vmem>>, vector<1x32xf32>
    %782 = arith.addf %779, %672 : vector<8x32xf32>
    %cst_340 = arith.constant dense<0.000000e+00> : vector<8xf32>
    %783 = vector.multi_reduction <add>, %782, %cst_340 [1] : vector<8x32xf32> to vector<8xf32>
    %784 = vector.shape_cast %783 : vector<8xf32> to vector<8x1xf32>
    %cst_341 = arith.constant 3.200000e+01 : f32
    %785 = vector.broadcast %cst_341 : f32 to vector<8x1xf32>
    %786 = arith.divf %784, %785 : vector<8x1xf32>
    %787 = vector.broadcast %786 : vector<8x1xf32> to vector<8x32xf32>
    %788 = arith.subf %782, %787 : vector<8x32xf32>
    %789 = arith.mulf %788, %788 : vector<8x32xf32>
    %cst_342 = arith.constant dense<0.000000e+00> : vector<8xf32>
    %790 = vector.multi_reduction <add>, %789, %cst_342 [1] : vector<8x32xf32> to vector<8xf32>
    %791 = vector.shape_cast %790 : vector<8xf32> to vector<8x1xf32>
    %cst_343 = arith.constant 3.200000e+01 : f32
    %792 = vector.broadcast %cst_343 : f32 to vector<8x1xf32>
    %793 = arith.divf %791, %792 : vector<8x1xf32>
    %794 = vector.broadcast %786 : vector<8x1xf32> to vector<8x32xf32>
    %795 = arith.subf %782, %794 : vector<8x32xf32>
    %cst_344 = arith.constant 9.99999974E-6 : f32
    %796 = vector.broadcast %cst_344 : f32 to vector<8x1xf32>
    %797 = arith.addf %793, %796 : vector<8x1xf32>
    %798 = math.rsqrt %797 : vector<8x1xf32>
    %799 = vector.broadcast %798 : vector<8x1xf32> to vector<8x32xf32>
    %800 = arith.mulf %795, %799 : vector<8x32xf32>
    %801 = vector.broadcast %780 : vector<1x32xf32> to vector<8x32xf32>
    %802 = arith.mulf %800, %801 : vector<8x32xf32>
    %803 = vector.broadcast %781 : vector<1x32xf32> to vector<8x32xf32>
    %804 = arith.addf %802, %803 : vector<8x32xf32>
    %c1_i32_345 = arith.constant 1 : i32
    %805 = tpu.dynamic_rotate %672 by %c1_i32_345 dim 0 : vector<8x32xf32>, i32 -> vector<8x32xf32>
    %cst_346 = arith.constant 0.000000e+00 : f32
    %806 = vector.broadcast %cst_346 : f32 to vector<8x32xf32>
    %807 = arith.select %6, %806, %805 : vector<8x32xi1>, vector<8x32xf32>
    %c0_347 = arith.constant 0 : index
    %c0_348 = arith.constant 0 : index
    %808 = vector.load %arg5[%c0_347, %c0_348] : memref<8x96xf32, #tpu.memory_space<vmem>>, vector<8x32xf32>
    tpu.vector_store %arg5[%c0_347, %c0_348], %672 {strides = array<i32>} : memref<8x96xf32, #tpu.memory_space<vmem>>, vector<8x32xf32>,
    %c0_349 = arith.constant 0 : index
    %c32_350 = arith.constant 32 : index
    %809 = vector.load %arg5[%c0_349, %c32_350] : memref<8x96xf32, #tpu.memory_space<vmem>>, vector<8x32xf32>
    tpu.vector_store %arg5[%c0_349, %c32_350], %807 {strides = array<i32>} : memref<8x96xf32, #tpu.memory_space<vmem>>, vector<8x32xf32>,
    %c0_351 = arith.constant 0 : index
    %c64_352 = arith.constant 64 : index
    %810 = vector.load %arg5[%c0_351, %c64_352] : memref<8x96xf32, #tpu.memory_space<vmem>>, vector<8x32xf32>
    tpu.vector_store %arg5[%c0_351, %c64_352], %804 {strides = array<i32>} : memref<8x96xf32, #tpu.memory_space<vmem>>, vector<8x32xf32>,
    %c0_353 = arith.constant 0 : index
    %c0_354 = arith.constant 0 : index
    %811 = vector.load %arg5[%c0_353, %c0_354] : memref<8x96xf32, #tpu.memory_space<vmem>>, vector<8x96xf32>
    %c128_355 = arith.constant 128 : index
    %c0_356 = arith.constant 0 : index
    %812 = vector.load %arg2[%c128_355, %c0_356] : memref<240x128xf32, #tpu.memory_space<vmem>>, vector<96x128xf32>
    %cst_357 = arith.constant dense<0.000000e+00> : vector<8x128xf32>
    %813 = tpu.matmul %811, %812, %cst_357 {dimension_numbers = #tpu.dot_dimension_numbers<[1], [0], [0], [1], [0, 0, 1, 1], [], []>} : vector<8x96xf32>, vector<96x128xf32>, vector<8x128xf32> -> vector<8x128xf32>
    %c224_358 = arith.constant 224 : index
    %c0_359 = arith.constant 0 : index
    %814 = vector.load %arg2[%c224_358, %c0_359] : memref<240x128xf32, #tpu.memory_space<vmem>>, vector<1x128xf32>
    %815 = vector.broadcast %814 : vector<1x128xf32> to vector<8x128xf32>
    %816 = arith.addf %813, %815 : vector<8x128xf32>
    %817 = vector.extract_strided_slice %816 {offsets = [0, 0], sizes = [8, 32], strides = [1, 1]} : vector<8x128xf32> to vector<8x32xf32>
    %818 = arith.negf %817 : vector<8x32xf32>
    %819 = math.exp %818 : vector<8x32xf32>
    %cst_360 = arith.constant 1.000000e+00 : f32
    %820 = vector.broadcast %cst_360 : f32 to vector<8x32xf32>
    %821 = arith.addf %820, %819 : vector<8x32xf32>
    %822 = arith.divf %820, %821 : vector<8x32xf32>
    %823 = vector.extract_strided_slice %816 {offsets = [0, 32], sizes = [8, 32], strides = [1, 1]} : vector<8x128xf32> to vector<8x32xf32>
    %824 = arith.negf %823 : vector<8x32xf32>
    %825 = math.exp %824 : vector<8x32xf32>
    %cst_361 = arith.constant 1.000000e+00 : f32
    %826 = vector.broadcast %cst_361 : f32 to vector<8x32xf32>
    %827 = arith.addf %826, %825 : vector<8x32xf32>
    %828 = arith.divf %826, %827 : vector<8x32xf32>
    %829 = vector.extract_strided_slice %816 {offsets = [0, 64], sizes = [8, 32], strides = [1, 1]} : vector<8x128xf32> to vector<8x32xf32>
    %830 = arith.negf %829 : vector<8x32xf32>
    %831 = math.exp %830 : vector<8x32xf32>
    %cst_362 = arith.constant 1.000000e+00 : f32
    %832 = vector.broadcast %cst_362 : f32 to vector<8x32xf32>
    %833 = arith.addf %832, %831 : vector<8x32xf32>
    %834 = arith.divf %832, %833 : vector<8x32xf32>
    %835 = vector.extract_strided_slice %816 {offsets = [0, 96], sizes = [8, 32], strides = [1, 1]} : vector<8x128xf32> to vector<8x32xf32>
    %836 = math.tanh %835 : vector<8x32xf32>
    %837 = arith.maximumf %822, %828 : vector<8x32xf32>
    %838 = arith.maximumf %837, %834 : vector<8x32xf32>
    %839 = arith.subf %822, %838 : vector<8x32xf32>
    %840 = math.exp %839 : vector<8x32xf32>
    %841 = arith.subf %828, %838 : vector<8x32xf32>
    %842 = math.exp %841 : vector<8x32xf32>
    %843 = arith.subf %834, %838 : vector<8x32xf32>
    %844 = math.exp %843 : vector<8x32xf32>
    %845 = arith.addf %840, %842 : vector<8x32xf32>
    %846 = arith.addf %845, %844 : vector<8x32xf32>
    %847 = tpu.reciprocal %846 {approx = true} : vector<8x32xf32> -> vector<8x32xf32>
    %848 = arith.mulf %840, %836 : vector<8x32xf32>
    %849 = arith.mulf %842, %807 : vector<8x32xf32>
    %850 = arith.addf %848, %849 : vector<8x32xf32>
    %851 = arith.mulf %844, %804 : vector<8x32xf32>
    %852 = arith.addf %850, %851 : vector<8x32xf32>
    %853 = arith.mulf %852, %847 : vector<8x32xf32>
    %854 = vector.broadcast %2 : vector<1x32xf32> to vector<8x32xf32>
    %855 = arith.mulf %460, %854 : vector<8x32xf32>
    %cst_363 = arith.constant dense<0.000000e+00> : vector<8xf32>
    %856 = vector.multi_reduction <add>, %855, %cst_363 [1] : vector<8x32xf32> to vector<8xf32>
    %857 = vector.shape_cast %856 : vector<8xf32> to vector<8x1xf32>
    %858 = vector.broadcast %3 : vector<1x1xf32> to vector<8x1xf32>
    %859 = arith.addf %857, %858 : vector<8x1xf32>
    %860 = arith.negf %859 : vector<8x1xf32>
    %861 = math.exp %860 : vector<8x1xf32>
    %cst_364 = arith.constant 1.000000e+00 : f32
    %862 = vector.broadcast %cst_364 : f32 to vector<8x1xf32>
    %863 = arith.addf %862, %861 : vector<8x1xf32>
    %864 = arith.divf %862, %863 : vector<8x1xf32>
    %865 = vector.broadcast %2 : vector<1x32xf32> to vector<8x32xf32>
    %866 = arith.mulf %649, %865 : vector<8x32xf32>
    %cst_365 = arith.constant dense<0.000000e+00> : vector<8xf32>
    %867 = vector.multi_reduction <add>, %866, %cst_365 [1] : vector<8x32xf32> to vector<8xf32>
    %868 = vector.shape_cast %867 : vector<8xf32> to vector<8x1xf32>
    %869 = vector.broadcast %3 : vector<1x1xf32> to vector<8x1xf32>
    %870 = arith.addf %868, %869 : vector<8x1xf32>
    %871 = arith.negf %870 : vector<8x1xf32>
    %872 = math.exp %871 : vector<8x1xf32>
    %cst_366 = arith.constant 1.000000e+00 : f32
    %873 = vector.broadcast %cst_366 : f32 to vector<8x1xf32>
    %874 = arith.addf %873, %872 : vector<8x1xf32>
    %875 = arith.divf %873, %874 : vector<8x1xf32>
    %876 = vector.broadcast %2 : vector<1x32xf32> to vector<8x32xf32>
    %877 = arith.mulf %853, %876 : vector<8x32xf32>
    %cst_367 = arith.constant dense<0.000000e+00> : vector<8xf32>
    %878 = vector.multi_reduction <add>, %877, %cst_367 [1] : vector<8x32xf32> to vector<8xf32>
    %879 = vector.shape_cast %878 : vector<8xf32> to vector<8x1xf32>
    %880 = vector.broadcast %3 : vector<1x1xf32> to vector<8x1xf32>
    %881 = arith.addf %879, %880 : vector<8x1xf32>
    %882 = arith.negf %881 : vector<8x1xf32>
    %883 = math.exp %882 : vector<8x1xf32>
    %cst_368 = arith.constant 1.000000e+00 : f32
    %884 = vector.broadcast %cst_368 : f32 to vector<8x1xf32>
    %885 = arith.addf %884, %883 : vector<8x1xf32>
    %886 = arith.divf %884, %885 : vector<8x1xf32>
    %887 = arith.maximumf %864, %875 : vector<8x1xf32>
    %888 = arith.maximumf %887, %886 : vector<8x1xf32>
    %889 = arith.subf %864, %888 : vector<8x1xf32>
    %890 = math.exp %889 : vector<8x1xf32>
    %891 = arith.subf %875, %888 : vector<8x1xf32>
    %892 = math.exp %891 : vector<8x1xf32>
    %893 = arith.subf %886, %888 : vector<8x1xf32>
    %894 = math.exp %893 : vector<8x1xf32>
    %895 = arith.addf %890, %892 : vector<8x1xf32>
    %896 = arith.addf %895, %894 : vector<8x1xf32>
    %897 = vector.broadcast %890 : vector<8x1xf32> to vector<8x32xf32>
    %898 = arith.mulf %897, %460 : vector<8x32xf32>
    %899 = vector.broadcast %892 : vector<8x1xf32> to vector<8x32xf32>
    %900 = arith.mulf %899, %649 : vector<8x32xf32>
    %901 = arith.addf %898, %900 : vector<8x32xf32>
    %902 = vector.broadcast %894 : vector<8x1xf32> to vector<8x32xf32>
    %903 = arith.mulf %902, %853 : vector<8x32xf32>
    %904 = arith.addf %901, %903 : vector<8x32xf32>
    %905 = tpu.reciprocal %896 {approx = true} : vector<8x1xf32> -> vector<8x1xf32>
    %906 = vector.broadcast %905 : vector<8x1xf32> to vector<8x32xf32>
    %907 = arith.mulf %904, %906 : vector<8x32xf32>
    %c1_369 = arith.constant 1 : index
    %c0_370 = arith.constant 0 : index
    %c0_371 = arith.constant 0 : index
    %908 = vector.load %arg3[%c1_369, %c0_370, %c0_371] : memref<2x8x32xf32, #tpu.memory_space<vmem>>, vector<1x8x32xf32>
    %909 = vector.shape_cast %908 : vector<1x8x32xf32> to vector<8x32xf32>
    %910 = vector.shape_cast %907 : vector<8x32xf32> to vector<1x8x32xf32>
    tpu.vector_store %arg3[%c1_369, %c0_370, %c0_371], %910 {strides = array<i32>} : memref<2x8x32xf32, #tpu.memory_space<vmem>>, vector<1x8x32xf32>,
    return
  }
  func.func @transform_0(%arg0: i32) -> (i32, i32, i32) {
    %c0_i32 = arith.constant 0 : i32
    %c0_i32_0 = arith.constant 0 : i32
    %c0_i32_1 = arith.constant 0 : i32
    %c0_i32_2 = arith.constant 0 : i32
    return %c0_i32, %c0_i32_0, %c0_i32_1 : i32, i32, i32
  }
  func.func @transform_1(%arg0: i32) -> (i32, i32) {
    %c0_i32 = arith.constant 0 : i32
    %c0_i32_0 = arith.constant 0 : i32
    %c0_i32_1 = arith.constant 0 : i32
    return %c0_i32, %c0_i32_0 : i32, i32
  }
  func.func @transform_2(%arg0: i32) -> (i32, i32, i32) {
    %c0_i32 = arith.constant 0 : i32
    %c0_i32_0 = arith.constant 0 : i32
    %c0_i32_1 = arith.constant 0 : i32
    %c0_i32_2 = arith.constant 0 : i32
    return %c0_i32, %c0_i32_0, %c0_i32_1 : i32, i32, i32
  }
}

</mosaic_0001>

<llo_original>
// kernel: _fused_forward.1
$region0: #{_fused_forward.1}
  #allocation0 [shape = 'u32[]', space=smem, size = 0x4, offset = 0x4, fixed_abs, tag = 'smem constant byte address 0x4 - core index']
  #allocation1 [shape = 'u32[144,128]{1,0:T(1,128)}', space=vmem, size = 0x12000, scoped, tag = 'internal scratch']
  #allocation2 [shape = 'f32[8,32]{1,0:T(8,128)}', space=vmem, size = 0x1000, scoped, tag = 'scratch operand']
  #allocation3 [shape = 'f32[8,96]{1,0:T(8,128)}', space=vmem, size = 0x1000, scoped, tag = 'scratch operand']
  %s0 = inlined_call_operand.hbm [shape: f32[2,8,58], index: 0, kind: input, shape index: {}]
  %s1 = inlined_call_operand.hbm [shape: f32[240,128], index: 1, kind: input, shape index: {}]
  %s2 = inlined_call_operand.hbm [shape: f32[2,8,32], index: 2, kind: output, shape index: {}]
  %s3 = sld [smem:[#allocation0]]
  $region26: #{_fused_forward.1} parent=0
    _
  %s5 = ssub.s32 1, %s3
  %s6 = scalar_select 0, %s5, %s3
  $region1: #{_fused_forward.1} parent=0
    #allocation4 [shape = 'u8[8192]{0}', space=vmem, size = 0x2000, scoped, tag = 'input window, operand 0, single buffered']
    #allocation5 [shape = 's32[1]{0}', space=sflag, size = 0x4, scoped, tag = 'scoped memory for _fused_forward.1']
    #allocation6 [shape = 's32[1]{0}', space=sflag, size = 0x4, scoped, tag = 'scoped memory for _fused_forward.1']
    #allocation7 [shape = 'u8[122880]{0}', space=vmem, size = 0x1e000, scoped, tag = 'input window, operand 1, single buffered']
    #allocation8 [shape = 's32[1]{0}', space=sflag, size = 0x4, scoped, tag = 'scoped memory for _fused_forward.1']
    #allocation9 [shape = 'u8[8192]{0}', space=vmem, size = 0x2000, scoped, tag = 'output window, operand 0, single buffered']
    %7 = vsyncpa [#allocation5], 0
    %8 = vsyncpa [#allocation8], 0
    %9 = vsyncpa [#allocation6], 0
    // Predicated region
    $region2: #{_fused_forward.1} parent=1 // pred_check
      _
    $region3: #{_fused_forward.1} parent=1 // pred_check_branch
      %11 = sbr.rel (0) target = $region5
    $region4: #{_fused_forward.1} parent=1 // pred_region
      %s13 = ssub.s32 256, 256
      %14 = vsyncadd [#allocation5], %s13
      %s15 = sshll.u32 [#allocation4], 4
      %s16 = int_to_ptr.vmem [resolvable:$true] %s15
      %21 = dma.hbm_to_vmem [thread:$0]  %s0, 256, %s16, [#allocation5], 128, 128, 8
    $region5: #{_fused_forward.1} parent=1 // pred_fallthru
      _
    // Predicated region
    $region6: #{_fused_forward.1} parent=1 // pred_check
      _
    $region7: #{_fused_forward.1} parent=1 // pred_check_branch
      %23 = sbr.rel (0) target = $region9
    $region8: #{_fused_forward.1} parent=1 // pred_region
      %s25 = ssub.s32 3840, 3840
      %26 = vsyncadd [#allocation8], %s25
      %s27 = sshll.u32 [#allocation7], 4
      %s28 = int_to_ptr.vmem [resolvable:$true] %s27
      %33 = dma.hbm_to_vmem [thread:$0]  %s1, 3840, %s28, [#allocation8], 128, 128, 8
    $region9: #{_fused_forward.1} parent=1 // pred_fallthru
      _
    // Predicated region
    $region10: #{_fused_forward.1} parent=1 // pred_check
      _
    $region11: #{_fused_forward.1} parent=1 // pred_check_branch
      %35 = sbr.rel (0) target = $region13
    $region12: #{_fused_forward.1} parent=1 // pred_region
      %36 = dma.done [#allocation5], 256
    $region13: #{_fused_forward.1} parent=1 // pred_fallthru
      _
    // Predicated region
    $region14: #{_fused_forward.1} parent=1 // pred_check
      _
    $region15: #{_fused_forward.1} parent=1 // pred_check_branch
      %38 = sbr.rel (0) target = $region17
    $region16: #{_fused_forward.1} parent=1 // pred_region
      %39 = dma.done [#allocation8], 3840
    $region17: #{_fused_forward.1} parent=1 // pred_fallthru
      _
    %v40 = vld [vmem:[#allocation7 + $0xe8] sm:$0x1]
    %v41 = vlaneseq
    %v42 = vshrl.u32 %v41, 7
    %vm43 = vcmp.eq.s32.totalorder %v42, 0
    %v44 = vld [vmem:[#allocation4] sm:$0xff]
    %vm45 = vcmp.gt.f32.partialorder %v44, 0.5
    %47 = vrot.lane.b32.xlu0 %v44, 96
    %v48 = vpop.permute.xlu0 %47
    %vm49 = vcmask 64512
    %v50 = vsel %vm49, %v48, 0
    %52 = vmatprep.subr.mxu0 0.0
    %53 = vmatpush1.msra.mxu0 %v44
    %54 = vmatprep.subr.mxu0 0.0
    %55 = vmatpush1.msra.mxu0 0.0
    %56 = vmatprep.subr.mxu0 0.0
    %57 = vmatpush1.msra.mxu0 0.0
    %58 = vmatprep.subr.mxu0 0.0
    %59 = vmatpush1.msra.mxu0 0.0
    %60 = vmatprep.subr.mxu0 0.0
    %61 = vmatpush1.msra.mxu0 0.0
    %62 = vmatprep.subr.mxu0 0.0
    %63 = vmatpush1.msra.mxu0 0.0
    %64 = vmatprep.subr.mxu0 0.0
    %65 = vmatpush1.msra.mxu0 0.0
    %66 = vmatprep.subr.mxu0 0.0
    %67 = vmatpush1.msra.mxu0 0.0
    %68 = vmatprep.subr.mxu0 0.0
    %69 = vmatpush1.msra.mxu0 0.0
    %70 = vmatprep.subr.mxu0 0.0
    %71 = vmatpush1.msra.mxu0 0.0
    %72 = vmatprep.subr.mxu0 0.0
    %73 = vmatpush1.msra.mxu0 0.0
    %74 = vmatprep.subr.mxu0 0.0
    %75 = vmatpush1.msra.mxu0 0.0
    %76 = vmatprep.subr.mxu0 0.0
    %77 = vmatpush1.msra.mxu0 0.0
    %78 = vmatprep.subr.mxu0 0.0
    %79 = vmatpush1.msra.mxu0 0.0
    %80 = vmatprep.subr.mxu0 0.0
    %81 = vmatpush1.msra.mxu0 0.0
    %82 = vmatprep.subr.mxu0 0.0
    %83 = vmatpush1.msra.mxu0 0.0
    %84 = vmatprep.subr.mxu0 0.0
    %85 = vmatpush1.msra.mxu0 0.0
    %86 = vmatprep.subr.mxu0 0.0
    %87 = vmatpush1.msra.mxu0 0.0
    %88 = vmatprep.subr.mxu0 0.0
    %89 = vmatpush1.msra.mxu0 0.0
    %90 = vmatprep.subr.mxu0 0.0
    %91 = vmatpush1.msra.mxu0 0.0
    %92 = vmatprep.subr.mxu0 0.0
    %93 = vmatpush1.msra.mxu0 0.0
    %94 = vmatprep.subr.mxu0 0.0
    %95 = vmatpush1.msra.mxu0 0.0
    %96 = vmatprep.subr.mxu0 0.0
    %97 = vmatpush1.msra.mxu0 0.0
    %98 = vmatprep.subr.mxu0 0.0
    %99 = vmatpush1.msra.mxu0 0.0
    %100 = vmatprep.subr.mxu0 0.0
    %101 = vmatpush1.msra.mxu0 0.0
    %102 = vmatprep.subr.mxu0 0.0
    %103 = vmatpush1.msra.mxu0 0.0
    %104 = vmatprep.subr.mxu0 0.0
    %105 = vmatpush1.msra.mxu0 0.0
    %106 = vmatprep.subr.mxu0 0.0
    %107 = vmatpush1.msra.mxu0 0.0
    %108 = vmatprep.subr.mxu0 0.0
    %109 = vmatpush1.msra.mxu0 0.0
    %110 = vmatprep.subr.mxu0 0.0
    %111 = vmatpush1.msra.mxu0 0.0
    %112 = vmatprep.subr.mxu0 0.0
    %113 = vmatpush1.msra.mxu0 0.0
    %114 = vmatprep.subr.mxu0 0.0
    %115 = vmatpush1.msra.mxu0 0.0
    %116 = vmatprep.mubr.f32.mxu0 0.0
    %117 = vmatmul.mubr.f32.gmra.mrb[0].mxu0 %v50
    %v118 = vpop.f32.mrb[0].mxu0
    %v119 = vadd.f32 0.0, %v118
    %v120 = vpop.f32.mrb[0].mxu0
    %121 = vdwg.mxu0
    %v122 = vld [vmem:[#allocation7] sm:$0xff]
    %v123 = vld [vmem:[#allocation7 + $0x8] sm:$0xff]
    %v124 = vld [vmem:[#allocation7 + $0x10] sm:$0xff]
    %v125 = vld [vmem:[#allocation7 + $0x18] sm:$0xff]
    %v126 = vld [vmem:[#allocation7 + $0x30] sm:$0x1]
    %v127 = vlaneseq
    %v128 = vshrl.u32 %v127, 7
    %v129 = vsub.s32 0, %v128
    %v130 = vrot.slane %v126, %v129
    %vm131 = vcmask 261120
    %v132 = vsel %vm131, %v44, 0
    %134 = vmatprep.subr.mxu0 0.0
    %135 = vmatpush1.msra.mxu0 %v122
    %136 = vmatprep.subr.mxu0 0.0
    %137 = vmatpush1.msra.mxu0 %v123
    %138 = vmatprep.subr.mxu0 0.0
    %139 = vmatpush1.msra.mxu0 %v124
    %140 = vmatprep.subr.mxu0 0.0
    %141 = vmatpush1.msra.mxu0 %v125
    %142 = vmatprep.subr.mxu0 0.0
    %143 = vmatpush1.msra.mxu0 0.0
    %144 = vmatprep.subr.mxu0 0.0
    %145 = vmatpush1.msra.mxu0 0.0
    %146 = vmatprep.subr.mxu0 0.0
    %147 = vmatpush1.msra.mxu0 0.0
    %148 = vmatprep.subr.mxu0 0.0
    %149 = vmatpush1.msra.mxu0 0.0
    %150 = vmatprep.subr.mxu0 0.0
    %151 = vmatpush1.msra.mxu0 0.0
    %152 = vmatprep.subr.mxu0 0.0
    %153 = vmatpush1.msra.mxu0 0.0
    %154 = vmatprep.subr.mxu0 0.0
    %155 = vmatpush1.msra.mxu0 0.0
    %156 = vmatprep.subr.mxu0 0.0
    %157 = vmatpush1.msra.mxu0 0.0
    %158 = vmatprep.subr.mxu0 0.0
    %159 = vmatpush1.msra.mxu0 0.0
    %160 = vmatprep.subr.mxu0 0.0
    %161 = vmatpush1.msra.mxu0 0.0
    %162 = vmatprep.subr.mxu0 0.0
    %163 = vmatpush1.msra.mxu0 0.0
    %164 = vmatprep.subr.mxu0 0.0
    %165 = vmatpush1.msra.mxu0 0.0
    %166 = vmatprep.subr.mxu0 0.0
    %167 = vmatpush1.msra.mxu0 0.0
    %168 = vmatprep.subr.mxu0 0.0
    %169 = vmatpush1.msra.mxu0 0.0
    %170 = vmatprep.subr.mxu0 0.0
    %171 = vmatpush1.msra.mxu0 0.0
    %172 = vmatprep.subr.mxu0 0.0
    %173 = vmatpush1.msra.mxu0 0.0
    %174 = vmatprep.subr.mxu0 0.0
    %175 = vmatpush1.msra.mxu0 0.0
    %176 = vmatprep.subr.mxu0 0.0
    %177 = vmatpush1.msra.mxu0 0.0
    %178 = vmatprep.subr.mxu0 0.0
    %179 = vmatpush1.msra.mxu0 0.0
    %180 = vmatprep.subr.mxu0 0.0
    %181 = vmatpush1.msra.mxu0 0.0
    %182 = vmatprep.subr.mxu0 0.0
    %183 = vmatpush1.msra.mxu0 0.0
    %184 = vmatprep.subr.mxu0 0.0
    %185 = vmatpush1.msra.mxu0 0.0
    %186 = vmatprep.subr.mxu0 0.0
    %187 = vmatpush1.msra.mxu0 0.0
    %188 = vmatprep.subr.mxu0 0.0
    %189 = vmatpush1.msra.mxu0 0.0
    %190 = vmatprep.subr.mxu0 0.0
    %191 = vmatpush1.msra.mxu0 0.0
    %192 = vmatprep.subr.mxu0 0.0
    %193 = vmatpush1.msra.mxu0 0.0
    %194 = vmatprep.subr.mxu0 0.0
    %195 = vmatpush1.msra.mxu0 0.0
    %196 = vmatprep.subr.mxu0 0.0
    %197 = vmatpush1.msra.mxu0 0.0
    %198 = vmatprep.mubr.f32.mxu0 0.0
    %199 = vmatmul.mubr.f32.gmra.mrb[0].mxu0 %v132
    %v200 = vpop.f32.mrb[0].mxu0
    %v201 = vadd.f32 %v130, %v200
    %v202 = vpop.f32.mrb[0].mxu0
    %203 = vdwg.mxu0
    %v204 = vld [vmem:[#allocation7 + $0x20] sm:$0xff]
    %v205 = vld [vmem:[#allocation7 + $0x28] sm:$0x3]
    %206 = vrot.lane.b32.xlu0 %v44, 80
    %v207 = vpop.permute.xlu0 %206
    %210 = vrot.lane.b32.xlu0 %v204, 96
    %v211 = vpop.permute.xlu0 %210
    %212 = vrot.lane.b32.xlu0 %v205, 96
    %v213 = vpop.permute.xlu0 %212
    %vm215 = vcmask 80896
    %v216 = vsel %vm215, %v207, 0
    %vm218 = vcmask 1041408
    %v219 = vsel %vm218, %v213, 0
    %221 = vmatprep.subr.mxu0 0.0
    %222 = vmatpush1.msra.mxu0 %v211
    %223 = vmatprep.subr.mxu0 0.0
    %224 = vmatpush1.msra.mxu0 %v219
    %225 = vmatprep.subr.mxu0 0.0
    %226 = vmatpush1.msra.mxu0 0.0
    %227 = vmatprep.subr.mxu0 0.0
    %228 = vmatpush1.msra.mxu0 0.0
    %229 = vmatprep.subr.mxu0 0.0
    %230 = vmatpush1.msra.mxu0 0.0
    %231 = vmatprep.subr.mxu0 0.0
    %232 = vmatpush1.msra.mxu0 0.0
    %233 = vmatprep.subr.mxu0 0.0
    %234 = vmatpush1.msra.mxu0 0.0
    %235 = vmatprep.subr.mxu0 0.0
    %236 = vmatpush1.msra.mxu0 0.0
    %237 = vmatprep.subr.mxu0 0.0
    %238 = vmatpush1.msra.mxu0 0.0
    %239 = vmatprep.subr.mxu0 0.0
    %240 = vmatpush1.msra.mxu0 0.0
    %241 = vmatprep.subr.mxu0 0.0
    %242 = vmatpush1.msra.mxu0 0.0
    %243 = vmatprep.subr.mxu0 0.0
    %244 = vmatpush1.msra.mxu0 0.0
    %245 = vmatprep.subr.mxu0 0.0
    %246 = vmatpush1.msra.mxu0 0.0
    %247 = vmatprep.subr.mxu0 0.0
    %248 = vmatpush1.msra.mxu0 0.0
    %249 = vmatprep.subr.mxu0 0.0
    %250 = vmatpush1.msra.mxu0 0.0
    %251 = vmatprep.subr.mxu0 0.0
    %252 = vmatpush1.msra.mxu0 0.0
    %253 = vmatprep.subr.mxu0 0.0
    %254 = vmatpush1.msra.mxu0 0.0
    %255 = vmatprep.subr.mxu0 0.0
    %256 = vmatpush1.msra.mxu0 0.0
    %257 = vmatprep.subr.mxu0 0.0
    %258 = vmatpush1.msra.mxu0 0.0
    %259 = vmatprep.subr.mxu0 0.0
    %260 = vmatpush1.msra.mxu0 0.0
    %261 = vmatprep.subr.mxu0 0.0
    %262 = vmatpush1.msra.mxu0 0.0
    %263 = vmatprep.subr.mxu0 0.0
    %264 = vmatpush1.msra.mxu0 0.0
    %265 = vmatprep.subr.mxu0 0.0
    %266 = vmatpush1.msra.mxu0 0.0
    %267 = vmatprep.subr.mxu0 0.0
    %268 = vmatpush1.msra.mxu0 0.0
    %269 = vmatprep.subr.mxu0 0.0
    %270 = vmatpush1.msra.mxu0 0.0
    %271 = vmatprep.subr.mxu0 0.0
    %272 = vmatpush1.msra.mxu0 0.0
    %273 = vmatprep.subr.mxu0 0.0
    %274 = vmatpush1.msra.mxu0 0.0
    %275 = vmatprep.subr.mxu0 0.0
    %276 = vmatpush1.msra.mxu0 0.0
    %277 = vmatprep.subr.mxu0 0.0
    %278 = vmatpush1.msra.mxu0 0.0
    %279 = vmatprep.subr.mxu0 0.0
    %280 = vmatpush1.msra.mxu0 0.0
    %281 = vmatprep.subr.mxu0 0.0
    %282 = vmatpush1.msra.mxu0 0.0
    %283 = vmatprep.subr.mxu0 0.0
    %284 = vmatpush1.msra.mxu0 0.0
    %285 = vmatprep.mubr.f32.mxu0 0.0
    %286 = vmatmul.mubr.f32.gmra.mrb[0].mxu0 %v216
    %v287 = vpop.f32.mrb[0].mxu0
    %v288 = vadd.f32 0.0, %v287
    %v289 = vpop.f32.mrb[0].mxu0
    %290 = vdwg.mxu0
    %295 = vrot.lane.b32.xlu0 %v122, 96
    %v296 = vpop.permute.xlu0 %295
    %297 = vrot.lane.b32.xlu0 %v123, 96
    %v298 = vpop.permute.xlu0 %297
    %299 = vrot.lane.b32.xlu0 %v124, 96
    %v300 = vpop.permute.xlu0 %299
    %301 = vrot.lane.b32.xlu0 %v125, 96
    %v302 = vpop.permute.xlu0 %301
    %v308 = vsel %vm131, %v119, 0
    %310 = vmatprep.subr.mxu0 0.0
    %311 = vmatpush1.msra.mxu0 %v296
    %312 = vmatprep.subr.mxu0 0.0
    %313 = vmatpush1.msra.mxu0 %v298
    %314 = vmatprep.subr.mxu0 0.0
    %315 = vmatpush1.msra.mxu0 %v300
    %316 = vmatprep.subr.mxu0 0.0
    %317 = vmatpush1.msra.mxu0 %v302
    %318 = vmatprep.subr.mxu0 0.0
    %319 = vmatpush1.msra.mxu0 0.0
    %320 = vmatprep.subr.mxu0 0.0
    %321 = vmatpush1.msra.mxu0 0.0
    %322 = vmatprep.subr.mxu0 0.0
    %323 = vmatpush1.msra.mxu0 0.0
    %324 = vmatprep.subr.mxu0 0.0
    %325 = vmatpush1.msra.mxu0 0.0
    %326 = vmatprep.subr.mxu0 0.0
    %327 = vmatpush1.msra.mxu0 0.0
    %328 = vmatprep.subr.mxu0 0.0
    %329 = vmatpush1.msra.mxu0 0.0
    %330 = vmatprep.subr.mxu0 0.0
    %331 = vmatpush1.msra.mxu0 0.0
    %332 = vmatprep.subr.mxu0 0.0
    %333 = vmatpush1.msra.mxu0 0.0
    %334 = vmatprep.subr.mxu0 0.0
    %335 = vmatpush1.msra.mxu0 0.0
    %336 = vmatprep.subr.mxu0 0.0
    %337 = vmatpush1.msra.mxu0 0.0
    %338 = vmatprep.subr.mxu0 0.0
    %339 = vmatpush1.msra.mxu0 0.0
    %340 = vmatprep.subr.mxu0 0.0
    %341 = vmatpush1.msra.mxu0 0.0
    %342 = vmatprep.subr.mxu0 0.0
    %343 = vmatpush1.msra.mxu0 0.0
    %344 = vmatprep.subr.mxu0 0.0
    %345 = vmatpush1.msra.mxu0 0.0
    %346 = vmatprep.subr.mxu0 0.0
    %347 = vmatpush1.msra.mxu0 0.0
    %348 = vmatprep.subr.mxu0 0.0
    %349 = vmatpush1.msra.mxu0 0.0
    %350 = vmatprep.subr.mxu0 0.0
    %351 = vmatpush1.msra.mxu0 0.0
    %352 = vmatprep.subr.mxu0 0.0
    %353 = vmatpush1.msra.mxu0 0.0
    %354 = vmatprep.subr.mxu0 0.0
    %355 = vmatpush1.msra.mxu0 0.0
    %356 = vmatprep.subr.mxu0 0.0
    %357 = vmatpush1.msra.mxu0 0.0
    %358 = vmatprep.subr.mxu0 0.0
    %359 = vmatpush1.msra.mxu0 0.0
    %360 = vmatprep.subr.mxu0 0.0
    %361 = vmatpush1.msra.mxu0 0.0
    %362 = vmatprep.subr.mxu0 0.0
    %363 = vmatpush1.msra.mxu0 0.0
    %364 = vmatprep.subr.mxu0 0.0
    %365 = vmatpush1.msra.mxu0 0.0
    %366 = vmatprep.subr.mxu0 0.0
    %367 = vmatpush1.msra.mxu0 0.0
    %368 = vmatprep.subr.mxu0 0.0
    %369 = vmatpush1.msra.mxu0 0.0
    %370 = vmatprep.subr.mxu0 0.0
    %371 = vmatpush1.msra.mxu0 0.0
    %372 = vmatprep.subr.mxu0 0.0
    %373 = vmatpush1.msra.mxu0 0.0
    %374 = vmatprep.mubr.f32.mxu0 0.0
    %375 = vmatmul.mubr.f32.gmra.mrb[0].mxu0 %v308
    %v376 = vpop.f32.mrb[0].mxu0
    %v377 = vadd.f32 %v288, %v376
    %v378 = vpop.f32.mrb[0].mxu0
    %379 = vdwg.mxu0
    %381 = vrot.lane.b32.xlu0 %v130, 96
    %v382 = vpop.permute.xlu0 %381
    %v384 = vadd.f32 %v377, %v382
    %v386 = vsel %vm49, %v201, 0
    %v389 = vsel %vm49, %v384, 0
    %391 = vmatprep.subr.mxu0 0.0
    %392 = vmatpush1.xpose.msra.mxu0 %v389
    %393 = vmatprep.subr.mxu0 0.0
    %394 = vmatpush1.xpose.msra.mxu0 0.0
    %395 = vmatprep.subr.mxu0 0.0
    %396 = vmatpush1.xpose.msra.mxu0 0.0
    %397 = vmatprep.subr.mxu0 0.0
    %398 = vmatpush1.xpose.msra.mxu0 0.0
    %399 = vmatprep.subr.mxu0 0.0
    %400 = vmatpush1.xpose.msra.mxu0 0.0
    %401 = vmatprep.subr.mxu0 0.0
    %402 = vmatpush1.xpose.msra.mxu0 0.0
    %403 = vmatprep.subr.mxu0 0.0
    %404 = vmatpush1.xpose.msra.mxu0 0.0
    %405 = vmatprep.subr.mxu0 0.0
    %406 = vmatpush1.xpose.msra.mxu0 0.0
    %407 = vmatprep.subr.mxu0 0.0
    %408 = vmatpush1.xpose.msra.mxu0 0.0
    %409 = vmatprep.subr.mxu0 0.0
    %410 = vmatpush1.xpose.msra.mxu0 0.0
    %411 = vmatprep.subr.mxu0 0.0
    %412 = vmatpush1.xpose.msra.mxu0 0.0
    %413 = vmatprep.subr.mxu0 0.0
    %414 = vmatpush1.xpose.msra.mxu0 0.0
    %415 = vmatprep.subr.mxu0 0.0
    %416 = vmatpush1.xpose.msra.mxu0 0.0
    %417 = vmatprep.subr.mxu0 0.0
    %418 = vmatpush1.xpose.msra.mxu0 0.0
    %419 = vmatprep.subr.mxu0 0.0
    %420 = vmatpush1.xpose.msra.mxu0 0.0
    %421 = vmatprep.subr.mxu0 0.0
    %422 = vmatpush1.xpose.msra.mxu0 0.0
    %423 = vmatprep.subr.mxu0 0.0
    %424 = vmatpush1.xpose.msra.mxu0 0.0
    %425 = vmatprep.subr.mxu0 0.0
    %426 = vmatpush1.xpose.msra.mxu0 0.0
    %427 = vmatprep.subr.mxu0 0.0
    %428 = vmatpush1.xpose.msra.mxu0 0.0
    %429 = vmatprep.subr.mxu0 0.0
    %430 = vmatpush1.xpose.msra.mxu0 0.0
    %431 = vmatprep.subr.mxu0 0.0
    %432 = vmatpush1.xpose.msra.mxu0 0.0
    %433 = vmatprep.subr.mxu0 0.0
    %434 = vmatpush1.xpose.msra.mxu0 0.0
    %435 = vmatprep.subr.mxu0 0.0
    %436 = vmatpush1.xpose.msra.mxu0 0.0
    %437 = vmatprep.subr.mxu0 0.0
    %438 = vmatpush1.xpose.msra.mxu0 0.0
    %439 = vmatprep.subr.mxu0 0.0
    %440 = vmatpush1.xpose.msra.mxu0 0.0
    %441 = vmatprep.subr.mxu0 0.0
    %442 = vmatpush1.xpose.msra.mxu0 0.0
    %443 = vmatprep.subr.mxu0 0.0
    %444 = vmatpush1.xpose.msra.mxu0 0.0
    %445 = vmatprep.subr.mxu0 0.0
    %446 = vmatpush1.xpose.msra.mxu0 0.0
    %447 = vmatprep.subr.mxu0 0.0
    %448 = vmatpush1.xpose.msra.mxu0 0.0
    %449 = vmatprep.subr.mxu0 0.0
    %450 = vmatpush1.xpose.msra.mxu0 0.0
    %451 = vmatprep.subr.mxu0 0.0
    %452 = vmatpush1.xpose.msra.mxu0 0.0
    %453 = vmatprep.subr.mxu0 0.0
    %454 = vmatpush1.xpose.msra.mxu0 0.0
    %455 = vmatprep.mubr.f32.mxu0 0.0
    %456 = vmatmul.mubr.f32.gmra.mrb[0].mxu0 %v386
    %v457 = vpop.f32.mrb[0].mxu0
    %v458 = vadd.f32 0.0, %v457
    %v459 = vpop.f32.mrb[0].mxu0
    %460 = vdwg.mxu0
    %v461 = vmul.f32 %v458, 0.35355338
    %463 = vrot.lane.b32.xlu0 %v461, 40
    %v464 = vpop.permute.xlu0 %463
    %v466 = vsel %vm45, -1e+30, %v464
    %vm467 = vcmask 392512
    %v468 = vsel %vm467, %v466, -inf
    %469 = vmax.xlane.f32.xlu0 %v468
    %v470 = vpop.xlane.xlu0 %469
    %v471 = vsub.f32 %v466, %v470
    %v472 = vmul.f32 %v471, 1.442695
    %v473 = vpow.pop %v472
    %475 = vrot.lane.b32.xlu0 %v473, 88
    %v476 = vpop.permute.xlu0 %475
    %v478 = vsel %vm49, %v476, 0.0
    %479 = vadd.xlane.f32.xlu0 %v478
    %v480 = vpop.xlane.xlu0 %479
    %v481 = vrcp.pop %v480
    %v482 = vmul.f32 %v473, %v481
    %484 = vrot.lane.b32.xlu0 %v482, 88
    %v485 = vpop.permute.xlu0 %484
    %486 = vrot.lane.b32.xlu0 %v384, 96
    %v487 = vpop.permute.xlu0 %486
    %v489 = vsel %vm49, %v485, 0
    %491 = vmatprep.subr.mxu0 0.0
    %492 = vmatpush1.msra.mxu0 %v487
    %493 = vmatprep.subr.mxu0 0.0
    %494 = vmatpush1.msra.mxu0 0.0
    %495 = vmatprep.subr.mxu0 0.0
    %496 = vmatpush1.msra.mxu0 0.0
    %497 = vmatprep.subr.mxu0 0.0
    %498 = vmatpush1.msra.mxu0 0.0
    %499 = vmatprep.subr.mxu0 0.0
    %500 = vmatpush1.msra.mxu0 0.0
    %501 = vmatprep.subr.mxu0 0.0
    %502 = vmatpush1.msra.mxu0 0.0
    %503 = vmatprep.subr.mxu0 0.0
    %504 = vmatpush1.msra.mxu0 0.0
    %505 = vmatprep.subr.mxu0 0.0
    %506 = vmatpush1.msra.mxu0 0.0
    %507 = vmatprep.subr.mxu0 0.0
    %508 = vmatpush1.msra.mxu0 0.0
    %509 = vmatprep.subr.mxu0 0.0
    %510 = vmatpush1.msra.mxu0 0.0
    %511 = vmatprep.subr.mxu0 0.0
    %512 = vmatpush1.msra.mxu0 0.0
    %513 = vmatprep.subr.mxu0 0.0
    %514 = vmatpush1.msra.mxu0 0.0
    %515 = vmatprep.subr.mxu0 0.0
    %516 = vmatpush1.msra.mxu0 0.0
    %517 = vmatprep.subr.mxu0 0.0
    %518 = vmatpush1.msra.mxu0 0.0
    %519 = vmatprep.subr.mxu0 0.0
    %520 = vmatpush1.msra.mxu0 0.0
    %521 = vmatprep.subr.mxu0 0.0
    %522 = vmatpush1.msra.mxu0 0.0
    %523 = vmatprep.subr.mxu0 0.0
    %524 = vmatpush1.msra.mxu0 0.0
    %525 = vmatprep.subr.mxu0 0.0
    %526 = vmatpush1.msra.mxu0 0.0
    %527 = vmatprep.subr.mxu0 0.0
    %528 = vmatpush1.msra.mxu0 0.0
    %529 = vmatprep.subr.mxu0 0.0
    %530 = vmatpush1.msra.mxu0 0.0
    %531 = vmatprep.subr.mxu0 0.0
    %532 = vmatpush1.msra.mxu0 0.0
    %533 = vmatprep.subr.mxu0 0.0
    %534 = vmatpush1.msra.mxu0 0.0
    %535 = vmatprep.subr.mxu0 0.0
    %536 = vmatpush1.msra.mxu0 0.0
    %537 = vmatprep.subr.mxu0 0.0
    %538 = vmatpush1.msra.mxu0 0.0
    %539 = vmatprep.subr.mxu0 0.0
    %540 = vmatpush1.msra.mxu0 0.0
    %541 = vmatprep.subr.mxu0 0.0
    %542 = vmatpush1.msra.mxu0 0.0
    %543 = vmatprep.subr.mxu0 0.0
    %544 = vmatpush1.msra.mxu0 0.0
    %545 = vmatprep.subr.mxu0 0.0
    %546 = vmatpush1.msra.mxu0 0.0
    %547 = vmatprep.subr.mxu0 0.0
    %548 = vmatpush1.msra.mxu0 0.0
    %549 = vmatprep.subr.mxu0 0.0
    %550 = vmatpush1.msra.mxu0 0.0
    %551 = vmatprep.subr.mxu0 0.0
    %552 = vmatpush1.msra.mxu0 0.0
    %553 = vmatprep.subr.mxu0 0.0
    %554 = vmatpush1.msra.mxu0 0.0
    %555 = vmatprep.mubr.f32.mxu0 0.0
    %556 = vmatmul.mubr.f32.gmra.mrb[0].mxu0 %v489
    %v557 = vpop.f32.mrb[0].mxu0
    %v558 = vadd.f32 0.0, %v557
    %v559 = vpop.f32.mrb[0].mxu0
    %560 = vdwg.mxu0
    %561 = vst.msk [vmem:[#allocation2] sm:$0xff] %vm49, %v558
    %562 = vrot.lane.b32.xlu0 %v201, 120
    %v563 = vpop.permute.xlu0 %562
    %564 = vrot.lane.b32.xlu0 %v384, 120
    %v565 = vpop.permute.xlu0 %564
    %v566 = vsel %vm49, %v563, 0
    %v568 = vsel %vm49, %v565, 0
    %570 = vmatprep.subr.mxu0 0.0
    %571 = vmatpush1.xpose.msra.mxu0 %v568
    %572 = vmatprep.subr.mxu0 0.0
    %573 = vmatpush1.xpose.msra.mxu0 0.0
    %574 = vmatprep.subr.mxu0 0.0
    %575 = vmatpush1.xpose.msra.mxu0 0.0
    %576 = vmatprep.subr.mxu0 0.0
    %577 = vmatpush1.xpose.msra.mxu0 0.0
    %578 = vmatprep.subr.mxu0 0.0
    %579 = vmatpush1.xpose.msra.mxu0 0.0
    %580 = vmatprep.subr.mxu0 0.0
    %581 = vmatpush1.xpose.msra.mxu0 0.0
    %582 = vmatprep.subr.mxu0 0.0
    %583 = vmatpush1.xpose.msra.mxu0 0.0
    %584 = vmatprep.subr.mxu0 0.0
    %585 = vmatpush1.xpose.msra.mxu0 0.0
    %586 = vmatprep.subr.mxu0 0.0
    %587 = vmatpush1.xpose.msra.mxu0 0.0
    %588 = vmatprep.subr.mxu0 0.0
    %589 = vmatpush1.xpose.msra.mxu0 0.0
    %590 = vmatprep.subr.mxu0 0.0
    %591 = vmatpush1.xpose.msra.mxu0 0.0
    %592 = vmatprep.subr.mxu0 0.0
    %593 = vmatpush1.xpose.msra.mxu0 0.0
    %594 = vmatprep.subr.mxu0 0.0
    %595 = vmatpush1.xpose.msra.mxu0 0.0
    %596 = vmatprep.subr.mxu0 0.0
    %597 = vmatpush1.xpose.msra.mxu0 0.0
    %598 = vmatprep.subr.mxu0 0.0
    %599 = vmatpush1.xpose.msra.mxu0 0.0
    %600 = vmatprep.subr.mxu0 0.0
    %601 = vmatpush1.xpose.msra.mxu0 0.0
    %602 = vmatprep.subr.mxu0 0.0
    %603 = vmatpush1.xpose.msra.mxu0 0.0
    %604 = vmatprep.subr.mxu0 0.0
    %605 = vmatpush1.xpose.msra.mxu0 0.0
    %606 = vmatprep.subr.mxu0 0.0
    %607 = vmatpush1.xpose.msra.mxu0 0.0
    %608 = vmatprep.subr.mxu0 0.0
    %609 = vmatpush1.xpose.msra.mxu0 0.0
    %610 = vmatprep.subr.mxu0 0.0
    %611 = vmatpush1.xpose.msra.mxu0 0.0
    %612 = vmatprep.subr.mxu0 0.0
    %613 = vmatpush1.xpose.msra.mxu0 0.0
    %614 = vmatprep.subr.mxu0 0.0
    %615 = vmatpush1.xpose.msra.mxu0 0.0
    %616 = vmatprep.subr.mxu0 0.0
    %617 = vmatpush1.xpose.msra.mxu0 0.0
    %618 = vmatprep.subr.mxu0 0.0
    %619 = vmatpush1.xpose.msra.mxu0 0.0
    %620 = vmatprep.subr.mxu0 0.0
    %621 = vmatpush1.xpose.msra.mxu0 0.0
    %622 = vmatprep.subr.mxu0 0.0
    %623 = vmatpush1.xpose.msra.mxu0 0.0
    %624 = vmatprep.subr.mxu0 0.0
    %625 = vmatpush1.xpose.msra.mxu0 0.0
    %626 = vmatprep.subr.mxu0 0.0
    %627 = vmatpush1.xpose.msra.mxu0 0.0
    %628 = vmatprep.subr.mxu0 0.0
    %629 = vmatpush1.xpose.msra.mxu0 0.0
    %630 = vmatprep.subr.mxu0 0.0
    %631 = vmatpush1.xpose.msra.mxu0 0.0
    %632 = vmatprep.subr.mxu0 0.0
    %633 = vmatpush1.xpose.msra.mxu0 0.0
    %634 = vmatprep.mubr.f32.mxu0 0.0
    %635 = vmatmul.mubr.f32.gmra.mrb[0].mxu0 %v566
    %v636 = vpop.f32.mrb[0].mxu0
    %v637 = vadd.f32 0.0, %v636
    %v638 = vpop.f32.mrb[0].mxu0
    %639 = vdwg.mxu0
    %v640 = vmul.f32 %v637, 0.35355338
    %642 = vrot.lane.b32.xlu0 %v640, 40
    %v643 = vpop.permute.xlu0 %642
    %v645 = vsel %vm45, -1e+30, %v643
    %v646 = vsel %vm467, %v645, -inf
    %647 = vmax.xlane.f32.xlu0 %v646
    %v648 = vpop.xlane.xlu0 %647
    %v649 = vsub.f32 %v645, %v648
    %v650 = vmul.f32 %v649, 1.442695
    %v651 = vpow.pop %v650
    %653 = vrot.lane.b32.xlu0 %v651, 88
    %v654 = vpop.permute.xlu0 %653
    %v656 = vsel %vm49, %v654, 0.0
    %657 = vadd.xlane.f32.xlu0 %v656
    %v658 = vpop.xlane.xlu0 %657
    %v659 = vrcp.pop %v658
    %v660 = vmul.f32 %v651, %v659
    %662 = vrot.lane.b32.xlu0 %v660, 88
    %v663 = vpop.permute.xlu0 %662
    %664 = vrot.lane.b32.xlu0 %v384, 88
    %v665 = vpop.permute.xlu0 %664
    %v667 = vsel %vm49, %v663, 0
    %669 = vmatprep.subr.mxu0 0.0
    %670 = vmatpush1.msra.mxu0 %v665
    %671 = vmatprep.subr.mxu0 0.0
    %672 = vmatpush1.msra.mxu0 0.0
    %673 = vmatprep.subr.mxu0 0.0
    %674 = vmatpush1.msra.mxu0 0.0
    %675 = vmatprep.subr.mxu0 0.0
    %676 = vmatpush1.msra.mxu0 0.0
    %677 = vmatprep.subr.mxu0 0.0
    %678 = vmatpush1.msra.mxu0 0.0
    %679 = vmatprep.subr.mxu0 0.0
    %680 = vmatpush1.msra.mxu0 0.0
    %681 = vmatprep.subr.mxu0 0.0
    %682 = vmatpush1.msra.mxu0 0.0
    %683 = vmatprep.subr.mxu0 0.0
    %684 = vmatpush1.msra.mxu0 0.0
    %685 = vmatprep.subr.mxu0 0.0
    %686 = vmatpush1.msra.mxu0 0.0
    %687 = vmatprep.subr.mxu0 0.0
    %688 = vmatpush1.msra.mxu0 0.0
    %689 = vmatprep.subr.mxu0 0.0
    %690 = vmatpush1.msra.mxu0 0.0
    %691 = vmatprep.subr.mxu0 0.0
    %692 = vmatpush1.msra.mxu0 0.0
    %693 = vmatprep.subr.mxu0 0.0
    %694 = vmatpush1.msra.mxu0 0.0
    %695 = vmatprep.subr.mxu0 0.0
    %696 = vmatpush1.msra.mxu0 0.0
    %697 = vmatprep.subr.mxu0 0.0
    %698 = vmatpush1.msra.mxu0 0.0
    %699 = vmatprep.subr.mxu0 0.0
    %700 = vmatpush1.msra.mxu0 0.0
    %701 = vmatprep.subr.mxu0 0.0
    %702 = vmatpush1.msra.mxu0 0.0
    %703 = vmatprep.subr.mxu0 0.0
    %704 = vmatpush1.msra.mxu0 0.0
    %705 = vmatprep.subr.mxu0 0.0
    %706 = vmatpush1.msra.mxu0 0.0
    %707 = vmatprep.subr.mxu0 0.0
    %708 = vmatpush1.msra.mxu0 0.0
    %709 = vmatprep.subr.mxu0 0.0
    %710 = vmatpush1.msra.mxu0 0.0
    %711 = vmatprep.subr.mxu0 0.0
    %712 = vmatpush1.msra.mxu0 0.0
    %713 = vmatprep.subr.mxu0 0.0
    %714 = vmatpush1.msra.mxu0 0.0
    %715 = vmatprep.subr.mxu0 0.0
    %716 = vmatpush1.msra.mxu0 0.0
    %717 = vmatprep.subr.mxu0 0.0
    %718 = vmatpush1.msra.mxu0 0.0
    %719 = vmatprep.subr.mxu0 0.0
    %720 = vmatpush1.msra.mxu0 0.0
    %721 = vmatprep.subr.mxu0 0.0
    %722 = vmatpush1.msra.mxu0 0.0
    %723 = vmatprep.subr.mxu0 0.0
    %724 = vmatpush1.msra.mxu0 0.0
    %725 = vmatprep.subr.mxu0 0.0
    %726 = vmatpush1.msra.mxu0 0.0
    %727 = vmatprep.subr.mxu0 0.0
    %728 = vmatpush1.msra.mxu0 0.0
    %729 = vmatprep.subr.mxu0 0.0
    %730 = vmatpush1.msra.mxu0 0.0
    %731 = vmatprep.subr.mxu0 0.0
    %732 = vmatpush1.msra.mxu0 0.0
    %733 = vmatprep.mubr.f32.mxu0 0.0
    %734 = vmatmul.mubr.f32.gmra.mrb[0].mxu0 %v667
    %v735 = vpop.f32.mrb[0].mxu0
    %v736 = vadd.f32 0.0, %v735
    %v737 = vpop.f32.mrb[0].mxu0
    %738 = vdwg.mxu0
    %740 = vrot.lane.b32.xlu0 %v736, 8
    %v741 = vpop.permute.xlu0 %740
    %vm743 = vcmask 130112
    %744 = vst.msk [vmem:[#allocation2] sm:$0xff] %vm743, %v741
    %745 = vrot.lane.b32.xlu0 %v201, 112
    %v746 = vpop.permute.xlu0 %745
    %747 = vrot.lane.b32.xlu0 %v384, 112
    %v748 = vpop.permute.xlu0 %747
    %v749 = vsel %vm49, %v746, 0
    %v751 = vsel %vm49, %v748, 0
    %753 = vmatprep.subr.mxu0 0.0
    %754 = vmatpush1.xpose.msra.mxu0 %v751
    %755 = vmatprep.subr.mxu0 0.0
    %756 = vmatpush1.xpose.msra.mxu0 0.0
    %757 = vmatprep.subr.mxu0 0.0
    %758 = vmatpush1.xpose.msra.mxu0 0.0
    %759 = vmatprep.subr.mxu0 0.0
    %760 = vmatpush1.xpose.msra.mxu0 0.0
    %761 = vmatprep.subr.mxu0 0.0
    %762 = vmatpush1.xpose.msra.mxu0 0.0
    %763 = vmatprep.subr.mxu0 0.0
    %764 = vmatpush1.xpose.msra.mxu0 0.0
    %765 = vmatprep.subr.mxu0 0.0
    %766 = vmatpush1.xpose.msra.mxu0 0.0
    %767 = vmatprep.subr.mxu0 0.0
    %768 = vmatpush1.xpose.msra.mxu0 0.0
    %769 = vmatprep.subr.mxu0 0.0
    %770 = vmatpush1.xpose.msra.mxu0 0.0
    %771 = vmatprep.subr.mxu0 0.0
    %772 = vmatpush1.xpose.msra.mxu0 0.0
    %773 = vmatprep.subr.mxu0 0.0
    %774 = vmatpush1.xpose.msra.mxu0 0.0
    %775 = vmatprep.subr.mxu0 0.0
    %776 = vmatpush1.xpose.msra.mxu0 0.0
    %777 = vmatprep.subr.mxu0 0.0
    %778 = vmatpush1.xpose.msra.mxu0 0.0
    %779 = vmatprep.subr.mxu0 0.0
    %780 = vmatpush1.xpose.msra.mxu0 0.0
    %781 = vmatprep.subr.mxu0 0.0
    %782 = vmatpush1.xpose.msra.mxu0 0.0
    %783 = vmatprep.subr.mxu0 0.0
    %784 = vmatpush1.xpose.msra.mxu0 0.0
    %785 = vmatprep.subr.mxu0 0.0
    %786 = vmatpush1.xpose.msra.mxu0 0.0
    %787 = vmatprep.subr.mxu0 0.0
    %788 = vmatpush1.xpose.msra.mxu0 0.0
    %789 = vmatprep.subr.mxu0 0.0
    %790 = vmatpush1.xpose.msra.mxu0 0.0
    %791 = vmatprep.subr.mxu0 0.0
    %792 = vmatpush1.xpose.msra.mxu0 0.0
    %793 = vmatprep.subr.mxu0 0.0
    %794 = vmatpush1.xpose.msra.mxu0 0.0
    %795 = vmatprep.subr.mxu0 0.0
    %796 = vmatpush1.xpose.msra.mxu0 0.0
    %797 = vmatprep.subr.mxu0 0.0
    %798 = vmatpush1.xpose.msra.mxu0 0.0
    %799 = vmatprep.subr.mxu0 0.0
    %800 = vmatpush1.xpose.msra.mxu0 0.0
    %801 = vmatprep.subr.mxu0 0.0
    %802 = vmatpush1.xpose.msra.mxu0 0.0
    %803 = vmatprep.subr.mxu0 0.0
    %804 = vmatpush1.xpose.msra.mxu0 0.0
    %805 = vmatprep.subr.mxu0 0.0
    %806 = vmatpush1.xpose.msra.mxu0 0.0
    %807 = vmatprep.subr.mxu0 0.0
    %808 = vmatpush1.xpose.msra.mxu0 0.0
    %809 = vmatprep.subr.mxu0 0.0
    %810 = vmatpush1.xpose.msra.mxu0 0.0
    %811 = vmatprep.subr.mxu0 0.0
    %812 = vmatpush1.xpose.msra.mxu0 0.0
    %813 = vmatprep.subr.mxu0 0.0
    %814 = vmatpush1.xpose.msra.mxu0 0.0
    %815 = vmatprep.subr.mxu0 0.0
    %816 = vmatpush1.xpose.msra.mxu0 0.0
    %817 = vmatprep.mubr.f32.mxu0 0.0
    %818 = vmatmul.mubr.f32.gmra.mrb[0].mxu0 %v749
    %v819 = vpop.f32.mrb[0].mxu0
    %v820 = vadd.f32 0.0, %v819
    %v821 = vpop.f32.mrb[0].mxu0
    %822 = vdwg.mxu0
    %v823 = vmul.f32 %v820, 0.35355338
    %825 = vrot.lane.b32.xlu0 %v823, 40
    %v826 = vpop.permute.xlu0 %825
    %v828 = vsel %vm45, -1e+30, %v826
    %v829 = vsel %vm467, %v828, -inf
    %830 = vmax.xlane.f32.xlu0 %v829
    %v831 = vpop.xlane.xlu0 %830
    %v832 = vsub.f32 %v828, %v831
    %v833 = vmul.f32 %v832, 1.442695
    %v834 = vpow.pop %v833
    %836 = vrot.lane.b32.xlu0 %v834, 88
    %v837 = vpop.permute.xlu0 %836
    %v839 = vsel %vm49, %v837, 0.0
    %840 = vadd.xlane.f32.xlu0 %v839
    %v841 = vpop.xlane.xlu0 %840
    %v842 = vrcp.pop %v841
    %v843 = vmul.f32 %v834, %v842
    %845 = vrot.lane.b32.xlu0 %v843, 88
    %v846 = vpop.permute.xlu0 %845
    %847 = vrot.lane.b32.xlu0 %v384, 80
    %v848 = vpop.permute.xlu0 %847
    %v850 = vsel %vm49, %v846, 0
    %852 = vmatprep.subr.mxu0 0.0
    %853 = vmatpush1.msra.mxu0 %v848
    %854 = vmatprep.subr.mxu0 0.0
    %855 = vmatpush1.msra.mxu0 0.0
    %856 = vmatprep.subr.mxu0 0.0
    %857 = vmatpush1.msra.mxu0 0.0
    %858 = vmatprep.subr.mxu0 0.0
    %859 = vmatpush1.msra.mxu0 0.0
    %860 = vmatprep.subr.mxu0 0.0
    %861 = vmatpush1.msra.mxu0 0.0
    %862 = vmatprep.subr.mxu0 0.0
    %863 = vmatpush1.msra.mxu0 0.0
    %864 = vmatprep.subr.mxu0 0.0
    %865 = vmatpush1.msra.mxu0 0.0
    %866 = vmatprep.subr.mxu0 0.0
    %867 = vmatpush1.msra.mxu0 0.0
    %868 = vmatprep.subr.mxu0 0.0
    %869 = vmatpush1.msra.mxu0 0.0
    %870 = vmatprep.subr.mxu0 0.0
    %871 = vmatpush1.msra.mxu0 0.0
    %872 = vmatprep.subr.mxu0 0.0
    %873 = vmatpush1.msra.mxu0 0.0
    %874 = vmatprep.subr.mxu0 0.0
    %875 = vmatpush1.msra.mxu0 0.0
    %876 = vmatprep.subr.mxu0 0.0
    %877 = vmatpush1.msra.mxu0 0.0
    %878 = vmatprep.subr.mxu0 0.0
    %879 = vmatpush1.msra.mxu0 0.0
    %880 = vmatprep.subr.mxu0 0.0
    %881 = vmatpush1.msra.mxu0 0.0
    %882 = vmatprep.subr.mxu0 0.0
    %883 = vmatpush1.msra.mxu0 0.0
    %884 = vmatprep.subr.mxu0 0.0
    %885 = vmatpush1.msra.mxu0 0.0
    %886 = vmatprep.subr.mxu0 0.0
    %887 = vmatpush1.msra.mxu0 0.0
    %888 = vmatprep.subr.mxu0 0.0
    %889 = vmatpush1.msra.mxu0 0.0
    %890 = vmatprep.subr.mxu0 0.0
    %891 = vmatpush1.msra.mxu0 0.0
    %892 = vmatprep.subr.mxu0 0.0
    %893 = vmatpush1.msra.mxu0 0.0
    %894 = vmatprep.subr.mxu0 0.0
    %895 = vmatpush1.msra.mxu0 0.0
    %896 = vmatprep.subr.mxu0 0.0
    %897 = vmatpush1.msra.mxu0 0.0
    %898 = vmatprep.subr.mxu0 0.0
    %899 = vmatpush1.msra.mxu0 0.0
    %900 = vmatprep.subr.mxu0 0.0
    %901 = vmatpush1.msra.mxu0 0.0
    %902 = vmatprep.subr.mxu0 0.0
    %903 = vmatpush1.msra.mxu0 0.0
    %904 = vmatprep.subr.mxu0 0.0
    %905 = vmatpush1.msra.mxu0 0.0
    %906 = vmatprep.subr.mxu0 0.0
    %907 = vmatpush1.msra.mxu0 0.0
    %908 = vmatprep.subr.mxu0 0.0
    %909 = vmatpush1.msra.mxu0 0.0
    %910 = vmatprep.subr.mxu0 0.0
    %911 = vmatpush1.msra.mxu0 0.0
    %912 = vmatprep.subr.mxu0 0.0
    %913 = vmatpush1.msra.mxu0 0.0
    %914 = vmatprep.subr.mxu0 0.0
    %915 = vmatpush1.msra.mxu0 0.0
    %916 = vmatprep.mubr.f32.mxu0 0.0
    %917 = vmatmul.mubr.f32.gmra.mrb[0].mxu0 %v850
    %v918 = vpop.f32.mrb[0].mxu0
    %v919 = vadd.f32 0.0, %v918
    %v920 = vpop.f32.mrb[0].mxu0
    %921 = vdwg.mxu0
    %923 = vrot.lane.b32.xlu0 %v919, 16
    %v924 = vpop.permute.xlu0 %923
    %vm926 = vcmask 195712
    %927 = vst.msk [vmem:[#allocation2] sm:$0xff] %vm926, %v924
    %928 = vrot.lane.b32.xlu0 %v201, 104
    %v929 = vpop.permute.xlu0 %928
    %930 = vrot.lane.b32.xlu0 %v384, 104
    %v931 = vpop.permute.xlu0 %930
    %v932 = vsel %vm49, %v929, 0
    %v934 = vsel %vm49, %v931, 0
    %936 = vmatprep.subr.mxu0 0.0
    %937 = vmatpush1.xpose.msra.mxu0 %v934
    %938 = vmatprep.subr.mxu0 0.0
    %939 = vmatpush1.xpose.msra.mxu0 0.0
    %940 = vmatprep.subr.mxu0 0.0
    %941 = vmatpush1.xpose.msra.mxu0 0.0
    %942 = vmatprep.subr.mxu0 0.0
    %943 = vmatpush1.xpose.msra.mxu0 0.0
    %944 = vmatprep.subr.mxu0 0.0
    %945 = vmatpush1.xpose.msra.mxu0 0.0
    %946 = vmatprep.subr.mxu0 0.0
    %947 = vmatpush1.xpose.msra.mxu0 0.0
    %948 = vmatprep.subr.mxu0 0.0
    %949 = vmatpush1.xpose.msra.mxu0 0.0
    %950 = vmatprep.subr.mxu0 0.0
    %951 = vmatpush1.xpose.msra.mxu0 0.0
    %952 = vmatprep.subr.mxu0 0.0
    %953 = vmatpush1.xpose.msra.mxu0 0.0
    %954 = vmatprep.subr.mxu0 0.0
    %955 = vmatpush1.xpose.msra.mxu0 0.0
    %956 = vmatprep.subr.mxu0 0.0
    %957 = vmatpush1.xpose.msra.mxu0 0.0
    %958 = vmatprep.subr.mxu0 0.0
    %959 = vmatpush1.xpose.msra.mxu0 0.0
    %960 = vmatprep.subr.mxu0 0.0
    %961 = vmatpush1.xpose.msra.mxu0 0.0
    %962 = vmatprep.subr.mxu0 0.0
    %963 = vmatpush1.xpose.msra.mxu0 0.0
    %964 = vmatprep.subr.mxu0 0.0
    %965 = vmatpush1.xpose.msra.mxu0 0.0
    %966 = vmatprep.subr.mxu0 0.0
    %967 = vmatpush1.xpose.msra.mxu0 0.0
    %968 = vmatprep.subr.mxu0 0.0
    %969 = vmatpush1.xpose.msra.mxu0 0.0
    %970 = vmatprep.subr.mxu0 0.0
    %971 = vmatpush1.xpose.msra.mxu0 0.0
    %972 = vmatprep.subr.mxu0 0.0
    %973 = vmatpush1.xpose.msra.mxu0 0.0
    %974 = vmatprep.subr.mxu0 0.0
    %975 = vmatpush1.xpose.msra.mxu0 0.0
    %976 = vmatprep.subr.mxu0 0.0
    %977 = vmatpush1.xpose.msra.mxu0 0.0
    %978 = vmatprep.subr.mxu0 0.0
    %979 = vmatpush1.xpose.msra.mxu0 0.0
    %980 = vmatprep.subr.mxu0 0.0
    %981 = vmatpush1.xpose.msra.mxu0 0.0
    %982 = vmatprep.subr.mxu0 0.0
    %983 = vmatpush1.xpose.msra.mxu0 0.0
    %984 = vmatprep.subr.mxu0 0.0
    %985 = vmatpush1.xpose.msra.mxu0 0.0
    %986 = vmatprep.subr.mxu0 0.0
    %987 = vmatpush1.xpose.msra.mxu0 0.0
    %988 = vmatprep.subr.mxu0 0.0
    %989 = vmatpush1.xpose.msra.mxu0 0.0
    %990 = vmatprep.subr.mxu0 0.0
    %991 = vmatpush1.xpose.msra.mxu0 0.0
    %992 = vmatprep.subr.mxu0 0.0
    %993 = vmatpush1.xpose.msra.mxu0 0.0
    %994 = vmatprep.subr.mxu0 0.0
    %995 = vmatpush1.xpose.msra.mxu0 0.0
    %996 = vmatprep.subr.mxu0 0.0
    %997 = vmatpush1.xpose.msra.mxu0 0.0
    %998 = vmatprep.subr.mxu0 0.0
    %999 = vmatpush1.xpose.msra.mxu0 0.0
    %1000 = vmatprep.mubr.f32.mxu0 0.0
    %1001 = vmatmul.mubr.f32.gmra.mrb[0].mxu0 %v932
    %v1002 = vpop.f32.mrb[0].mxu0
    %v1003 = vadd.f32 0.0, %v1002
    %v1004 = vpop.f32.mrb[0].mxu0
    %1005 = vdwg.mxu0
    %v1006 = vmul.f32 %v1003, 0.35355338
    %1008 = vrot.lane.b32.xlu0 %v1006, 40
    %v1009 = vpop.permute.xlu0 %1008
    %v1011 = vsel %vm45, -1e+30, %v1009
    %v1012 = vsel %vm467, %v1011, -inf
    %1013 = vmax.xlane.f32.xlu0 %v1012
    %v1014 = vpop.xlane.xlu0 %1013
    %v1015 = vsub.f32 %v1011, %v1014
    %v1016 = vmul.f32 %v1015, 1.442695
    %v1017 = vpow.pop %v1016
    %1019 = vrot.lane.b32.xlu0 %v1017, 88
    %v1020 = vpop.permute.xlu0 %1019
    %v1022 = vsel %vm49, %v1020, 0.0
    %1023 = vadd.xlane.f32.xlu0 %v1022
    %v1024 = vpop.xlane.xlu0 %1023
    %v1025 = vrcp.pop %v1024
    %v1026 = vmul.f32 %v1017, %v1025
    %1028 = vrot.lane.b32.xlu0 %v1026, 88
    %v1029 = vpop.permute.xlu0 %1028
    %1030 = vrot.lane.b32.xlu0 %v384, 72
    %v1031 = vpop.permute.xlu0 %1030
    %v1033 = vsel %vm49, %v1029, 0
    %1035 = vmatprep.subr.mxu0 0.0
    %1036 = vmatpush1.msra.mxu0 %v1031
    %1037 = vmatprep.subr.mxu0 0.0
    %1038 = vmatpush1.msra.mxu0 0.0
    %1039 = vmatprep.subr.mxu0 0.0
    %1040 = vmatpush1.msra.mxu0 0.0
    %1041 = vmatprep.subr.mxu0 0.0
    %1042 = vmatpush1.msra.mxu0 0.0
    %1043 = vmatprep.subr.mxu0 0.0
    %1044 = vmatpush1.msra.mxu0 0.0
    %1045 = vmatprep.subr.mxu0 0.0
    %1046 = vmatpush1.msra.mxu0 0.0
    %1047 = vmatprep.subr.mxu0 0.0
    %1048 = vmatpush1.msra.mxu0 0.0
    %1049 = vmatprep.subr.mxu0 0.0
    %1050 = vmatpush1.msra.mxu0 0.0
    %1051 = vmatprep.subr.mxu0 0.0
    %1052 = vmatpush1.msra.mxu0 0.0
    %1053 = vmatprep.subr.mxu0 0.0
    %1054 = vmatpush1.msra.mxu0 0.0
    %1055 = vmatprep.subr.mxu0 0.0
    %1056 = vmatpush1.msra.mxu0 0.0
    %1057 = vmatprep.subr.mxu0 0.0
    %1058 = vmatpush1.msra.mxu0 0.0
    %1059 = vmatprep.subr.mxu0 0.0
    %1060 = vmatpush1.msra.mxu0 0.0
    %1061 = vmatprep.subr.mxu0 0.0
    %1062 = vmatpush1.msra.mxu0 0.0
    %1063 = vmatprep.subr.mxu0 0.0
    %1064 = vmatpush1.msra.mxu0 0.0
    %1065 = vmatprep.subr.mxu0 0.0
    %1066 = vmatpush1.msra.mxu0 0.0
    %1067 = vmatprep.subr.mxu0 0.0
    %1068 = vmatpush1.msra.mxu0 0.0
    %1069 = vmatprep.subr.mxu0 0.0
    %1070 = vmatpush1.msra.mxu0 0.0
    %1071 = vmatprep.subr.mxu0 0.0
    %1072 = vmatpush1.msra.mxu0 0.0
    %1073 = vmatprep.subr.mxu0 0.0
    %1074 = vmatpush1.msra.mxu0 0.0
    %1075 = vmatprep.subr.mxu0 0.0
    %1076 = vmatpush1.msra.mxu0 0.0
    %1077 = vmatprep.subr.mxu0 0.0
    %1078 = vmatpush1.msra.mxu0 0.0
    %1079 = vmatprep.subr.mxu0 0.0
    %1080 = vmatpush1.msra.mxu0 0.0
    %1081 = vmatprep.subr.mxu0 0.0
    %1082 = vmatpush1.msra.mxu0 0.0
    %1083 = vmatprep.subr.mxu0 0.0
    %1084 = vmatpush1.msra.mxu0 0.0
    %1085 = vmatprep.subr.mxu0 0.0
    %1086 = vmatpush1.msra.mxu0 0.0
    %1087 = vmatprep.subr.mxu0 0.0
    %1088 = vmatpush1.msra.mxu0 0.0
    %1089 = vmatprep.subr.mxu0 0.0
    %1090 = vmatpush1.msra.mxu0 0.0
    %1091 = vmatprep.subr.mxu0 0.0
    %1092 = vmatpush1.msra.mxu0 0.0
    %1093 = vmatprep.subr.mxu0 0.0
    %1094 = vmatpush1.msra.mxu0 0.0
    %1095 = vmatprep.subr.mxu0 0.0
    %1096 = vmatpush1.msra.mxu0 0.0
    %1097 = vmatprep.subr.mxu0 0.0
    %1098 = vmatpush1.msra.mxu0 0.0
    %1099 = vmatprep.mubr.f32.mxu0 0.0
    %1100 = vmatmul.mubr.f32.gmra.mrb[0].mxu0 %v1033
    %v1101 = vpop.f32.mrb[0].mxu0
    %v1102 = vadd.f32 0.0, %v1101
    %v1103 = vpop.f32.mrb[0].mxu0
    %1104 = vdwg.mxu0
    %1106 = vrot.lane.b32.xlu0 %v1102, 24
    %v1107 = vpop.permute.xlu0 %1106
    %vm1109 = vcmask 261312
    %1110 = vst.msk [vmem:[#allocation2] sm:$0xff] %vm1109, %v1107
    %v1111 = vld [vmem:[#allocation2] sm:$0xff]
    %v1112 = vld [vmem:[#allocation7] sm:$0xff]
    %v1113 = vld [vmem:[#allocation7 + $0x8] sm:$0xff]
    %v1114 = vld [vmem:[#allocation7 + $0x10] sm:$0xff]
    %v1115 = vld [vmem:[#allocation7 + $0x18] sm:$0xff]
    %v1116 = vld [vmem:[#allocation7 + $0x30] sm:$0x1]
    %v1117 = vlaneseq
    %v1118 = vshrl.u32 %v1117, 7
    %v1119 = vsub.s32 0, %v1118
    %v1120 = vrot.slane %v1116, %v1119
    %1125 = vrot.lane.b32.xlu0 %v1112, 32
    %v1126 = vpop.permute.xlu0 %1125
    %1127 = vrot.lane.b32.xlu0 %v1113, 32
    %v1128 = vpop.permute.xlu0 %1127
    %1129 = vrot.lane.b32.xlu0 %v1114, 32
    %v1130 = vpop.permute.xlu0 %1129
    %1131 = vrot.lane.b32.xlu0 %v1115, 32
    %v1132 = vpop.permute.xlu0 %1131
    %1138 = vrot.lane.b32.xlu0 %v1120, 32
    %v1139 = vpop.permute.xlu0 %1138
    %v1142 = vsel %vm131, %v1111, 0
    %1144 = vmatprep.subr.mxu0 0.0
    %1145 = vmatpush1.msra.mxu0 %v1126
    %1146 = vmatprep.subr.mxu0 0.0
    %1147 = vmatpush1.msra.mxu0 %v1128
    %1148 = vmatprep.subr.mxu0 0.0
    %1149 = vmatpush1.msra.mxu0 %v1130
    %1150 = vmatprep.subr.mxu0 0.0
    %1151 = vmatpush1.msra.mxu0 %v1132
    %1152 = vmatprep.subr.mxu0 0.0
    %1153 = vmatpush1.msra.mxu0 0.0
    %1154 = vmatprep.subr.mxu0 0.0
    %1155 = vmatpush1.msra.mxu0 0.0
    %1156 = vmatprep.subr.mxu0 0.0
    %1157 = vmatpush1.msra.mxu0 0.0
    %1158 = vmatprep.subr.mxu0 0.0
    %1159 = vmatpush1.msra.mxu0 0.0
    %1160 = vmatprep.subr.mxu0 0.0
    %1161 = vmatpush1.msra.mxu0 0.0
    %1162 = vmatprep.subr.mxu0 0.0
    %1163 = vmatpush1.msra.mxu0 0.0
    %1164 = vmatprep.subr.mxu0 0.0
    %1165 = vmatpush1.msra.mxu0 0.0
    %1166 = vmatprep.subr.mxu0 0.0
    %1167 = vmatpush1.msra.mxu0 0.0
    %1168 = vmatprep.subr.mxu0 0.0
    %1169 = vmatpush1.msra.mxu0 0.0
    %1170 = vmatprep.subr.mxu0 0.0
    %1171 = vmatpush1.msra.mxu0 0.0
    %1172 = vmatprep.subr.mxu0 0.0
    %1173 = vmatpush1.msra.mxu0 0.0
    %1174 = vmatprep.subr.mxu0 0.0
    %1175 = vmatpush1.msra.mxu0 0.0
    %1176 = vmatprep.subr.mxu0 0.0
    %1177 = vmatpush1.msra.mxu0 0.0
    %1178 = vmatprep.subr.mxu0 0.0
    %1179 = vmatpush1.msra.mxu0 0.0
    %1180 = vmatprep.subr.mxu0 0.0
    %1181 = vmatpush1.msra.mxu0 0.0
    %1182 = vmatprep.subr.mxu0 0.0
    %1183 = vmatpush1.msra.mxu0 0.0
    %1184 = vmatprep.subr.mxu0 0.0
    %1185 = vmatpush1.msra.mxu0 0.0
    %1186 = vmatprep.subr.mxu0 0.0
    %1187 = vmatpush1.msra.mxu0 0.0
    %1188 = vmatprep.subr.mxu0 0.0
    %1189 = vmatpush1.msra.mxu0 0.0
    %1190 = vmatprep.subr.mxu0 0.0
    %1191 = vmatpush1.msra.mxu0 0.0
    %1192 = vmatprep.subr.mxu0 0.0
    %1193 = vmatpush1.msra.mxu0 0.0
    %1194 = vmatprep.subr.mxu0 0.0
    %1195 = vmatpush1.msra.mxu0 0.0
    %1196 = vmatprep.subr.mxu0 0.0
    %1197 = vmatpush1.msra.mxu0 0.0
    %1198 = vmatprep.subr.mxu0 0.0
    %1199 = vmatpush1.msra.mxu0 0.0
    %1200 = vmatprep.subr.mxu0 0.0
    %1201 = vmatpush1.msra.mxu0 0.0
    %1202 = vmatprep.subr.mxu0 0.0
    %1203 = vmatpush1.msra.mxu0 0.0
    %1204 = vmatprep.subr.mxu0 0.0
    %1205 = vmatpush1.msra.mxu0 0.0
    %1206 = vmatprep.subr.mxu0 0.0
    %1207 = vmatpush1.msra.mxu0 0.0
    %1208 = vmatprep.mubr.f32.mxu0 0.0
    %1209 = vmatmul.mubr.f32.gmra.mrb[0].mxu0 %v1142
    %v1210 = vpop.f32.mrb[0].mxu0
    %v1211 = vadd.f32 %v1139, %v1210
    %v1212 = vpop.f32.mrb[0].mxu0
    %1213 = vdwg.mxu0
    %vm1214 = vcmp.ge.f32.partialorder %v1211, 0.0
    %v1215 = vmul.f32 %v1211, 0.01
    %v1216 = vsel %vm1214, %v1211, %v1215
    %v1217 = vld [vmem:[#allocation7 + $0x38] sm:$0x1]
    %v1218 = vadd.f32 %v1216, %v44
    %v1219 = vsel %vm131, %v1218, 0.0
    %1220 = vadd.xlane.f32.xlu0 %v1219
    %v1221 = vpop.xlane.xlu0 %1220
    %v1222 = vrcp.pop 32.0
    %v1223 = vmul.f32 %v1221, %v1222
    %v1224 = vsub.f32 %v1218, %v1223
    %v1225 = vmul.f32 %v1224, %v1224
    %v1226 = vsel %vm131, %v1225, 0.0
    %1227 = vadd.xlane.f32.xlu0 %v1226
    %v1228 = vpop.xlane.xlu0 %1227
    %v1229 = vmul.f32 %v1228, %v1222
    %v1230 = vadd.f32 %v1229, 1e-05
    %v1231 = vrsqrt.pop %v1230
    %v1232 = vmul.f32 %v1224, %v1231
    %v1233 = vlaneseq
    %v1234 = vshrl.u32 %v1233, 7
    %v1235 = vsub.s32 0, %v1234
    %v1236 = vrot.slane %v1217, %v1235
    %v1237 = vmul.f32 %v1232, %v1236
    %1239 = vrot.lane.b32.xlu0 %v1236, 96
    %v1240 = vpop.permute.xlu0 %1239
    %v1242 = vadd.f32 %v1237, %v1240
    %v1243 = vrot.slane %v44, 7
    %v1244 = vsel %vm43, 0.0, %v1243
    %1245 = vst.msk [vmem:[#allocation3] sm:$0xff] %vm131, %v44
    %1247 = vrot.lane.b32.xlu0 %v1244, 32
    %v1248 = vpop.permute.xlu0 %1247
    %vm1250 = vcmask 523520
    %1251 = vst.msk [vmem:[#allocation3] sm:$0xff] %vm1250, %v1248
    %1253 = vrot.lane.b32.xlu0 %v1242, 64
    %v1254 = vpop.permute.xlu0 %1253
    %vm1256 = vcmask 785920
    %1257 = vst.msk [vmem:[#allocation3] sm:$0xff] %vm1256, %v1254
    %v1258 = vld [vmem:[#allocation3] sm:$0xff]
    %v1259 = vld [vmem:[#allocation7 + $0x80] sm:$0xff]
    %v1260 = vld [vmem:[#allocation7 + $0x88] sm:$0xff]
    %v1261 = vld [vmem:[#allocation7 + $0x90] sm:$0xff]
    %v1262 = vld [vmem:[#allocation7 + $0x98] sm:$0xff]
    %v1263 = vld [vmem:[#allocation7 + $0xa0] sm:$0xff]
    %v1264 = vld [vmem:[#allocation7 + $0xa8] sm:$0xff]
    %v1265 = vld [vmem:[#allocation7 + $0xb0] sm:$0xff]
    %v1266 = vld [vmem:[#allocation7 + $0xb8] sm:$0xff]
    %v1267 = vld [vmem:[#allocation7 + $0xc0] sm:$0xff]
    %v1268 = vld [vmem:[#allocation7 + $0xc8] sm:$0xff]
    %v1269 = vld [vmem:[#allocation7 + $0xd0] sm:$0xff]
    %v1270 = vld [vmem:[#allocation7 + $0xd8] sm:$0xff]
    %v1271 = vld [vmem:[#allocation7 + $0xe0] sm:$0x1]
    %v1272 = vlaneseq
    %v1273 = vshrl.u32 %v1272, 7
    %v1274 = vsub.s32 0, %v1273
    %v1275 = vrot.slane %v1271, %v1274
    %vm1276 = vcmask 785408
    %v1278 = vsel %vm1276, %v1258, 0
    %1280 = vmatprep.subr.mxu0 0.0
    %1281 = vmatpush1.msra.mxu0 %v1259
    %1282 = vmatprep.subr.mxu0 0.0
    %1283 = vmatpush1.msra.mxu0 %v1260
    %1284 = vmatprep.subr.mxu0 0.0
    %1285 = vmatpush1.msra.mxu0 %v1261
    %1286 = vmatprep.subr.mxu0 0.0
    %1287 = vmatpush1.msra.mxu0 %v1262
    %1288 = vmatprep.subr.mxu0 0.0
    %1289 = vmatpush1.msra.mxu0 %v1263
    %1290 = vmatprep.subr.mxu0 0.0
    %1291 = vmatpush1.msra.mxu0 %v1264
    %1292 = vmatprep.subr.mxu0 0.0
    %1293 = vmatpush1.msra.mxu0 %v1265
    %1294 = vmatprep.subr.mxu0 0.0
    %1295 = vmatpush1.msra.mxu0 %v1266
    %1296 = vmatprep.subr.mxu0 0.0
    %1297 = vmatpush1.msra.mxu0 %v1267
    %1298 = vmatprep.subr.mxu0 0.0
    %1299 = vmatpush1.msra.mxu0 %v1268
    %1300 = vmatprep.subr.mxu0 0.0
    %1301 = vmatpush1.msra.mxu0 %v1269
    %1302 = vmatprep.subr.mxu0 0.0
    %1303 = vmatpush1.msra.mxu0 %v1270
    %1304 = vmatprep.subr.mxu0 0.0
    %1305 = vmatpush1.msra.mxu0 0.0
    %1306 = vmatprep.subr.mxu0 0.0
    %1307 = vmatpush1.msra.mxu0 0.0
    %1308 = vmatprep.subr.mxu0 0.0
    %1309 = vmatpush1.msra.mxu0 0.0
    %1310 = vmatprep.subr.mxu0 0.0
    %1311 = vmatpush1.msra.mxu0 0.0
    %1312 = vmatprep.subr.mxu0 0.0
    %1313 = vmatpush1.msra.mxu0 0.0
    %1314 = vmatprep.subr.mxu0 0.0
    %1315 = vmatpush1.msra.mxu0 0.0
    %1316 = vmatprep.subr.mxu0 0.0
    %1317 = vmatpush1.msra.mxu0 0.0
    %1318 = vmatprep.subr.mxu0 0.0
    %1319 = vmatpush1.msra.mxu0 0.0
    %1320 = vmatprep.subr.mxu0 0.0
    %1321 = vmatpush1.msra.mxu0 0.0
    %1322 = vmatprep.subr.mxu0 0.0
    %1323 = vmatpush1.msra.mxu0 0.0
    %1324 = vmatprep.subr.mxu0 0.0
    %1325 = vmatpush1.msra.mxu0 0.0
    %1326 = vmatprep.subr.mxu0 0.0
    %1327 = vmatpush1.msra.mxu0 0.0
    %1328 = vmatprep.subr.mxu0 0.0
    %1329 = vmatpush1.msra.mxu0 0.0
    %1330 = vmatprep.subr.mxu0 0.0
    %1331 = vmatpush1.msra.mxu0 0.0
    %1332 = vmatprep.subr.mxu0 0.0
    %1333 = vmatpush1.msra.mxu0 0.0
    %1334 = vmatprep.subr.mxu0 0.0
    %1335 = vmatpush1.msra.mxu0 0.0
    %1336 = vmatprep.subr.mxu0 0.0
    %1337 = vmatpush1.msra.mxu0 0.0
    %1338 = vmatprep.subr.mxu0 0.0
    %1339 = vmatpush1.msra.mxu0 0.0
    %1340 = vmatprep.subr.mxu0 0.0
    %1341 = vmatpush1.msra.mxu0 0.0
    %1342 = vmatprep.subr.mxu0 0.0
    %1343 = vmatpush1.msra.mxu0 0.0
    %1344 = vmatprep.mubr.f32.mxu0 0.0
    %1345 = vmatmul.mubr.f32.gmra.mrb[0].mxu0 %v1278
    %v1346 = vpop.f32.mrb[0].mxu0
    %v1347 = vadd.f32 %v1275, %v1346
    %v1348 = vpop.f32.mrb[0].mxu0
    %1349 = vdwg.mxu0
    %v1350 = vxor.u32 %v1347, 2147483648
    %v1351 = vmul.f32 %v1350, 1.442695
    %v1352 = vpow.pop %v1351
    %v1353 = vadd.f32 %v1352, 1.0
    %v1354 = vrcp.pop %v1353
    %v1355 = vmul.f32 1.0, %v1354
    %v1356 = vtanh.pop %v1347
    %1358 = vrot.lane.b32.xlu0 %v1355, 96
    %v1359 = vpop.permute.xlu0 %1358
    %v1361 = vmax.f32 %v1355, %v1359
    %1362 = vrot.lane.b32.xlu0 %v1355, 64
    %v1363 = vpop.permute.xlu0 %1362
    %v1365 = vmax.f32 %v1361, %v1363
    %v1366 = vsub.f32 %v1355, %v1365
    %v1367 = vmul.f32 %v1366, 1.442695
    %v1368 = vpow.pop %v1367
    %1370 = vrot.lane.b32.xlu0 %v1365, 32
    %v1371 = vpop.permute.xlu0 %1370
    %v1373 = vsub.f32 %v1355, %v1371
    %v1374 = vmul.f32 %v1373, 1.442695
    %v1375 = vpow.pop %v1374
    %1376 = vrot.lane.b32.xlu0 %v1365, 64
    %v1377 = vpop.permute.xlu0 %1376
    %v1379 = vsub.f32 %v1355, %v1377
    %v1380 = vmul.f32 %v1379, 1.442695
    %v1381 = vpow.pop %v1380
    %1383 = vrot.lane.b32.xlu0 %v1375, 96
    %v1384 = vpop.permute.xlu0 %1383
    %v1386 = vadd.f32 %v1368, %v1384
    %1388 = vrot.lane.b32.xlu0 %v1381, 64
    %v1389 = vpop.permute.xlu0 %1388
    %v1391 = vadd.f32 %v1386, %v1389
    %v1392 = vrcp.pop %v1391
    %1394 = vrot.lane.b32.xlu0 %v1356, 32
    %v1395 = vpop.permute.xlu0 %1394
    %v1397 = vmul.f32 %v1368, %v1395
    %v1398 = vmul.f32 %v1375, %v1248
    %1400 = vrot.lane.b32.xlu0 %v1398, 96
    %v1401 = vpop.permute.xlu0 %1400
    %v1403 = vadd.f32 %v1397, %v1401
    %v1404 = vmul.f32 %v1381, %v1254
    %1406 = vrot.lane.b32.xlu0 %v1404, 64
    %v1407 = vpop.permute.xlu0 %1406
    %v1409 = vadd.f32 %v1403, %v1407
    %v1410 = vmul.f32 %v1409, %v1392
    %v1411 = vadd.f32 %v44, %v1410
    %v1412 = vsel %vm131, %v1411, 0.0
    %1413 = vadd.xlane.f32.xlu0 %v1412
    %v1414 = vpop.xlane.xlu0 %1413
    %v1415 = vmul.f32 %v1414, %v1222
    %v1416 = vsub.f32 %v1411, %v1415
    %v1417 = vmul.f32 %v1416, %v1416
    %v1418 = vsel %vm131, %v1417, 0.0
    %1419 = vadd.xlane.f32.xlu0 %v1418
    %v1420 = vpop.xlane.xlu0 %1419
    %v1421 = vmul.f32 %v1420, %v1222
    %v1422 = vadd.f32 %v1421, 1e-05
    %v1423 = vrsqrt.pop %v1422
    %v1424 = vmul.f32 %v1416, %v1423
    %v1425 = vlaneseq
    %v1426 = vshrl.u32 %v1425, 7
    %v1427 = vsub.s32 0, %v1426
    %v1428 = vrot.slane %v40, %v1427
    %v1429 = vmul.f32 %v1424, %v1428
    %1431 = vrot.lane.b32.xlu0 %v1428, 96
    %v1432 = vpop.permute.xlu0 %1431
    %v1434 = vadd.f32 %v1429, %v1432
    %1435 = vmatprep.subr.mxu0 0.0
    %1436 = vmatpush1.msra.mxu0 %v1434
    %1437 = vmatprep.subr.mxu0 0.0
    %1438 = vmatpush1.msra.mxu0 0.0
    %1439 = vmatprep.subr.mxu0 0.0
    %1440 = vmatpush1.msra.mxu0 0.0
    %1441 = vmatprep.subr.mxu0 0.0
    %1442 = vmatpush1.msra.mxu0 0.0
    %1443 = vmatprep.subr.mxu0 0.0
    %1444 = vmatpush1.msra.mxu0 0.0
    %1445 = vmatprep.subr.mxu0 0.0
    %1446 = vmatpush1.msra.mxu0 0.0
    %1447 = vmatprep.subr.mxu0 0.0
    %1448 = vmatpush1.msra.mxu0 0.0
    %1449 = vmatprep.subr.mxu0 0.0
    %1450 = vmatpush1.msra.mxu0 0.0
    %1451 = vmatprep.subr.mxu0 0.0
    %1452 = vmatpush1.msra.mxu0 0.0
    %1453 = vmatprep.subr.mxu0 0.0
    %1454 = vmatpush1.msra.mxu0 0.0
    %1455 = vmatprep.subr.mxu0 0.0
    %1456 = vmatpush1.msra.mxu0 0.0
    %1457 = vmatprep.subr.mxu0 0.0
    %1458 = vmatpush1.msra.mxu0 0.0
    %1459 = vmatprep.subr.mxu0 0.0
    %1460 = vmatpush1.msra.mxu0 0.0
    %1461 = vmatprep.subr.mxu0 0.0
    %1462 = vmatpush1.msra.mxu0 0.0
    %1463 = vmatprep.subr.mxu0 0.0
    %1464 = vmatpush1.msra.mxu0 0.0
    %1465 = vmatprep.subr.mxu0 0.0
    %1466 = vmatpush1.msra.mxu0 0.0
    %1467 = vmatprep.subr.mxu0 0.0
    %1468 = vmatpush1.msra.mxu0 0.0
    %1469 = vmatprep.subr.mxu0 0.0
    %1470 = vmatpush1.msra.mxu0 0.0
    %1471 = vmatprep.subr.mxu0 0.0
    %1472 = vmatpush1.msra.mxu0 0.0
    %1473 = vmatprep.subr.mxu0 0.0
    %1474 = vmatpush1.msra.mxu0 0.0
    %1475 = vmatprep.subr.mxu0 0.0
    %1476 = vmatpush1.msra.mxu0 0.0
    %1477 = vmatprep.subr.mxu0 0.0
    %1478 = vmatpush1.msra.mxu0 0.0
    %1479 = vmatprep.subr.mxu0 0.0
    %1480 = vmatpush1.msra.mxu0 0.0
    %1481 = vmatprep.subr.mxu0 0.0
    %1482 = vmatpush1.msra.mxu0 0.0
    %1483 = vmatprep.subr.mxu0 0.0
    %1484 = vmatpush1.msra.mxu0 0.0
    %1485 = vmatprep.subr.mxu0 0.0
    %1486 = vmatpush1.msra.mxu0 0.0
    %1487 = vmatprep.subr.mxu0 0.0
    %1488 = vmatpush1.msra.mxu0 0.0
    %1489 = vmatprep.subr.mxu0 0.0
    %1490 = vmatpush1.msra.mxu0 0.0
    %1491 = vmatprep.subr.mxu0 0.0
    %1492 = vmatpush1.msra.mxu0 0.0
    %1493 = vmatprep.subr.mxu0 0.0
    %1494 = vmatpush1.msra.mxu0 0.0
    %1495 = vmatprep.subr.mxu0 0.0
    %1496 = vmatpush1.msra.mxu0 0.0
    %1497 = vmatprep.subr.mxu0 0.0
    %1498 = vmatpush1.msra.mxu0 0.0
    %1499 = vmatprep.mubr.f32.mxu0 0.0
    %1500 = vmatmul.mubr.f32.gmra.mrb[0].mxu0 %v50
    %v1501 = vpop.f32.mrb[0].mxu0
    %v1502 = vadd.f32 0.0, %v1501
    %v1503 = vpop.f32.mrb[0].mxu0
    %1504 = vdwg.mxu0
    %v1505 = vld [vmem:[#allocation7 + $0x40] sm:$0xff]
    %v1506 = vld [vmem:[#allocation7 + $0x48] sm:$0xff]
    %v1507 = vld [vmem:[#allocation7 + $0x50] sm:$0xff]
    %v1508 = vld [vmem:[#allocation7 + $0x58] sm:$0xff]
    %v1509 = vld [vmem:[#allocation7 + $0x70] sm:$0x1]
    %v1510 = vlaneseq
    %v1511 = vshrl.u32 %v1510, 7
    %v1512 = vsub.s32 0, %v1511
    %v1513 = vrot.slane %v1509, %v1512
    %v1515 = vsel %vm131, %v1434, 0
    %1517 = vmatprep.subr.mxu0 0.0
    %1518 = vmatpush1.msra.mxu0 %v1505
    %1519 = vmatprep.subr.mxu0 0.0
    %1520 = vmatpush1.msra.mxu0 %v1506
    %1521 = vmatprep.subr.mxu0 0.0
    %1522 = vmatpush1.msra.mxu0 %v1507
    %1523 = vmatprep.subr.mxu0 0.0
    %1524 = vmatpush1.msra.mxu0 %v1508
    %1525 = vmatprep.subr.mxu0 0.0
    %1526 = vmatpush1.msra.mxu0 0.0
    %1527 = vmatprep.subr.mxu0 0.0
    %1528 = vmatpush1.msra.mxu0 0.0
    %1529 = vmatprep.subr.mxu0 0.0
    %1530 = vmatpush1.msra.mxu0 0.0
    %1531 = vmatprep.subr.mxu0 0.0
    %1532 = vmatpush1.msra.mxu0 0.0
    %1533 = vmatprep.subr.mxu0 0.0
    %1534 = vmatpush1.msra.mxu0 0.0
    %1535 = vmatprep.subr.mxu0 0.0
    %1536 = vmatpush1.msra.mxu0 0.0
    %1537 = vmatprep.subr.mxu0 0.0
    %1538 = vmatpush1.msra.mxu0 0.0
    %1539 = vmatprep.subr.mxu0 0.0
    %1540 = vmatpush1.msra.mxu0 0.0
    %1541 = vmatprep.subr.mxu0 0.0
    %1542 = vmatpush1.msra.mxu0 0.0
    %1543 = vmatprep.subr.mxu0 0.0
    %1544 = vmatpush1.msra.mxu0 0.0
    %1545 = vmatprep.subr.mxu0 0.0
    %1546 = vmatpush1.msra.mxu0 0.0
    %1547 = vmatprep.subr.mxu0 0.0
    %1548 = vmatpush1.msra.mxu0 0.0
    %1549 = vmatprep.subr.mxu0 0.0
    %1550 = vmatpush1.msra.mxu0 0.0
    %1551 = vmatprep.subr.mxu0 0.0
    %1552 = vmatpush1.msra.mxu0 0.0
    %1553 = vmatprep.subr.mxu0 0.0
    %1554 = vmatpush1.msra.mxu0 0.0
    %1555 = vmatprep.subr.mxu0 0.0
    %1556 = vmatpush1.msra.mxu0 0.0
    %1557 = vmatprep.subr.mxu0 0.0
    %1558 = vmatpush1.msra.mxu0 0.0
    %1559 = vmatprep.subr.mxu0 0.0
    %1560 = vmatpush1.msra.mxu0 0.0
    %1561 = vmatprep.subr.mxu0 0.0
    %1562 = vmatpush1.msra.mxu0 0.0
    %1563 = vmatprep.subr.mxu0 0.0
    %1564 = vmatpush1.msra.mxu0 0.0
    %1565 = vmatprep.subr.mxu0 0.0
    %1566 = vmatpush1.msra.mxu0 0.0
    %1567 = vmatprep.subr.mxu0 0.0
    %1568 = vmatpush1.msra.mxu0 0.0
    %1569 = vmatprep.subr.mxu0 0.0
    %1570 = vmatpush1.msra.mxu0 0.0
    %1571 = vmatprep.subr.mxu0 0.0
    %1572 = vmatpush1.msra.mxu0 0.0
    %1573 = vmatprep.subr.mxu0 0.0
    %1574 = vmatpush1.msra.mxu0 0.0
    %1575 = vmatprep.subr.mxu0 0.0
    %1576 = vmatpush1.msra.mxu0 0.0
    %1577 = vmatprep.subr.mxu0 0.0
    %1578 = vmatpush1.msra.mxu0 0.0
    %1579 = vmatprep.subr.mxu0 0.0
    %1580 = vmatpush1.msra.mxu0 0.0
    %1581 = vmatprep.mubr.f32.mxu0 0.0
    %1582 = vmatmul.mubr.f32.gmra.mrb[0].mxu0 %v1515
    %v1583 = vpop.f32.mrb[0].mxu0
    %v1584 = vadd.f32 %v1513, %v1583
    %v1585 = vpop.f32.mrb[0].mxu0
    %1586 = vdwg.mxu0
    %v1587 = vld [vmem:[#allocation7 + $0x60] sm:$0xff]
    %v1588 = vld [vmem:[#allocation7 + $0x68] sm:$0x3]
    %1591 = vrot.lane.b32.xlu0 %v1587, 96
    %v1592 = vpop.permute.xlu0 %1591
    %1593 = vrot.lane.b32.xlu0 %v1588, 96
    %v1594 = vpop.permute.xlu0 %1593
    %v1596 = vsel %vm218, %v1594, 0
    %1598 = vmatprep.subr.mxu0 0.0
    %1599 = vmatpush1.msra.mxu0 %v1592
    %1600 = vmatprep.subr.mxu0 0.0
    %1601 = vmatpush1.msra.mxu0 %v1596
    %1602 = vmatprep.subr.mxu0 0.0
    %1603 = vmatpush1.msra.mxu0 0.0
    %1604 = vmatprep.subr.mxu0 0.0
    %1605 = vmatpush1.msra.mxu0 0.0
    %1606 = vmatprep.subr.mxu0 0.0
    %1607 = vmatpush1.msra.mxu0 0.0
    %1608 = vmatprep.subr.mxu0 0.0
    %1609 = vmatpush1.msra.mxu0 0.0
    %1610 = vmatprep.subr.mxu0 0.0
    %1611 = vmatpush1.msra.mxu0 0.0
    %1612 = vmatprep.subr.mxu0 0.0
    %1613 = vmatpush1.msra.mxu0 0.0
    %1614 = vmatprep.subr.mxu0 0.0
    %1615 = vmatpush1.msra.mxu0 0.0
    %1616 = vmatprep.subr.mxu0 0.0
    %1617 = vmatpush1.msra.mxu0 0.0
    %1618 = vmatprep.subr.mxu0 0.0
    %1619 = vmatpush1.msra.mxu0 0.0
    %1620 = vmatprep.subr.mxu0 0.0
    %1621 = vmatpush1.msra.mxu0 0.0
    %1622 = vmatprep.subr.mxu0 0.0
    %1623 = vmatpush1.msra.mxu0 0.0
    %1624 = vmatprep.subr.mxu0 0.0
    %1625 = vmatpush1.msra.mxu0 0.0
    %1626 = vmatprep.subr.mxu0 0.0
    %1627 = vmatpush1.msra.mxu0 0.0
    %1628 = vmatprep.subr.mxu0 0.0
    %1629 = vmatpush1.msra.mxu0 0.0
    %1630 = vmatprep.subr.mxu0 0.0
    %1631 = vmatpush1.msra.mxu0 0.0
    %1632 = vmatprep.subr.mxu0 0.0
    %1633 = vmatpush1.msra.mxu0 0.0
    %1634 = vmatprep.subr.mxu0 0.0
    %1635 = vmatpush1.msra.mxu0 0.0
    %1636 = vmatprep.subr.mxu0 0.0
    %1637 = vmatpush1.msra.mxu0 0.0
    %1638 = vmatprep.subr.mxu0 0.0
    %1639 = vmatpush1.msra.mxu0 0.0
    %1640 = vmatprep.subr.mxu0 0.0
    %1641 = vmatpush1.msra.mxu0 0.0
    %1642 = vmatprep.subr.mxu0 0.0
    %1643 = vmatpush1.msra.mxu0 0.0
    %1644 = vmatprep.subr.mxu0 0.0
    %1645 = vmatpush1.msra.mxu0 0.0
    %1646 = vmatprep.subr.mxu0 0.0
    %1647 = vmatpush1.msra.mxu0 0.0
    %1648 = vmatprep.subr.mxu0 0.0
    %1649 = vmatpush1.msra.mxu0 0.0
    %1650 = vmatprep.subr.mxu0 0.0
    %1651 = vmatpush1.msra.mxu0 0.0
    %1652 = vmatprep.subr.mxu0 0.0
    %1653 = vmatpush1.msra.mxu0 0.0
    %1654 = vmatprep.subr.mxu0 0.0
    %1655 = vmatpush1.msra.mxu0 0.0
    %1656 = vmatprep.subr.mxu0 0.0
    %1657 = vmatpush1.msra.mxu0 0.0
    %1658 = vmatprep.subr.mxu0 0.0
    %1659 = vmatpush1.msra.mxu0 0.0
    %1660 = vmatprep.subr.mxu0 0.0
    %1661 = vmatpush1.msra.mxu0 0.0
    %1662 = vmatprep.mubr.f32.mxu0 0.0
    %1663 = vmatmul.mubr.f32.gmra.mrb[0].mxu0 %v216
    %v1664 = vpop.f32.mrb[0].mxu0
    %v1665 = vadd.f32 0.0, %v1664
    %v1666 = vpop.f32.mrb[0].mxu0
    %1667 = vdwg.mxu0
    %1672 = vrot.lane.b32.xlu0 %v1505, 96
    %v1673 = vpop.permute.xlu0 %1672
    %1674 = vrot.lane.b32.xlu0 %v1506, 96
    %v1675 = vpop.permute.xlu0 %1674
    %1676 = vrot.lane.b32.xlu0 %v1507, 96
    %v1677 = vpop.permute.xlu0 %1676
    %1678 = vrot.lane.b32.xlu0 %v1508, 96
    %v1679 = vpop.permute.xlu0 %1678
    %v1685 = vsel %vm131, %v1502, 0
    %1687 = vmatprep.subr.mxu0 0.0
    %1688 = vmatpush1.msra.mxu0 %v1673
    %1689 = vmatprep.subr.mxu0 0.0
    %1690 = vmatpush1.msra.mxu0 %v1675
    %1691 = vmatprep.subr.mxu0 0.0
    %1692 = vmatpush1.msra.mxu0 %v1677
    %1693 = vmatprep.subr.mxu0 0.0
    %1694 = vmatpush1.msra.mxu0 %v1679
    %1695 = vmatprep.subr.mxu0 0.0
    %1696 = vmatpush1.msra.mxu0 0.0
    %1697 = vmatprep.subr.mxu0 0.0
    %1698 = vmatpush1.msra.mxu0 0.0
    %1699 = vmatprep.subr.mxu0 0.0
    %1700 = vmatpush1.msra.mxu0 0.0
    %1701 = vmatprep.subr.mxu0 0.0
    %1702 = vmatpush1.msra.mxu0 0.0
    %1703 = vmatprep.subr.mxu0 0.0
    %1704 = vmatpush1.msra.mxu0 0.0
    %1705 = vmatprep.subr.mxu0 0.0
    %1706 = vmatpush1.msra.mxu0 0.0
    %1707 = vmatprep.subr.mxu0 0.0
    %1708 = vmatpush1.msra.mxu0 0.0
    %1709 = vmatprep.subr.mxu0 0.0
    %1710 = vmatpush1.msra.mxu0 0.0
    %1711 = vmatprep.subr.mxu0 0.0
    %1712 = vmatpush1.msra.mxu0 0.0
    %1713 = vmatprep.subr.mxu0 0.0
    %1714 = vmatpush1.msra.mxu0 0.0
    %1715 = vmatprep.subr.mxu0 0.0
    %1716 = vmatpush1.msra.mxu0 0.0
    %1717 = vmatprep.subr.mxu0 0.0
    %1718 = vmatpush1.msra.mxu0 0.0
    %1719 = vmatprep.subr.mxu0 0.0
    %1720 = vmatpush1.msra.mxu0 0.0
    %1721 = vmatprep.subr.mxu0 0.0
    %1722 = vmatpush1.msra.mxu0 0.0
    %1723 = vmatprep.subr.mxu0 0.0
    %1724 = vmatpush1.msra.mxu0 0.0
    %1725 = vmatprep.subr.mxu0 0.0
    %1726 = vmatpush1.msra.mxu0 0.0
    %1727 = vmatprep.subr.mxu0 0.0
    %1728 = vmatpush1.msra.mxu0 0.0
    %1729 = vmatprep.subr.mxu0 0.0
    %1730 = vmatpush1.msra.mxu0 0.0
    %1731 = vmatprep.subr.mxu0 0.0
    %1732 = vmatpush1.msra.mxu0 0.0
    %1733 = vmatprep.subr.mxu0 0.0
    %1734 = vmatpush1.msra.mxu0 0.0
    %1735 = vmatprep.subr.mxu0 0.0
    %1736 = vmatpush1.msra.mxu0 0.0
    %1737 = vmatprep.subr.mxu0 0.0
    %1738 = vmatpush1.msra.mxu0 0.0
    %1739 = vmatprep.subr.mxu0 0.0
    %1740 = vmatpush1.msra.mxu0 0.0
    %1741 = vmatprep.subr.mxu0 0.0
    %1742 = vmatpush1.msra.mxu0 0.0
    %1743 = vmatprep.subr.mxu0 0.0
    %1744 = vmatpush1.msra.mxu0 0.0
    %1745 = vmatprep.subr.mxu0 0.0
    %1746 = vmatpush1.msra.mxu0 0.0
    %1747 = vmatprep.subr.mxu0 0.0
    %1748 = vmatpush1.msra.mxu0 0.0
    %1749 = vmatprep.subr.mxu0 0.0
    %1750 = vmatpush1.msra.mxu0 0.0
    %1751 = vmatprep.mubr.f32.mxu0 0.0
    %1752 = vmatmul.mubr.f32.gmra.mrb[0].mxu0 %v1685
    %v1753 = vpop.f32.mrb[0].mxu0
    %v1754 = vadd.f32 %v1665, %v1753
    %v1755 = vpop.f32.mrb[0].mxu0
    %1756 = vdwg.mxu0
    %1758 = vrot.lane.b32.xlu0 %v1513, 96
    %v1759 = vpop.permute.xlu0 %1758
    %v1761 = vadd.f32 %v1754, %v1759
    %v1763 = vsel %vm49, %v1584, 0
    %v1766 = vsel %vm49, %v1761, 0
    %1768 = vmatprep.subr.mxu0 0.0
    %1769 = vmatpush1.xpose.msra.mxu0 %v1766
    %1770 = vmatprep.subr.mxu0 0.0
    %1771 = vmatpush1.xpose.msra.mxu0 0.0
    %1772 = vmatprep.subr.mxu0 0.0
    %1773 = vmatpush1.xpose.msra.mxu0 0.0
    %1774 = vmatprep.subr.mxu0 0.0
    %1775 = vmatpush1.xpose.msra.mxu0 0.0
    %1776 = vmatprep.subr.mxu0 0.0
    %1777 = vmatpush1.xpose.msra.mxu0 0.0
    %1778 = vmatprep.subr.mxu0 0.0
    %1779 = vmatpush1.xpose.msra.mxu0 0.0
    %1780 = vmatprep.subr.mxu0 0.0
    %1781 = vmatpush1.xpose.msra.mxu0 0.0
    %1782 = vmatprep.subr.mxu0 0.0
    %1783 = vmatpush1.xpose.msra.mxu0 0.0
    %1784 = vmatprep.subr.mxu0 0.0
    %1785 = vmatpush1.xpose.msra.mxu0 0.0
    %1786 = vmatprep.subr.mxu0 0.0
    %1787 = vmatpush1.xpose.msra.mxu0 0.0
    %1788 = vmatprep.subr.mxu0 0.0
    %1789 = vmatpush1.xpose.msra.mxu0 0.0
    %1790 = vmatprep.subr.mxu0 0.0
    %1791 = vmatpush1.xpose.msra.mxu0 0.0
    %1792 = vmatprep.subr.mxu0 0.0
    %1793 = vmatpush1.xpose.msra.mxu0 0.0
    %1794 = vmatprep.subr.mxu0 0.0
    %1795 = vmatpush1.xpose.msra.mxu0 0.0
    %1796 = vmatprep.subr.mxu0 0.0
    %1797 = vmatpush1.xpose.msra.mxu0 0.0
    %1798 = vmatprep.subr.mxu0 0.0
    %1799 = vmatpush1.xpose.msra.mxu0 0.0
    %1800 = vmatprep.subr.mxu0 0.0
    %1801 = vmatpush1.xpose.msra.mxu0 0.0
    %1802 = vmatprep.subr.mxu0 0.0
    %1803 = vmatpush1.xpose.msra.mxu0 0.0
    %1804 = vmatprep.subr.mxu0 0.0
    %1805 = vmatpush1.xpose.msra.mxu0 0.0
    %1806 = vmatprep.subr.mxu0 0.0
    %1807 = vmatpush1.xpose.msra.mxu0 0.0
    %1808 = vmatprep.subr.mxu0 0.0
    %1809 = vmatpush1.xpose.msra.mxu0 0.0
    %1810 = vmatprep.subr.mxu0 0.0
    %1811 = vmatpush1.xpose.msra.mxu0 0.0
    %1812 = vmatprep.subr.mxu0 0.0
    %1813 = vmatpush1.xpose.msra.mxu0 0.0
    %1814 = vmatprep.subr.mxu0 0.0
    %1815 = vmatpush1.xpose.msra.mxu0 0.0
    %1816 = vmatprep.subr.mxu0 0.0
    %1817 = vmatpush1.xpose.msra.mxu0 0.0
    %1818 = vmatprep.subr.mxu0 0.0
    %1819 = vmatpush1.xpose.msra.mxu0 0.0
    %1820 = vmatprep.subr.mxu0 0.0
    %1821 = vmatpush1.xpose.msra.mxu0 0.0
    %1822 = vmatprep.subr.mxu0 0.0
    %1823 = vmatpush1.xpose.msra.mxu0 0.0
    %1824 = vmatprep.subr.mxu0 0.0
    %1825 = vmatpush1.xpose.msra.mxu0 0.0
    %1826 = vmatprep.subr.mxu0 0.0
    %1827 = vmatpush1.xpose.msra.mxu0 0.0
    %1828 = vmatprep.subr.mxu0 0.0
    %1829 = vmatpush1.xpose.msra.mxu0 0.0
    %1830 = vmatprep.subr.mxu0 0.0
    %1831 = vmatpush1.xpose.msra.mxu0 0.0
    %1832 = vmatprep.mubr.f32.mxu0 0.0
    %1833 = vmatmul.mubr.f32.gmra.mrb[0].mxu0 %v1763
    %v1834 = vpop.f32.mrb[0].mxu0
    %v1835 = vadd.f32 0.0, %v1834
    %v1836 = vpop.f32.mrb[0].mxu0
    %1837 = vdwg.mxu0
    %v1838 = vmul.f32 %v1835, 0.35355338
    %1840 = vrot.lane.b32.xlu0 %v1838, 40
    %v1841 = vpop.permute.xlu0 %1840
    %v1843 = vsel %vm45, -1e+30, %v1841
    %v1844 = vsel %vm467, %v1843, -inf
    %1845 = vmax.xlane.f32.xlu0 %v1844
    %v1846 = vpop.xlane.xlu0 %1845
    %v1847 = vsub.f32 %v1843, %v1846
    %v1848 = vmul.f32 %v1847, 1.442695
    %v1849 = vpow.pop %v1848
    %1851 = vrot.lane.b32.xlu0 %v1849, 88
    %v1852 = vpop.permute.xlu0 %1851
    %v1854 = vsel %vm49, %v1852, 0.0
    %1855 = vadd.xlane.f32.xlu0 %v1854
    %v1856 = vpop.xlane.xlu0 %1855
    %v1857 = vrcp.pop %v1856
    %v1858 = vmul.f32 %v1849, %v1857
    %1860 = vrot.lane.b32.xlu0 %v1858, 88
    %v1861 = vpop.permute.xlu0 %1860
    %1862 = vrot.lane.b32.xlu0 %v1761, 96
    %v1863 = vpop.permute.xlu0 %1862
    %v1865 = vsel %vm49, %v1861, 0
    %1867 = vmatprep.subr.mxu0 0.0
    %1868 = vmatpush1.msra.mxu0 %v1863
    %1869 = vmatprep.subr.mxu0 0.0
    %1870 = vmatpush1.msra.mxu0 0.0
    %1871 = vmatprep.subr.mxu0 0.0
    %1872 = vmatpush1.msra.mxu0 0.0
    %1873 = vmatprep.subr.mxu0 0.0
    %1874 = vmatpush1.msra.mxu0 0.0
    %1875 = vmatprep.subr.mxu0 0.0
    %1876 = vmatpush1.msra.mxu0 0.0
    %1877 = vmatprep.subr.mxu0 0.0
    %1878 = vmatpush1.msra.mxu0 0.0
    %1879 = vmatprep.subr.mxu0 0.0
    %1880 = vmatpush1.msra.mxu0 0.0
    %1881 = vmatprep.subr.mxu0 0.0
    %1882 = vmatpush1.msra.mxu0 0.0
    %1883 = vmatprep.subr.mxu0 0.0
    %1884 = vmatpush1.msra.mxu0 0.0
    %1885 = vmatprep.subr.mxu0 0.0
    %1886 = vmatpush1.msra.mxu0 0.0
    %1887 = vmatprep.subr.mxu0 0.0
    %1888 = vmatpush1.msra.mxu0 0.0
    %1889 = vmatprep.subr.mxu0 0.0
    %1890 = vmatpush1.msra.mxu0 0.0
    %1891 = vmatprep.subr.mxu0 0.0
    %1892 = vmatpush1.msra.mxu0 0.0
    %1893 = vmatprep.subr.mxu0 0.0
    %1894 = vmatpush1.msra.mxu0 0.0
    %1895 = vmatprep.subr.mxu0 0.0
    %1896 = vmatpush1.msra.mxu0 0.0
    %1897 = vmatprep.subr.mxu0 0.0
    %1898 = vmatpush1.msra.mxu0 0.0
    %1899 = vmatprep.subr.mxu0 0.0
    %1900 = vmatpush1.msra.mxu0 0.0
    %1901 = vmatprep.subr.mxu0 0.0
    %1902 = vmatpush1.msra.mxu0 0.0
    %1903 = vmatprep.subr.mxu0 0.0
    %1904 = vmatpush1.msra.mxu0 0.0
    %1905 = vmatprep.subr.mxu0 0.0
    %1906 = vmatpush1.msra.mxu0 0.0
    %1907 = vmatprep.subr.mxu0 0.0
    %1908 = vmatpush1.msra.mxu0 0.0
    %1909 = vmatprep.subr.mxu0 0.0
    %1910 = vmatpush1.msra.mxu0 0.0
    %1911 = vmatprep.subr.mxu0 0.0
    %1912 = vmatpush1.msra.mxu0 0.0
    %1913 = vmatprep.subr.mxu0 0.0
    %1914 = vmatpush1.msra.mxu0 0.0
    %1915 = vmatprep.subr.mxu0 0.0
    %1916 = vmatpush1.msra.mxu0 0.0
    %1917 = vmatprep.subr.mxu0 0.0
    %1918 = vmatpush1.msra.mxu0 0.0
    %1919 = vmatprep.subr.mxu0 0.0
    %1920 = vmatpush1.msra.mxu0 0.0
    %1921 = vmatprep.subr.mxu0 0.0
    %1922 = vmatpush1.msra.mxu0 0.0
    %1923 = vmatprep.subr.mxu0 0.0
    %1924 = vmatpush1.msra.mxu0 0.0
    %1925 = vmatprep.subr.mxu0 0.0
    %1926 = vmatpush1.msra.mxu0 0.0
    %1927 = vmatprep.subr.mxu0 0.0
    %1928 = vmatpush1.msra.mxu0 0.0
    %1929 = vmatprep.subr.mxu0 0.0
    %1930 = vmatpush1.msra.mxu0 0.0
    %1931 = vmatprep.mubr.f32.mxu0 0.0
    %1932 = vmatmul.mubr.f32.gmra.mrb[0].mxu0 %v1865
    %v1933 = vpop.f32.mrb[0].mxu0
    %v1934 = vadd.f32 0.0, %v1933
    %v1935 = vpop.f32.mrb[0].mxu0
    %1936 = vdwg.mxu0
    %1937 = vst.msk [vmem:[#allocation2] sm:$0xff] %vm49, %v1934
    %1938 = vrot.lane.b32.xlu0 %v1584, 120
    %v1939 = vpop.permute.xlu0 %1938
    %1940 = vrot.lane.b32.xlu0 %v1761, 120
    %v1941 = vpop.permute.xlu0 %1940
    %v1942 = vsel %vm49, %v1939, 0
    %v1944 = vsel %vm49, %v1941, 0
    %1946 = vmatprep.subr.mxu0 0.0
    %1947 = vmatpush1.xpose.msra.mxu0 %v1944
    %1948 = vmatprep.subr.mxu0 0.0
    %1949 = vmatpush1.xpose.msra.mxu0 0.0
    %1950 = vmatprep.subr.mxu0 0.0
    %1951 = vmatpush1.xpose.msra.mxu0 0.0
    %1952 = vmatprep.subr.mxu0 0.0
    %1953 = vmatpush1.xpose.msra.mxu0 0.0
    %1954 = vmatprep.subr.mxu0 0.0
    %1955 = vmatpush1.xpose.msra.mxu0 0.0
    %1956 = vmatprep.subr.mxu0 0.0
    %1957 = vmatpush1.xpose.msra.mxu0 0.0
    %1958 = vmatprep.subr.mxu0 0.0
    %1959 = vmatpush1.xpose.msra.mxu0 0.0
    %1960 = vmatprep.subr.mxu0 0.0
    %1961 = vmatpush1.xpose.msra.mxu0 0.0
    %1962 = vmatprep.subr.mxu0 0.0
    %1963 = vmatpush1.xpose.msra.mxu0 0.0
    %1964 = vmatprep.subr.mxu0 0.0
    %1965 = vmatpush1.xpose.msra.mxu0 0.0
    %1966 = vmatprep.subr.mxu0 0.0
    %1967 = vmatpush1.xpose.msra.mxu0 0.0
    %1968 = vmatprep.subr.mxu0 0.0
    %1969 = vmatpush1.xpose.msra.mxu0 0.0
    %1970 = vmatprep.subr.mxu0 0.0
    %1971 = vmatpush1.xpose.msra.mxu0 0.0
    %1972 = vmatprep.subr.mxu0 0.0
    %1973 = vmatpush1.xpose.msra.mxu0 0.0
    %1974 = vmatprep.subr.mxu0 0.0
    %1975 = vmatpush1.xpose.msra.mxu0 0.0
    %1976 = vmatprep.subr.mxu0 0.0
    %1977 = vmatpush1.xpose.msra.mxu0 0.0
    %1978 = vmatprep.subr.mxu0 0.0
    %1979 = vmatpush1.xpose.msra.mxu0 0.0
    %1980 = vmatprep.subr.mxu0 0.0
    %1981 = vmatpush1.xpose.msra.mxu0 0.0
    %1982 = vmatprep.subr.mxu0 0.0
    %1983 = vmatpush1.xpose.msra.mxu0 0.0
    %1984 = vmatprep.subr.mxu0 0.0
    %1985 = vmatpush1.xpose.msra.mxu0 0.0
    %1986 = vmatprep.subr.mxu0 0.0
    %1987 = vmatpush1.xpose.msra.mxu0 0.0
    %1988 = vmatprep.subr.mxu0 0.0
    %1989 = vmatpush1.xpose.msra.mxu0 0.0
    %1990 = vmatprep.subr.mxu0 0.0
    %1991 = vmatpush1.xpose.msra.mxu0 0.0
    %1992 = vmatprep.subr.mxu0 0.0
    %1993 = vmatpush1.xpose.msra.mxu0 0.0
    %1994 = vmatprep.subr.mxu0 0.0
    %1995 = vmatpush1.xpose.msra.mxu0 0.0
    %1996 = vmatprep.subr.mxu0 0.0
    %1997 = vmatpush1.xpose.msra.mxu0 0.0
    %1998 = vmatprep.subr.mxu0 0.0
    %1999 = vmatpush1.xpose.msra.mxu0 0.0
    %2000 = vmatprep.subr.mxu0 0.0
    %2001 = vmatpush1.xpose.msra.mxu0 0.0
    %2002 = vmatprep.subr.mxu0 0.0
    %2003 = vmatpush1.xpose.msra.mxu0 0.0
    %2004 = vmatprep.subr.mxu0 0.0
    %2005 = vmatpush1.xpose.msra.mxu0 0.0
    %2006 = vmatprep.subr.mxu0 0.0
    %2007 = vmatpush1.xpose.msra.mxu0 0.0
    %2008 = vmatprep.subr.mxu0 0.0
    %2009 = vmatpush1.xpose.msra.mxu0 0.0
    %2010 = vmatprep.mubr.f32.mxu0 0.0
    %2011 = vmatmul.mubr.f32.gmra.mrb[0].mxu0 %v1942
    %v2012 = vpop.f32.mrb[0].mxu0
    %v2013 = vadd.f32 0.0, %v2012
    %v2014 = vpop.f32.mrb[0].mxu0
    %2015 = vdwg.mxu0
    %v2016 = vmul.f32 %v2013, 0.35355338
    %2018 = vrot.lane.b32.xlu0 %v2016, 40
    %v2019 = vpop.permute.xlu0 %2018
    %v2021 = vsel %vm45, -1e+30, %v2019
    %v2022 = vsel %vm467, %v2021, -inf
    %2023 = vmax.xlane.f32.xlu0 %v2022
    %v2024 = vpop.xlane.xlu0 %2023
    %v2025 = vsub.f32 %v2021, %v2024
    %v2026 = vmul.f32 %v2025, 1.442695
    %v2027 = vpow.pop %v2026
    %2029 = vrot.lane.b32.xlu0 %v2027, 88
    %v2030 = vpop.permute.xlu0 %2029
    %v2032 = vsel %vm49, %v2030, 0.0
    %2033 = vadd.xlane.f32.xlu0 %v2032
    %v2034 = vpop.xlane.xlu0 %2033
    %v2035 = vrcp.pop %v2034
    %v2036 = vmul.f32 %v2027, %v2035
    %2038 = vrot.lane.b32.xlu0 %v2036, 88
    %v2039 = vpop.permute.xlu0 %2038
    %2040 = vrot.lane.b32.xlu0 %v1761, 88
    %v2041 = vpop.permute.xlu0 %2040
    %v2043 = vsel %vm49, %v2039, 0
    %2045 = vmatprep.subr.mxu0 0.0
    %2046 = vmatpush1.msra.mxu0 %v2041
    %2047 = vmatprep.subr.mxu0 0.0
    %2048 = vmatpush1.msra.mxu0 0.0
    %2049 = vmatprep.subr.mxu0 0.0
    %2050 = vmatpush1.msra.mxu0 0.0
    %2051 = vmatprep.subr.mxu0 0.0
    %2052 = vmatpush1.msra.mxu0 0.0
    %2053 = vmatprep.subr.mxu0 0.0
    %2054 = vmatpush1.msra.mxu0 0.0
    %2055 = vmatprep.subr.mxu0 0.0
    %2056 = vmatpush1.msra.mxu0 0.0
    %2057 = vmatprep.subr.mxu0 0.0
    %2058 = vmatpush1.msra.mxu0 0.0
    %2059 = vmatprep.subr.mxu0 0.0
    %2060 = vmatpush1.msra.mxu0 0.0
    %2061 = vmatprep.subr.mxu0 0.0
    %2062 = vmatpush1.msra.mxu0 0.0
    %2063 = vmatprep.subr.mxu0 0.0
    %2064 = vmatpush1.msra.mxu0 0.0
    %2065 = vmatprep.subr.mxu0 0.0
    %2066 = vmatpush1.msra.mxu0 0.0
    %2067 = vmatprep.subr.mxu0 0.0
    %2068 = vmatpush1.msra.mxu0 0.0
    %2069 = vmatprep.subr.mxu0 0.0
    %2070 = vmatpush1.msra.mxu0 0.0
    %2071 = vmatprep.subr.mxu0 0.0
    %2072 = vmatpush1.msra.mxu0 0.0
    %2073 = vmatprep.subr.mxu0 0.0
    %2074 = vmatpush1.msra.mxu0 0.0
    %2075 = vmatprep.subr.mxu0 0.0
    %2076 = vmatpush1.msra.mxu0 0.0
    %2077 = vmatprep.subr.mxu0 0.0
    %2078 = vmatpush1.msra.mxu0 0.0
    %2079 = vmatprep.subr.mxu0 0.0
    %2080 = vmatpush1.msra.mxu0 0.0
    %2081 = vmatprep.subr.mxu0 0.0
    %2082 = vmatpush1.msra.mxu0 0.0
    %2083 = vmatprep.subr.mxu0 0.0
    %2084 = vmatpush1.msra.mxu0 0.0
    %2085 = vmatprep.subr.mxu0 0.0
    %2086 = vmatpush1.msra.mxu0 0.0
    %2087 = vmatprep.subr.mxu0 0.0
    %2088 = vmatpush1.msra.mxu0 0.0
    %2089 = vmatprep.subr.mxu0 0.0
    %2090 = vmatpush1.msra.mxu0 0.0
    %2091 = vmatprep.subr.mxu0 0.0
    %2092 = vmatpush1.msra.mxu0 0.0
    %2093 = vmatprep.subr.mxu0 0.0
    %2094 = vmatpush1.msra.mxu0 0.0
    %2095 = vmatprep.subr.mxu0 0.0
    %2096 = vmatpush1.msra.mxu0 0.0
    %2097 = vmatprep.subr.mxu0 0.0
    %2098 = vmatpush1.msra.mxu0 0.0
    %2099 = vmatprep.subr.mxu0 0.0
    %2100 = vmatpush1.msra.mxu0 0.0
    %2101 = vmatprep.subr.mxu0 0.0
    %2102 = vmatpush1.msra.mxu0 0.0
    %2103 = vmatprep.subr.mxu0 0.0
    %2104 = vmatpush1.msra.mxu0 0.0
    %2105 = vmatprep.subr.mxu0 0.0
    %2106 = vmatpush1.msra.mxu0 0.0
    %2107 = vmatprep.subr.mxu0 0.0
    %2108 = vmatpush1.msra.mxu0 0.0
    %2109 = vmatprep.mubr.f32.mxu0 0.0
    %2110 = vmatmul.mubr.f32.gmra.mrb[0].mxu0 %v2043
    %v2111 = vpop.f32.mrb[0].mxu0
    %v2112 = vadd.f32 0.0, %v2111
    %v2113 = vpop.f32.mrb[0].mxu0
    %2114 = vdwg.mxu0
    %2116 = vrot.lane.b32.xlu0 %v2112, 8
    %v2117 = vpop.permute.xlu0 %2116
    %2119 = vst.msk [vmem:[#allocation2] sm:$0xff] %vm743, %v2117
    %2120 = vrot.lane.b32.xlu0 %v1584, 112
    %v2121 = vpop.permute.xlu0 %2120
    %2122 = vrot.lane.b32.xlu0 %v1761, 112
    %v2123 = vpop.permute.xlu0 %2122
    %v2124 = vsel %vm49, %v2121, 0
    %v2126 = vsel %vm49, %v2123, 0
    %2128 = vmatprep.subr.mxu0 0.0
    %2129 = vmatpush1.xpose.msra.mxu0 %v2126
    %2130 = vmatprep.subr.mxu0 0.0
    %2131 = vmatpush1.xpose.msra.mxu0 0.0
    %2132 = vmatprep.subr.mxu0 0.0
    %2133 = vmatpush1.xpose.msra.mxu0 0.0
    %2134 = vmatprep.subr.mxu0 0.0
    %2135 = vmatpush1.xpose.msra.mxu0 0.0
    %2136 = vmatprep.subr.mxu0 0.0
    %2137 = vmatpush1.xpose.msra.mxu0 0.0
    %2138 = vmatprep.subr.mxu0 0.0
    %2139 = vmatpush1.xpose.msra.mxu0 0.0
    %2140 = vmatprep.subr.mxu0 0.0
    %2141 = vmatpush1.xpose.msra.mxu0 0.0
    %2142 = vmatprep.subr.mxu0 0.0
    %2143 = vmatpush1.xpose.msra.mxu0 0.0
    %2144 = vmatprep.subr.mxu0 0.0
    %2145 = vmatpush1.xpose.msra.mxu0 0.0
    %2146 = vmatprep.subr.mxu0 0.0
    %2147 = vmatpush1.xpose.msra.mxu0 0.0
    %2148 = vmatprep.subr.mxu0 0.0
    %2149 = vmatpush1.xpose.msra.mxu0 0.0
    %2150 = vmatprep.subr.mxu0 0.0
    %2151 = vmatpush1.xpose.msra.mxu0 0.0
    %2152 = vmatprep.subr.mxu0 0.0
    %2153 = vmatpush1.xpose.msra.mxu0 0.0
    %2154 = vmatprep.subr.mxu0 0.0
    %2155 = vmatpush1.xpose.msra.mxu0 0.0
    %2156 = vmatprep.subr.mxu0 0.0
    %2157 = vmatpush1.xpose.msra.mxu0 0.0
    %2158 = vmatprep.subr.mxu0 0.0
    %2159 = vmatpush1.xpose.msra.mxu0 0.0
    %2160 = vmatprep.subr.mxu0 0.0
    %2161 = vmatpush1.xpose.msra.mxu0 0.0
    %2162 = vmatprep.subr.mxu0 0.0
    %2163 = vmatpush1.xpose.msra.mxu0 0.0
    %2164 = vmatprep.subr.mxu0 0.0
    %2165 = vmatpush1.xpose.msra.mxu0 0.0
    %2166 = vmatprep.subr.mxu0 0.0
    %2167 = vmatpush1.xpose.msra.mxu0 0.0
    %2168 = vmatprep.subr.mxu0 0.0
    %2169 = vmatpush1.xpose.msra.mxu0 0.0
    %2170 = vmatprep.subr.mxu0 0.0
    %2171 = vmatpush1.xpose.msra.mxu0 0.0
    %2172 = vmatprep.subr.mxu0 0.0
    %2173 = vmatpush1.xpose.msra.mxu0 0.0
    %2174 = vmatprep.subr.mxu0 0.0
    %2175 = vmatpush1.xpose.msra.mxu0 0.0
    %2176 = vmatprep.subr.mxu0 0.0
    %2177 = vmatpush1.xpose.msra.mxu0 0.0
    %2178 = vmatprep.subr.mxu0 0.0
    %2179 = vmatpush1.xpose.msra.mxu0 0.0
    %2180 = vmatprep.subr.mxu0 0.0
    %2181 = vmatpush1.xpose.msra.mxu0 0.0
    %2182 = vmatprep.subr.mxu0 0.0
    %2183 = vmatpush1.xpose.msra.mxu0 0.0
    %2184 = vmatprep.subr.mxu0 0.0
    %2185 = vmatpush1.xpose.msra.mxu0 0.0
    %2186 = vmatprep.subr.mxu0 0.0
    %2187 = vmatpush1.xpose.msra.mxu0 0.0
    %2188 = vmatprep.subr.mxu0 0.0
    %2189 = vmatpush1.xpose.msra.mxu0 0.0
    %2190 = vmatprep.subr.mxu0 0.0
    %2191 = vmatpush1.xpose.msra.mxu0 0.0
    %2192 = vmatprep.mubr.f32.mxu0 0.0
    %2193 = vmatmul.mubr.f32.gmra.mrb[0].mxu0 %v2124
    %v2194 = vpop.f32.mrb[0].mxu0
    %v2195 = vadd.f32 0.0, %v2194
    %v2196 = vpop.f32.mrb[0].mxu0
    %2197 = vdwg.mxu0
    %v2198 = vmul.f32 %v2195, 0.35355338
    %2200 = vrot.lane.b32.xlu0 %v2198, 40
    %v2201 = vpop.permute.xlu0 %2200
    %v2203 = vsel %vm45, -1e+30, %v2201
    %v2204 = vsel %vm467, %v2203, -inf
    %2205 = vmax.xlane.f32.xlu0 %v2204
    %v2206 = vpop.xlane.xlu0 %2205
    %v2207 = vsub.f32 %v2203, %v2206
    %v2208 = vmul.f32 %v2207, 1.442695
    %v2209 = vpow.pop %v2208
    %2211 = vrot.lane.b32.xlu0 %v2209, 88
    %v2212 = vpop.permute.xlu0 %2211
    %v2214 = vsel %vm49, %v2212, 0.0
    %2215 = vadd.xlane.f32.xlu0 %v2214
    %v2216 = vpop.xlane.xlu0 %2215
    %v2217 = vrcp.pop %v2216
    %v2218 = vmul.f32 %v2209, %v2217
    %2220 = vrot.lane.b32.xlu0 %v2218, 88
    %v2221 = vpop.permute.xlu0 %2220
    %2222 = vrot.lane.b32.xlu0 %v1761, 80
    %v2223 = vpop.permute.xlu0 %2222
    %v2225 = vsel %vm49, %v2221, 0
    %2227 = vmatprep.subr.mxu0 0.0
    %2228 = vmatpush1.msra.mxu0 %v2223
    %2229 = vmatprep.subr.mxu0 0.0
    %2230 = vmatpush1.msra.mxu0 0.0
    %2231 = vmatprep.subr.mxu0 0.0
    %2232 = vmatpush1.msra.mxu0 0.0
    %2233 = vmatprep.subr.mxu0 0.0
    %2234 = vmatpush1.msra.mxu0 0.0
    %2235 = vmatprep.subr.mxu0 0.0
    %2236 = vmatpush1.msra.mxu0 0.0
    %2237 = vmatprep.subr.mxu0 0.0
    %2238 = vmatpush1.msra.mxu0 0.0
    %2239 = vmatprep.subr.mxu0 0.0
    %2240 = vmatpush1.msra.mxu0 0.0
    %2241 = vmatprep.subr.mxu0 0.0
    %2242 = vmatpush1.msra.mxu0 0.0
    %2243 = vmatprep.subr.mxu0 0.0
    %2244 = vmatpush1.msra.mxu0 0.0
    %2245 = vmatprep.subr.mxu0 0.0
    %2246 = vmatpush1.msra.mxu0 0.0
    %2247 = vmatprep.subr.mxu0 0.0
    %2248 = vmatpush1.msra.mxu0 0.0
    %2249 = vmatprep.subr.mxu0 0.0
    %2250 = vmatpush1.msra.mxu0 0.0
    %2251 = vmatprep.subr.mxu0 0.0
    %2252 = vmatpush1.msra.mxu0 0.0
    %2253 = vmatprep.subr.mxu0 0.0
    %2254 = vmatpush1.msra.mxu0 0.0
    %2255 = vmatprep.subr.mxu0 0.0
    %2256 = vmatpush1.msra.mxu0 0.0
    %2257 = vmatprep.subr.mxu0 0.0
    %2258 = vmatpush1.msra.mxu0 0.0
    %2259 = vmatprep.subr.mxu0 0.0
    %2260 = vmatpush1.msra.mxu0 0.0
    %2261 = vmatprep.subr.mxu0 0.0
    %2262 = vmatpush1.msra.mxu0 0.0
    %2263 = vmatprep.subr.mxu0 0.0
    %2264 = vmatpush1.msra.mxu0 0.0
    %2265 = vmatprep.subr.mxu0 0.0
    %2266 = vmatpush1.msra.mxu0 0.0
    %2267 = vmatprep.subr.mxu0 0.0
    %2268 = vmatpush1.msra.mxu0 0.0
    %2269 = vmatprep.subr.mxu0 0.0
    %2270 = vmatpush1.msra.mxu0 0.0
    %2271 = vmatprep.subr.mxu0 0.0
    %2272 = vmatpush1.msra.mxu0 0.0
    %2273 = vmatprep.subr.mxu0 0.0
    %2274 = vmatpush1.msra.mxu0 0.0
    %2275 = vmatprep.subr.mxu0 0.0
    %2276 = vmatpush1.msra.mxu0 0.0
    %2277 = vmatprep.subr.mxu0 0.0
    %2278 = vmatpush1.msra.mxu0 0.0
    %2279 = vmatprep.subr.mxu0 0.0
    %2280 = vmatpush1.msra.mxu0 0.0
    %2281 = vmatprep.subr.mxu0 0.0
    %2282 = vmatpush1.msra.mxu0 0.0
    %2283 = vmatprep.subr.mxu0 0.0
    %2284 = vmatpush1.msra.mxu0 0.0
    %2285 = vmatprep.subr.mxu0 0.0
    %2286 = vmatpush1.msra.mxu0 0.0
    %2287 = vmatprep.subr.mxu0 0.0
    %2288 = vmatpush1.msra.mxu0 0.0
    %2289 = vmatprep.subr.mxu0 0.0
    %2290 = vmatpush1.msra.mxu0 0.0
    %2291 = vmatprep.mubr.f32.mxu0 0.0
    %2292 = vmatmul.mubr.f32.gmra.mrb[0].mxu0 %v2225
    %v2293 = vpop.f32.mrb[0].mxu0
    %v2294 = vadd.f32 0.0, %v2293
    %v2295 = vpop.f32.mrb[0].mxu0
    %2296 = vdwg.mxu0
    %2298 = vrot.lane.b32.xlu0 %v2294, 16
    %v2299 = vpop.permute.xlu0 %2298
    %2301 = vst.msk [vmem:[#allocation2] sm:$0xff] %vm926, %v2299
    %2302 = vrot.lane.b32.xlu0 %v1584, 104
    %v2303 = vpop.permute.xlu0 %2302
    %2304 = vrot.lane.b32.xlu0 %v1761, 104
    %v2305 = vpop.permute.xlu0 %2304
    %v2306 = vsel %vm49, %v2303, 0
    %v2308 = vsel %vm49, %v2305, 0
    %2310 = vmatprep.subr.mxu0 0.0
    %2311 = vmatpush1.xpose.msra.mxu0 %v2308
    %2312 = vmatprep.subr.mxu0 0.0
    %2313 = vmatpush1.xpose.msra.mxu0 0.0
    %2314 = vmatprep.subr.mxu0 0.0
    %2315 = vmatpush1.xpose.msra.mxu0 0.0
    %2316 = vmatprep.subr.mxu0 0.0
    %2317 = vmatpush1.xpose.msra.mxu0 0.0
    %2318 = vmatprep.subr.mxu0 0.0
    %2319 = vmatpush1.xpose.msra.mxu0 0.0
    %2320 = vmatprep.subr.mxu0 0.0
    %2321 = vmatpush1.xpose.msra.mxu0 0.0
    %2322 = vmatprep.subr.mxu0 0.0
    %2323 = vmatpush1.xpose.msra.mxu0 0.0
    %2324 = vmatprep.subr.mxu0 0.0
    %2325 = vmatpush1.xpose.msra.mxu0 0.0
    %2326 = vmatprep.subr.mxu0 0.0
    %2327 = vmatpush1.xpose.msra.mxu0 0.0
    %2328 = vmatprep.subr.mxu0 0.0
    %2329 = vmatpush1.xpose.msra.mxu0 0.0
    %2330 = vmatprep.subr.mxu0 0.0
    %2331 = vmatpush1.xpose.msra.mxu0 0.0
    %2332 = vmatprep.subr.mxu0 0.0
    %2333 = vmatpush1.xpose.msra.mxu0 0.0
    %2334 = vmatprep.subr.mxu0 0.0
    %2335 = vmatpush1.xpose.msra.mxu0 0.0
    %2336 = vmatprep.subr.mxu0 0.0
    %2337 = vmatpush1.xpose.msra.mxu0 0.0
    %2338 = vmatprep.subr.mxu0 0.0
    %2339 = vmatpush1.xpose.msra.mxu0 0.0
    %2340 = vmatprep.subr.mxu0 0.0
    %2341 = vmatpush1.xpose.msra.mxu0 0.0
    %2342 = vmatprep.subr.mxu0 0.0
    %2343 = vmatpush1.xpose.msra.mxu0 0.0
    %2344 = vmatprep.subr.mxu0 0.0
    %2345 = vmatpush1.xpose.msra.mxu0 0.0
    %2346 = vmatprep.subr.mxu0 0.0
    %2347 = vmatpush1.xpose.msra.mxu0 0.0
    %2348 = vmatprep.subr.mxu0 0.0
    %2349 = vmatpush1.xpose.msra.mxu0 0.0
    %2350 = vmatprep.subr.mxu0 0.0
    %2351 = vmatpush1.xpose.msra.mxu0 0.0
    %2352 = vmatprep.subr.mxu0 0.0
    %2353 = vmatpush1.xpose.msra.mxu0 0.0
    %2354 = vmatprep.subr.mxu0 0.0
    %2355 = vmatpush1.xpose.msra.mxu0 0.0
    %2356 = vmatprep.subr.mxu0 0.0
    %2357 = vmatpush1.xpose.msra.mxu0 0.0
    %2358 = vmatprep.subr.mxu0 0.0
    %2359 = vmatpush1.xpose.msra.mxu0 0.0
    %2360 = vmatprep.subr.mxu0 0.0
    %2361 = vmatpush1.xpose.msra.mxu0 0.0
    %2362 = vmatprep.subr.mxu0 0.0
    %2363 = vmatpush1.xpose.msra.mxu0 0.0
    %2364 = vmatprep.subr.mxu0 0.0
    %2365 = vmatpush1.xpose.msra.mxu0 0.0
    %2366 = vmatprep.subr.mxu0 0.0
    %2367 = vmatpush1.xpose.msra.mxu0 0.0
    %2368 = vmatprep.subr.mxu0 0.0
    %2369 = vmatpush1.xpose.msra.mxu0 0.0
    %2370 = vmatprep.subr.mxu0 0.0
    %2371 = vmatpush1.xpose.msra.mxu0 0.0
    %2372 = vmatprep.subr.mxu0 0.0
    %2373 = vmatpush1.xpose.msra.mxu0 0.0
    %2374 = vmatprep.mubr.f32.mxu0 0.0
    %2375 = vmatmul.mubr.f32.gmra.mrb[0].mxu0 %v2306
    %v2376 = vpop.f32.mrb[0].mxu0
    %v2377 = vadd.f32 0.0, %v2376
    %v2378 = vpop.f32.mrb[0].mxu0
    %2379 = vdwg.mxu0
    %v2380 = vmul.f32 %v2377, 0.35355338
    %2382 = vrot.lane.b32.xlu0 %v2380, 40
    %v2383 = vpop.permute.xlu0 %2382
    %v2385 = vsel %vm45, -1e+30, %v2383
    %v2386 = vsel %vm467, %v2385, -inf
    %2387 = vmax.xlane.f32.xlu0 %v2386
    %v2388 = vpop.xlane.xlu0 %2387
    %v2389 = vsub.f32 %v2385, %v2388
    %v2390 = vmul.f32 %v2389, 1.442695
    %v2391 = vpow.pop %v2390
    %2393 = vrot.lane.b32.xlu0 %v2391, 88
    %v2394 = vpop.permute.xlu0 %2393
    %v2396 = vsel %vm49, %v2394, 0.0
    %2397 = vadd.xlane.f32.xlu0 %v2396
    %v2398 = vpop.xlane.xlu0 %2397
    %v2399 = vrcp.pop %v2398
    %v2400 = vmul.f32 %v2391, %v2399
    %2402 = vrot.lane.b32.xlu0 %v2400, 88
    %v2403 = vpop.permute.xlu0 %2402
    %2404 = vrot.lane.b32.xlu0 %v1761, 72
    %v2405 = vpop.permute.xlu0 %2404
    %v2407 = vsel %vm49, %v2403, 0
    %2409 = vmatprep.subr.mxu0 0.0
    %2410 = vmatpush1.msra.mxu0 %v2405
    %2411 = vmatprep.subr.mxu0 0.0
    %2412 = vmatpush1.msra.mxu0 0.0
    %2413 = vmatprep.subr.mxu0 0.0
    %2414 = vmatpush1.msra.mxu0 0.0
    %2415 = vmatprep.subr.mxu0 0.0
    %2416 = vmatpush1.msra.mxu0 0.0
    %2417 = vmatprep.subr.mxu0 0.0
    %2418 = vmatpush1.msra.mxu0 0.0
    %2419 = vmatprep.subr.mxu0 0.0
    %2420 = vmatpush1.msra.mxu0 0.0
    %2421 = vmatprep.subr.mxu0 0.0
    %2422 = vmatpush1.msra.mxu0 0.0
    %2423 = vmatprep.subr.mxu0 0.0
    %2424 = vmatpush1.msra.mxu0 0.0
    %2425 = vmatprep.subr.mxu0 0.0
    %2426 = vmatpush1.msra.mxu0 0.0
    %2427 = vmatprep.subr.mxu0 0.0
    %2428 = vmatpush1.msra.mxu0 0.0
    %2429 = vmatprep.subr.mxu0 0.0
    %2430 = vmatpush1.msra.mxu0 0.0
    %2431 = vmatprep.subr.mxu0 0.0
    %2432 = vmatpush1.msra.mxu0 0.0
    %2433 = vmatprep.subr.mxu0 0.0
    %2434 = vmatpush1.msra.mxu0 0.0
    %2435 = vmatprep.subr.mxu0 0.0
    %2436 = vmatpush1.msra.mxu0 0.0
    %2437 = vmatprep.subr.mxu0 0.0
    %2438 = vmatpush1.msra.mxu0 0.0
    %2439 = vmatprep.subr.mxu0 0.0
    %2440 = vmatpush1.msra.mxu0 0.0
    %2441 = vmatprep.subr.mxu0 0.0
    %2442 = vmatpush1.msra.mxu0 0.0
    %2443 = vmatprep.subr.mxu0 0.0
    %2444 = vmatpush1.msra.mxu0 0.0
    %2445 = vmatprep.subr.mxu0 0.0
    %2446 = vmatpush1.msra.mxu0 0.0
    %2447 = vmatprep.subr.mxu0 0.0
    %2448 = vmatpush1.msra.mxu0 0.0
    %2449 = vmatprep.subr.mxu0 0.0
    %2450 = vmatpush1.msra.mxu0 0.0
    %2451 = vmatprep.subr.mxu0 0.0
    %2452 = vmatpush1.msra.mxu0 0.0
    %2453 = vmatprep.subr.mxu0 0.0
    %2454 = vmatpush1.msra.mxu0 0.0
    %2455 = vmatprep.subr.mxu0 0.0
    %2456 = vmatpush1.msra.mxu0 0.0
    %2457 = vmatprep.subr.mxu0 0.0
    %2458 = vmatpush1.msra.mxu0 0.0
    %2459 = vmatprep.subr.mxu0 0.0
    %2460 = vmatpush1.msra.mxu0 0.0
    %2461 = vmatprep.subr.mxu0 0.0
    %2462 = vmatpush1.msra.mxu0 0.0
    %2463 = vmatprep.subr.mxu0 0.0
    %2464 = vmatpush1.msra.mxu0 0.0
    %2465 = vmatprep.subr.mxu0 0.0
    %2466 = vmatpush1.msra.mxu0 0.0
    %2467 = vmatprep.subr.mxu0 0.0
    %2468 = vmatpush1.msra.mxu0 0.0
    %2469 = vmatprep.subr.mxu0 0.0
    %2470 = vmatpush1.msra.mxu0 0.0
    %2471 = vmatprep.subr.mxu0 0.0
    %2472 = vmatpush1.msra.mxu0 0.0
    %2473 = vmatprep.mubr.f32.mxu0 0.0
    %2474 = vmatmul.mubr.f32.gmra.mrb[0].mxu0 %v2407
    %v2475 = vpop.f32.mrb[0].mxu0
    %v2476 = vadd.f32 0.0, %v2475
    %v2477 = vpop.f32.mrb[0].mxu0
    %2478 = vdwg.mxu0
    %2480 = vrot.lane.b32.xlu0 %v2476, 24
    %v2481 = vpop.permute.xlu0 %2480
    %2483 = vst.msk [vmem:[#allocation2] sm:$0xff] %vm1109, %v2481
    %v2484 = vld [vmem:[#allocation2] sm:$0xff]
    %v2485 = vld [vmem:[#allocation7 + $0x40] sm:$0xff]
    %v2486 = vld [vmem:[#allocation7 + $0x48] sm:$0xff]
    %v2487 = vld [vmem:[#allocation7 + $0x50] sm:$0xff]
    %v2488 = vld [vmem:[#allocation7 + $0x58] sm:$0xff]
    %v2489 = vld [vmem:[#allocation7 + $0x70] sm:$0x1]
    %v2490 = vlaneseq
    %v2491 = vshrl.u32 %v2490, 7
    %v2492 = vsub.s32 0, %v2491
    %v2493 = vrot.slane %v2489, %v2492
    %2498 = vrot.lane.b32.xlu0 %v2485, 32
    %v2499 = vpop.permute.xlu0 %2498
    %2500 = vrot.lane.b32.xlu0 %v2486, 32
    %v2501 = vpop.permute.xlu0 %2500
    %2502 = vrot.lane.b32.xlu0 %v2487, 32
    %v2503 = vpop.permute.xlu0 %2502
    %2504 = vrot.lane.b32.xlu0 %v2488, 32
    %v2505 = vpop.permute.xlu0 %2504
    %2511 = vrot.lane.b32.xlu0 %v2493, 32
    %v2512 = vpop.permute.xlu0 %2511
    %v2515 = vsel %vm131, %v2484, 0
    %2517 = vmatprep.subr.mxu0 0.0
    %2518 = vmatpush1.msra.mxu0 %v2499
    %2519 = vmatprep.subr.mxu0 0.0
    %2520 = vmatpush1.msra.mxu0 %v2501
    %2521 = vmatprep.subr.mxu0 0.0
    %2522 = vmatpush1.msra.mxu0 %v2503
    %2523 = vmatprep.subr.mxu0 0.0
    %2524 = vmatpush1.msra.mxu0 %v2505
    %2525 = vmatprep.subr.mxu0 0.0
    %2526 = vmatpush1.msra.mxu0 0.0
    %2527 = vmatprep.subr.mxu0 0.0
    %2528 = vmatpush1.msra.mxu0 0.0
    %2529 = vmatprep.subr.mxu0 0.0
    %2530 = vmatpush1.msra.mxu0 0.0
    %2531 = vmatprep.subr.mxu0 0.0
    %2532 = vmatpush1.msra.mxu0 0.0
    %2533 = vmatprep.subr.mxu0 0.0
    %2534 = vmatpush1.msra.mxu0 0.0
    %2535 = vmatprep.subr.mxu0 0.0
    %2536 = vmatpush1.msra.mxu0 0.0
    %2537 = vmatprep.subr.mxu0 0.0
    %2538 = vmatpush1.msra.mxu0 0.0
    %2539 = vmatprep.subr.mxu0 0.0
    %2540 = vmatpush1.msra.mxu0 0.0
    %2541 = vmatprep.subr.mxu0 0.0
    %2542 = vmatpush1.msra.mxu0 0.0
    %2543 = vmatprep.subr.mxu0 0.0
    %2544 = vmatpush1.msra.mxu0 0.0
    %2545 = vmatprep.subr.mxu0 0.0
    %2546 = vmatpush1.msra.mxu0 0.0
    %2547 = vmatprep.subr.mxu0 0.0
    %2548 = vmatpush1.msra.mxu0 0.0
    %2549 = vmatprep.subr.mxu0 0.0
    %2550 = vmatpush1.msra.mxu0 0.0
    %2551 = vmatprep.subr.mxu0 0.0
    %2552 = vmatpush1.msra.mxu0 0.0
    %2553 = vmatprep.subr.mxu0 0.0
    %2554 = vmatpush1.msra.mxu0 0.0
    %2555 = vmatprep.subr.mxu0 0.0
    %2556 = vmatpush1.msra.mxu0 0.0
    %2557 = vmatprep.subr.mxu0 0.0
    %2558 = vmatpush1.msra.mxu0 0.0
    %2559 = vmatprep.subr.mxu0 0.0
    %2560 = vmatpush1.msra.mxu0 0.0
    %2561 = vmatprep.subr.mxu0 0.0
    %2562 = vmatpush1.msra.mxu0 0.0
    %2563 = vmatprep.subr.mxu0 0.0
    %2564 = vmatpush1.msra.mxu0 0.0
    %2565 = vmatprep.subr.mxu0 0.0
    %2566 = vmatpush1.msra.mxu0 0.0
    %2567 = vmatprep.subr.mxu0 0.0
    %2568 = vmatpush1.msra.mxu0 0.0
    %2569 = vmatprep.subr.mxu0 0.0
    %2570 = vmatpush1.msra.mxu0 0.0
    %2571 = vmatprep.subr.mxu0 0.0
    %2572 = vmatpush1.msra.mxu0 0.0
    %2573 = vmatprep.subr.mxu0 0.0
    %2574 = vmatpush1.msra.mxu0 0.0
    %2575 = vmatprep.subr.mxu0 0.0
    %2576 = vmatpush1.msra.mxu0 0.0
    %2577 = vmatprep.subr.mxu0 0.0
    %2578 = vmatpush1.msra.mxu0 0.0
    %2579 = vmatprep.subr.mxu0 0.0
    %2580 = vmatpush1.msra.mxu0 0.0
    %2581 = vmatprep.mubr.f32.mxu0 0.0
    %2582 = vmatmul.mubr.f32.gmra.mrb[0].mxu0 %v2515
    %v2583 = vpop.f32.mrb[0].mxu0
    %v2584 = vadd.f32 %v2512, %v2583
    %v2585 = vpop.f32.mrb[0].mxu0
    %2586 = vdwg.mxu0
    %vm2587 = vcmp.ge.f32.partialorder %v2584, 0.0
    %v2588 = vmul.f32 %v2584, 0.01
    %v2589 = vsel %vm2587, %v2584, %v2588
    %v2590 = vld [vmem:[#allocation7 + $0x78] sm:$0x1]
    %v2591 = vadd.f32 %v2589, %v1434
    %v2592 = vsel %vm131, %v2591, 0.0
    %2593 = vadd.xlane.f32.xlu0 %v2592
    %v2594 = vpop.xlane.xlu0 %2593
    %v2595 = vmul.f32 %v2594, %v1222
    %v2596 = vsub.f32 %v2591, %v2595
    %v2597 = vmul.f32 %v2596, %v2596
    %v2598 = vsel %vm131, %v2597, 0.0
    %2599 = vadd.xlane.f32.xlu0 %v2598
    %v2600 = vpop.xlane.xlu0 %2599
    %v2601 = vmul.f32 %v2600, %v1222
    %v2602 = vadd.f32 %v2601, 1e-05
    %v2603 = vrsqrt.pop %v2602
    %v2604 = vmul.f32 %v2596, %v2603
    %v2605 = vlaneseq
    %v2606 = vshrl.u32 %v2605, 7
    %v2607 = vsub.s32 0, %v2606
    %v2608 = vrot.slane %v2590, %v2607
    %v2609 = vmul.f32 %v2604, %v2608
    %2611 = vrot.lane.b32.xlu0 %v2608, 96
    %v2612 = vpop.permute.xlu0 %2611
    %v2614 = vadd.f32 %v2609, %v2612
    %v2615 = vrot.slane %v1434, 7
    %v2616 = vsel %vm43, 0.0, %v2615
    %2617 = vst.msk [vmem:[#allocation3] sm:$0xff] %vm131, %v1434
    %2619 = vrot.lane.b32.xlu0 %v2616, 32
    %v2620 = vpop.permute.xlu0 %2619
    %2622 = vst.msk [vmem:[#allocation3] sm:$0xff] %vm1250, %v2620
    %2624 = vrot.lane.b32.xlu0 %v2614, 64
    %v2625 = vpop.permute.xlu0 %2624
    %2627 = vst.msk [vmem:[#allocation3] sm:$0xff] %vm1256, %v2625
    %v2628 = vld [vmem:[#allocation3] sm:$0xff]
    %v2629 = vld [vmem:[#allocation7 + $0x80] sm:$0xff]
    %v2630 = vld [vmem:[#allocation7 + $0x88] sm:$0xff]
    %v2631 = vld [vmem:[#allocation7 + $0x90] sm:$0xff]
    %v2632 = vld [vmem:[#allocation7 + $0x98] sm:$0xff]
    %v2633 = vld [vmem:[#allocation7 + $0xa0] sm:$0xff]
    %v2634 = vld [vmem:[#allocation7 + $0xa8] sm:$0xff]
    %v2635 = vld [vmem:[#allocation7 + $0xb0] sm:$0xff]
    %v2636 = vld [vmem:[#allocation7 + $0xb8] sm:$0xff]
    %v2637 = vld [vmem:[#allocation7 + $0xc0] sm:$0xff]
    %v2638 = vld [vmem:[#allocation7 + $0xc8] sm:$0xff]
    %v2639 = vld [vmem:[#allocation7 + $0xd0] sm:$0xff]
    %v2640 = vld [vmem:[#allocation7 + $0xd8] sm:$0xff]
    %v2641 = vld [vmem:[#allocation7 + $0xe0] sm:$0x1]
    %v2642 = vlaneseq
    %v2643 = vshrl.u32 %v2642, 7
    %v2644 = vsub.s32 0, %v2643
    %v2645 = vrot.slane %v2641, %v2644
    %v2647 = vsel %vm1276, %v2628, 0
    %2649 = vmatprep.subr.mxu0 0.0
    %2650 = vmatpush1.msra.mxu0 %v2629
    %2651 = vmatprep.subr.mxu0 0.0
    %2652 = vmatpush1.msra.mxu0 %v2630
    %2653 = vmatprep.subr.mxu0 0.0
    %2654 = vmatpush1.msra.mxu0 %v2631
    %2655 = vmatprep.subr.mxu0 0.0
    %2656 = vmatpush1.msra.mxu0 %v2632
    %2657 = vmatprep.subr.mxu0 0.0
    %2658 = vmatpush1.msra.mxu0 %v2633
    %2659 = vmatprep.subr.mxu0 0.0
    %2660 = vmatpush1.msra.mxu0 %v2634
    %2661 = vmatprep.subr.mxu0 0.0
    %2662 = vmatpush1.msra.mxu0 %v2635
    %2663 = vmatprep.subr.mxu0 0.0
    %2664 = vmatpush1.msra.mxu0 %v2636
    %2665 = vmatprep.subr.mxu0 0.0
    %2666 = vmatpush1.msra.mxu0 %v2637
    %2667 = vmatprep.subr.mxu0 0.0
    %2668 = vmatpush1.msra.mxu0 %v2638
    %2669 = vmatprep.subr.mxu0 0.0
    %2670 = vmatpush1.msra.mxu0 %v2639
    %2671 = vmatprep.subr.mxu0 0.0
    %2672 = vmatpush1.msra.mxu0 %v2640
    %2673 = vmatprep.subr.mxu0 0.0
    %2674 = vmatpush1.msra.mxu0 0.0
    %2675 = vmatprep.subr.mxu0 0.0
    %2676 = vmatpush1.msra.mxu0 0.0
    %2677 = vmatprep.subr.mxu0 0.0
    %2678 = vmatpush1.msra.mxu0 0.0
    %2679 = vmatprep.subr.mxu0 0.0
    %2680 = vmatpush1.msra.mxu0 0.0
    %2681 = vmatprep.subr.mxu0 0.0
    %2682 = vmatpush1.msra.mxu0 0.0
    %2683 = vmatprep.subr.mxu0 0.0
    %2684 = vmatpush1.msra.mxu0 0.0
    %2685 = vmatprep.subr.mxu0 0.0
    %2686 = vmatpush1.msra.mxu0 0.0
    %2687 = vmatprep.subr.mxu0 0.0
    %2688 = vmatpush1.msra.mxu0 0.0
    %2689 = vmatprep.subr.mxu0 0.0
    %2690 = vmatpush1.msra.mxu0 0.0
    %2691 = vmatprep.subr.mxu0 0.0
    %2692 = vmatpush1.msra.mxu0 0.0
    %2693 = vmatprep.subr.mxu0 0.0
    %2694 = vmatpush1.msra.mxu0 0.0
    %2695 = vmatprep.subr.mxu0 0.0
    %2696 = vmatpush1.msra.mxu0 0.0
    %2697 = vmatprep.subr.mxu0 0.0
    %2698 = vmatpush1.msra.mxu0 0.0
    %2699 = vmatprep.subr.mxu0 0.0
    %2700 = vmatpush1.msra.mxu0 0.0
    %2701 = vmatprep.subr.mxu0 0.0
    %2702 = vmatpush1.msra.mxu0 0.0
    %2703 = vmatprep.subr.mxu0 0.0
    %2704 = vmatpush1.msra.mxu0 0.0
    %2705 = vmatprep.subr.mxu0 0.0
    %2706 = vmatpush1.msra.mxu0 0.0
    %2707 = vmatprep.subr.mxu0 0.0
    %2708 = vmatpush1.msra.mxu0 0.0
    %2709 = vmatprep.subr.mxu0 0.0
    %2710 = vmatpush1.msra.mxu0 0.0
    %2711 = vmatprep.subr.mxu0 0.0
    %2712 = vmatpush1.msra.mxu0 0.0
    %2713 = vmatprep.mubr.f32.mxu0 0.0
    %2714 = vmatmul.mubr.f32.gmra.mrb[0].mxu0 %v2647
    %v2715 = vpop.f32.mrb[0].mxu0
    %v2716 = vadd.f32 %v2645, %v2715
    %v2717 = vpop.f32.mrb[0].mxu0
    %2718 = vdwg.mxu0
    %v2719 = vxor.u32 %v2716, 2147483648
    %v2720 = vmul.f32 %v2719, 1.442695
    %v2721 = vpow.pop %v2720
    %v2722 = vadd.f32 %v2721, 1.0
    %v2723 = vrcp.pop %v2722
    %v2724 = vmul.f32 1.0, %v2723
    %v2725 = vtanh.pop %v2716
    %2727 = vrot.lane.b32.xlu0 %v2724, 96
    %v2728 = vpop.permute.xlu0 %2727
    %v2730 = vmax.f32 %v2724, %v2728
    %2731 = vrot.lane.b32.xlu0 %v2724, 64
    %v2732 = vpop.permute.xlu0 %2731
    %v2734 = vmax.f32 %v2730, %v2732
    %v2735 = vsub.f32 %v2724, %v2734
    %v2736 = vmul.f32 %v2735, 1.442695
    %v2737 = vpow.pop %v2736
    %2739 = vrot.lane.b32.xlu0 %v2734, 32
    %v2740 = vpop.permute.xlu0 %2739
    %v2742 = vsub.f32 %v2724, %v2740
    %v2743 = vmul.f32 %v2742, 1.442695
    %v2744 = vpow.pop %v2743
    %2745 = vrot.lane.b32.xlu0 %v2734, 64
    %v2746 = vpop.permute.xlu0 %2745
    %v2748 = vsub.f32 %v2724, %v2746
    %v2749 = vmul.f32 %v2748, 1.442695
    %v2750 = vpow.pop %v2749
    %2752 = vrot.lane.b32.xlu0 %v2744, 96
    %v2753 = vpop.permute.xlu0 %2752
    %v2755 = vadd.f32 %v2737, %v2753
    %2757 = vrot.lane.b32.xlu0 %v2750, 64
    %v2758 = vpop.permute.xlu0 %2757
    %v2760 = vadd.f32 %v2755, %v2758
    %v2761 = vrcp.pop %v2760
    %2763 = vrot.lane.b32.xlu0 %v2725, 32
    %v2764 = vpop.permute.xlu0 %2763
    %v2766 = vmul.f32 %v2737, %v2764
    %v2767 = vmul.f32 %v2744, %v2620
    %2769 = vrot.lane.b32.xlu0 %v2767, 96
    %v2770 = vpop.permute.xlu0 %2769
    %v2772 = vadd.f32 %v2766, %v2770
    %v2773 = vmul.f32 %v2750, %v2625
    %2775 = vrot.lane.b32.xlu0 %v2773, 64
    %v2776 = vpop.permute.xlu0 %2775
    %v2778 = vadd.f32 %v2772, %v2776
    %v2779 = vmul.f32 %v2778, %v2761
    %2780 = vrot.lane.b32.xlu0 %v1428, 64
    %v2781 = vpop.permute.xlu0 %2780
    %v2783 = vmul.f32 %v44, %v2781
    %v2784 = vsel %vm131, %v2783, 0.0
    %2785 = vadd.xlane.f32.xlu0 %v2784
    %v2786 = vpop.xlane.xlu0 %2785
    %v2787 = vadd.f32 %v2786, %v1428
    %v2788 = vxor.u32 %v2787, 2147483648
    %v2789 = vmul.f32 %v2788, 1.442695
    %v2790 = vpow.pop %v2789
    %v2791 = vadd.f32 %v2790, 1.0
    %v2792 = vrcp.pop %v2791
    %v2793 = vmul.f32 1.0, %v2792
    %v2794 = vmul.f32 %v1410, %v2781
    %v2795 = vsel %vm131, %v2794, 0.0
    %2796 = vadd.xlane.f32.xlu0 %v2795
    %v2797 = vpop.xlane.xlu0 %2796
    %v2798 = vadd.f32 %v2797, %v1428
    %v2799 = vxor.u32 %v2798, 2147483648
    %v2800 = vmul.f32 %v2799, 1.442695
    %v2801 = vpow.pop %v2800
    %v2802 = vadd.f32 %v2801, 1.0
    %v2803 = vrcp.pop %v2802
    %v2804 = vmul.f32 1.0, %v2803
    %v2805 = vmul.f32 %v2779, %v2781
    %v2806 = vsel %vm131, %v2805, 0.0
    %2807 = vadd.xlane.f32.xlu0 %v2806
    %v2808 = vpop.xlane.xlu0 %2807
    %v2809 = vadd.f32 %v2808, %v1428
    %v2810 = vxor.u32 %v2809, 2147483648
    %v2811 = vmul.f32 %v2810, 1.442695
    %v2812 = vpow.pop %v2811
    %v2813 = vadd.f32 %v2812, 1.0
    %v2814 = vrcp.pop %v2813
    %v2815 = vmul.f32 1.0, %v2814
    %v2816 = vmax.f32 %v2793, %v2804
    %v2817 = vmax.f32 %v2816, %v2815
    %v2818 = vsub.f32 %v2793, %v2817
    %v2819 = vmul.f32 %v2818, 1.442695
    %v2820 = vpow.pop %v2819
    %v2821 = vsub.f32 %v2804, %v2817
    %v2822 = vmul.f32 %v2821, 1.442695
    %v2823 = vpow.pop %v2822
    %v2824 = vsub.f32 %v2815, %v2817
    %v2825 = vmul.f32 %v2824, 1.442695
    %v2826 = vpow.pop %v2825
    %v2827 = vadd.f32 %v2820, %v2823
    %v2828 = vadd.f32 %v2827, %v2826
    %2830 = vset.pattern.permute.xlu0 96
    %2831 = vperm.xlu0 %2830, %v2820
    %v2832 = vpop.permute.xlu0 %2831
    %v2834 = vmul.f32 %v2832, %v44
    %2836 = vset.pattern.permute.xlu0 96
    %2837 = vperm.xlu0 %2836, %v2823
    %v2838 = vpop.permute.xlu0 %2837
    %v2840 = vmul.f32 %v2838, %v1410
    %v2841 = vadd.f32 %v2834, %v2840
    %2843 = vset.pattern.permute.xlu0 96
    %2844 = vperm.xlu0 %2843, %v2826
    %v2845 = vpop.permute.xlu0 %2844
    %v2847 = vmul.f32 %v2845, %v2779
    %v2848 = vadd.f32 %v2841, %v2847
    %v2849 = vrcp.pop %v2828
    %2851 = vset.pattern.permute.xlu0 96
    %2852 = vperm.xlu0 %2851, %v2849
    %v2853 = vpop.permute.xlu0 %2852
    %v2855 = vmul.f32 %v2848, %v2853
    %2856 = vst.msk [vmem:[#allocation9] sm:$0xff] %vm131, %v2855
    %s2857 = scalar_lea.vmem [#allocation4], 8
    %v2858 = vld [vmem:[%s2857] sm:$0xff]
    %vm2859 = vcmp.gt.f32.partialorder %v2858, 0.5
    %2861 = vrot.lane.b32.xlu0 %v2858, 96
    %v2862 = vpop.permute.xlu0 %2861
    %v2863 = vsel %vm49, %v2862, 0
    %2865 = vmatprep.subr.mxu0 0.0
    %2866 = vmatpush1.msra.mxu0 %v2858
    %2867 = vmatprep.subr.mxu0 0.0
    %2868 = vmatpush1.msra.mxu0 0.0
    %2869 = vmatprep.subr.mxu0 0.0
    %2870 = vmatpush1.msra.mxu0 0.0
    %2871 = vmatprep.subr.mxu0 0.0
    %2872 = vmatpush1.msra.mxu0 0.0
    %2873 = vmatprep.subr.mxu0 0.0
    %2874 = vmatpush1.msra.mxu0 0.0
    %2875 = vmatprep.subr.mxu0 0.0
    %2876 = vmatpush1.msra.mxu0 0.0
    %2877 = vmatprep.subr.mxu0 0.0
    %2878 = vmatpush1.msra.mxu0 0.0
    %2879 = vmatprep.subr.mxu0 0.0
    %2880 = vmatpush1.msra.mxu0 0.0
    %2881 = vmatprep.subr.mxu0 0.0
    %2882 = vmatpush1.msra.mxu0 0.0
    %2883 = vmatprep.subr.mxu0 0.0
    %2884 = vmatpush1.msra.mxu0 0.0
    %2885 = vmatprep.subr.mxu0 0.0
    %2886 = vmatpush1.msra.mxu0 0.0
    %2887 = vmatprep.subr.mxu0 0.0
    %2888 = vmatpush1.msra.mxu0 0.0
    %2889 = vmatprep.subr.mxu0 0.0
    %2890 = vmatpush1.msra.mxu0 0.0
    %2891 = vmatprep.subr.mxu0 0.0
    %2892 = vmatpush1.msra.mxu0 0.0
    %2893 = vmatprep.subr.mxu0 0.0
    %2894 = vmatpush1.msra.mxu0 0.0
    %2895 = vmatprep.subr.mxu0 0.0
    %2896 = vmatpush1.msra.mxu0 0.0
    %2897 = vmatprep.subr.mxu0 0.0
    %2898 = vmatpush1.msra.mxu0 0.0
    %2899 = vmatprep.subr.mxu0 0.0
    %2900 = vmatpush1.msra.mxu0 0.0
    %2901 = vmatprep.subr.mxu0 0.0
    %2902 = vmatpush1.msra.mxu0 0.0
    %2903 = vmatprep.subr.mxu0 0.0
    %2904 = vmatpush1.msra.mxu0 0.0
    %2905 = vmatprep.subr.mxu0 0.0
    %2906 = vmatpush1.msra.mxu0 0.0
    %2907 = vmatprep.subr.mxu0 0.0
    %2908 = vmatpush1.msra.mxu0 0.0
    %2909 = vmatprep.subr.mxu0 0.0
    %2910 = vmatpush1.msra.mxu0 0.0
    %2911 = vmatprep.subr.mxu0 0.0
    %2912 = vmatpush1.msra.mxu0 0.0
    %2913 = vmatprep.subr.mxu0 0.0
    %2914 = vmatpush1.msra.mxu0 0.0
    %2915 = vmatprep.subr.mxu0 0.0
    %2916 = vmatpush1.msra.mxu0 0.0
    %2917 = vmatprep.subr.mxu0 0.0
    %2918 = vmatpush1.msra.mxu0 0.0
    %2919 = vmatprep.subr.mxu0 0.0
    %2920 = vmatpush1.msra.mxu0 0.0
    %2921 = vmatprep.subr.mxu0 0.0
    %2922 = vmatpush1.msra.mxu0 0.0
    %2923 = vmatprep.subr.mxu0 0.0
    %2924 = vmatpush1.msra.mxu0 0.0
    %2925 = vmatprep.subr.mxu0 0.0
    %2926 = vmatpush1.msra.mxu0 0.0
    %2927 = vmatprep.subr.mxu0 0.0
    %2928 = vmatpush1.msra.mxu0 0.0
    %2929 = vmatprep.mubr.f32.mxu0 0.0
    %2930 = vmatmul.mubr.f32.gmra.mrb[0].mxu0 %v2863
    %v2931 = vpop.f32.mrb[0].mxu0
    %v2932 = vadd.f32 0.0, %v2931
    %v2933 = vpop.f32.mrb[0].mxu0
    %2934 = vdwg.mxu0
    %v2935 = vld [vmem:[#allocation7] sm:$0xff]
    %v2936 = vld [vmem:[#allocation7 + $0x8] sm:$0xff]
    %v2937 = vld [vmem:[#allocation7 + $0x10] sm:$0xff]
    %v2938 = vld [vmem:[#allocation7 + $0x18] sm:$0xff]
    %v2939 = vld [vmem:[#allocation7 + $0x30] sm:$0x1]
    %v2940 = vlaneseq
    %v2941 = vshrl.u32 %v2940, 7
    %v2942 = vsub.s32 0, %v2941
    %v2943 = vrot.slane %v2939, %v2942
    %v2944 = vsel %vm131, %v2858, 0
    %2946 = vmatprep.subr.mxu0 0.0
    %2947 = vmatpush1.msra.mxu0 %v2935
    %2948 = vmatprep.subr.mxu0 0.0
    %2949 = vmatpush1.msra.mxu0 %v2936
    %2950 = vmatprep.subr.mxu0 0.0
    %2951 = vmatpush1.msra.mxu0 %v2937
    %2952 = vmatprep.subr.mxu0 0.0
    %2953 = vmatpush1.msra.mxu0 %v2938
    %2954 = vmatprep.subr.mxu0 0.0
    %2955 = vmatpush1.msra.mxu0 0.0
    %2956 = vmatprep.subr.mxu0 0.0
    %2957 = vmatpush1.msra.mxu0 0.0
    %2958 = vmatprep.subr.mxu0 0.0
    %2959 = vmatpush1.msra.mxu0 0.0
    %2960 = vmatprep.subr.mxu0 0.0
    %2961 = vmatpush1.msra.mxu0 0.0
    %2962 = vmatprep.subr.mxu0 0.0
    %2963 = vmatpush1.msra.mxu0 0.0
    %2964 = vmatprep.subr.mxu0 0.0
    %2965 = vmatpush1.msra.mxu0 0.0
    %2966 = vmatprep.subr.mxu0 0.0
    %2967 = vmatpush1.msra.mxu0 0.0
    %2968 = vmatprep.subr.mxu0 0.0
    %2969 = vmatpush1.msra.mxu0 0.0
    %2970 = vmatprep.subr.mxu0 0.0
    %2971 = vmatpush1.msra.mxu0 0.0
    %2972 = vmatprep.subr.mxu0 0.0
    %2973 = vmatpush1.msra.mxu0 0.0
    %2974 = vmatprep.subr.mxu0 0.0
    %2975 = vmatpush1.msra.mxu0 0.0
    %2976 = vmatprep.subr.mxu0 0.0
    %2977 = vmatpush1.msra.mxu0 0.0
    %2978 = vmatprep.subr.mxu0 0.0
    %2979 = vmatpush1.msra.mxu0 0.0
    %2980 = vmatprep.subr.mxu0 0.0
    %2981 = vmatpush1.msra.mxu0 0.0
    %2982 = vmatprep.subr.mxu0 0.0
    %2983 = vmatpush1.msra.mxu0 0.0
    %2984 = vmatprep.subr.mxu0 0.0
    %2985 = vmatpush1.msra.mxu0 0.0
    %2986 = vmatprep.subr.mxu0 0.0
    %2987 = vmatpush1.msra.mxu0 0.0
    %2988 = vmatprep.subr.mxu0 0.0
    %2989 = vmatpush1.msra.mxu0 0.0
    %2990 = vmatprep.subr.mxu0 0.0
    %2991 = vmatpush1.msra.mxu0 0.0
    %2992 = vmatprep.subr.mxu0 0.0
    %2993 = vmatpush1.msra.mxu0 0.0
    %2994 = vmatprep.subr.mxu0 0.0
    %2995 = vmatpush1.msra.mxu0 0.0
    %2996 = vmatprep.subr.mxu0 0.0
    %2997 = vmatpush1.msra.mxu0 0.0
    %2998 = vmatprep.subr.mxu0 0.0
    %2999 = vmatpush1.msra.mxu0 0.0
    %3000 = vmatprep.subr.mxu0 0.0
    %3001 = vmatpush1.msra.mxu0 0.0
    %3002 = vmatprep.subr.mxu0 0.0
    %3003 = vmatpush1.msra.mxu0 0.0
    %3004 = vmatprep.subr.mxu0 0.0
    %3005 = vmatpush1.msra.mxu0 0.0
    %3006 = vmatprep.subr.mxu0 0.0
    %3007 = vmatpush1.msra.mxu0 0.0
    %3008 = vmatprep.subr.mxu0 0.0
    %3009 = vmatpush1.msra.mxu0 0.0
    %3010 = vmatprep.mubr.f32.mxu0 0.0
    %3011 = vmatmul.mubr.f32.gmra.mrb[0].mxu0 %v2944
    %v3012 = vpop.f32.mrb[0].mxu0
    %v3013 = vadd.f32 %v2943, %v3012
    %v3014 = vpop.f32.mrb[0].mxu0
    %3015 = vdwg.mxu0
    %v3016 = vld [vmem:[#allocation7 + $0x20] sm:$0xff]
    %v3017 = vld [vmem:[#allocation7 + $0x28] sm:$0x3]
    %3018 = vrot.lane.b32.xlu0 %v2858, 80
    %v3019 = vpop.permute.xlu0 %3018
    %3022 = vrot.lane.b32.xlu0 %v3016, 96
    %v3023 = vpop.permute.xlu0 %3022
    %3024 = vrot.lane.b32.xlu0 %v3017, 96
    %v3025 = vpop.permute.xlu0 %3024
    %v3027 = vsel %vm215, %v3019, 0
    %v3029 = vsel %vm218, %v3025, 0
    %3031 = vmatprep.subr.mxu0 0.0
    %3032 = vmatpush1.msra.mxu0 %v3023
    %3033 = vmatprep.subr.mxu0 0.0
    %3034 = vmatpush1.msra.mxu0 %v3029
    %3035 = vmatprep.subr.mxu0 0.0
    %3036 = vmatpush1.msra.mxu0 0.0
    %3037 = vmatprep.subr.mxu0 0.0
    %3038 = vmatpush1.msra.mxu0 0.0
    %3039 = vmatprep.subr.mxu0 0.0
    %3040 = vmatpush1.msra.mxu0 0.0
    %3041 = vmatprep.subr.mxu0 0.0
    %3042 = vmatpush1.msra.mxu0 0.0
    %3043 = vmatprep.subr.mxu0 0.0
    %3044 = vmatpush1.msra.mxu0 0.0
    %3045 = vmatprep.subr.mxu0 0.0
    %3046 = vmatpush1.msra.mxu0 0.0
    %3047 = vmatprep.subr.mxu0 0.0
    %3048 = vmatpush1.msra.mxu0 0.0
    %3049 = vmatprep.subr.mxu0 0.0
    %3050 = vmatpush1.msra.mxu0 0.0
    %3051 = vmatprep.subr.mxu0 0.0
    %3052 = vmatpush1.msra.mxu0 0.0
    %3053 = vmatprep.subr.mxu0 0.0
    %3054 = vmatpush1.msra.mxu0 0.0
    %3055 = vmatprep.subr.mxu0 0.0
    %3056 = vmatpush1.msra.mxu0 0.0
    %3057 = vmatprep.subr.mxu0 0.0
    %3058 = vmatpush1.msra.mxu0 0.0
    %3059 = vmatprep.subr.mxu0 0.0
    %3060 = vmatpush1.msra.mxu0 0.0
    %3061 = vmatprep.subr.mxu0 0.0
    %3062 = vmatpush1.msra.mxu0 0.0
    %3063 = vmatprep.subr.mxu0 0.0
    %3064 = vmatpush1.msra.mxu0 0.0
    %3065 = vmatprep.subr.mxu0 0.0
    %3066 = vmatpush1.msra.mxu0 0.0
    %3067 = vmatprep.subr.mxu0 0.0
    %3068 = vmatpush1.msra.mxu0 0.0
    %3069 = vmatprep.subr.mxu0 0.0
    %3070 = vmatpush1.msra.mxu0 0.0
    %3071 = vmatprep.subr.mxu0 0.0
    %3072 = vmatpush1.msra.mxu0 0.0
    %3073 = vmatprep.subr.mxu0 0.0
    %3074 = vmatpush1.msra.mxu0 0.0
    %3075 = vmatprep.subr.mxu0 0.0
    %3076 = vmatpush1.msra.mxu0 0.0
    %3077 = vmatprep.subr.mxu0 0.0
    %3078 = vmatpush1.msra.mxu0 0.0
    %3079 = vmatprep.subr.mxu0 0.0
    %3080 = vmatpush1.msra.mxu0 0.0
    %3081 = vmatprep.subr.mxu0 0.0
    %3082 = vmatpush1.msra.mxu0 0.0
    %3083 = vmatprep.subr.mxu0 0.0
    %3084 = vmatpush1.msra.mxu0 0.0
    %3085 = vmatprep.subr.mxu0 0.0
    %3086 = vmatpush1.msra.mxu0 0.0
    %3087 = vmatprep.subr.mxu0 0.0
    %3088 = vmatpush1.msra.mxu0 0.0
    %3089 = vmatprep.subr.mxu0 0.0
    %3090 = vmatpush1.msra.mxu0 0.0
    %3091 = vmatprep.subr.mxu0 0.0
    %3092 = vmatpush1.msra.mxu0 0.0
    %3093 = vmatprep.subr.mxu0 0.0
    %3094 = vmatpush1.msra.mxu0 0.0
    %3095 = vmatprep.mubr.f32.mxu0 0.0
    %3096 = vmatmul.mubr.f32.gmra.mrb[0].mxu0 %v3027
    %v3097 = vpop.f32.mrb[0].mxu0
    %v3098 = vadd.f32 0.0, %v3097
    %v3099 = vpop.f32.mrb[0].mxu0
    %3100 = vdwg.mxu0
    %3105 = vrot.lane.b32.xlu0 %v2935, 96
    %v3106 = vpop.permute.xlu0 %3105
    %3107 = vrot.lane.b32.xlu0 %v2936, 96
    %v3108 = vpop.permute.xlu0 %3107
    %3109 = vrot.lane.b32.xlu0 %v2937, 96
    %v3110 = vpop.permute.xlu0 %3109
    %3111 = vrot.lane.b32.xlu0 %v2938, 96
    %v3112 = vpop.permute.xlu0 %3111
    %v3118 = vsel %vm131, %v2932, 0
    %3120 = vmatprep.subr.mxu0 0.0
    %3121 = vmatpush1.msra.mxu0 %v3106
    %3122 = vmatprep.subr.mxu0 0.0
    %3123 = vmatpush1.msra.mxu0 %v3108
    %3124 = vmatprep.subr.mxu0 0.0
    %3125 = vmatpush1.msra.mxu0 %v3110
    %3126 = vmatprep.subr.mxu0 0.0
    %3127 = vmatpush1.msra.mxu0 %v3112
    %3128 = vmatprep.subr.mxu0 0.0
    %3129 = vmatpush1.msra.mxu0 0.0
    %3130 = vmatprep.subr.mxu0 0.0
    %3131 = vmatpush1.msra.mxu0 0.0
    %3132 = vmatprep.subr.mxu0 0.0
    %3133 = vmatpush1.msra.mxu0 0.0
    %3134 = vmatprep.subr.mxu0 0.0
    %3135 = vmatpush1.msra.mxu0 0.0
    %3136 = vmatprep.subr.mxu0 0.0
    %3137 = vmatpush1.msra.mxu0 0.0
    %3138 = vmatprep.subr.mxu0 0.0
    %3139 = vmatpush1.msra.mxu0 0.0
    %3140 = vmatprep.subr.mxu0 0.0
    %3141 = vmatpush1.msra.mxu0 0.0
    %3142 = vmatprep.subr.mxu0 0.0
    %3143 = vmatpush1.msra.mxu0 0.0
    %3144 = vmatprep.subr.mxu0 0.0
    %3145 = vmatpush1.msra.mxu0 0.0
    %3146 = vmatprep.subr.mxu0 0.0
    %3147 = vmatpush1.msra.mxu0 0.0
    %3148 = vmatprep.subr.mxu0 0.0
    %3149 = vmatpush1.msra.mxu0 0.0
    %3150 = vmatprep.subr.mxu0 0.0
    %3151 = vmatpush1.msra.mxu0 0.0
    %3152 = vmatprep.subr.mxu0 0.0
    %3153 = vmatpush1.msra.mxu0 0.0
    %3154 = vmatprep.subr.mxu0 0.0
    %3155 = vmatpush1.msra.mxu0 0.0
    %3156 = vmatprep.subr.mxu0 0.0
    %3157 = vmatpush1.msra.mxu0 0.0
    %3158 = vmatprep.subr.mxu0 0.0
    %3159 = vmatpush1.msra.mxu0 0.0
    %3160 = vmatprep.subr.mxu0 0.0
    %3161 = vmatpush1.msra.mxu0 0.0
    %3162 = vmatprep.subr.mxu0 0.0
    %3163 = vmatpush1.msra.mxu0 0.0
    %3164 = vmatprep.subr.mxu0 0.0
    %3165 = vmatpush1.msra.mxu0 0.0
    %3166 = vmatprep.subr.mxu0 0.0
    %3167 = vmatpush1.msra.mxu0 0.0
    %3168 = vmatprep.subr.mxu0 0.0
    %3169 = vmatpush1.msra.mxu0 0.0
    %3170 = vmatprep.subr.mxu0 0.0
    %3171 = vmatpush1.msra.mxu0 0.0
    %3172 = vmatprep.subr.mxu0 0.0
    %3173 = vmatpush1.msra.mxu0 0.0
    %3174 = vmatprep.subr.mxu0 0.0
    %3175 = vmatpush1.msra.mxu0 0.0
    %3176 = vmatprep.subr.mxu0 0.0
    %3177 = vmatpush1.msra.mxu0 0.0
    %3178 = vmatprep.subr.mxu0 0.0
    %3179 = vmatpush1.msra.mxu0 0.0
    %3180 = vmatprep.subr.mxu0 0.0
    %3181 = vmatpush1.msra.mxu0 0.0
    %3182 = vmatprep.subr.mxu0 0.0
    %3183 = vmatpush1.msra.mxu0 0.0
    %3184 = vmatprep.mubr.f32.mxu0 0.0
    %3185 = vmatmul.mubr.f32.gmra.mrb[0].mxu0 %v3118
    %v3186 = vpop.f32.mrb[0].mxu0
    %v3187 = vadd.f32 %v3098, %v3186
    %v3188 = vpop.f32.mrb[0].mxu0
    %3189 = vdwg.mxu0
    %3191 = vrot.lane.b32.xlu0 %v2943, 96
    %v3192 = vpop.permute.xlu0 %3191
    %v3194 = vadd.f32 %v3187, %v3192
    %v3196 = vsel %vm49, %v3013, 0
    %v3199 = vsel %vm49, %v3194, 0
    %3201 = vmatprep.subr.mxu0 0.0
    %3202 = vmatpush1.xpose.msra.mxu0 %v3199
    %3203 = vmatprep.subr.mxu0 0.0
    %3204 = vmatpush1.xpose.msra.mxu0 0.0
    %3205 = vmatprep.subr.mxu0 0.0
    %3206 = vmatpush1.xpose.msra.mxu0 0.0
    %3207 = vmatprep.subr.mxu0 0.0
    %3208 = vmatpush1.xpose.msra.mxu0 0.0
    %3209 = vmatprep.subr.mxu0 0.0
    %3210 = vmatpush1.xpose.msra.mxu0 0.0
    %3211 = vmatprep.subr.mxu0 0.0
    %3212 = vmatpush1.xpose.msra.mxu0 0.0
    %3213 = vmatprep.subr.mxu0 0.0
    %3214 = vmatpush1.xpose.msra.mxu0 0.0
    %3215 = vmatprep.subr.mxu0 0.0
    %3216 = vmatpush1.xpose.msra.mxu0 0.0
    %3217 = vmatprep.subr.mxu0 0.0
    %3218 = vmatpush1.xpose.msra.mxu0 0.0
    %3219 = vmatprep.subr.mxu0 0.0
    %3220 = vmatpush1.xpose.msra.mxu0 0.0
    %3221 = vmatprep.subr.mxu0 0.0
    %3222 = vmatpush1.xpose.msra.mxu0 0.0
    %3223 = vmatprep.subr.mxu0 0.0
    %3224 = vmatpush1.xpose.msra.mxu0 0.0
    %3225 = vmatprep.subr.mxu0 0.0
    %3226 = vmatpush1.xpose.msra.mxu0 0.0
    %3227 = vmatprep.subr.mxu0 0.0
    %3228 = vmatpush1.xpose.msra.mxu0 0.0
    %3229 = vmatprep.subr.mxu0 0.0
    %3230 = vmatpush1.xpose.msra.mxu0 0.0
    %3231 = vmatprep.subr.mxu0 0.0
    %3232 = vmatpush1.xpose.msra.mxu0 0.0
    %3233 = vmatprep.subr.mxu0 0.0
    %3234 = vmatpush1.xpose.msra.mxu0 0.0
    %3235 = vmatprep.subr.mxu0 0.0
    %3236 = vmatpush1.xpose.msra.mxu0 0.0
    %3237 = vmatprep.subr.mxu0 0.0
    %3238 = vmatpush1.xpose.msra.mxu0 0.0
    %3239 = vmatprep.subr.mxu0 0.0
    %3240 = vmatpush1.xpose.msra.mxu0 0.0
    %3241 = vmatprep.subr.mxu0 0.0
    %3242 = vmatpush1.xpose.msra.mxu0 0.0
    %3243 = vmatprep.subr.mxu0 0.0
    %3244 = vmatpush1.xpose.msra.mxu0 0.0
    %3245 = vmatprep.subr.mxu0 0.0
    %3246 = vmatpush1.xpose.msra.mxu0 0.0
    %3247 = vmatprep.subr.mxu0 0.0
    %3248 = vmatpush1.xpose.msra.mxu0 0.0
    %3249 = vmatprep.subr.mxu0 0.0
    %3250 = vmatpush1.xpose.msra.mxu0 0.0
    %3251 = vmatprep.subr.mxu0 0.0
    %3252 = vmatpush1.xpose.msra.mxu0 0.0
    %3253 = vmatprep.subr.mxu0 0.0
    %3254 = vmatpush1.xpose.msra.mxu0 0.0
    %3255 = vmatprep.subr.mxu0 0.0
    %3256 = vmatpush1.xpose.msra.mxu0 0.0
    %3257 = vmatprep.subr.mxu0 0.0
    %3258 = vmatpush1.xpose.msra.mxu0 0.0
    %3259 = vmatprep.subr.mxu0 0.0
    %3260 = vmatpush1.xpose.msra.mxu0 0.0
    %3261 = vmatprep.subr.mxu0 0.0
    %3262 = vmatpush1.xpose.msra.mxu0 0.0
    %3263 = vmatprep.subr.mxu0 0.0
    %3264 = vmatpush1.xpose.msra.mxu0 0.0
    %3265 = vmatprep.mubr.f32.mxu0 0.0
    %3266 = vmatmul.mubr.f32.gmra.mrb[0].mxu0 %v3196
    %v3267 = vpop.f32.mrb[0].mxu0
    %v3268 = vadd.f32 0.0, %v3267
    %v3269 = vpop.f32.mrb[0].mxu0
    %3270 = vdwg.mxu0
    %v3271 = vmul.f32 %v3268, 0.35355338
    %3273 = vrot.lane.b32.xlu0 %v3271, 40
    %v3274 = vpop.permute.xlu0 %3273
    %v3276 = vsel %vm2859, -1e+30, %v3274
    %v3277 = vsel %vm467, %v3276, -inf
    %3278 = vmax.xlane.f32.xlu0 %v3277
    %v3279 = vpop.xlane.xlu0 %3278
    %v3280 = vsub.f32 %v3276, %v3279
    %v3281 = vmul.f32 %v3280, 1.442695
    %v3282 = vpow.pop %v3281
    %3284 = vrot.lane.b32.xlu0 %v3282, 88
    %v3285 = vpop.permute.xlu0 %3284
    %v3287 = vsel %vm49, %v3285, 0.0
    %3288 = vadd.xlane.f32.xlu0 %v3287
    %v3289 = vpop.xlane.xlu0 %3288
    %v3290 = vrcp.pop %v3289
    %v3291 = vmul.f32 %v3282, %v3290
    %3293 = vrot.lane.b32.xlu0 %v3291, 88
    %v3294 = vpop.permute.xlu0 %3293
    %3295 = vrot.lane.b32.xlu0 %v3194, 96
    %v3296 = vpop.permute.xlu0 %3295
    %v3298 = vsel %vm49, %v3294, 0
    %3300 = vmatprep.subr.mxu0 0.0
    %3301 = vmatpush1.msra.mxu0 %v3296
    %3302 = vmatprep.subr.mxu0 0.0
    %3303 = vmatpush1.msra.mxu0 0.0
    %3304 = vmatprep.subr.mxu0 0.0
    %3305 = vmatpush1.msra.mxu0 0.0
    %3306 = vmatprep.subr.mxu0 0.0
    %3307 = vmatpush1.msra.mxu0 0.0
    %3308 = vmatprep.subr.mxu0 0.0
    %3309 = vmatpush1.msra.mxu0 0.0
    %3310 = vmatprep.subr.mxu0 0.0
    %3311 = vmatpush1.msra.mxu0 0.0
    %3312 = vmatprep.subr.mxu0 0.0
    %3313 = vmatpush1.msra.mxu0 0.0
    %3314 = vmatprep.subr.mxu0 0.0
    %3315 = vmatpush1.msra.mxu0 0.0
    %3316 = vmatprep.subr.mxu0 0.0
    %3317 = vmatpush1.msra.mxu0 0.0
    %3318 = vmatprep.subr.mxu0 0.0
    %3319 = vmatpush1.msra.mxu0 0.0
    %3320 = vmatprep.subr.mxu0 0.0
    %3321 = vmatpush1.msra.mxu0 0.0
    %3322 = vmatprep.subr.mxu0 0.0
    %3323 = vmatpush1.msra.mxu0 0.0
    %3324 = vmatprep.subr.mxu0 0.0
    %3325 = vmatpush1.msra.mxu0 0.0
    %3326 = vmatprep.subr.mxu0 0.0
    %3327 = vmatpush1.msra.mxu0 0.0
    %3328 = vmatprep.subr.mxu0 0.0
    %3329 = vmatpush1.msra.mxu0 0.0
    %3330 = vmatprep.subr.mxu0 0.0
    %3331 = vmatpush1.msra.mxu0 0.0
    %3332 = vmatprep.subr.mxu0 0.0
    %3333 = vmatpush1.msra.mxu0 0.0
    %3334 = vmatprep.subr.mxu0 0.0
    %3335 = vmatpush1.msra.mxu0 0.0
    %3336 = vmatprep.subr.mxu0 0.0
    %3337 = vmatpush1.msra.mxu0 0.0
    %3338 = vmatprep.subr.mxu0 0.0
    %3339 = vmatpush1.msra.mxu0 0.0
    %3340 = vmatprep.subr.mxu0 0.0
    %3341 = vmatpush1.msra.mxu0 0.0
    %3342 = vmatprep.subr.mxu0 0.0
    %3343 = vmatpush1.msra.mxu0 0.0
    %3344 = vmatprep.subr.mxu0 0.0
    %3345 = vmatpush1.msra.mxu0 0.0
    %3346 = vmatprep.subr.mxu0 0.0
    %3347 = vmatpush1.msra.mxu0 0.0
    %3348 = vmatprep.subr.mxu0 0.0
    %3349 = vmatpush1.msra.mxu0 0.0
    %3350 = vmatprep.subr.mxu0 0.0
    %3351 = vmatpush1.msra.mxu0 0.0
    %3352 = vmatprep.subr.mxu0 0.0
    %3353 = vmatpush1.msra.mxu0 0.0
    %3354 = vmatprep.subr.mxu0 0.0
    %3355 = vmatpush1.msra.mxu0 0.0
    %3356 = vmatprep.subr.mxu0 0.0
    %3357 = vmatpush1.msra.mxu0 0.0
    %3358 = vmatprep.subr.mxu0 0.0
    %3359 = vmatpush1.msra.mxu0 0.0
    %3360 = vmatprep.subr.mxu0 0.0
    %3361 = vmatpush1.msra.mxu0 0.0
    %3362 = vmatprep.subr.mxu0 0.0
    %3363 = vmatpush1.msra.mxu0 0.0
    %3364 = vmatprep.mubr.f32.mxu0 0.0
    %3365 = vmatmul.mubr.f32.gmra.mrb[0].mxu0 %v3298
    %v3366 = vpop.f32.mrb[0].mxu0
    %v3367 = vadd.f32 0.0, %v3366
    %v3368 = vpop.f32.mrb[0].mxu0
    %3369 = vdwg.mxu0
    %3370 = vst.msk [vmem:[#allocation2] sm:$0xff] %vm49, %v3367
    %3371 = vrot.lane.b32.xlu0 %v3013, 120
    %v3372 = vpop.permute.xlu0 %3371
    %3373 = vrot.lane.b32.xlu0 %v3194, 120
    %v3374 = vpop.permute.xlu0 %3373
    %v3375 = vsel %vm49, %v3372, 0
    %v3377 = vsel %vm49, %v3374, 0
    %3379 = vmatprep.subr.mxu0 0.0
    %3380 = vmatpush1.xpose.msra.mxu0 %v3377
    %3381 = vmatprep.subr.mxu0 0.0
    %3382 = vmatpush1.xpose.msra.mxu0 0.0
    %3383 = vmatprep.subr.mxu0 0.0
    %3384 = vmatpush1.xpose.msra.mxu0 0.0
    %3385 = vmatprep.subr.mxu0 0.0
    %3386 = vmatpush1.xpose.msra.mxu0 0.0
    %3387 = vmatprep.subr.mxu0 0.0
    %3388 = vmatpush1.xpose.msra.mxu0 0.0
    %3389 = vmatprep.subr.mxu0 0.0
    %3390 = vmatpush1.xpose.msra.mxu0 0.0
    %3391 = vmatprep.subr.mxu0 0.0
    %3392 = vmatpush1.xpose.msra.mxu0 0.0
    %3393 = vmatprep.subr.mxu0 0.0
    %3394 = vmatpush1.xpose.msra.mxu0 0.0
    %3395 = vmatprep.subr.mxu0 0.0
    %3396 = vmatpush1.xpose.msra.mxu0 0.0
    %3397 = vmatprep.subr.mxu0 0.0
    %3398 = vmatpush1.xpose.msra.mxu0 0.0
    %3399 = vmatprep.subr.mxu0 0.0
    %3400 = vmatpush1.xpose.msra.mxu0 0.0
    %3401 = vmatprep.subr.mxu0 0.0
    %3402 = vmatpush1.xpose.msra.mxu0 0.0
    %3403 = vmatprep.subr.mxu0 0.0
    %3404 = vmatpush1.xpose.msra.mxu0 0.0
    %3405 = vmatprep.subr.mxu0 0.0
    %3406 = vmatpush1.xpose.msra.mxu0 0.0
    %3407 = vmatprep.subr.mxu0 0.0
    %3408 = vmatpush1.xpose.msra.mxu0 0.0
    %3409 = vmatprep.subr.mxu0 0.0
    %3410 = vmatpush1.xpose.msra.mxu0 0.0
    %3411 = vmatprep.subr.mxu0 0.0
    %3412 = vmatpush1.xpose.msra.mxu0 0.0
    %3413 = vmatprep.subr.mxu0 0.0
    %3414 = vmatpush1.xpose.msra.mxu0 0.0
    %3415 = vmatprep.subr.mxu0 0.0
    %3416 = vmatpush1.xpose.msra.mxu0 0.0
    %3417 = vmatprep.subr.mxu0 0.0
    %3418 = vmatpush1.xpose.msra.mxu0 0.0
    %3419 = vmatprep.subr.mxu0 0.0
    %3420 = vmatpush1.xpose.msra.mxu0 0.0
    %3421 = vmatprep.subr.mxu0 0.0
    %3422 = vmatpush1.xpose.msra.mxu0 0.0
    %3423 = vmatprep.subr.mxu0 0.0
    %3424 = vmatpush1.xpose.msra.mxu0 0.0
    %3425 = vmatprep.subr.mxu0 0.0
    %3426 = vmatpush1.xpose.msra.mxu0 0.0
    %3427 = vmatprep.subr.mxu0 0.0
    %3428 = vmatpush1.xpose.msra.mxu0 0.0
    %3429 = vmatprep.subr.mxu0 0.0
    %3430 = vmatpush1.xpose.msra.mxu0 0.0
    %3431 = vmatprep.subr.mxu0 0.0
    %3432 = vmatpush1.xpose.msra.mxu0 0.0
    %3433 = vmatprep.subr.mxu0 0.0
    %3434 = vmatpush1.xpose.msra.mxu0 0.0
    %3435 = vmatprep.subr.mxu0 0.0
    %3436 = vmatpush1.xpose.msra.mxu0 0.0
    %3437 = vmatprep.subr.mxu0 0.0
    %3438 = vmatpush1.xpose.msra.mxu0 0.0
    %3439 = vmatprep.subr.mxu0 0.0
    %3440 = vmatpush1.xpose.msra.mxu0 0.0
    %3441 = vmatprep.subr.mxu0 0.0
    %3442 = vmatpush1.xpose.msra.mxu0 0.0
    %3443 = vmatprep.mubr.f32.mxu0 0.0
    %3444 = vmatmul.mubr.f32.gmra.mrb[0].mxu0 %v3375
    %v3445 = vpop.f32.mrb[0].mxu0
    %v3446 = vadd.f32 0.0, %v3445
    %v3447 = vpop.f32.mrb[0].mxu0
    %3448 = vdwg.mxu0
    %v3449 = vmul.f32 %v3446, 0.35355338
    %3451 = vrot.lane.b32.xlu0 %v3449, 40
    %v3452 = vpop.permute.xlu0 %3451
    %v3454 = vsel %vm2859, -1e+30, %v3452
    %v3455 = vsel %vm467, %v3454, -inf
    %3456 = vmax.xlane.f32.xlu0 %v3455
    %v3457 = vpop.xlane.xlu0 %3456
    %v3458 = vsub.f32 %v3454, %v3457
    %v3459 = vmul.f32 %v3458, 1.442695
    %v3460 = vpow.pop %v3459
    %3462 = vrot.lane.b32.xlu0 %v3460, 88
    %v3463 = vpop.permute.xlu0 %3462
    %v3465 = vsel %vm49, %v3463, 0.0
    %3466 = vadd.xlane.f32.xlu0 %v3465
    %v3467 = vpop.xlane.xlu0 %3466
    %v3468 = vrcp.pop %v3467
    %v3469 = vmul.f32 %v3460, %v3468
    %3471 = vrot.lane.b32.xlu0 %v3469, 88
    %v3472 = vpop.permute.xlu0 %3471
    %3473 = vrot.lane.b32.xlu0 %v3194, 88
    %v3474 = vpop.permute.xlu0 %3473
    %v3476 = vsel %vm49, %v3472, 0
    %3478 = vmatprep.subr.mxu0 0.0
    %3479 = vmatpush1.msra.mxu0 %v3474
    %3480 = vmatprep.subr.mxu0 0.0
    %3481 = vmatpush1.msra.mxu0 0.0
    %3482 = vmatprep.subr.mxu0 0.0
    %3483 = vmatpush1.msra.mxu0 0.0
    %3484 = vmatprep.subr.mxu0 0.0
    %3485 = vmatpush1.msra.mxu0 0.0
    %3486 = vmatprep.subr.mxu0 0.0
    %3487 = vmatpush1.msra.mxu0 0.0
    %3488 = vmatprep.subr.mxu0 0.0
    %3489 = vmatpush1.msra.mxu0 0.0
    %3490 = vmatprep.subr.mxu0 0.0
    %3491 = vmatpush1.msra.mxu0 0.0
    %3492 = vmatprep.subr.mxu0 0.0
    %3493 = vmatpush1.msra.mxu0 0.0
    %3494 = vmatprep.subr.mxu0 0.0
    %3495 = vmatpush1.msra.mxu0 0.0
    %3496 = vmatprep.subr.mxu0 0.0
    %3497 = vmatpush1.msra.mxu0 0.0
    %3498 = vmatprep.subr.mxu0 0.0
    %3499 = vmatpush1.msra.mxu0 0.0
    %3500 = vmatprep.subr.mxu0 0.0
    %3501 = vmatpush1.msra.mxu0 0.0
    %3502 = vmatprep.subr.mxu0 0.0
    %3503 = vmatpush1.msra.mxu0 0.0
    %3504 = vmatprep.subr.mxu0 0.0
    %3505 = vmatpush1.msra.mxu0 0.0
    %3506 = vmatprep.subr.mxu0 0.0
    %3507 = vmatpush1.msra.mxu0 0.0
    %3508 = vmatprep.subr.mxu0 0.0
    %3509 = vmatpush1.msra.mxu0 0.0
    %3510 = vmatprep.subr.mxu0 0.0
    %3511 = vmatpush1.msra.mxu0 0.0
    %3512 = vmatprep.subr.mxu0 0.0
    %3513 = vmatpush1.msra.mxu0 0.0
    %3514 = vmatprep.subr.mxu0 0.0
    %3515 = vmatpush1.msra.mxu0 0.0
    %3516 = vmatprep.subr.mxu0 0.0
    %3517 = vmatpush1.msra.mxu0 0.0
    %3518 = vmatprep.subr.mxu0 0.0
    %3519 = vmatpush1.msra.mxu0 0.0
    %3520 = vmatprep.subr.mxu0 0.0
    %3521 = vmatpush1.msra.mxu0 0.0
    %3522 = vmatprep.subr.mxu0 0.0
    %3523 = vmatpush1.msra.mxu0 0.0
    %3524 = vmatprep.subr.mxu0 0.0
    %3525 = vmatpush1.msra.mxu0 0.0
    %3526 = vmatprep.subr.mxu0 0.0
    %3527 = vmatpush1.msra.mxu0 0.0
    %3528 = vmatprep.subr.mxu0 0.0
    %3529 = vmatpush1.msra.mxu0 0.0
    %3530 = vmatprep.subr.mxu0 0.0
    %3531 = vmatpush1.msra.mxu0 0.0
    %3532 = vmatprep.subr.mxu0 0.0
    %3533 = vmatpush1.msra.mxu0 0.0
    %3534 = vmatprep.subr.mxu0 0.0
    %3535 = vmatpush1.msra.mxu0 0.0
    %3536 = vmatprep.subr.mxu0 0.0
    %3537 = vmatpush1.msra.mxu0 0.0
    %3538 = vmatprep.subr.mxu0 0.0
    %3539 = vmatpush1.msra.mxu0 0.0
    %3540 = vmatprep.subr.mxu0 0.0
    %3541 = vmatpush1.msra.mxu0 0.0
    %3542 = vmatprep.mubr.f32.mxu0 0.0
    %3543 = vmatmul.mubr.f32.gmra.mrb[0].mxu0 %v3476
    %v3544 = vpop.f32.mrb[0].mxu0
    %v3545 = vadd.f32 0.0, %v3544
    %v3546 = vpop.f32.mrb[0].mxu0
    %3547 = vdwg.mxu0
    %3549 = vrot.lane.b32.xlu0 %v3545, 8
    %v3550 = vpop.permute.xlu0 %3549
    %3552 = vst.msk [vmem:[#allocation2] sm:$0xff] %vm743, %v3550
    %3553 = vrot.lane.b32.xlu0 %v3013, 112
    %v3554 = vpop.permute.xlu0 %3553
    %3555 = vrot.lane.b32.xlu0 %v3194, 112
    %v3556 = vpop.permute.xlu0 %3555
    %v3557 = vsel %vm49, %v3554, 0
    %v3559 = vsel %vm49, %v3556, 0
    %3561 = vmatprep.subr.mxu0 0.0
    %3562 = vmatpush1.xpose.msra.mxu0 %v3559
    %3563 = vmatprep.subr.mxu0 0.0
    %3564 = vmatpush1.xpose.msra.mxu0 0.0
    %3565 = vmatprep.subr.mxu0 0.0
    %3566 = vmatpush1.xpose.msra.mxu0 0.0
    %3567 = vmatprep.subr.mxu0 0.0
    %3568 = vmatpush1.xpose.msra.mxu0 0.0
    %3569 = vmatprep.subr.mxu0 0.0
    %3570 = vmatpush1.xpose.msra.mxu0 0.0
    %3571 = vmatprep.subr.mxu0 0.0
    %3572 = vmatpush1.xpose.msra.mxu0 0.0
    %3573 = vmatprep.subr.mxu0 0.0
    %3574 = vmatpush1.xpose.msra.mxu0 0.0
    %3575 = vmatprep.subr.mxu0 0.0
    %3576 = vmatpush1.xpose.msra.mxu0 0.0
    %3577 = vmatprep.subr.mxu0 0.0
    %3578 = vmatpush1.xpose.msra.mxu0 0.0
    %3579 = vmatprep.subr.mxu0 0.0
    %3580 = vmatpush1.xpose.msra.mxu0 0.0
    %3581 = vmatprep.subr.mxu0 0.0
    %3582 = vmatpush1.xpose.msra.mxu0 0.0
    %3583 = vmatprep.subr.mxu0 0.0
    %3584 = vmatpush1.xpose.msra.mxu0 0.0
    %3585 = vmatprep.subr.mxu0 0.0
    %3586 = vmatpush1.xpose.msra.mxu0 0.0
    %3587 = vmatprep.subr.mxu0 0.0
    %3588 = vmatpush1.xpose.msra.mxu0 0.0
    %3589 = vmatprep.subr.mxu0 0.0
    %3590 = vmatpush1.xpose.msra.mxu0 0.0
    %3591 = vmatprep.subr.mxu0 0.0
    %3592 = vmatpush1.xpose.msra.mxu0 0.0
    %3593 = vmatprep.subr.mxu0 0.0
    %3594 = vmatpush1.xpose.msra.mxu0 0.0
    %3595 = vmatprep.subr.mxu0 0.0
    %3596 = vmatpush1.xpose.msra.mxu0 0.0
    %3597 = vmatprep.subr.mxu0 0.0
    %3598 = vmatpush1.xpose.msra.mxu0 0.0
    %3599 = vmatprep.subr.mxu0 0.0
    %3600 = vmatpush1.xpose.msra.mxu0 0.0
    %3601 = vmatprep.subr.mxu0 0.0
    %3602 = vmatpush1.xpose.msra.mxu0 0.0
    %3603 = vmatprep.subr.mxu0 0.0
    %3604 = vmatpush1.xpose.msra.mxu0 0.0
    %3605 = vmatprep.subr.mxu0 0.0
    %3606 = vmatpush1.xpose.msra.mxu0 0.0
    %3607 = vmatprep.subr.mxu0 0.0
    %3608 = vmatpush1.xpose.msra.mxu0 0.0
    %3609 = vmatprep.subr.mxu0 0.0
    %3610 = vmatpush1.xpose.msra.mxu0 0.0
    %3611 = vmatprep.subr.mxu0 0.0
    %3612 = vmatpush1.xpose.msra.mxu0 0.0
    %3613 = vmatprep.subr.mxu0 0.0
    %3614 = vmatpush1.xpose.msra.mxu0 0.0
    %3615 = vmatprep.subr.mxu0 0.0
    %3616 = vmatpush1.xpose.msra.mxu0 0.0
    %3617 = vmatprep.subr.mxu0 0.0
    %3618 = vmatpush1.xpose.msra.mxu0 0.0
    %3619 = vmatprep.subr.mxu0 0.0
    %3620 = vmatpush1.xpose.msra.mxu0 0.0
    %3621 = vmatprep.subr.mxu0 0.0
    %3622 = vmatpush1.xpose.msra.mxu0 0.0
    %3623 = vmatprep.subr.mxu0 0.0
    %3624 = vmatpush1.xpose.msra.mxu0 0.0
    %3625 = vmatprep.mubr.f32.mxu0 0.0
    %3626 = vmatmul.mubr.f32.gmra.mrb[0].mxu0 %v3557
    %v3627 = vpop.f32.mrb[0].mxu0
    %v3628 = vadd.f32 0.0, %v3627
    %v3629 = vpop.f32.mrb[0].mxu0
    %3630 = vdwg.mxu0
    %v3631 = vmul.f32 %v3628, 0.35355338
    %3633 = vrot.lane.b32.xlu0 %v3631, 40
    %v3634 = vpop.permute.xlu0 %3633
    %v3636 = vsel %vm2859, -1e+30, %v3634
    %v3637 = vsel %vm467, %v3636, -inf
    %3638 = vmax.xlane.f32.xlu0 %v3637
    %v3639 = vpop.xlane.xlu0 %3638
    %v3640 = vsub.f32 %v3636, %v3639
    %v3641 = vmul.f32 %v3640, 1.442695
    %v3642 = vpow.pop %v3641
    %3644 = vrot.lane.b32.xlu0 %v3642, 88
    %v3645 = vpop.permute.xlu0 %3644
    %v3647 = vsel %vm49, %v3645, 0.0
    %3648 = vadd.xlane.f32.xlu0 %v3647
    %v3649 = vpop.xlane.xlu0 %3648
    %v3650 = vrcp.pop %v3649
    %v3651 = vmul.f32 %v3642, %v3650
    %3653 = vrot.lane.b32.xlu0 %v3651, 88
    %v3654 = vpop.permute.xlu0 %3653
    %3655 = vrot.lane.b32.xlu0 %v3194, 80
    %v3656 = vpop.permute.xlu0 %3655
    %v3658 = vsel %vm49, %v3654, 0
    %3660 = vmatprep.subr.mxu0 0.0
    %3661 = vmatpush1.msra.mxu0 %v3656
    %3662 = vmatprep.subr.mxu0 0.0
    %3663 = vmatpush1.msra.mxu0 0.0
    %3664 = vmatprep.subr.mxu0 0.0
    %3665 = vmatpush1.msra.mxu0 0.0
    %3666 = vmatprep.subr.mxu0 0.0
    %3667 = vmatpush1.msra.mxu0 0.0
    %3668 = vmatprep.subr.mxu0 0.0
    %3669 = vmatpush1.msra.mxu0 0.0
    %3670 = vmatprep.subr.mxu0 0.0
    %3671 = vmatpush1.msra.mxu0 0.0
    %3672 = vmatprep.subr.mxu0 0.0
    %3673 = vmatpush1.msra.mxu0 0.0
    %3674 = vmatprep.subr.mxu0 0.0
    %3675 = vmatpush1.msra.mxu0 0.0
    %3676 = vmatprep.subr.mxu0 0.0
    %3677 = vmatpush1.msra.mxu0 0.0
    %3678 = vmatprep.subr.mxu0 0.0
    %3679 = vmatpush1.msra.mxu0 0.0
    %3680 = vmatprep.subr.mxu0 0.0
    %3681 = vmatpush1.msra.mxu0 0.0
    %3682 = vmatprep.subr.mxu0 0.0
    %3683 = vmatpush1.msra.mxu0 0.0
    %3684 = vmatprep.subr.mxu0 0.0
    %3685 = vmatpush1.msra.mxu0 0.0
    %3686 = vmatprep.subr.mxu0 0.0
    %3687 = vmatpush1.msra.mxu0 0.0
    %3688 = vmatprep.subr.mxu0 0.0
    %3689 = vmatpush1.msra.mxu0 0.0
    %3690 = vmatprep.subr.mxu0 0.0
    %3691 = vmatpush1.msra.mxu0 0.0
    %3692 = vmatprep.subr.mxu0 0.0
    %3693 = vmatpush1.msra.mxu0 0.0
    %3694 = vmatprep.subr.mxu0 0.0
    %3695 = vmatpush1.msra.mxu0 0.0
    %3696 = vmatprep.subr.mxu0 0.0
    %3697 = vmatpush1.msra.mxu0 0.0
    %3698 = vmatprep.subr.mxu0 0.0
    %3699 = vmatpush1.msra.mxu0 0.0
    %3700 = vmatprep.subr.mxu0 0.0
    %3701 = vmatpush1.msra.mxu0 0.0
    %3702 = vmatprep.subr.mxu0 0.0
    %3703 = vmatpush1.msra.mxu0 0.0
    %3704 = vmatprep.subr.mxu0 0.0
    %3705 = vmatpush1.msra.mxu0 0.0
    %3706 = vmatprep.subr.mxu0 0.0
    %3707 = vmatpush1.msra.mxu0 0.0
    %3708 = vmatprep.subr.mxu0 0.0
    %3709 = vmatpush1.msra.mxu0 0.0
    %3710 = vmatprep.subr.mxu0 0.0
    %3711 = vmatpush1.msra.mxu0 0.0
    %3712 = vmatprep.subr.mxu0 0.0
    %3713 = vmatpush1.msra.mxu0 0.0
    %3714 = vmatprep.subr.mxu0 0.0
    %3715 = vmatpush1.msra.mxu0 0.0
    %3716 = vmatprep.subr.mxu0 0.0
    %3717 = vmatpush1.msra.mxu0 0.0
    %3718 = vmatprep.subr.mxu0 0.0
    %3719 = vmatpush1.msra.mxu0 0.0
    %3720 = vmatprep.subr.mxu0 0.0
    %3721 = vmatpush1.msra.mxu0 0.0
    %3722 = vmatprep.subr.mxu0 0.0
    %3723 = vmatpush1.msra.mxu0 0.0
    %3724 = vmatprep.mubr.f32.mxu0 0.0
    %3725 = vmatmul.mubr.f32.gmra.mrb[0].mxu0 %v3658
    %v3726 = vpop.f32.mrb[0].mxu0
    %v3727 = vadd.f32 0.0, %v3726
    %v3728 = vpop.f32.mrb[0].mxu0
    %3729 = vdwg.mxu0
    %3731 = vrot.lane.b32.xlu0 %v3727, 16
    %v3732 = vpop.permute.xlu0 %3731
    %3734 = vst.msk [vmem:[#allocation2] sm:$0xff] %vm926, %v3732
    %3735 = vrot.lane.b32.xlu0 %v3013, 104
    %v3736 = vpop.permute.xlu0 %3735
    %3737 = vrot.lane.b32.xlu0 %v3194, 104
    %v3738 = vpop.permute.xlu0 %3737
    %v3739 = vsel %vm49, %v3736, 0
    %v3741 = vsel %vm49, %v3738, 0
    %3743 = vmatprep.subr.mxu0 0.0
    %3744 = vmatpush1.xpose.msra.mxu0 %v3741
    %3745 = vmatprep.subr.mxu0 0.0
    %3746 = vmatpush1.xpose.msra.mxu0 0.0
    %3747 = vmatprep.subr.mxu0 0.0
    %3748 = vmatpush1.xpose.msra.mxu0 0.0
    %3749 = vmatprep.subr.mxu0 0.0
    %3750 = vmatpush1.xpose.msra.mxu0 0.0
    %3751 = vmatprep.subr.mxu0 0.0
    %3752 = vmatpush1.xpose.msra.mxu0 0.0
    %3753 = vmatprep.subr.mxu0 0.0
    %3754 = vmatpush1.xpose.msra.mxu0 0.0
    %3755 = vmatprep.subr.mxu0 0.0
    %3756 = vmatpush1.xpose.msra.mxu0 0.0
    %3757 = vmatprep.subr.mxu0 0.0
    %3758 = vmatpush1.xpose.msra.mxu0 0.0
    %3759 = vmatprep.subr.mxu0 0.0
    %3760 = vmatpush1.xpose.msra.mxu0 0.0
    %3761 = vmatprep.subr.mxu0 0.0
    %3762 = vmatpush1.xpose.msra.mxu0 0.0
    %3763 = vmatprep.subr.mxu0 0.0
    %3764 = vmatpush1.xpose.msra.mxu0 0.0
    %3765 = vmatprep.subr.mxu0 0.0
    %3766 = vmatpush1.xpose.msra.mxu0 0.0
    %3767 = vmatprep.subr.mxu0 0.0
    %3768 = vmatpush1.xpose.msra.mxu0 0.0
    %3769 = vmatprep.subr.mxu0 0.0
    %3770 = vmatpush1.xpose.msra.mxu0 0.0
    %3771 = vmatprep.subr.mxu0 0.0
    %3772 = vmatpush1.xpose.msra.mxu0 0.0
    %3773 = vmatprep.subr.mxu0 0.0
    %3774 = vmatpush1.xpose.msra.mxu0 0.0
    %3775 = vmatprep.subr.mxu0 0.0
    %3776 = vmatpush1.xpose.msra.mxu0 0.0
    %3777 = vmatprep.subr.mxu0 0.0
    %3778 = vmatpush1.xpose.msra.mxu0 0.0
    %3779 = vmatprep.subr.mxu0 0.0
    %3780 = vmatpush1.xpose.msra.mxu0 0.0
    %3781 = vmatprep.subr.mxu0 0.0
    %3782 = vmatpush1.xpose.msra.mxu0 0.0
    %3783 = vmatprep.subr.mxu0 0.0
    %3784 = vmatpush1.xpose.msra.mxu0 0.0
    %3785 = vmatprep.subr.mxu0 0.0
    %3786 = vmatpush1.xpose.msra.mxu0 0.0
    %3787 = vmatprep.subr.mxu0 0.0
    %3788 = vmatpush1.xpose.msra.mxu0 0.0
    %3789 = vmatprep.subr.mxu0 0.0
    %3790 = vmatpush1.xpose.msra.mxu0 0.0
    %3791 = vmatprep.subr.mxu0 0.0
    %3792 = vmatpush1.xpose.msra.mxu0 0.0
    %3793 = vmatprep.subr.mxu0 0.0
    %3794 = vmatpush1.xpose.msra.mxu0 0.0
    %3795 = vmatprep.subr.mxu0 0.0
    %3796 = vmatpush1.xpose.msra.mxu0 0.0
    %3797 = vmatprep.subr.mxu0 0.0
    %3798 = vmatpush1.xpose.msra.mxu0 0.0
    %3799 = vmatprep.subr.mxu0 0.0
    %3800 = vmatpush1.xpose.msra.mxu0 0.0
    %3801 = vmatprep.subr.mxu0 0.0
    %3802 = vmatpush1.xpose.msra.mxu0 0.0
    %3803 = vmatprep.subr.mxu0 0.0
    %3804 = vmatpush1.xpose.msra.mxu0 0.0
    %3805 = vmatprep.subr.mxu0 0.0
    %3806 = vmatpush1.xpose.msra.mxu0 0.0
    %3807 = vmatprep.mubr.f32.mxu0 0.0
    %3808 = vmatmul.mubr.f32.gmra.mrb[0].mxu0 %v3739
    %v3809 = vpop.f32.mrb[0].mxu0
    %v3810 = vadd.f32 0.0, %v3809
    %v3811 = vpop.f32.mrb[0].mxu0
    %3812 = vdwg.mxu0
    %v3813 = vmul.f32 %v3810, 0.35355338
    %3815 = vrot.lane.b32.xlu0 %v3813, 40
    %v3816 = vpop.permute.xlu0 %3815
    %v3818 = vsel %vm2859, -1e+30, %v3816
    %v3819 = vsel %vm467, %v3818, -inf
    %3820 = vmax.xlane.f32.xlu0 %v3819
    %v3821 = vpop.xlane.xlu0 %3820
    %v3822 = vsub.f32 %v3818, %v3821
    %v3823 = vmul.f32 %v3822, 1.442695
    %v3824 = vpow.pop %v3823
    %3826 = vrot.lane.b32.xlu0 %v3824, 88
    %v3827 = vpop.permute.xlu0 %3826
    %v3829 = vsel %vm49, %v3827, 0.0
    %3830 = vadd.xlane.f32.xlu0 %v3829
    %v3831 = vpop.xlane.xlu0 %3830
    %v3832 = vrcp.pop %v3831
    %v3833 = vmul.f32 %v3824, %v3832
    %3835 = vrot.lane.b32.xlu0 %v3833, 88
    %v3836 = vpop.permute.xlu0 %3835
    %3837 = vrot.lane.b32.xlu0 %v3194, 72
    %v3838 = vpop.permute.xlu0 %3837
    %v3840 = vsel %vm49, %v3836, 0
    %3842 = vmatprep.subr.mxu0 0.0
    %3843 = vmatpush1.msra.mxu0 %v3838
    %3844 = vmatprep.subr.mxu0 0.0
    %3845 = vmatpush1.msra.mxu0 0.0
    %3846 = vmatprep.subr.mxu0 0.0
    %3847 = vmatpush1.msra.mxu0 0.0
    %3848 = vmatprep.subr.mxu0 0.0
    %3849 = vmatpush1.msra.mxu0 0.0
    %3850 = vmatprep.subr.mxu0 0.0
    %3851 = vmatpush1.msra.mxu0 0.0
    %3852 = vmatprep.subr.mxu0 0.0
    %3853 = vmatpush1.msra.mxu0 0.0
    %3854 = vmatprep.subr.mxu0 0.0
    %3855 = vmatpush1.msra.mxu0 0.0
    %3856 = vmatprep.subr.mxu0 0.0
    %3857 = vmatpush1.msra.mxu0 0.0
    %3858 = vmatprep.subr.mxu0 0.0
    %3859 = vmatpush1.msra.mxu0 0.0
    %3860 = vmatprep.subr.mxu0 0.0
    %3861 = vmatpush1.msra.mxu0 0.0
    %3862 = vmatprep.subr.mxu0 0.0
    %3863 = vmatpush1.msra.mxu0 0.0
    %3864 = vmatprep.subr.mxu0 0.0
    %3865 = vmatpush1.msra.mxu0 0.0
    %3866 = vmatprep.subr.mxu0 0.0
    %3867 = vmatpush1.msra.mxu0 0.0
    %3868 = vmatprep.subr.mxu0 0.0
    %3869 = vmatpush1.msra.mxu0 0.0
    %3870 = vmatprep.subr.mxu0 0.0
    %3871 = vmatpush1.msra.mxu0 0.0
    %3872 = vmatprep.subr.mxu0 0.0
    %3873 = vmatpush1.msra.mxu0 0.0
    %3874 = vmatprep.subr.mxu0 0.0
    %3875 = vmatpush1.msra.mxu0 0.0
    %3876 = vmatprep.subr.mxu0 0.0
    %3877 = vmatpush1.msra.mxu0 0.0
    %3878 = vmatprep.subr.mxu0 0.0
    %3879 = vmatpush1.msra.mxu0 0.0
    %3880 = vmatprep.subr.mxu0 0.0
    %3881 = vmatpush1.msra.mxu0 0.0
    %3882 = vmatprep.subr.mxu0 0.0
    %3883 = vmatpush1.msra.mxu0 0.0
    %3884 = vmatprep.subr.mxu0 0.0
    %3885 = vmatpush1.msra.mxu0 0.0
    %3886 = vmatprep.subr.mxu0 0.0
    %3887 = vmatpush1.msra.mxu0 0.0
    %3888 = vmatprep.subr.mxu0 0.0
    %3889 = vmatpush1.msra.mxu0 0.0
    %3890 = vmatprep.subr.mxu0 0.0
    %3891 = vmatpush1.msra.mxu0 0.0
    %3892 = vmatprep.subr.mxu0 0.0
    %3893 = vmatpush1.msra.mxu0 0.0
    %3894 = vmatprep.subr.mxu0 0.0
    %3895 = vmatpush1.msra.mxu0 0.0
    %3896 = vmatprep.subr.mxu0 0.0
    %3897 = vmatpush1.msra.mxu0 0.0
    %3898 = vmatprep.subr.mxu0 0.0
    %3899 = vmatpush1.msra.mxu0 0.0
    %3900 = vmatprep.subr.mxu0 0.0
    %3901 = vmatpush1.msra.mxu0 0.0
    %3902 = vmatprep.subr.mxu0 0.0
    %3903 = vmatpush1.msra.mxu0 0.0
    %3904 = vmatprep.subr.mxu0 0.0
    %3905 = vmatpush1.msra.mxu0 0.0
    %3906 = vmatprep.mubr.f32.mxu0 0.0
    %3907 = vmatmul.mubr.f32.gmra.mrb[0].mxu0 %v3840
    %v3908 = vpop.f32.mrb[0].mxu0
    %v3909 = vadd.f32 0.0, %v3908
    %v3910 = vpop.f32.mrb[0].mxu0
    %3911 = vdwg.mxu0
    %3913 = vrot.lane.b32.xlu0 %v3909, 24
    %v3914 = vpop.permute.xlu0 %3913
    %3916 = vst.msk [vmem:[#allocation2] sm:$0xff] %vm1109, %v3914
    %v3917 = vld [vmem:[#allocation2] sm:$0xff]
    %v3918 = vld [vmem:[#allocation7] sm:$0xff]
    %v3919 = vld [vmem:[#allocation7 + $0x8] sm:$0xff]
    %v3920 = vld [vmem:[#allocation7 + $0x10] sm:$0xff]
    %v3921 = vld [vmem:[#allocation7 + $0x18] sm:$0xff]
    %v3922 = vld [vmem:[#allocation7 + $0x30] sm:$0x1]
    %v3923 = vlaneseq
    %v3924 = vshrl.u32 %v3923, 7
    %v3925 = vsub.s32 0, %v3924
    %v3926 = vrot.slane %v3922, %v3925
    %3931 = vrot.lane.b32.xlu0 %v3918, 32
    %v3932 = vpop.permute.xlu0 %3931
    %3933 = vrot.lane.b32.xlu0 %v3919, 32
    %v3934 = vpop.permute.xlu0 %3933
    %3935 = vrot.lane.b32.xlu0 %v3920, 32
    %v3936 = vpop.permute.xlu0 %3935
    %3937 = vrot.lane.b32.xlu0 %v3921, 32
    %v3938 = vpop.permute.xlu0 %3937
    %3944 = vrot.lane.b32.xlu0 %v3926, 32
    %v3945 = vpop.permute.xlu0 %3944
    %v3948 = vsel %vm131, %v3917, 0
    %3950 = vmatprep.subr.mxu0 0.0
    %3951 = vmatpush1.msra.mxu0 %v3932
    %3952 = vmatprep.subr.mxu0 0.0
    %3953 = vmatpush1.msra.mxu0 %v3934
    %3954 = vmatprep.subr.mxu0 0.0
    %3955 = vmatpush1.msra.mxu0 %v3936
    %3956 = vmatprep.subr.mxu0 0.0
    %3957 = vmatpush1.msra.mxu0 %v3938
    %3958 = vmatprep.subr.mxu0 0.0
    %3959 = vmatpush1.msra.mxu0 0.0
    %3960 = vmatprep.subr.mxu0 0.0
    %3961 = vmatpush1.msra.mxu0 0.0
    %3962 = vmatprep.subr.mxu0 0.0
    %3963 = vmatpush1.msra.mxu0 0.0
    %3964 = vmatprep.subr.mxu0 0.0
    %3965 = vmatpush1.msra.mxu0 0.0
    %3966 = vmatprep.subr.mxu0 0.0
    %3967 = vmatpush1.msra.mxu0 0.0
    %3968 = vmatprep.subr.mxu0 0.0
    %3969 = vmatpush1.msra.mxu0 0.0
    %3970 = vmatprep.subr.mxu0 0.0
    %3971 = vmatpush1.msra.mxu0 0.0
    %3972 = vmatprep.subr.mxu0 0.0
    %3973 = vmatpush1.msra.mxu0 0.0
    %3974 = vmatprep.subr.mxu0 0.0
    %3975 = vmatpush1.msra.mxu0 0.0
    %3976 = vmatprep.subr.mxu0 0.0
    %3977 = vmatpush1.msra.mxu0 0.0
    %3978 = vmatprep.subr.mxu0 0.0
    %3979 = vmatpush1.msra.mxu0 0.0
    %3980 = vmatprep.subr.mxu0 0.0
    %3981 = vmatpush1.msra.mxu0 0.0
    %3982 = vmatprep.subr.mxu0 0.0
    %3983 = vmatpush1.msra.mxu0 0.0
    %3984 = vmatprep.subr.mxu0 0.0
    %3985 = vmatpush1.msra.mxu0 0.0
    %3986 = vmatprep.subr.mxu0 0.0
    %3987 = vmatpush1.msra.mxu0 0.0
    %3988 = vmatprep.subr.mxu0 0.0
    %3989 = vmatpush1.msra.mxu0 0.0
    %3990 = vmatprep.subr.mxu0 0.0
    %3991 = vmatpush1.msra.mxu0 0.0
    %3992 = vmatprep.subr.mxu0 0.0
    %3993 = vmatpush1.msra.mxu0 0.0
    %3994 = vmatprep.subr.mxu0 0.0
    %3995 = vmatpush1.msra.mxu0 0.0
    %3996 = vmatprep.subr.mxu0 0.0
    %3997 = vmatpush1.msra.mxu0 0.0
    %3998 = vmatprep.subr.mxu0 0.0
    %3999 = vmatpush1.msra.mxu0 0.0
    %4000 = vmatprep.subr.mxu0 0.0
    %4001 = vmatpush1.msra.mxu0 0.0
    %4002 = vmatprep.subr.mxu0 0.0
    %4003 = vmatpush1.msra.mxu0 0.0
    %4004 = vmatprep.subr.mxu0 0.0
    %4005 = vmatpush1.msra.mxu0 0.0
    %4006 = vmatprep.subr.mxu0 0.0
    %4007 = vmatpush1.msra.mxu0 0.0
    %4008 = vmatprep.subr.mxu0 0.0
    %4009 = vmatpush1.msra.mxu0 0.0
    %4010 = vmatprep.subr.mxu0 0.0
    %4011 = vmatpush1.msra.mxu0 0.0
    %4012 = vmatprep.subr.mxu0 0.0
    %4013 = vmatpush1.msra.mxu0 0.0
    %4014 = vmatprep.mubr.f32.mxu0 0.0
    %4015 = vmatmul.mubr.f32.gmra.mrb[0].mxu0 %v3948
    %v4016 = vpop.f32.mrb[0].mxu0
    %v4017 = vadd.f32 %v3945, %v4016
    %v4018 = vpop.f32.mrb[0].mxu0
    %4019 = vdwg.mxu0
    %vm4020 = vcmp.ge.f32.partialorder %v4017, 0.0
    %v4021 = vmul.f32 %v4017, 0.01
    %v4022 = vsel %vm4020, %v4017, %v4021
    %v4023 = vld [vmem:[#allocation7 + $0x38] sm:$0x1]
    %v4024 = vadd.f32 %v4022, %v2858
    %v4025 = vsel %vm131, %v4024, 0.0
    %4026 = vadd.xlane.f32.xlu0 %v4025
    %v4027 = vpop.xlane.xlu0 %4026
    %v4028 = vmul.f32 %v4027, %v1222
    %v4029 = vsub.f32 %v4024, %v4028
    %v4030 = vmul.f32 %v4029, %v4029
    %v4031 = vsel %vm131, %v4030, 0.0
    %4032 = vadd.xlane.f32.xlu0 %v4031
    %v4033 = vpop.xlane.xlu0 %4032
    %v4034 = vmul.f32 %v4033, %v1222
    %v4035 = vadd.f32 %v4034, 1e-05
    %v4036 = vrsqrt.pop %v4035
    %v4037 = vmul.f32 %v4029, %v4036
    %v4038 = vlaneseq
    %v4039 = vshrl.u32 %v4038, 7
    %v4040 = vsub.s32 0, %v4039
    %v4041 = vrot.slane %v4023, %v4040
    %v4042 = vmul.f32 %v4037, %v4041
    %4044 = vrot.lane.b32.xlu0 %v4041, 96
    %v4045 = vpop.permute.xlu0 %4044
    %v4047 = vadd.f32 %v4042, %v4045
    %v4048 = vrot.slane %v2858, 7
    %v4049 = vsel %vm43, 0.0, %v4048
    %4050 = vst.msk [vmem:[#allocation3] sm:$0xff] %vm131, %v2858
    %4052 = vrot.lane.b32.xlu0 %v4049, 32
    %v4053 = vpop.permute.xlu0 %4052
    %4055 = vst.msk [vmem:[#allocation3] sm:$0xff] %vm1250, %v4053
    %4057 = vrot.lane.b32.xlu0 %v4047, 64
    %v4058 = vpop.permute.xlu0 %4057
    %4060 = vst.msk [vmem:[#allocation3] sm:$0xff] %vm1256, %v4058
    %v4061 = vld [vmem:[#allocation3] sm:$0xff]
    %v4062 = vld [vmem:[#allocation7 + $0x80] sm:$0xff]
    %v4063 = vld [vmem:[#allocation7 + $0x88] sm:$0xff]
    %v4064 = vld [vmem:[#allocation7 + $0x90] sm:$0xff]
    %v4065 = vld [vmem:[#allocation7 + $0x98] sm:$0xff]
    %v4066 = vld [vmem:[#allocation7 + $0xa0] sm:$0xff]
    %v4067 = vld [vmem:[#allocation7 + $0xa8] sm:$0xff]
    %v4068 = vld [vmem:[#allocation7 + $0xb0] sm:$0xff]
    %v4069 = vld [vmem:[#allocation7 + $0xb8] sm:$0xff]
    %v4070 = vld [vmem:[#allocation7 + $0xc0] sm:$0xff]
    %v4071 = vld [vmem:[#allocation7 + $0xc8] sm:$0xff]
    %v4072 = vld [vmem:[#allocation7 + $0xd0] sm:$0xff]
    %v4073 = vld [vmem:[#allocation7 + $0xd8] sm:$0xff]
    %v4074 = vld [vmem:[#allocation7 + $0xe0] sm:$0x1]
    %v4075 = vlaneseq
    %v4076 = vshrl.u32 %v4075, 7
    %v4077 = vsub.s32 0, %v4076
    %v4078 = vrot.slane %v4074, %v4077
    %v4080 = vsel %vm1276, %v4061, 0
    %4082 = vmatprep.subr.mxu0 0.0
    %4083 = vmatpush1.msra.mxu0 %v4062
    %4084 = vmatprep.subr.mxu0 0.0
    %4085 = vmatpush1.msra.mxu0 %v4063
    %4086 = vmatprep.subr.mxu0 0.0
    %4087 = vmatpush1.msra.mxu0 %v4064
    %4088 = vmatprep.subr.mxu0 0.0
    %4089 = vmatpush1.msra.mxu0 %v4065
    %4090 = vmatprep.subr.mxu0 0.0
    %4091 = vmatpush1.msra.mxu0 %v4066
    %4092 = vmatprep.subr.mxu0 0.0
    %4093 = vmatpush1.msra.mxu0 %v4067
    %4094 = vmatprep.subr.mxu0 0.0
    %4095 = vmatpush1.msra.mxu0 %v4068
    %4096 = vmatprep.subr.mxu0 0.0
    %4097 = vmatpush1.msra.mxu0 %v4069
    %4098 = vmatprep.subr.mxu0 0.0
    %4099 = vmatpush1.msra.mxu0 %v4070
    %4100 = vmatprep.subr.mxu0 0.0
    %4101 = vmatpush1.msra.mxu0 %v4071
    %4102 = vmatprep.subr.mxu0 0.0
    %4103 = vmatpush1.msra.mxu0 %v4072
    %4104 = vmatprep.subr.mxu0 0.0
    %4105 = vmatpush1.msra.mxu0 %v4073
    %4106 = vmatprep.subr.mxu0 0.0
    %4107 = vmatpush1.msra.mxu0 0.0
    %4108 = vmatprep.subr.mxu0 0.0
    %4109 = vmatpush1.msra.mxu0 0.0
    %4110 = vmatprep.subr.mxu0 0.0
    %4111 = vmatpush1.msra.mxu0 0.0
    %4112 = vmatprep.subr.mxu0 0.0
    %4113 = vmatpush1.msra.mxu0 0.0
    %4114 = vmatprep.subr.mxu0 0.0
    %4115 = vmatpush1.msra.mxu0 0.0
    %4116 = vmatprep.subr.mxu0 0.0
    %4117 = vmatpush1.msra.mxu0 0.0
    %4118 = vmatprep.subr.mxu0 0.0
    %4119 = vmatpush1.msra.mxu0 0.0
    %4120 = vmatprep.subr.mxu0 0.0
    %4121 = vmatpush1.msra.mxu0 0.0
    %4122 = vmatprep.subr.mxu0 0.0
    %4123 = vmatpush1.msra.mxu0 0.0
    %4124 = vmatprep.subr.mxu0 0.0
    %4125 = vmatpush1.msra.mxu0 0.0
    %4126 = vmatprep.subr.mxu0 0.0
    %4127 = vmatpush1.msra.mxu0 0.0
    %4128 = vmatprep.subr.mxu0 0.0
    %4129 = vmatpush1.msra.mxu0 0.0
    %4130 = vmatprep.subr.mxu0 0.0
    %4131 = vmatpush1.msra.mxu0 0.0
    %4132 = vmatprep.subr.mxu0 0.0
    %4133 = vmatpush1.msra.mxu0 0.0
    %4134 = vmatprep.subr.mxu0 0.0
    %4135 = vmatpush1.msra.mxu0 0.0
    %4136 = vmatprep.subr.mxu0 0.0
    %4137 = vmatpush1.msra.mxu0 0.0
    %4138 = vmatprep.subr.mxu0 0.0
    %4139 = vmatpush1.msra.mxu0 0.0
    %4140 = vmatprep.subr.mxu0 0.0
    %4141 = vmatpush1.msra.mxu0 0.0
    %4142 = vmatprep.subr.mxu0 0.0
    %4143 = vmatpush1.msra.mxu0 0.0
    %4144 = vmatprep.subr.mxu0 0.0
    %4145 = vmatpush1.msra.mxu0 0.0
    %4146 = vmatprep.mubr.f32.mxu0 0.0
    %4147 = vmatmul.mubr.f32.gmra.mrb[0].mxu0 %v4080
    %v4148 = vpop.f32.mrb[0].mxu0
    %v4149 = vadd.f32 %v4078, %v4148
    %v4150 = vpop.f32.mrb[0].mxu0
    %4151 = vdwg.mxu0
    %v4152 = vxor.u32 %v4149, 2147483648
    %v4153 = vmul.f32 %v4152, 1.442695
    %v4154 = vpow.pop %v4153
    %v4155 = vadd.f32 %v4154, 1.0
    %v4156 = vrcp.pop %v4155
    %v4157 = vmul.f32 1.0, %v4156
    %v4158 = vtanh.pop %v4149
    %4160 = vrot.lane.b32.xlu0 %v4157, 96
    %v4161 = vpop.permute.xlu0 %4160
    %v4163 = vmax.f32 %v4157, %v4161
    %4164 = vrot.lane.b32.xlu0 %v4157, 64
    %v4165 = vpop.permute.xlu0 %4164
    %v4167 = vmax.f32 %v4163, %v4165
    %v4168 = vsub.f32 %v4157, %v4167
    %v4169 = vmul.f32 %v4168, 1.442695
    %v4170 = vpow.pop %v4169
    %4172 = vrot.lane.b32.xlu0 %v4167, 32
    %v4173 = vpop.permute.xlu0 %4172
    %v4175 = vsub.f32 %v4157, %v4173
    %v4176 = vmul.f32 %v4175, 1.442695
    %v4177 = vpow.pop %v4176
    %4178 = vrot.lane.b32.xlu0 %v4167, 64
    %v4179 = vpop.permute.xlu0 %4178
    %v4181 = vsub.f32 %v4157, %v4179
    %v4182 = vmul.f32 %v4181, 1.442695
    %v4183 = vpow.pop %v4182
    %4185 = vrot.lane.b32.xlu0 %v4177, 96
    %v4186 = vpop.permute.xlu0 %4185
    %v4188 = vadd.f32 %v4170, %v4186
    %4190 = vrot.lane.b32.xlu0 %v4183, 64
    %v4191 = vpop.permute.xlu0 %4190
    %v4193 = vadd.f32 %v4188, %v4191
    %v4194 = vrcp.pop %v4193
    %4196 = vrot.lane.b32.xlu0 %v4158, 32
    %v4197 = vpop.permute.xlu0 %4196
    %v4199 = vmul.f32 %v4170, %v4197
    %v4200 = vmul.f32 %v4177, %v4053
    %4202 = vrot.lane.b32.xlu0 %v4200, 96
    %v4203 = vpop.permute.xlu0 %4202
    %v4205 = vadd.f32 %v4199, %v4203
    %v4206 = vmul.f32 %v4183, %v4058
    %4208 = vrot.lane.b32.xlu0 %v4206, 64
    %v4209 = vpop.permute.xlu0 %4208
    %v4211 = vadd.f32 %v4205, %v4209
    %v4212 = vmul.f32 %v4211, %v4194
    %v4213 = vadd.f32 %v2858, %v4212
    %v4214 = vsel %vm131, %v4213, 0.0
    %4215 = vadd.xlane.f32.xlu0 %v4214
    %v4216 = vpop.xlane.xlu0 %4215
    %v4217 = vmul.f32 %v4216, %v1222
    %v4218 = vsub.f32 %v4213, %v4217
    %v4219 = vmul.f32 %v4218, %v4218
    %v4220 = vsel %vm131, %v4219, 0.0
    %4221 = vadd.xlane.f32.xlu0 %v4220
    %v4222 = vpop.xlane.xlu0 %4221
    %v4223 = vmul.f32 %v4222, %v1222
    %v4224 = vadd.f32 %v4223, 1e-05
    %v4225 = vrsqrt.pop %v4224
    %v4226 = vmul.f32 %v4218, %v4225
    %v4227 = vmul.f32 %v4226, %v1428
    %v4228 = vadd.f32 %v4227, %v1432
    %4229 = vmatprep.subr.mxu0 0.0
    %4230 = vmatpush1.msra.mxu0 %v4228
    %4231 = vmatprep.subr.mxu0 0.0
    %4232 = vmatpush1.msra.mxu0 0.0
    %4233 = vmatprep.subr.mxu0 0.0
    %4234 = vmatpush1.msra.mxu0 0.0
    %4235 = vmatprep.subr.mxu0 0.0
    %4236 = vmatpush1.msra.mxu0 0.0
    %4237 = vmatprep.subr.mxu0 0.0
    %4238 = vmatpush1.msra.mxu0 0.0
    %4239 = vmatprep.subr.mxu0 0.0
    %4240 = vmatpush1.msra.mxu0 0.0
    %4241 = vmatprep.subr.mxu0 0.0
    %4242 = vmatpush1.msra.mxu0 0.0
    %4243 = vmatprep.subr.mxu0 0.0
    %4244 = vmatpush1.msra.mxu0 0.0
    %4245 = vmatprep.subr.mxu0 0.0
    %4246 = vmatpush1.msra.mxu0 0.0
    %4247 = vmatprep.subr.mxu0 0.0
    %4248 = vmatpush1.msra.mxu0 0.0
    %4249 = vmatprep.subr.mxu0 0.0
    %4250 = vmatpush1.msra.mxu0 0.0
    %4251 = vmatprep.subr.mxu0 0.0
    %4252 = vmatpush1.msra.mxu0 0.0
    %4253 = vmatprep.subr.mxu0 0.0
    %4254 = vmatpush1.msra.mxu0 0.0
    %4255 = vmatprep.subr.mxu0 0.0
    %4256 = vmatpush1.msra.mxu0 0.0
    %4257 = vmatprep.subr.mxu0 0.0
    %4258 = vmatpush1.msra.mxu0 0.0
    %4259 = vmatprep.subr.mxu0 0.0
    %4260 = vmatpush1.msra.mxu0 0.0
    %4261 = vmatprep.subr.mxu0 0.0
    %4262 = vmatpush1.msra.mxu0 0.0
    %4263 = vmatprep.subr.mxu0 0.0
    %4264 = vmatpush1.msra.mxu0 0.0
    %4265 = vmatprep.subr.mxu0 0.0
    %4266 = vmatpush1.msra.mxu0 0.0
    %4267 = vmatprep.subr.mxu0 0.0
    %4268 = vmatpush1.msra.mxu0 0.0
    %4269 = vmatprep.subr.mxu0 0.0
    %4270 = vmatpush1.msra.mxu0 0.0
    %4271 = vmatprep.subr.mxu0 0.0
    %4272 = vmatpush1.msra.mxu0 0.0
    %4273 = vmatprep.subr.mxu0 0.0
    %4274 = vmatpush1.msra.mxu0 0.0
    %4275 = vmatprep.subr.mxu0 0.0
    %4276 = vmatpush1.msra.mxu0 0.0
    %4277 = vmatprep.subr.mxu0 0.0
    %4278 = vmatpush1.msra.mxu0 0.0
    %4279 = vmatprep.subr.mxu0 0.0
    %4280 = vmatpush1.msra.mxu0 0.0
    %4281 = vmatprep.subr.mxu0 0.0
    %4282 = vmatpush1.msra.mxu0 0.0
    %4283 = vmatprep.subr.mxu0 0.0
    %4284 = vmatpush1.msra.mxu0 0.0
    %4285 = vmatprep.subr.mxu0 0.0
    %4286 = vmatpush1.msra.mxu0 0.0
    %4287 = vmatprep.subr.mxu0 0.0
    %4288 = vmatpush1.msra.mxu0 0.0
    %4289 = vmatprep.subr.mxu0 0.0
    %4290 = vmatpush1.msra.mxu0 0.0
    %4291 = vmatprep.subr.mxu0 0.0
    %4292 = vmatpush1.msra.mxu0 0.0
    %4293 = vmatprep.mubr.f32.mxu0 0.0
    %4294 = vmatmul.mubr.f32.gmra.mrb[0].mxu0 %v2863
    %v4295 = vpop.f32.mrb[0].mxu0
    %v4296 = vadd.f32 0.0, %v4295
    %v4297 = vpop.f32.mrb[0].mxu0
    %4298 = vdwg.mxu0
    %v4299 = vld [vmem:[#allocation7 + $0x40] sm:$0xff]
    %v4300 = vld [vmem:[#allocation7 + $0x48] sm:$0xff]
    %v4301 = vld [vmem:[#allocation7 + $0x50] sm:$0xff]
    %v4302 = vld [vmem:[#allocation7 + $0x58] sm:$0xff]
    %v4303 = vld [vmem:[#allocation7 + $0x70] sm:$0x1]
    %v4304 = vlaneseq
    %v4305 = vshrl.u32 %v4304, 7
    %v4306 = vsub.s32 0, %v4305
    %v4307 = vrot.slane %v4303, %v4306
    %v4309 = vsel %vm131, %v4228, 0
    %4311 = vmatprep.subr.mxu0 0.0
    %4312 = vmatpush1.msra.mxu0 %v4299
    %4313 = vmatprep.subr.mxu0 0.0
    %4314 = vmatpush1.msra.mxu0 %v4300
    %4315 = vmatprep.subr.mxu0 0.0
    %4316 = vmatpush1.msra.mxu0 %v4301
    %4317 = vmatprep.subr.mxu0 0.0
    %4318 = vmatpush1.msra.mxu0 %v4302
    %4319 = vmatprep.subr.mxu0 0.0
    %4320 = vmatpush1.msra.mxu0 0.0
    %4321 = vmatprep.subr.mxu0 0.0
    %4322 = vmatpush1.msra.mxu0 0.0
    %4323 = vmatprep.subr.mxu0 0.0
    %4324 = vmatpush1.msra.mxu0 0.0
    %4325 = vmatprep.subr.mxu0 0.0
    %4326 = vmatpush1.msra.mxu0 0.0
    %4327 = vmatprep.subr.mxu0 0.0
    %4328 = vmatpush1.msra.mxu0 0.0
    %4329 = vmatprep.subr.mxu0 0.0
    %4330 = vmatpush1.msra.mxu0 0.0
    %4331 = vmatprep.subr.mxu0 0.0
    %4332 = vmatpush1.msra.mxu0 0.0
    %4333 = vmatprep.subr.mxu0 0.0
    %4334 = vmatpush1.msra.mxu0 0.0
    %4335 = vmatprep.subr.mxu0 0.0
    %4336 = vmatpush1.msra.mxu0 0.0
    %4337 = vmatprep.subr.mxu0 0.0
    %4338 = vmatpush1.msra.mxu0 0.0
    %4339 = vmatprep.subr.mxu0 0.0
    %4340 = vmatpush1.msra.mxu0 0.0
    %4341 = vmatprep.subr.mxu0 0.0
    %4342 = vmatpush1.msra.mxu0 0.0
    %4343 = vmatprep.subr.mxu0 0.0
    %4344 = vmatpush1.msra.mxu0 0.0
    %4345 = vmatprep.subr.mxu0 0.0
    %4346 = vmatpush1.msra.mxu0 0.0
    %4347 = vmatprep.subr.mxu0 0.0
    %4348 = vmatpush1.msra.mxu0 0.0
    %4349 = vmatprep.subr.mxu0 0.0
    %4350 = vmatpush1.msra.mxu0 0.0
    %4351 = vmatprep.subr.mxu0 0.0
    %4352 = vmatpush1.msra.mxu0 0.0
    %4353 = vmatprep.subr.mxu0 0.0
    %4354 = vmatpush1.msra.mxu0 0.0
    %4355 = vmatprep.subr.mxu0 0.0
    %4356 = vmatpush1.msra.mxu0 0.0
    %4357 = vmatprep.subr.mxu0 0.0
    %4358 = vmatpush1.msra.mxu0 0.0
    %4359 = vmatprep.subr.mxu0 0.0
    %4360 = vmatpush1.msra.mxu0 0.0
    %4361 = vmatprep.subr.mxu0 0.0
    %4362 = vmatpush1.msra.mxu0 0.0
    %4363 = vmatprep.subr.mxu0 0.0
    %4364 = vmatpush1.msra.mxu0 0.0
    %4365 = vmatprep.subr.mxu0 0.0
    %4366 = vmatpush1.msra.mxu0 0.0
    %4367 = vmatprep.subr.mxu0 0.0
    %4368 = vmatpush1.msra.mxu0 0.0
    %4369 = vmatprep.subr.mxu0 0.0
    %4370 = vmatpush1.msra.mxu0 0.0
    %4371 = vmatprep.subr.mxu0 0.0
    %4372 = vmatpush1.msra.mxu0 0.0
    %4373 = vmatprep.subr.mxu0 0.0
    %4374 = vmatpush1.msra.mxu0 0.0
    %4375 = vmatprep.mubr.f32.mxu0 0.0
    %4376 = vmatmul.mubr.f32.gmra.mrb[0].mxu0 %v4309
    %v4377 = vpop.f32.mrb[0].mxu0
    %v4378 = vadd.f32 %v4307, %v4377
    %v4379 = vpop.f32.mrb[0].mxu0
    %4380 = vdwg.mxu0
    %v4381 = vld [vmem:[#allocation7 + $0x60] sm:$0xff]
    %v4382 = vld [vmem:[#allocation7 + $0x68] sm:$0x3]
    %4385 = vrot.lane.b32.xlu0 %v4381, 96
    %v4386 = vpop.permute.xlu0 %4385
    %4387 = vrot.lane.b32.xlu0 %v4382, 96
    %v4388 = vpop.permute.xlu0 %4387
    %v4390 = vsel %vm218, %v4388, 0
    %4392 = vmatprep.subr.mxu0 0.0
    %4393 = vmatpush1.msra.mxu0 %v4386
    %4394 = vmatprep.subr.mxu0 0.0
    %4395 = vmatpush1.msra.mxu0 %v4390
    %4396 = vmatprep.subr.mxu0 0.0
    %4397 = vmatpush1.msra.mxu0 0.0
    %4398 = vmatprep.subr.mxu0 0.0
    %4399 = vmatpush1.msra.mxu0 0.0
    %4400 = vmatprep.subr.mxu0 0.0
    %4401 = vmatpush1.msra.mxu0 0.0
    %4402 = vmatprep.subr.mxu0 0.0
    %4403 = vmatpush1.msra.mxu0 0.0
    %4404 = vmatprep.subr.mxu0 0.0
    %4405 = vmatpush1.msra.mxu0 0.0
    %4406 = vmatprep.subr.mxu0 0.0
    %4407 = vmatpush1.msra.mxu0 0.0
    %4408 = vmatprep.subr.mxu0 0.0
    %4409 = vmatpush1.msra.mxu0 0.0
    %4410 = vmatprep.subr.mxu0 0.0
    %4411 = vmatpush1.msra.mxu0 0.0
    %4412 = vmatprep.subr.mxu0 0.0
    %4413 = vmatpush1.msra.mxu0 0.0
    %4414 = vmatprep.subr.mxu0 0.0
    %4415 = vmatpush1.msra.mxu0 0.0
    %4416 = vmatprep.subr.mxu0 0.0
    %4417 = vmatpush1.msra.mxu0 0.0
    %4418 = vmatprep.subr.mxu0 0.0
    %4419 = vmatpush1.msra.mxu0 0.0
    %4420 = vmatprep.subr.mxu0 0.0
    %4421 = vmatpush1.msra.mxu0 0.0
    %4422 = vmatprep.subr.mxu0 0.0
    %4423 = vmatpush1.msra.mxu0 0.0
    %4424 = vmatprep.subr.mxu0 0.0
    %4425 = vmatpush1.msra.mxu0 0.0
    %4426 = vmatprep.subr.mxu0 0.0
    %4427 = vmatpush1.msra.mxu0 0.0
    %4428 = vmatprep.subr.mxu0 0.0
    %4429 = vmatpush1.msra.mxu0 0.0
    %4430 = vmatprep.subr.mxu0 0.0
    %4431 = vmatpush1.msra.mxu0 0.0
    %4432 = vmatprep.subr.mxu0 0.0
    %4433 = vmatpush1.msra.mxu0 0.0
    %4434 = vmatprep.subr.mxu0 0.0
    %4435 = vmatpush1.msra.mxu0 0.0
    %4436 = vmatprep.subr.mxu0 0.0
    %4437 = vmatpush1.msra.mxu0 0.0
    %4438 = vmatprep.subr.mxu0 0.0
    %4439 = vmatpush1.msra.mxu0 0.0
    %4440 = vmatprep.subr.mxu0 0.0
    %4441 = vmatpush1.msra.mxu0 0.0
    %4442 = vmatprep.subr.mxu0 0.0
    %4443 = vmatpush1.msra.mxu0 0.0
    %4444 = vmatprep.subr.mxu0 0.0
    %4445 = vmatpush1.msra.mxu0 0.0
    %4446 = vmatprep.subr.mxu0 0.0
    %4447 = vmatpush1.msra.mxu0 0.0
    %4448 = vmatprep.subr.mxu0 0.0
    %4449 = vmatpush1.msra.mxu0 0.0
    %4450 = vmatprep.subr.mxu0 0.0
    %4451 = vmatpush1.msra.mxu0 0.0
    %4452 = vmatprep.subr.mxu0 0.0
    %4453 = vmatpush1.msra.mxu0 0.0
    %4454 = vmatprep.subr.mxu0 0.0
    %4455 = vmatpush1.msra.mxu0 0.0
    %4456 = vmatprep.mubr.f32.mxu0 0.0
    %4457 = vmatmul.mubr.f32.gmra.mrb[0].mxu0 %v3027
    %v4458 = vpop.f32.mrb[0].mxu0
    %v4459 = vadd.f32 0.0, %v4458
    %v4460 = vpop.f32.mrb[0].mxu0
    %4461 = vdwg.mxu0
    %4466 = vrot.lane.b32.xlu0 %v4299, 96
    %v4467 = vpop.permute.xlu0 %4466
    %4468 = vrot.lane.b32.xlu0 %v4300, 96
    %v4469 = vpop.permute.xlu0 %4468
    %4470 = vrot.lane.b32.xlu0 %v4301, 96
    %v4471 = vpop.permute.xlu0 %4470
    %4472 = vrot.lane.b32.xlu0 %v4302, 96
    %v4473 = vpop.permute.xlu0 %4472
    %v4479 = vsel %vm131, %v4296, 0
    %4481 = vmatprep.subr.mxu0 0.0
    %4482 = vmatpush1.msra.mxu0 %v4467
    %4483 = vmatprep.subr.mxu0 0.0
    %4484 = vmatpush1.msra.mxu0 %v4469
    %4485 = vmatprep.subr.mxu0 0.0
    %4486 = vmatpush1.msra.mxu0 %v4471
    %4487 = vmatprep.subr.mxu0 0.0
    %4488 = vmatpush1.msra.mxu0 %v4473
    %4489 = vmatprep.subr.mxu0 0.0
    %4490 = vmatpush1.msra.mxu0 0.0
    %4491 = vmatprep.subr.mxu0 0.0
    %4492 = vmatpush1.msra.mxu0 0.0
    %4493 = vmatprep.subr.mxu0 0.0
    %4494 = vmatpush1.msra.mxu0 0.0
    %4495 = vmatprep.subr.mxu0 0.0
    %4496 = vmatpush1.msra.mxu0 0.0
    %4497 = vmatprep.subr.mxu0 0.0
    %4498 = vmatpush1.msra.mxu0 0.0
    %4499 = vmatprep.subr.mxu0 0.0
    %4500 = vmatpush1.msra.mxu0 0.0
    %4501 = vmatprep.subr.mxu0 0.0
    %4502 = vmatpush1.msra.mxu0 0.0
    %4503 = vmatprep.subr.mxu0 0.0
    %4504 = vmatpush1.msra.mxu0 0.0
    %4505 = vmatprep.subr.mxu0 0.0
    %4506 = vmatpush1.msra.mxu0 0.0
    %4507 = vmatprep.subr.mxu0 0.0
    %4508 = vmatpush1.msra.mxu0 0.0
    %4509 = vmatprep.subr.mxu0 0.0
    %4510 = vmatpush1.msra.mxu0 0.0
    %4511 = vmatprep.subr.mxu0 0.0
    %4512 = vmatpush1.msra.mxu0 0.0
    %4513 = vmatprep.subr.mxu0 0.0
    %4514 = vmatpush1.msra.mxu0 0.0
    %4515 = vmatprep.subr.mxu0 0.0
    %4516 = vmatpush1.msra.mxu0 0.0
    %4517 = vmatprep.subr.mxu0 0.0
    %4518 = vmatpush1.msra.mxu0 0.0
    %4519 = vmatprep.subr.mxu0 0.0
    %4520 = vmatpush1.msra.mxu0 0.0
    %4521 = vmatprep.subr.mxu0 0.0
    %4522 = vmatpush1.msra.mxu0 0.0
    %4523 = vmatprep.subr.mxu0 0.0
    %4524 = vmatpush1.msra.mxu0 0.0
    %4525 = vmatprep.subr.mxu0 0.0
    %4526 = vmatpush1.msra.mxu0 0.0
    %4527 = vmatprep.subr.mxu0 0.0
    %4528 = vmatpush1.msra.mxu0 0.0
    %4529 = vmatprep.subr.mxu0 0.0
    %4530 = vmatpush1.msra.mxu0 0.0
    %4531 = vmatprep.subr.mxu0 0.0
    %4532 = vmatpush1.msra.mxu0 0.0
    %4533 = vmatprep.subr.mxu0 0.0
    %4534 = vmatpush1.msra.mxu0 0.0
    %4535 = vmatprep.subr.mxu0 0.0
    %4536 = vmatpush1.msra.mxu0 0.0
    %4537 = vmatprep.subr.mxu0 0.0
    %4538 = vmatpush1.msra.mxu0 0.0
    %4539 = vmatprep.subr.mxu0 0.0
    %4540 = vmatpush1.msra.mxu0 0.0
    %4541 = vmatprep.subr.mxu0 0.0
    %4542 = vmatpush1.msra.mxu0 0.0
    %4543 = vmatprep.subr.mxu0 0.0
    %4544 = vmatpush1.msra.mxu0 0.0
    %4545 = vmatprep.mubr.f32.mxu0 0.0
    %4546 = vmatmul.mubr.f32.gmra.mrb[0].mxu0 %v4479
    %v4547 = vpop.f32.mrb[0].mxu0
    %v4548 = vadd.f32 %v4459, %v4547
    %v4549 = vpop.f32.mrb[0].mxu0
    %4550 = vdwg.mxu0
    %4552 = vrot.lane.b32.xlu0 %v4307, 96
    %v4553 = vpop.permute.xlu0 %4552
    %v4555 = vadd.f32 %v4548, %v4553
    %v4557 = vsel %vm49, %v4378, 0
    %v4560 = vsel %vm49, %v4555, 0
    %4562 = vmatprep.subr.mxu0 0.0
    %4563 = vmatpush1.xpose.msra.mxu0 %v4560
    %4564 = vmatprep.subr.mxu0 0.0
    %4565 = vmatpush1.xpose.msra.mxu0 0.0
    %4566 = vmatprep.subr.mxu0 0.0
    %4567 = vmatpush1.xpose.msra.mxu0 0.0
    %4568 = vmatprep.subr.mxu0 0.0
    %4569 = vmatpush1.xpose.msra.mxu0 0.0
    %4570 = vmatprep.subr.mxu0 0.0
    %4571 = vmatpush1.xpose.msra.mxu0 0.0
    %4572 = vmatprep.subr.mxu0 0.0
    %4573 = vmatpush1.xpose.msra.mxu0 0.0
    %4574 = vmatprep.subr.mxu0 0.0
    %4575 = vmatpush1.xpose.msra.mxu0 0.0
    %4576 = vmatprep.subr.mxu0 0.0
    %4577 = vmatpush1.xpose.msra.mxu0 0.0
    %4578 = vmatprep.subr.mxu0 0.0
    %4579 = vmatpush1.xpose.msra.mxu0 0.0
    %4580 = vmatprep.subr.mxu0 0.0
    %4581 = vmatpush1.xpose.msra.mxu0 0.0
    %4582 = vmatprep.subr.mxu0 0.0
    %4583 = vmatpush1.xpose.msra.mxu0 0.0
    %4584 = vmatprep.subr.mxu0 0.0
    %4585 = vmatpush1.xpose.msra.mxu0 0.0
    %4586 = vmatprep.subr.mxu0 0.0
    %4587 = vmatpush1.xpose.msra.mxu0 0.0
    %4588 = vmatprep.subr.mxu0 0.0
    %4589 = vmatpush1.xpose.msra.mxu0 0.0
    %4590 = vmatprep.subr.mxu0 0.0
    %4591 = vmatpush1.xpose.msra.mxu0 0.0
    %4592 = vmatprep.subr.mxu0 0.0
    %4593 = vmatpush1.xpose.msra.mxu0 0.0
    %4594 = vmatprep.subr.mxu0 0.0
    %4595 = vmatpush1.xpose.msra.mxu0 0.0
    %4596 = vmatprep.subr.mxu0 0.0
    %4597 = vmatpush1.xpose.msra.mxu0 0.0
    %4598 = vmatprep.subr.mxu0 0.0
    %4599 = vmatpush1.xpose.msra.mxu0 0.0
    %4600 = vmatprep.subr.mxu0 0.0
    %4601 = vmatpush1.xpose.msra.mxu0 0.0
    %4602 = vmatprep.subr.mxu0 0.0
    %4603 = vmatpush1.xpose.msra.mxu0 0.0
    %4604 = vmatprep.subr.mxu0 0.0
    %4605 = vmatpush1.xpose.msra.mxu0 0.0
    %4606 = vmatprep.subr.mxu0 0.0
    %4607 = vmatpush1.xpose.msra.mxu0 0.0
    %4608 = vmatprep.subr.mxu0 0.0
    %4609 = vmatpush1.xpose.msra.mxu0 0.0
    %4610 = vmatprep.subr.mxu0 0.0
    %4611 = vmatpush1.xpose.msra.mxu0 0.0
    %4612 = vmatprep.subr.mxu0 0.0
    %4613 = vmatpush1.xpose.msra.mxu0 0.0
    %4614 = vmatprep.subr.mxu0 0.0
    %4615 = vmatpush1.xpose.msra.mxu0 0.0
    %4616 = vmatprep.subr.mxu0 0.0
    %4617 = vmatpush1.xpose.msra.mxu0 0.0
    %4618 = vmatprep.subr.mxu0 0.0
    %4619 = vmatpush1.xpose.msra.mxu0 0.0
    %4620 = vmatprep.subr.mxu0 0.0
    %4621 = vmatpush1.xpose.msra.mxu0 0.0
    %4622 = vmatprep.subr.mxu0 0.0
    %4623 = vmatpush1.xpose.msra.mxu0 0.0
    %4624 = vmatprep.subr.mxu0 0.0
    %4625 = vmatpush1.xpose.msra.mxu0 0.0
    %4626 = vmatprep.mubr.f32.mxu0 0.0
    %4627 = vmatmul.mubr.f32.gmra.mrb[0].mxu0 %v4557
    %v4628 = vpop.f32.mrb[0].mxu0
    %v4629 = vadd.f32 0.0, %v4628
    %v4630 = vpop.f32.mrb[0].mxu0
    %4631 = vdwg.mxu0
    %v4632 = vmul.f32 %v4629, 0.35355338
    %4634 = vrot.lane.b32.xlu0 %v4632, 40
    %v4635 = vpop.permute.xlu0 %4634
    %v4637 = vsel %vm2859, -1e+30, %v4635
    %v4638 = vsel %vm467, %v4637, -inf
    %4639 = vmax.xlane.f32.xlu0 %v4638
    %v4640 = vpop.xlane.xlu0 %4639
    %v4641 = vsub.f32 %v4637, %v4640
    %v4642 = vmul.f32 %v4641, 1.442695
    %v4643 = vpow.pop %v4642
    %4645 = vrot.lane.b32.xlu0 %v4643, 88
    %v4646 = vpop.permute.xlu0 %4645
    %v4648 = vsel %vm49, %v4646, 0.0
    %4649 = vadd.xlane.f32.xlu0 %v4648
    %v4650 = vpop.xlane.xlu0 %4649
    %v4651 = vrcp.pop %v4650
    %v4652 = vmul.f32 %v4643, %v4651
    %4654 = vrot.lane.b32.xlu0 %v4652, 88
    %v4655 = vpop.permute.xlu0 %4654
    %4656 = vrot.lane.b32.xlu0 %v4555, 96
    %v4657 = vpop.permute.xlu0 %4656
    %v4659 = vsel %vm49, %v4655, 0
    %4661 = vmatprep.subr.mxu0 0.0
    %4662 = vmatpush1.msra.mxu0 %v4657
    %4663 = vmatprep.subr.mxu0 0.0
    %4664 = vmatpush1.msra.mxu0 0.0
    %4665 = vmatprep.subr.mxu0 0.0
    %4666 = vmatpush1.msra.mxu0 0.0
    %4667 = vmatprep.subr.mxu0 0.0
    %4668 = vmatpush1.msra.mxu0 0.0
    %4669 = vmatprep.subr.mxu0 0.0
    %4670 = vmatpush1.msra.mxu0 0.0
    %4671 = vmatprep.subr.mxu0 0.0
    %4672 = vmatpush1.msra.mxu0 0.0
    %4673 = vmatprep.subr.mxu0 0.0
    %4674 = vmatpush1.msra.mxu0 0.0
    %4675 = vmatprep.subr.mxu0 0.0
    %4676 = vmatpush1.msra.mxu0 0.0
    %4677 = vmatprep.subr.mxu0 0.0
    %4678 = vmatpush1.msra.mxu0 0.0
    %4679 = vmatprep.subr.mxu0 0.0
    %4680 = vmatpush1.msra.mxu0 0.0
    %4681 = vmatprep.subr.mxu0 0.0
    %4682 = vmatpush1.msra.mxu0 0.0
    %4683 = vmatprep.subr.mxu0 0.0
    %4684 = vmatpush1.msra.mxu0 0.0
    %4685 = vmatprep.subr.mxu0 0.0
    %4686 = vmatpush1.msra.mxu0 0.0
    %4687 = vmatprep.subr.mxu0 0.0
    %4688 = vmatpush1.msra.mxu0 0.0
    %4689 = vmatprep.subr.mxu0 0.0
    %4690 = vmatpush1.msra.mxu0 0.0
    %4691 = vmatprep.subr.mxu0 0.0
    %4692 = vmatpush1.msra.mxu0 0.0
    %4693 = vmatprep.subr.mxu0 0.0
    %4694 = vmatpush1.msra.mxu0 0.0
    %4695 = vmatprep.subr.mxu0 0.0
    %4696 = vmatpush1.msra.mxu0 0.0
    %4697 = vmatprep.subr.mxu0 0.0
    %4698 = vmatpush1.msra.mxu0 0.0
    %4699 = vmatprep.subr.mxu0 0.0
    %4700 = vmatpush1.msra.mxu0 0.0
    %4701 = vmatprep.subr.mxu0 0.0
    %4702 = vmatpush1.msra.mxu0 0.0
    %4703 = vmatprep.subr.mxu0 0.0
    %4704 = vmatpush1.msra.mxu0 0.0
    %4705 = vmatprep.subr.mxu0 0.0
    %4706 = vmatpush1.msra.mxu0 0.0
    %4707 = vmatprep.subr.mxu0 0.0
    %4708 = vmatpush1.msra.mxu0 0.0
    %4709 = vmatprep.subr.mxu0 0.0
    %4710 = vmatpush1.msra.mxu0 0.0
    %4711 = vmatprep.subr.mxu0 0.0
    %4712 = vmatpush1.msra.mxu0 0.0
    %4713 = vmatprep.subr.mxu0 0.0
    %4714 = vmatpush1.msra.mxu0 0.0
    %4715 = vmatprep.subr.mxu0 0.0
    %4716 = vmatpush1.msra.mxu0 0.0
    %4717 = vmatprep.subr.mxu0 0.0
    %4718 = vmatpush1.msra.mxu0 0.0
    %4719 = vmatprep.subr.mxu0 0.0
    %4720 = vmatpush1.msra.mxu0 0.0
    %4721 = vmatprep.subr.mxu0 0.0
    %4722 = vmatpush1.msra.mxu0 0.0
    %4723 = vmatprep.subr.mxu0 0.0
    %4724 = vmatpush1.msra.mxu0 0.0
    %4725 = vmatprep.mubr.f32.mxu0 0.0
    %4726 = vmatmul.mubr.f32.gmra.mrb[0].mxu0 %v4659
    %v4727 = vpop.f32.mrb[0].mxu0
    %v4728 = vadd.f32 0.0, %v4727
    %v4729 = vpop.f32.mrb[0].mxu0
    %4730 = vdwg.mxu0
    %4731 = vst.msk [vmem:[#allocation2] sm:$0xff] %vm49, %v4728
    %4732 = vrot.lane.b32.xlu0 %v4378, 120
    %v4733 = vpop.permute.xlu0 %4732
    %4734 = vrot.lane.b32.xlu0 %v4555, 120
    %v4735 = vpop.permute.xlu0 %4734
    %v4736 = vsel %vm49, %v4733, 0
    %v4738 = vsel %vm49, %v4735, 0
    %4740 = vmatprep.subr.mxu0 0.0
    %4741 = vmatpush1.xpose.msra.mxu0 %v4738
    %4742 = vmatprep.subr.mxu0 0.0
    %4743 = vmatpush1.xpose.msra.mxu0 0.0
    %4744 = vmatprep.subr.mxu0 0.0
    %4745 = vmatpush1.xpose.msra.mxu0 0.0
    %4746 = vmatprep.subr.mxu0 0.0
    %4747 = vmatpush1.xpose.msra.mxu0 0.0
    %4748 = vmatprep.subr.mxu0 0.0
    %4749 = vmatpush1.xpose.msra.mxu0 0.0
    %4750 = vmatprep.subr.mxu0 0.0
    %4751 = vmatpush1.xpose.msra.mxu0 0.0
    %4752 = vmatprep.subr.mxu0 0.0
    %4753 = vmatpush1.xpose.msra.mxu0 0.0
    %4754 = vmatprep.subr.mxu0 0.0
    %4755 = vmatpush1.xpose.msra.mxu0 0.0
    %4756 = vmatprep.subr.mxu0 0.0
    %4757 = vmatpush1.xpose.msra.mxu0 0.0
    %4758 = vmatprep.subr.mxu0 0.0
    %4759 = vmatpush1.xpose.msra.mxu0 0.0
    %4760 = vmatprep.subr.mxu0 0.0
    %4761 = vmatpush1.xpose.msra.mxu0 0.0
    %4762 = vmatprep.subr.mxu0 0.0
    %4763 = vmatpush1.xpose.msra.mxu0 0.0
    %4764 = vmatprep.subr.mxu0 0.0
    %4765 = vmatpush1.xpose.msra.mxu0 0.0
    %4766 = vmatprep.subr.mxu0 0.0
    %4767 = vmatpush1.xpose.msra.mxu0 0.0
    %4768 = vmatprep.subr.mxu0 0.0
    %4769 = vmatpush1.xpose.msra.mxu0 0.0
    %4770 = vmatprep.subr.mxu0 0.0
    %4771 = vmatpush1.xpose.msra.mxu0 0.0
    %4772 = vmatprep.subr.mxu0 0.0
    %4773 = vmatpush1.xpose.msra.mxu0 0.0
    %4774 = vmatprep.subr.mxu0 0.0
    %4775 = vmatpush1.xpose.msra.mxu0 0.0
    %4776 = vmatprep.subr.mxu0 0.0
    %4777 = vmatpush1.xpose.msra.mxu0 0.0
    %4778 = vmatprep.subr.mxu0 0.0
    %4779 = vmatpush1.xpose.msra.mxu0 0.0
    %4780 = vmatprep.subr.mxu0 0.0
    %4781 = vmatpush1.xpose.msra.mxu0 0.0
    %4782 = vmatprep.subr.mxu0 0.0
    %4783 = vmatpush1.xpose.msra.mxu0 0.0
    %4784 = vmatprep.subr.mxu0 0.0
    %4785 = vmatpush1.xpose.msra.mxu0 0.0
    %4786 = vmatprep.subr.mxu0 0.0
    %4787 = vmatpush1.xpose.msra.mxu0 0.0
    %4788 = vmatprep.subr.mxu0 0.0
    %4789 = vmatpush1.xpose.msra.mxu0 0.0
    %4790 = vmatprep.subr.mxu0 0.0
    %4791 = vmatpush1.xpose.msra.mxu0 0.0
    %4792 = vmatprep.subr.mxu0 0.0
    %4793 = vmatpush1.xpose.msra.mxu0 0.0
    %4794 = vmatprep.subr.mxu0 0.0
    %4795 = vmatpush1.xpose.msra.mxu0 0.0
    %4796 = vmatprep.subr.mxu0 0.0
    %4797 = vmatpush1.xpose.msra.mxu0 0.0
    %4798 = vmatprep.subr.mxu0 0.0
    %4799 = vmatpush1.xpose.msra.mxu0 0.0
    %4800 = vmatprep.subr.mxu0 0.0
    %4801 = vmatpush1.xpose.msra.mxu0 0.0
    %4802 = vmatprep.subr.mxu0 0.0
    %4803 = vmatpush1.xpose.msra.mxu0 0.0
    %4804 = vmatprep.mubr.f32.mxu0 0.0
    %4805 = vmatmul.mubr.f32.gmra.mrb[0].mxu0 %v4736
    %v4806 = vpop.f32.mrb[0].mxu0
    %v4807 = vadd.f32 0.0, %v4806
    %v4808 = vpop.f32.mrb[0].mxu0
    %4809 = vdwg.mxu0
    %v4810 = vmul.f32 %v4807, 0.35355338
    %4812 = vrot.lane.b32.xlu0 %v4810, 40
    %v4813 = vpop.permute.xlu0 %4812
    %v4815 = vsel %vm2859, -1e+30, %v4813
    %v4816 = vsel %vm467, %v4815, -inf
    %4817 = vmax.xlane.f32.xlu0 %v4816
    %v4818 = vpop.xlane.xlu0 %4817
    %v4819 = vsub.f32 %v4815, %v4818
    %v4820 = vmul.f32 %v4819, 1.442695
    %v4821 = vpow.pop %v4820
    %4823 = vrot.lane.b32.xlu0 %v4821, 88
    %v4824 = vpop.permute.xlu0 %4823
    %v4826 = vsel %vm49, %v4824, 0.0
    %4827 = vadd.xlane.f32.xlu0 %v4826
    %v4828 = vpop.xlane.xlu0 %4827
    %v4829 = vrcp.pop %v4828
    %v4830 = vmul.f32 %v4821, %v4829
    %4832 = vrot.lane.b32.xlu0 %v4830, 88
    %v4833 = vpop.permute.xlu0 %4832
    %4834 = vrot.lane.b32.xlu0 %v4555, 88
    %v4835 = vpop.permute.xlu0 %4834
    %v4837 = vsel %vm49, %v4833, 0
    %4839 = vmatprep.subr.mxu0 0.0
    %4840 = vmatpush1.msra.mxu0 %v4835
    %4841 = vmatprep.subr.mxu0 0.0
    %4842 = vmatpush1.msra.mxu0 0.0
    %4843 = vmatprep.subr.mxu0 0.0
    %4844 = vmatpush1.msra.mxu0 0.0
    %4845 = vmatprep.subr.mxu0 0.0
    %4846 = vmatpush1.msra.mxu0 0.0
    %4847 = vmatprep.subr.mxu0 0.0
    %4848 = vmatpush1.msra.mxu0 0.0
    %4849 = vmatprep.subr.mxu0 0.0
    %4850 = vmatpush1.msra.mxu0 0.0
    %4851 = vmatprep.subr.mxu0 0.0
    %4852 = vmatpush1.msra.mxu0 0.0
    %4853 = vmatprep.subr.mxu0 0.0
    %4854 = vmatpush1.msra.mxu0 0.0
    %4855 = vmatprep.subr.mxu0 0.0
    %4856 = vmatpush1.msra.mxu0 0.0
    %4857 = vmatprep.subr.mxu0 0.0
    %4858 = vmatpush1.msra.mxu0 0.0
    %4859 = vmatprep.subr.mxu0 0.0
    %4860 = vmatpush1.msra.mxu0 0.0
    %4861 = vmatprep.subr.mxu0 0.0
    %4862 = vmatpush1.msra.mxu0 0.0
    %4863 = vmatprep.subr.mxu0 0.0
    %4864 = vmatpush1.msra.mxu0 0.0
    %4865 = vmatprep.subr.mxu0 0.0
    %4866 = vmatpush1.msra.mxu0 0.0
    %4867 = vmatprep.subr.mxu0 0.0
    %4868 = vmatpush1.msra.mxu0 0.0
    %4869 = vmatprep.subr.mxu0 0.0
    %4870 = vmatpush1.msra.mxu0 0.0
    %4871 = vmatprep.subr.mxu0 0.0
    %4872 = vmatpush1.msra.mxu0 0.0
    %4873 = vmatprep.subr.mxu0 0.0
    %4874 = vmatpush1.msra.mxu0 0.0
    %4875 = vmatprep.subr.mxu0 0.0
    %4876 = vmatpush1.msra.mxu0 0.0
    %4877 = vmatprep.subr.mxu0 0.0
    %4878 = vmatpush1.msra.mxu0 0.0
    %4879 = vmatprep.subr.mxu0 0.0
    %4880 = vmatpush1.msra.mxu0 0.0
    %4881 = vmatprep.subr.mxu0 0.0
    %4882 = vmatpush1.msra.mxu0 0.0
    %4883 = vmatprep.subr.mxu0 0.0
    %4884 = vmatpush1.msra.mxu0 0.0
    %4885 = vmatprep.subr.mxu0 0.0
    %4886 = vmatpush1.msra.mxu0 0.0
    %4887 = vmatprep.subr.mxu0 0.0
    %4888 = vmatpush1.msra.mxu0 0.0
    %4889 = vmatprep.subr.mxu0 0.0
    %4890 = vmatpush1.msra.mxu0 0.0
    %4891 = vmatprep.subr.mxu0 0.0
    %4892 = vmatpush1.msra.mxu0 0.0
    %4893 = vmatprep.subr.mxu0 0.0
    %4894 = vmatpush1.msra.mxu0 0.0
    %4895 = vmatprep.subr.mxu0 0.0
    %4896 = vmatpush1.msra.mxu0 0.0
    %4897 = vmatprep.subr.mxu0 0.0
    %4898 = vmatpush1.msra.mxu0 0.0
    %4899 = vmatprep.subr.mxu0 0.0
    %4900 = vmatpush1.msra.mxu0 0.0
    %4901 = vmatprep.subr.mxu0 0.0
    %4902 = vmatpush1.msra.mxu0 0.0
    %4903 = vmatprep.mubr.f32.mxu0 0.0
    %4904 = vmatmul.mubr.f32.gmra.mrb[0].mxu0 %v4837
    %v4905 = vpop.f32.mrb[0].mxu0
    %v4906 = vadd.f32 0.0, %v4905
    %v4907 = vpop.f32.mrb[0].mxu0
    %4908 = vdwg.mxu0
    %4910 = vrot.lane.b32.xlu0 %v4906, 8
    %v4911 = vpop.permute.xlu0 %4910
    %4913 = vst.msk [vmem:[#allocation2] sm:$0xff] %vm743, %v4911
    %4914 = vrot.lane.b32.xlu0 %v4378, 112
    %v4915 = vpop.permute.xlu0 %4914
    %4916 = vrot.lane.b32.xlu0 %v4555, 112
    %v4917 = vpop.permute.xlu0 %4916
    %v4918 = vsel %vm49, %v4915, 0
    %v4920 = vsel %vm49, %v4917, 0
    %4922 = vmatprep.subr.mxu0 0.0
    %4923 = vmatpush1.xpose.msra.mxu0 %v4920
    %4924 = vmatprep.subr.mxu0 0.0
    %4925 = vmatpush1.xpose.msra.mxu0 0.0
    %4926 = vmatprep.subr.mxu0 0.0
    %4927 = vmatpush1.xpose.msra.mxu0 0.0
    %4928 = vmatprep.subr.mxu0 0.0
    %4929 = vmatpush1.xpose.msra.mxu0 0.0
    %4930 = vmatprep.subr.mxu0 0.0
    %4931 = vmatpush1.xpose.msra.mxu0 0.0
    %4932 = vmatprep.subr.mxu0 0.0
    %4933 = vmatpush1.xpose.msra.mxu0 0.0
    %4934 = vmatprep.subr.mxu0 0.0
    %4935 = vmatpush1.xpose.msra.mxu0 0.0
    %4936 = vmatprep.subr.mxu0 0.0
    %4937 = vmatpush1.xpose.msra.mxu0 0.0
    %4938 = vmatprep.subr.mxu0 0.0
    %4939 = vmatpush1.xpose.msra.mxu0 0.0
    %4940 = vmatprep.subr.mxu0 0.0
    %4941 = vmatpush1.xpose.msra.mxu0 0.0
    %4942 = vmatprep.subr.mxu0 0.0
    %4943 = vmatpush1.xpose.msra.mxu0 0.0
    %4944 = vmatprep.subr.mxu0 0.0
    %4945 = vmatpush1.xpose.msra.mxu0 0.0
    %4946 = vmatprep.subr.mxu0 0.0
    %4947 = vmatpush1.xpose.msra.mxu0 0.0
    %4948 = vmatprep.subr.mxu0 0.0
    %4949 = vmatpush1.xpose.msra.mxu0 0.0
    %4950 = vmatprep.subr.mxu0 0.0
    %4951 = vmatpush1.xpose.msra.mxu0 0.0
    %4952 = vmatprep.subr.mxu0 0.0
    %4953 = vmatpush1.xpose.msra.mxu0 0.0
    %4954 = vmatprep.subr.mxu0 0.0
    %4955 = vmatpush1.xpose.msra.mxu0 0.0
    %4956 = vmatprep.subr.mxu0 0.0
    %4957 = vmatpush1.xpose.msra.mxu0 0.0
    %4958 = vmatprep.subr.mxu0 0.0
    %4959 = vmatpush1.xpose.msra.mxu0 0.0
    %4960 = vmatprep.subr.mxu0 0.0
    %4961 = vmatpush1.xpose.msra.mxu0 0.0
    %4962 = vmatprep.subr.mxu0 0.0
    %4963 = vmatpush1.xpose.msra.mxu0 0.0
    %4964 = vmatprep.subr.mxu0 0.0
    %4965 = vmatpush1.xpose.msra.mxu0 0.0
    %4966 = vmatprep.subr.mxu0 0.0
    %4967 = vmatpush1.xpose.msra.mxu0 0.0
    %4968 = vmatprep.subr.mxu0 0.0
    %4969 = vmatpush1.xpose.msra.mxu0 0.0
    %4970 = vmatprep.subr.mxu0 0.0
    %4971 = vmatpush1.xpose.msra.mxu0 0.0
    %4972 = vmatprep.subr.mxu0 0.0
    %4973 = vmatpush1.xpose.msra.mxu0 0.0
    %4974 = vmatprep.subr.mxu0 0.0
    %4975 = vmatpush1.xpose.msra.mxu0 0.0
    %4976 = vmatprep.subr.mxu0 0.0
    %4977 = vmatpush1.xpose.msra.mxu0 0.0
    %4978 = vmatprep.subr.mxu0 0.0
    %4979 = vmatpush1.xpose.msra.mxu0 0.0
    %4980 = vmatprep.subr.mxu0 0.0
    %4981 = vmatpush1.xpose.msra.mxu0 0.0
    %4982 = vmatprep.subr.mxu0 0.0
    %4983 = vmatpush1.xpose.msra.mxu0 0.0
    %4984 = vmatprep.subr.mxu0 0.0
    %4985 = vmatpush1.xpose.msra.mxu0 0.0
    %4986 = vmatprep.mubr.f32.mxu0 0.0
    %4987 = vmatmul.mubr.f32.gmra.mrb[0].mxu0 %v4918
    %v4988 = vpop.f32.mrb[0].mxu0
    %v4989 = vadd.f32 0.0, %v4988
    %v4990 = vpop.f32.mrb[0].mxu0
    %4991 = vdwg.mxu0
    %v4992 = vmul.f32 %v4989, 0.35355338
    %4994 = vrot.lane.b32.xlu0 %v4992, 40
    %v4995 = vpop.permute.xlu0 %4994
    %v4997 = vsel %vm2859, -1e+30, %v4995
    %v4998 = vsel %vm467, %v4997, -inf
    %4999 = vmax.xlane.f32.xlu0 %v4998
    %v5000 = vpop.xlane.xlu0 %4999
    %v5001 = vsub.f32 %v4997, %v5000
    %v5002 = vmul.f32 %v5001, 1.442695
    %v5003 = vpow.pop %v5002
    %5005 = vrot.lane.b32.xlu0 %v5003, 88
    %v5006 = vpop.permute.xlu0 %5005
    %v5008 = vsel %vm49, %v5006, 0.0
    %5009 = vadd.xlane.f32.xlu0 %v5008
    %v5010 = vpop.xlane.xlu0 %5009
    %v5011 = vrcp.pop %v5010
    %v5012 = vmul.f32 %v5003, %v5011
    %5014 = vrot.lane.b32.xlu0 %v5012, 88
    %v5015 = vpop.permute.xlu0 %5014
    %5016 = vrot.lane.b32.xlu0 %v4555, 80
    %v5017 = vpop.permute.xlu0 %5016
    %v5019 = vsel %vm49, %v5015, 0
    %5021 = vmatprep.subr.mxu0 0.0
    %5022 = vmatpush1.msra.mxu0 %v5017
    %5023 = vmatprep.subr.mxu0 0.0
    %5024 = vmatpush1.msra.mxu0 0.0
    %5025 = vmatprep.subr.mxu0 0.0
    %5026 = vmatpush1.msra.mxu0 0.0
    %5027 = vmatprep.subr.mxu0 0.0
    %5028 = vmatpush1.msra.mxu0 0.0
    %5029 = vmatprep.subr.mxu0 0.0
    %5030 = vmatpush1.msra.mxu0 0.0
    %5031 = vmatprep.subr.mxu0 0.0
    %5032 = vmatpush1.msra.mxu0 0.0
    %5033 = vmatprep.subr.mxu0 0.0
    %5034 = vmatpush1.msra.mxu0 0.0
    %5035 = vmatprep.subr.mxu0 0.0
    %5036 = vmatpush1.msra.mxu0 0.0
    %5037 = vmatprep.subr.mxu0 0.0
    %5038 = vmatpush1.msra.mxu0 0.0
    %5039 = vmatprep.subr.mxu0 0.0
    %5040 = vmatpush1.msra.mxu0 0.0
    %5041 = vmatprep.subr.mxu0 0.0
    %5042 = vmatpush1.msra.mxu0 0.0
    %5043 = vmatprep.subr.mxu0 0.0
    %5044 = vmatpush1.msra.mxu0 0.0
    %5045 = vmatprep.subr.mxu0 0.0
    %5046 = vmatpush1.msra.mxu0 0.0
    %5047 = vmatprep.subr.mxu0 0.0
    %5048 = vmatpush1.msra.mxu0 0.0
    %5049 = vmatprep.subr.mxu0 0.0
    %5050 = vmatpush1.msra.mxu0 0.0
    %5051 = vmatprep.subr.mxu0 0.0
    %5052 = vmatpush1.msra.mxu0 0.0
    %5053 = vmatprep.subr.mxu0 0.0
    %5054 = vmatpush1.msra.mxu0 0.0
    %5055 = vmatprep.subr.mxu0 0.0
    %5056 = vmatpush1.msra.mxu0 0.0
    %5057 = vmatprep.subr.mxu0 0.0
    %5058 = vmatpush1.msra.mxu0 0.0
    %5059 = vmatprep.subr.mxu0 0.0
    %5060 = vmatpush1.msra.mxu0 0.0
    %5061 = vmatprep.subr.mxu0 0.0
    %5062 = vmatpush1.msra.mxu0 0.0
    %5063 = vmatprep.subr.mxu0 0.0
    %5064 = vmatpush1.msra.mxu0 0.0
    %5065 = vmatprep.subr.mxu0 0.0
    %5066 = vmatpush1.msra.mxu0 0.0
    %5067 = vmatprep.subr.mxu0 0.0
    %5068 = vmatpush1.msra.mxu0 0.0
    %5069 = vmatprep.subr.mxu0 0.0
    %5070 = vmatpush1.msra.mxu0 0.0
    %5071 = vmatprep.subr.mxu0 0.0
    %5072 = vmatpush1.msra.mxu0 0.0
    %5073 = vmatprep.subr.mxu0 0.0
    %5074 = vmatpush1.msra.mxu0 0.0
    %5075 = vmatprep.subr.mxu0 0.0
    %5076 = vmatpush1.msra.mxu0 0.0
    %5077 = vmatprep.subr.mxu0 0.0
    %5078 = vmatpush1.msra.mxu0 0.0
    %5079 = vmatprep.subr.mxu0 0.0
    %5080 = vmatpush1.msra.mxu0 0.0
    %5081 = vmatprep.subr.mxu0 0.0
    %5082 = vmatpush1.msra.mxu0 0.0
    %5083 = vmatprep.subr.mxu0 0.0
    %5084 = vmatpush1.msra.mxu0 0.0
    %5085 = vmatprep.mubr.f32.mxu0 0.0
    %5086 = vmatmul.mubr.f32.gmra.mrb[0].mxu0 %v5019
    %v5087 = vpop.f32.mrb[0].mxu0
    %v5088 = vadd.f32 0.0, %v5087
    %v5089 = vpop.f32.mrb[0].mxu0
    %5090 = vdwg.mxu0
    %5092 = vrot.lane.b32.xlu0 %v5088, 16
    %v5093 = vpop.permute.xlu0 %5092
    %5095 = vst.msk [vmem:[#allocation2] sm:$0xff] %vm926, %v5093
    %5096 = vrot.lane.b32.xlu0 %v4378, 104
    %v5097 = vpop.permute.xlu0 %5096
    %5098 = vrot.lane.b32.xlu0 %v4555, 104
    %v5099 = vpop.permute.xlu0 %5098
    %v5100 = vsel %vm49, %v5097, 0
    %v5102 = vsel %vm49, %v5099, 0
    %5104 = vmatprep.subr.mxu0 0.0
    %5105 = vmatpush1.xpose.msra.mxu0 %v5102
    %5106 = vmatprep.subr.mxu0 0.0
    %5107 = vmatpush1.xpose.msra.mxu0 0.0
    %5108 = vmatprep.subr.mxu0 0.0
    %5109 = vmatpush1.xpose.msra.mxu0 0.0
    %5110 = vmatprep.subr.mxu0 0.0
    %5111 = vmatpush1.xpose.msra.mxu0 0.0
    %5112 = vmatprep.subr.mxu0 0.0
    %5113 = vmatpush1.xpose.msra.mxu0 0.0
    %5114 = vmatprep.subr.mxu0 0.0
    %5115 = vmatpush1.xpose.msra.mxu0 0.0
    %5116 = vmatprep.subr.mxu0 0.0
    %5117 = vmatpush1.xpose.msra.mxu0 0.0
    %5118 = vmatprep.subr.mxu0 0.0
    %5119 = vmatpush1.xpose.msra.mxu0 0.0
    %5120 = vmatprep.subr.mxu0 0.0
    %5121 = vmatpush1.xpose.msra.mxu0 0.0
    %5122 = vmatprep.subr.mxu0 0.0
    %5123 = vmatpush1.xpose.msra.mxu0 0.0
    %5124 = vmatprep.subr.mxu0 0.0
    %5125 = vmatpush1.xpose.msra.mxu0 0.0
    %5126 = vmatprep.subr.mxu0 0.0
    %5127 = vmatpush1.xpose.msra.mxu0 0.0
    %5128 = vmatprep.subr.mxu0 0.0
    %5129 = vmatpush1.xpose.msra.mxu0 0.0
    %5130 = vmatprep.subr.mxu0 0.0
    %5131 = vmatpush1.xpose.msra.mxu0 0.0
    %5132 = vmatprep.subr.mxu0 0.0
    %5133 = vmatpush1.xpose.msra.mxu0 0.0
    %5134 = vmatprep.subr.mxu0 0.0
    %5135 = vmatpush1.xpose.msra.mxu0 0.0
    %5136 = vmatprep.subr.mxu0 0.0
    %5137 = vmatpush1.xpose.msra.mxu0 0.0
    %5138 = vmatprep.subr.mxu0 0.0
    %5139 = vmatpush1.xpose.msra.mxu0 0.0
    %5140 = vmatprep.subr.mxu0 0.0
    %5141 = vmatpush1.xpose.msra.mxu0 0.0
    %5142 = vmatprep.subr.mxu0 0.0
    %5143 = vmatpush1.xpose.msra.mxu0 0.0
    %5144 = vmatprep.subr.mxu0 0.0
    %5145 = vmatpush1.xpose.msra.mxu0 0.0
    %5146 = vmatprep.subr.mxu0 0.0
    %5147 = vmatpush1.xpose.msra.mxu0 0.0
    %5148 = vmatprep.subr.mxu0 0.0
    %5149 = vmatpush1.xpose.msra.mxu0 0.0
    %5150 = vmatprep.subr.mxu0 0.0
    %5151 = vmatpush1.xpose.msra.mxu0 0.0
    %5152 = vmatprep.subr.mxu0 0.0
    %5153 = vmatpush1.xpose.msra.mxu0 0.0
    %5154 = vmatprep.subr.mxu0 0.0
    %5155 = vmatpush1.xpose.msra.mxu0 0.0
    %5156 = vmatprep.subr.mxu0 0.0
    %5157 = vmatpush1.xpose.msra.mxu0 0.0
    %5158 = vmatprep.subr.mxu0 0.0
    %5159 = vmatpush1.xpose.msra.mxu0 0.0
    %5160 = vmatprep.subr.mxu0 0.0
    %5161 = vmatpush1.xpose.msra.mxu0 0.0
    %5162 = vmatprep.subr.mxu0 0.0
    %5163 = vmatpush1.xpose.msra.mxu0 0.0
    %5164 = vmatprep.subr.mxu0 0.0
    %5165 = vmatpush1.xpose.msra.mxu0 0.0
    %5166 = vmatprep.subr.mxu0 0.0
    %5167 = vmatpush1.xpose.msra.mxu0 0.0
    %5168 = vmatprep.mubr.f32.mxu0 0.0
    %5169 = vmatmul.mubr.f32.gmra.mrb[0].mxu0 %v5100
    %v5170 = vpop.f32.mrb[0].mxu0
    %v5171 = vadd.f32 0.0, %v5170
    %v5172 = vpop.f32.mrb[0].mxu0
    %5173 = vdwg.mxu0
    %v5174 = vmul.f32 %v5171, 0.35355338
    %5176 = vrot.lane.b32.xlu0 %v5174, 40
    %v5177 = vpop.permute.xlu0 %5176
    %v5179 = vsel %vm2859, -1e+30, %v5177
    %v5180 = vsel %vm467, %v5179, -inf
    %5181 = vmax.xlane.f32.xlu0 %v5180
    %v5182 = vpop.xlane.xlu0 %5181
    %v5183 = vsub.f32 %v5179, %v5182
    %v5184 = vmul.f32 %v5183, 1.442695
    %v5185 = vpow.pop %v5184
    %5187 = vrot.lane.b32.xlu0 %v5185, 88
    %v5188 = vpop.permute.xlu0 %5187
    %v5190 = vsel %vm49, %v5188, 0.0
    %5191 = vadd.xlane.f32.xlu0 %v5190
    %v5192 = vpop.xlane.xlu0 %5191
    %v5193 = vrcp.pop %v5192
    %v5194 = vmul.f32 %v5185, %v5193
    %5196 = vrot.lane.b32.xlu0 %v5194, 88
    %v5197 = vpop.permute.xlu0 %5196
    %5198 = vrot.lane.b32.xlu0 %v4555, 72
    %v5199 = vpop.permute.xlu0 %5198
    %v5201 = vsel %vm49, %v5197, 0
    %5203 = vmatprep.subr.mxu0 0.0
    %5204 = vmatpush1.msra.mxu0 %v5199
    %5205 = vmatprep.subr.mxu0 0.0
    %5206 = vmatpush1.msra.mxu0 0.0
    %5207 = vmatprep.subr.mxu0 0.0
    %5208 = vmatpush1.msra.mxu0 0.0
    %5209 = vmatprep.subr.mxu0 0.0
    %5210 = vmatpush1.msra.mxu0 0.0
    %5211 = vmatprep.subr.mxu0 0.0
    %5212 = vmatpush1.msra.mxu0 0.0
    %5213 = vmatprep.subr.mxu0 0.0
    %5214 = vmatpush1.msra.mxu0 0.0
    %5215 = vmatprep.subr.mxu0 0.0
    %5216 = vmatpush1.msra.mxu0 0.0
    %5217 = vmatprep.subr.mxu0 0.0
    %5218 = vmatpush1.msra.mxu0 0.0
    %5219 = vmatprep.subr.mxu0 0.0
    %5220 = vmatpush1.msra.mxu0 0.0
    %5221 = vmatprep.subr.mxu0 0.0
    %5222 = vmatpush1.msra.mxu0 0.0
    %5223 = vmatprep.subr.mxu0 0.0
    %5224 = vmatpush1.msra.mxu0 0.0
    %5225 = vmatprep.subr.mxu0 0.0
    %5226 = vmatpush1.msra.mxu0 0.0
    %5227 = vmatprep.subr.mxu0 0.0
    %5228 = vmatpush1.msra.mxu0 0.0
    %5229 = vmatprep.subr.mxu0 0.0
    %5230 = vmatpush1.msra.mxu0 0.0
    %5231 = vmatprep.subr.mxu0 0.0
    %5232 = vmatpush1.msra.mxu0 0.0
    %5233 = vmatprep.subr.mxu0 0.0
    %5234 = vmatpush1.msra.mxu0 0.0
    %5235 = vmatprep.subr.mxu0 0.0
    %5236 = vmatpush1.msra.mxu0 0.0
    %5237 = vmatprep.subr.mxu0 0.0
    %5238 = vmatpush1.msra.mxu0 0.0
    %5239 = vmatprep.subr.mxu0 0.0
    %5240 = vmatpush1.msra.mxu0 0.0
    %5241 = vmatprep.subr.mxu0 0.0
    %5242 = vmatpush1.msra.mxu0 0.0
    %5243 = vmatprep.subr.mxu0 0.0
    %5244 = vmatpush1.msra.mxu0 0.0
    %5245 = vmatprep.subr.mxu0 0.0
    %5246 = vmatpush1.msra.mxu0 0.0
    %5247 = vmatprep.subr.mxu0 0.0
    %5248 = vmatpush1.msra.mxu0 0.0
    %5249 = vmatprep.subr.mxu0 0.0
    %5250 = vmatpush1.msra.mxu0 0.0
    %5251 = vmatprep.subr.mxu0 0.0
    %5252 = vmatpush1.msra.mxu0 0.0
    %5253 = vmatprep.subr.mxu0 0.0
    %5254 = vmatpush1.msra.mxu0 0.0
    %5255 = vmatprep.subr.mxu0 0.0
    %5256 = vmatpush1.msra.mxu0 0.0
    %5257 = vmatprep.subr.mxu0 0.0
    %5258 = vmatpush1.msra.mxu0 0.0
    %5259 = vmatprep.subr.mxu0 0.0
    %5260 = vmatpush1.msra.mxu0 0.0
    %5261 = vmatprep.subr.mxu0 0.0
    %5262 = vmatpush1.msra.mxu0 0.0
    %5263 = vmatprep.subr.mxu0 0.0
    %5264 = vmatpush1.msra.mxu0 0.0
    %5265 = vmatprep.subr.mxu0 0.0
    %5266 = vmatpush1.msra.mxu0 0.0
    %5267 = vmatprep.mubr.f32.mxu0 0.0
    %5268 = vmatmul.mubr.f32.gmra.mrb[0].mxu0 %v5201
    %v5269 = vpop.f32.mrb[0].mxu0
    %v5270 = vadd.f32 0.0, %v5269
    %v5271 = vpop.f32.mrb[0].mxu0
    %5272 = vdwg.mxu0
    %5274 = vrot.lane.b32.xlu0 %v5270, 24
    %v5275 = vpop.permute.xlu0 %5274
    %5277 = vst.msk [vmem:[#allocation2] sm:$0xff] %vm1109, %v5275
    %v5278 = vld [vmem:[#allocation2] sm:$0xff]
    %v5279 = vld [vmem:[#allocation7 + $0x40] sm:$0xff]
    %v5280 = vld [vmem:[#allocation7 + $0x48] sm:$0xff]
    %v5281 = vld [vmem:[#allocation7 + $0x50] sm:$0xff]
    %v5282 = vld [vmem:[#allocation7 + $0x58] sm:$0xff]
    %v5283 = vld [vmem:[#allocation7 + $0x70] sm:$0x1]
    %v5284 = vlaneseq
    %v5285 = vshrl.u32 %v5284, 7
    %v5286 = vsub.s32 0, %v5285
    %v5287 = vrot.slane %v5283, %v5286
    %5292 = vrot.lane.b32.xlu0 %v5279, 32
    %v5293 = vpop.permute.xlu0 %5292
    %5294 = vrot.lane.b32.xlu0 %v5280, 32
    %v5295 = vpop.permute.xlu0 %5294
    %5296 = vrot.lane.b32.xlu0 %v5281, 32
    %v5297 = vpop.permute.xlu0 %5296
    %5298 = vrot.lane.b32.xlu0 %v5282, 32
    %v5299 = vpop.permute.xlu0 %5298
    %5305 = vrot.lane.b32.xlu0 %v5287, 32
    %v5306 = vpop.permute.xlu0 %5305
    %v5309 = vsel %vm131, %v5278, 0
    %5311 = vmatprep.subr.mxu0 0.0
    %5312 = vmatpush1.msra.mxu0 %v5293
    %5313 = vmatprep.subr.mxu0 0.0
    %5314 = vmatpush1.msra.mxu0 %v5295
    %5315 = vmatprep.subr.mxu0 0.0
    %5316 = vmatpush1.msra.mxu0 %v5297
    %5317 = vmatprep.subr.mxu0 0.0
    %5318 = vmatpush1.msra.mxu0 %v5299
    %5319 = vmatprep.subr.mxu0 0.0
    %5320 = vmatpush1.msra.mxu0 0.0
    %5321 = vmatprep.subr.mxu0 0.0
    %5322 = vmatpush1.msra.mxu0 0.0
    %5323 = vmatprep.subr.mxu0 0.0
    %5324 = vmatpush1.msra.mxu0 0.0
    %5325 = vmatprep.subr.mxu0 0.0
    %5326 = vmatpush1.msra.mxu0 0.0
    %5327 = vmatprep.subr.mxu0 0.0
    %5328 = vmatpush1.msra.mxu0 0.0
    %5329 = vmatprep.subr.mxu0 0.0
    %5330 = vmatpush1.msra.mxu0 0.0
    %5331 = vmatprep.subr.mxu0 0.0
    %5332 = vmatpush1.msra.mxu0 0.0
    %5333 = vmatprep.subr.mxu0 0.0
    %5334 = vmatpush1.msra.mxu0 0.0
    %5335 = vmatprep.subr.mxu0 0.0
    %5336 = vmatpush1.msra.mxu0 0.0
    %5337 = vmatprep.subr.mxu0 0.0
    %5338 = vmatpush1.msra.mxu0 0.0
    %5339 = vmatprep.subr.mxu0 0.0
    %5340 = vmatpush1.msra.mxu0 0.0
    %5341 = vmatprep.subr.mxu0 0.0
    %5342 = vmatpush1.msra.mxu0 0.0
    %5343 = vmatprep.subr.mxu0 0.0
    %5344 = vmatpush1.msra.mxu0 0.0
    %5345 = vmatprep.subr.mxu0 0.0
    %5346 = vmatpush1.msra.mxu0 0.0
    %5347 = vmatprep.subr.mxu0 0.0
    %5348 = vmatpush1.msra.mxu0 0.0
    %5349 = vmatprep.subr.mxu0 0.0
    %5350 = vmatpush1.msra.mxu0 0.0
    %5351 = vmatprep.subr.mxu0 0.0
    %5352 = vmatpush1.msra.mxu0 0.0
    %5353 = vmatprep.subr.mxu0 0.0
    %5354 = vmatpush1.msra.mxu0 0.0
    %5355 = vmatprep.subr.mxu0 0.0
    %5356 = vmatpush1.msra.mxu0 0.0
    %5357 = vmatprep.subr.mxu0 0.0
    %5358 = vmatpush1.msra.mxu0 0.0
    %5359 = vmatprep.subr.mxu0 0.0
    %5360 = vmatpush1.msra.mxu0 0.0
    %5361 = vmatprep.subr.mxu0 0.0
    %5362 = vmatpush1.msra.mxu0 0.0
    %5363 = vmatprep.subr.mxu0 0.0
    %5364 = vmatpush1.msra.mxu0 0.0
    %5365 = vmatprep.subr.mxu0 0.0
    %5366 = vmatpush1.msra.mxu0 0.0
    %5367 = vmatprep.subr.mxu0 0.0
    %5368 = vmatpush1.msra.mxu0 0.0
    %5369 = vmatprep.subr.mxu0 0.0
    %5370 = vmatpush1.msra.mxu0 0.0
    %5371 = vmatprep.subr.mxu0 0.0
    %5372 = vmatpush1.msra.mxu0 0.0
    %5373 = vmatprep.subr.mxu0 0.0
    %5374 = vmatpush1.msra.mxu0 0.0
    %5375 = vmatprep.mubr.f32.mxu0 0.0
    %5376 = vmatmul.mubr.f32.gmra.mrb[0].mxu0 %v5309
    %v5377 = vpop.f32.mrb[0].mxu0
    %v5378 = vadd.f32 %v5306, %v5377
    %v5379 = vpop.f32.mrb[0].mxu0
    %5380 = vdwg.mxu0
    %vm5381 = vcmp.ge.f32.partialorder %v5378, 0.0
    %v5382 = vmul.f32 %v5378, 0.01
    %v5383 = vsel %vm5381, %v5378, %v5382
    %v5384 = vld [vmem:[#allocation7 + $0x78] sm:$0x1]
    %v5385 = vadd.f32 %v5383, %v4228
    %v5386 = vsel %vm131, %v5385, 0.0
    %5387 = vadd.xlane.f32.xlu0 %v5386
    %v5388 = vpop.xlane.xlu0 %5387
    %v5389 = vmul.f32 %v5388, %v1222
    %v5390 = vsub.f32 %v5385, %v5389
    %v5391 = vmul.f32 %v5390, %v5390
    %v5392 = vsel %vm131, %v5391, 0.0
    %5393 = vadd.xlane.f32.xlu0 %v5392
    %v5394 = vpop.xlane.xlu0 %5393
    %v5395 = vmul.f32 %v5394, %v1222
    %v5396 = vadd.f32 %v5395, 1e-05
    %v5397 = vrsqrt.pop %v5396
    %v5398 = vmul.f32 %v5390, %v5397
    %v5399 = vlaneseq
    %v5400 = vshrl.u32 %v5399, 7
    %v5401 = vsub.s32 0, %v5400
    %v5402 = vrot.slane %v5384, %v5401
    %v5403 = vmul.f32 %v5398, %v5402
    %5405 = vrot.lane.b32.xlu0 %v5402, 96
    %v5406 = vpop.permute.xlu0 %5405
    %v5408 = vadd.f32 %v5403, %v5406
    %v5409 = vrot.slane %v4228, 7
    %v5410 = vsel %vm43, 0.0, %v5409
    %5411 = vst.msk [vmem:[#allocation3] sm:$0xff] %vm131, %v4228
    %5413 = vrot.lane.b32.xlu0 %v5410, 32
    %v5414 = vpop.permute.xlu0 %5413
    %5416 = vst.msk [vmem:[#allocation3] sm:$0xff] %vm1250, %v5414
    %5418 = vrot.lane.b32.xlu0 %v5408, 64
    %v5419 = vpop.permute.xlu0 %5418
    %5421 = vst.msk [vmem:[#allocation3] sm:$0xff] %vm1256, %v5419
    %v5422 = vld [vmem:[#allocation3] sm:$0xff]
    %v5423 = vld [vmem:[#allocation7 + $0x80] sm:$0xff]
    %v5424 = vld [vmem:[#allocation7 + $0x88] sm:$0xff]
    %v5425 = vld [vmem:[#allocation7 + $0x90] sm:$0xff]
    %v5426 = vld [vmem:[#allocation7 + $0x98] sm:$0xff]
    %v5427 = vld [vmem:[#allocation7 + $0xa0] sm:$0xff]
    %v5428 = vld [vmem:[#allocation7 + $0xa8] sm:$0xff]
    %v5429 = vld [vmem:[#allocation7 + $0xb0] sm:$0xff]
    %v5430 = vld [vmem:[#allocation7 + $0xb8] sm:$0xff]
    %v5431 = vld [vmem:[#allocation7 + $0xc0] sm:$0xff]
    %v5432 = vld [vmem:[#allocation7 + $0xc8] sm:$0xff]
    %v5433 = vld [vmem:[#allocation7 + $0xd0] sm:$0xff]
    %v5434 = vld [vmem:[#allocation7 + $0xd8] sm:$0xff]
    %v5435 = vld [vmem:[#allocation7 + $0xe0] sm:$0x1]
    %v5436 = vlaneseq
    %v5437 = vshrl.u32 %v5436, 7
    %v5438 = vsub.s32 0, %v5437
    %v5439 = vrot.slane %v5435, %v5438
    %v5441 = vsel %vm1276, %v5422, 0
    %5443 = vmatprep.subr.mxu0 0.0
    %5444 = vmatpush1.msra.mxu0 %v5423
    %5445 = vmatprep.subr.mxu0 0.0
    %5446 = vmatpush1.msra.mxu0 %v5424
    %5447 = vmatprep.subr.mxu0 0.0
    %5448 = vmatpush1.msra.mxu0 %v5425
    %5449 = vmatprep.subr.mxu0 0.0
    %5450 = vmatpush1.msra.mxu0 %v5426
    %5451 = vmatprep.subr.mxu0 0.0
    %5452 = vmatpush1.msra.mxu0 %v5427
    %5453 = vmatprep.subr.mxu0 0.0
    %5454 = vmatpush1.msra.mxu0 %v5428
    %5455 = vmatprep.subr.mxu0 0.0
    %5456 = vmatpush1.msra.mxu0 %v5429
    %5457 = vmatprep.subr.mxu0 0.0
    %5458 = vmatpush1.msra.mxu0 %v5430
    %5459 = vmatprep.subr.mxu0 0.0
    %5460 = vmatpush1.msra.mxu0 %v5431
    %5461 = vmatprep.subr.mxu0 0.0
    %5462 = vmatpush1.msra.mxu0 %v5432
    %5463 = vmatprep.subr.mxu0 0.0
    %5464 = vmatpush1.msra.mxu0 %v5433
    %5465 = vmatprep.subr.mxu0 0.0
    %5466 = vmatpush1.msra.mxu0 %v5434
    %5467 = vmatprep.subr.mxu0 0.0
    %5468 = vmatpush1.msra.mxu0 0.0
    %5469 = vmatprep.subr.mxu0 0.0
    %5470 = vmatpush1.msra.mxu0 0.0
    %5471 = vmatprep.subr.mxu0 0.0
    %5472 = vmatpush1.msra.mxu0 0.0
    %5473 = vmatprep.subr.mxu0 0.0
    %5474 = vmatpush1.msra.mxu0 0.0
    %5475 = vmatprep.subr.mxu0 0.0
    %5476 = vmatpush1.msra.mxu0 0.0
    %5477 = vmatprep.subr.mxu0 0.0
    %5478 = vmatpush1.msra.mxu0 0.0
    %5479 = vmatprep.subr.mxu0 0.0
    %5480 = vmatpush1.msra.mxu0 0.0
    %5481 = vmatprep.subr.mxu0 0.0
    %5482 = vmatpush1.msra.mxu0 0.0
    %5483 = vmatprep.subr.mxu0 0.0
    %5484 = vmatpush1.msra.mxu0 0.0
    %5485 = vmatprep.subr.mxu0 0.0
    %5486 = vmatpush1.msra.mxu0 0.0
    %5487 = vmatprep.subr.mxu0 0.0
    %5488 = vmatpush1.msra.mxu0 0.0
    %5489 = vmatprep.subr.mxu0 0.0
    %5490 = vmatpush1.msra.mxu0 0.0
    %5491 = vmatprep.subr.mxu0 0.0
    %5492 = vmatpush1.msra.mxu0 0.0
    %5493 = vmatprep.subr.mxu0 0.0
    %5494 = vmatpush1.msra.mxu0 0.0
    %5495 = vmatprep.subr.mxu0 0.0
    %5496 = vmatpush1.msra.mxu0 0.0
    %5497 = vmatprep.subr.mxu0 0.0
    %5498 = vmatpush1.msra.mxu0 0.0
    %5499 = vmatprep.subr.mxu0 0.0
    %5500 = vmatpush1.msra.mxu0 0.0
    %5501 = vmatprep.subr.mxu0 0.0
    %5502 = vmatpush1.msra.mxu0 0.0
    %5503 = vmatprep.subr.mxu0 0.0
    %5504 = vmatpush1.msra.mxu0 0.0
    %5505 = vmatprep.subr.mxu0 0.0
    %5506 = vmatpush1.msra.mxu0 0.0
    %5507 = vmatprep.mubr.f32.mxu0 0.0
    %5508 = vmatmul.mubr.f32.gmra.mrb[0].mxu0 %v5441
    %v5509 = vpop.f32.mrb[0].mxu0
    %v5510 = vadd.f32 %v5439, %v5509
    %v5511 = vpop.f32.mrb[0].mxu0
    %5512 = vdwg.mxu0
    %v5513 = vxor.u32 %v5510, 2147483648
    %v5514 = vmul.f32 %v5513, 1.442695
    %v5515 = vpow.pop %v5514
    %v5516 = vadd.f32 %v5515, 1.0
    %v5517 = vrcp.pop %v5516
    %v5518 = vmul.f32 1.0, %v5517
    %v5519 = vtanh.pop %v5510
    %5521 = vrot.lane.b32.xlu0 %v5518, 96
    %v5522 = vpop.permute.xlu0 %5521
    %v5524 = vmax.f32 %v5518, %v5522
    %5525 = vrot.lane.b32.xlu0 %v5518, 64
    %v5526 = vpop.permute.xlu0 %5525
    %v5528 = vmax.f32 %v5524, %v5526
    %v5529 = vsub.f32 %v5518, %v5528
    %v5530 = vmul.f32 %v5529, 1.442695
    %v5531 = vpow.pop %v5530
    %5533 = vrot.lane.b32.xlu0 %v5528, 32
    %v5534 = vpop.permute.xlu0 %5533
    %v5536 = vsub.f32 %v5518, %v5534
    %v5537 = vmul.f32 %v5536, 1.442695
    %v5538 = vpow.pop %v5537
    %5539 = vrot.lane.b32.xlu0 %v5528, 64
    %v5540 = vpop.permute.xlu0 %5539
    %v5542 = vsub.f32 %v5518, %v5540
    %v5543 = vmul.f32 %v5542, 1.442695
    %v5544 = vpow.pop %v5543
    %5546 = vrot.lane.b32.xlu0 %v5538, 96
    %v5547 = vpop.permute.xlu0 %5546
    %v5549 = vadd.f32 %v5531, %v5547
    %5551 = vrot.lane.b32.xlu0 %v5544, 64
    %v5552 = vpop.permute.xlu0 %5551
    %v5554 = vadd.f32 %v5549, %v5552
    %v5555 = vrcp.pop %v5554
    %5557 = vrot.lane.b32.xlu0 %v5519, 32
    %v5558 = vpop.permute.xlu0 %5557
    %v5560 = vmul.f32 %v5531, %v5558
    %v5561 = vmul.f32 %v5538, %v5414
    %5563 = vrot.lane.b32.xlu0 %v5561, 96
    %v5564 = vpop.permute.xlu0 %5563
    %v5566 = vadd.f32 %v5560, %v5564
    %v5567 = vmul.f32 %v5544, %v5419
    %5569 = vrot.lane.b32.xlu0 %v5567, 64
    %v5570 = vpop.permute.xlu0 %5569
    %v5572 = vadd.f32 %v5566, %v5570
    %v5573 = vmul.f32 %v5572, %v5555
    %v5574 = vmul.f32 %v2858, %v2781
    %v5575 = vsel %vm131, %v5574, 0.0
    %5576 = vadd.xlane.f32.xlu0 %v5575
    %v5577 = vpop.xlane.xlu0 %5576
    %v5578 = vadd.f32 %v5577, %v1428
    %v5579 = vxor.u32 %v5578, 2147483648
    %v5580 = vmul.f32 %v5579, 1.442695
    %v5581 = vpow.pop %v5580
    %v5582 = vadd.f32 %v5581, 1.0
    %v5583 = vrcp.pop %v5582
    %v5584 = vmul.f32 1.0, %v5583
    %v5585 = vmul.f32 %v4212, %v2781
    %v5586 = vsel %vm131, %v5585, 0.0
    %5587 = vadd.xlane.f32.xlu0 %v5586
    %v5588 = vpop.xlane.xlu0 %5587
    %v5589 = vadd.f32 %v5588, %v1428
    %v5590 = vxor.u32 %v5589, 2147483648
    %v5591 = vmul.f32 %v5590, 1.442695
    %v5592 = vpow.pop %v5591
    %v5593 = vadd.f32 %v5592, 1.0
    %v5594 = vrcp.pop %v5593
    %v5595 = vmul.f32 1.0, %v5594
    %v5596 = vmul.f32 %v5573, %v2781
    %v5597 = vsel %vm131, %v5596, 0.0
    %5598 = vadd.xlane.f32.xlu0 %v5597
    %v5599 = vpop.xlane.xlu0 %5598
    %v5600 = vadd.f32 %v5599, %v1428
    %v5601 = vxor.u32 %v5600, 2147483648
    %v5602 = vmul.f32 %v5601, 1.442695
    %v5603 = vpow.pop %v5602
    %v5604 = vadd.f32 %v5603, 1.0
    %v5605 = vrcp.pop %v5604
    %v5606 = vmul.f32 1.0, %v5605
    %v5607 = vmax.f32 %v5584, %v5595
    %v5608 = vmax.f32 %v5607, %v5606
    %v5609 = vsub.f32 %v5584, %v5608
    %v5610 = vmul.f32 %v5609, 1.442695
    %v5611 = vpow.pop %v5610
    %v5612 = vsub.f32 %v5595, %v5608
    %v5613 = vmul.f32 %v5612, 1.442695
    %v5614 = vpow.pop %v5613
    %v5615 = vsub.f32 %v5606, %v5608
    %v5616 = vmul.f32 %v5615, 1.442695
    %v5617 = vpow.pop %v5616
    %v5618 = vadd.f32 %v5611, %v5614
    %v5619 = vadd.f32 %v5618, %v5617
    %5621 = vset.pattern.permute.xlu0 96
    %5622 = vperm.xlu0 %5621, %v5611
    %v5623 = vpop.permute.xlu0 %5622
    %v5625 = vmul.f32 %v5623, %v2858
    %5627 = vset.pattern.permute.xlu0 96
    %5628 = vperm.xlu0 %5627, %v5614
    %v5629 = vpop.permute.xlu0 %5628
    %v5631 = vmul.f32 %v5629, %v4212
    %v5632 = vadd.f32 %v5625, %v5631
    %5634 = vset.pattern.permute.xlu0 96
    %5635 = vperm.xlu0 %5634, %v5617
    %v5636 = vpop.permute.xlu0 %5635
    %v5638 = vmul.f32 %v5636, %v5573
    %v5639 = vadd.f32 %v5632, %v5638
    %v5640 = vrcp.pop %v5619
    %5642 = vset.pattern.permute.xlu0 96
    %5643 = vperm.xlu0 %5642, %v5640
    %v5644 = vpop.permute.xlu0 %5643
    %v5646 = vmul.f32 %v5639, %v5644
    %s5647 = scalar_lea.vmem [#allocation9], 8
    %5648 = vst.msk [vmem:[%s5647] sm:$0xff] %vm131, %v5646
    // Predicated region
    $region18: #{_fused_forward.1} parent=1 // pred_check
      _
    $region19: #{_fused_forward.1} parent=1 // pred_check_branch
      %5650 = sbr.rel (0) target = $region21
    $region20: #{_fused_forward.1} parent=1 // pred_region
      %s5652 = ssub.s32 256, 256
      %5653 = vsyncadd [#allocation6], %s5652
      %s5654 = sshll.u32 [#allocation9], 4
      %s5655 = int_to_ptr.vmem [resolvable:$true] %s5654
      %5660 = dma.vmem_to_hbm [thread:$0]  %s5655, 256, %s2, [#allocation6], 128, 128, 8
    $region21: #{_fused_forward.1} parent=1 // pred_fallthru
      _
    // Predicated region
    $region22: #{_fused_forward.1} parent=1 // pred_check
      _
    $region23: #{_fused_forward.1} parent=1 // pred_check_branch
      %5662 = sbr.rel (0) target = $region25
    $region24: #{_fused_forward.1} parent=1 // pred_region
      %5663 = dma.done [#allocation6], 256
    $region25: #{_fused_forward.1} parent=1 // pred_fallthru
      _
    %5664 = vsyncpa [#allocation5], 1
    %5665 = vsyncpa [#allocation8], 1
    %5666 = vsyncpa [#allocation6], 1

</llo_original>
